<compile_context>
chip_gen: v6e
topology: v6e:2x2x1
jax: 0.10.0
libtpu: 0.0.40
codegen_flags: <defaults>
</compile_context>

<pallas_src>
import jax
import jax.numpy as jnp
import numpy as np
from jax import lax
from jax.experimental import pallas as pl
from jax.experimental.pallas import tpu as pltpu


def _basic_block_kernel(x_ref, w1_ref, w2_ref, s1_ref, b1_ref, s2_ref, b2_ref,
                        wfc1_ref, wfc2_ref, tsa_ref,
                        out_ref, pat_ref, pad2_ref, sapad_ref, sain_ref):
    # One image per grid step (grid=(N,), "parallel" -> v7x dual-TC sharding).
    _, Hp2, Wp2, Cin = x_ref.shape
    H, W = Hp2 - 2, Wp2 - 2
    C = out_ref.shape[-1]
    HW = H * W
    Wp6 = W + 6

    # ---- conv1: im2col -> ONE (HW, 9*Cin) x (9*Cin, C) MXU matmul -----------
    for ky in range(3):
        for kx in range(3):
            t = ky * 3 + kx
            pat_ref[:, t * Cin:(t + 1) * Cin] = (
                x_ref[0, ky:ky + H, kx:kx + W, :].reshape(HW, Cin))
    acc1 = jnp.dot(pat_ref[...].astype(jnp.bfloat16), w1_ref[...],
                   preferred_element_type=jnp.float32)            # (HW, C) f32
    # bn1 (inference-mode folded scale/bias, f32 VPU) + relu
    # TODO(synk): training-mode BatchNorm (batch statistics) not implemented.
    out1 = jnp.maximum(acc1 * s1_ref[...] + b1_ref[...], 0.0)

    # ---- conv2: zero-pad out1 into scratch, im2col, one matmul --------------
    # Full-buffer zero kept (vs halo-only): it is ~50 stores/step and stays
    # correct under any megacore grid partitioning.
    pad2_ref[...] = jnp.zeros_like(pad2_ref)
    pad2_ref[1:H + 1, 1:W + 1, :] = out1.reshape(H, W, C)
    for ky in range(3):
        for kx in range(3):
            t = ky * 3 + kx
            pat_ref[:, t * C:(t + 1) * C] = (
                pad2_ref[ky:ky + H, kx:kx + W, :].reshape(HW, C))
    acc2 = jnp.dot(pat_ref[...].astype(jnp.bfloat16), w2_ref[...],
                   preferred_element_type=jnp.float32)
    out2 = acc2 * s2_ref[...] + b2_ref[...]                       # bn2, no relu

    # ---- channel attention: avg & max pool stacked -> ONE batched MLP pass --
    avg_p = jnp.mean(out2, axis=0, keepdims=True)                 # (1, C)
    max_p = jnp.max(out2, axis=0, keepdims=True)                  # (1, C)
    row = lax.broadcasted_iota(jnp.int32, (2, C), 0)
    pooled = jnp.where(row == 0, avg_p, max_p)                    # (2, C)
    hid = jnp.maximum(jnp.dot(pooled, wfc1_ref[...],
                              preferred_element_type=jnp.float32), 0.0)
    att = jnp.dot(hid, wfc2_ref[...], preferred_element_type=jnp.float32)
    ca = jax.nn.sigmoid(jnp.sum(att, axis=0, keepdims=True))      # (1, C)
    out_ca = out2 * ca                                            # (HW, C)
    oc3 = out_ca.reshape(H, W, C)

    # ---- spatial attention: 7x7 conv as ONE (H, 14*(W+6)) x (..., W) matmul -
    # tsa is a wrapper-built banded weight slab folding the 7x7x2 filter.
    sa_avg = jnp.mean(oc3, axis=-1)                               # (H, W)
    sa_max = jnp.max(oc3, axis=-1)                                # (H, W)
    sapad_ref[...] = jnp.zeros_like(sapad_ref)
    sapad_ref[0, 3:3 + H, 3:3 + W] = sa_avg
    sapad_ref[1, 3:3 + H, 3:3 + W] = sa_max
    for c in range(2):
        for ky in range(7):
            p = c * 7 + ky
            sain_ref[:, p * Wp6:(p + 1) * Wp6] = sapad_ref[c, ky:ky + H, :]
    sa = jax.nn.sigmoid(jnp.dot(sain_ref[...], tsa_ref[...],
                                preferred_element_type=jnp.float32))  # (H, W)
    out_sa = oc3 * sa[:, :, None]

    # ---- identity shortcut (stride=1, in_planes==planes) + final relu -------
    # TODO(synk): projection shortcut (stride!=1 or channel change) not
    # implemented; the chosen config makes the shortcut an identity.
    x_center = x_ref[0, 1:H + 1, 1:W + 1, :]
    out_ref[0, :, :, :] = jnp.maximum(out_sa + x_center, 0.0)


def _sa_weight_slab(wsa, W):
    """Fold the 7x7x2 spatial-attention filter into a banded (14*(W+6), W)
    matmul weight: row index = (c*7 + ky)*(W+6) + j, col = output w,
    value = wsa[ky, j - w, c] for 0 <= j - w < 7, else 0 (plain-JAX glue)."""
    Wp = W + 6
    j = jnp.arange(Wp)[:, None]
    w = jnp.arange(W)[None, :]
    kx = j - w
    valid = (kx >= 0) & (kx < 7)
    kx_c = jnp.clip(kx, 0, 6)
    w_cyx = jnp.transpose(wsa, (2, 0, 1))                  # (2, 7, 7) [c,ky,kx]
    slab = jnp.where(valid[None, None], w_cyx[:, :, kx_c], 0.0)  # (2,7,Wp,W)
    return slab.reshape(14 * Wp, W).astype(jnp.float32)


def basic_block_forward(x_nhwc, params):
    """x_nhwc: [N, H, W, Cin] float32. Returns [N, H, W, C] float32."""
    N, H, W, Cin = x_nhwc.shape
    C = params["w1"].shape[-1]
    hidden = params["wfc1"].shape[-1]
    assert Cin == C, "identity-shortcut config requires in_planes == planes"

    x_pad = jnp.pad(x_nhwc, ((0, 0), (1, 1), (1, 1), (0, 0)))
    # Fold conv weights for im2col (row order = (ky, kx, cin)); bf16 at the
    # MXU boundary only -- accumulation and all elementwise math stay f32.
    w1 = params["w1"].reshape(9 * Cin, C).astype(jnp.bfloat16)
    w2 = params["w2"].reshape(9 * C, C).astype(jnp.bfloat16)
    tsa = _sa_weight_slab(params["wsa"], W)

    # NOTE: whole-image-resident per grid step; for much larger H*W*C this
    # must be re-tiled over H (with a 1-row halo) to fit v7x's 64 MiB VMEM.
    grid_spec = pltpu.PrefetchScalarGridSpec(
        num_scalar_prefetch=0,
        grid=(N,),
        in_specs=[
            pl.BlockSpec((1, H + 2, W + 2, Cin), lambda n: (n, 0, 0, 0)),
            pl.BlockSpec((9 * Cin, C), lambda n: (0, 0)),      # w1 (bf16)
            pl.BlockSpec((9 * C, C), lambda n: (0, 0)),        # w2 (bf16)
            pl.BlockSpec((1, C), lambda n: (0, 0)),            # s1
            pl.BlockSpec((1, C), lambda n: (0, 0)),            # b1
            pl.BlockSpec((1, C), lambda n: (0, 0)),            # s2
            pl.BlockSpec((1, C), lambda n: (0, 0)),            # b2
            pl.BlockSpec((C, hidden), lambda n: (0, 0)),       # wfc1
            pl.BlockSpec((hidden, C), lambda n: (0, 0)),       # wfc2
            pl.BlockSpec((14 * (W + 6), W), lambda n: (0, 0)),  # SA weight slab
        ],
        out_specs=pl.BlockSpec((1, H, W, C), lambda n: (n, 0, 0, 0)),
        scratch_shapes=[
            pltpu.VMEM((H * W, 9 * C), jnp.float32),        # im2col patches
            pltpu.VMEM((H + 2, W + 2, C), jnp.float32),     # conv2 padded input
            pltpu.VMEM((2, H + 6, W + 6), jnp.float32),     # SA padded avg/max
            pltpu.VMEM((H, 14 * (W + 6)), jnp.float32),     # SA im2col rows
        ],
    )
    return pl.pallas_call(
        _basic_block_kernel,
        out_shape=jax.ShapeDtypeStruct((N, H, W, C), jnp.float32),
        grid_spec=grid_spec,
        compiler_params=pltpu.CompilerParams(
            dimension_semantics=("parallel",)),
    )(x_pad, w1, w2,
      params["s1"], params["b1"], params["s2"], params["b2"],
      params["wfc1"], params["wfc2"], tsa)


def ref_forward(x_nhwc, p):
    """Pure-JAX reference. Conv inputs are cast to bf16 (f32 accumulation) to
    mirror the kernel's MXU precision; all other math is f32."""
    dn = ("NHWC", "HWIO", "NHWC")
    hi = lax.Precision.HIGHEST

    def conv_bf16(v, w):
        return lax.conv_general_dilated(
            v.astype(jnp.bfloat16), w.astype(jnp.bfloat16), (1, 1), "SAME",
            dimension_numbers=dn, preferred_element_type=jnp.float32)

    out = jnp.maximum(conv_bf16(x_nhwc, p["w1"]) * p["s1"] + p["b1"], 0.0)
    out = conv_bf16(out, p["w2"]) * p["s2"] + p["b2"]
    avg_p = jnp.mean(out, axis=(1, 2))
    max_p = jnp.max(out, axis=(1, 2))

    def mlp(q):
        h = jnp.maximum(jnp.dot(q, p["wfc1"], precision=hi), 0.0)
        return jnp.dot(h, p["wfc2"], precision=hi)

    ca = jax.nn.sigmoid(mlp(avg_p) + mlp(max_p))
    out = out * ca[:, None, None, :]
    sa_in = jnp.stack([jnp.mean(out, -1), jnp.max(out, -1)], axis=-1)
    sa = jax.nn.sigmoid(lax.conv_general_dilated(
        sa_in, p["wsa"][..., None], (1, 1), "SAME",
        dimension_numbers=dn, precision=hi))
    out = out * sa
    return jnp.maximum(out + x_nhwc, 0.0)


def make_params(key, cin, planes):
    hidden = planes // 16
    ks = jax.random.split(key, 12)
    eps = 1e-5

    def bn_fold(kg, kb, km, kv, c):
        gamma = 1.0 + 0.1 * jax.random.normal(kg, (c,), jnp.float32)
        beta = 0.1 * jax.random.normal(kb, (c,), jnp.float32)
        mean = 0.1 * jax.random.normal(km, (c,), jnp.float32)
        var = jax.random.uniform(kv, (c,), jnp.float32, 0.5, 1.5)
        scale = gamma / jnp.sqrt(var + eps)
        bias = beta - mean * scale
        return scale.reshape(1, c), bias.reshape(1, c)

    s1, b1 = bn_fold(ks[2], ks[3], ks[4], ks[5], planes)
    s2, b2 = bn_fold(ks[6], ks[7], ks[8], ks[9], planes)
    return {
        "w1": 0.1 * jax.random.normal(ks[0], (3, 3, cin, planes), jnp.float32),
        "w2": 0.1 * jax.random.normal(ks[1], (3, 3, planes, planes), jnp.float32),
        "s1": s1, "b1": b1, "s2": s2, "b2": b2,
        "wfc1": 0.1 * jax.random.normal(ks[10], (planes, hidden), jnp.float32),
        "wfc2": 0.1 * jax.random.normal(ks[11], (hidden, planes), jnp.float32),
        "wsa": 0.1 * jax.random.normal(jax.random.fold_in(key, 99),
                                       (7, 7, 2), jnp.float32),
    }


if __name__ == "__main__":
    # BasicBlock(in_planes=32, planes=32, stride=1): planes >= 16 so the
    # channel-attention bottleneck (planes // 16) is non-empty; identity
    # shortcut config.
    N, Cin, H, W = 2, 32, 16, 16
    planes = 32

    key = jax.random.PRNGKey(0)
    k_in, k_par = jax.random.split(key)
    x_nchw = jax.random.normal(k_in, (N, Cin, H, W), jnp.float32)  # torch layout
    x_nhwc = jnp.transpose(x_nchw, (0, 2, 3, 1))                   # kernel layout
    params = make_params(k_par, Cin, planes)

    out = basic_block_forward(x_nhwc, params)
    out = jax.block_until_ready(out)

    ref = ref_forward(x_nhwc, params)
    np.testing.assert_allclose(np.asarray(out), np.asarray(ref),
                               atol=5e-3, rtol=5e-3)
    print("KERNEL_OK")
</pallas_src>

<mosaic_0001>
module attributes {stable_mosaic.version = 11 : i64} {
  func.func @_basic_block_kernel(%arg0: i32, %arg1: memref<1x18x18x32xf32, #tpu.memory_space<vmem>>, %arg2: memref<288x32xbf16, #tpu.memory_space<vmem>>, %arg3: memref<288x32xbf16, #tpu.memory_space<vmem>>, %arg4: memref<1x32xf32, #tpu.memory_space<vmem>>, %arg5: memref<1x32xf32, #tpu.memory_space<vmem>>, %arg6: memref<1x32xf32, #tpu.memory_space<vmem>>, %arg7: memref<1x32xf32, #tpu.memory_space<vmem>>, %arg8: memref<32x2xf32, #tpu.memory_space<vmem>>, %arg9: memref<2x32xf32, #tpu.memory_space<vmem>>, %arg10: memref<308x16xf32, #tpu.memory_space<vmem>>, %arg11: memref<1x16x16x32xf32, #tpu.memory_space<vmem>>, %arg12: memref<256x288xf32, #tpu.memory_space<vmem>>, %arg13: memref<18x18x32xf32, #tpu.memory_space<vmem>>, %arg14: memref<2x22x22xf32, #tpu.memory_space<vmem>>, %arg15: memref<16x308xf32, #tpu.memory_space<vmem>>) attributes {dimension_semantics = [#tpu.dimension_semantics<parallel>], iteration_bounds = array<i64: 2>, scalar_prefetch = 0 : i64, scratch_operands = 4 : i64, tpu.core_type = #tpu.core_type<tc>, window_params = [{transform_indices = @transform_0, window_bounds = array<i64: 1, 18, 18, 32>}, {pipeline_mode = #tpu.pipeline_mode<synchronous>, transform_indices = @transform_1, window_bounds = array<i64: 288, 32>}, {pipeline_mode = #tpu.pipeline_mode<synchronous>, transform_indices = @transform_2, window_bounds = array<i64: 288, 32>}, {pipeline_mode = #tpu.pipeline_mode<synchronous>, transform_indices = @transform_3, window_bounds = array<i64: 1, 32>}, {pipeline_mode = #tpu.pipeline_mode<synchronous>, transform_indices = @transform_4, window_bounds = array<i64: 1, 32>}, {pipeline_mode = #tpu.pipeline_mode<synchronous>, transform_indices = @transform_5, window_bounds = array<i64: 1, 32>}, {pipeline_mode = #tpu.pipeline_mode<synchronous>, transform_indices = @transform_6, window_bounds = array<i64: 1, 32>}, {pipeline_mode = #tpu.pipeline_mode<synchronous>, transform_indices = @transform_7, window_bounds = array<i64: 32, 2>}, {pipeline_mode = #tpu.pipeline_mode<synchronous>, transform_indices = @transform_8, window_bounds = array<i64: 2, 32>}, {pipeline_mode = #tpu.pipeline_mode<synchronous>, transform_indices = @transform_9, window_bounds = array<i64: 308, 16>}, {transform_indices = @transform_10, window_bounds = array<i64: 1, 16, 16, 32>}]} {
    %c0 = arith.constant 0 : index
    %c0_0 = arith.constant 0 : index
    %c0_1 = arith.constant 0 : index
    %c0_2 = arith.constant 0 : index
    %0 = vector.load %arg1[%c0, %c0_0, %c0_1, %c0_2] : memref<1x18x18x32xf32, #tpu.memory_space<vmem>>, vector<1x16x16x32xf32>
    %1 = vector.shape_cast %0 : vector<1x16x16x32xf32> to vector<16x16x32xf32>
    %2 = vector.shape_cast %1 : vector<16x16x32xf32> to vector<256x32xf32>
    %c0_3 = arith.constant 0 : index
    %c0_4 = arith.constant 0 : index
    %3 = vector.load %arg12[%c0_3, %c0_4] : memref<256x288xf32, #tpu.memory_space<vmem>>, vector<256x32xf32>
    tpu.vector_store %arg12[%c0_3, %c0_4], %2 {strides = array<i32>} : memref<256x288xf32, #tpu.memory_space<vmem>>, vector<256x32xf32>,
    %c0_5 = arith.constant 0 : index
    %c0_6 = arith.constant 0 : index
    %c1 = arith.constant 1 : index
    %c0_7 = arith.constant 0 : index
    %4 = vector.load %arg1[%c0_5, %c0_6, %c1, %c0_7] : memref<1x18x18x32xf32, #tpu.memory_space<vmem>>, vector<1x16x16x32xf32>
    %5 = vector.shape_cast %4 : vector<1x16x16x32xf32> to vector<16x16x32xf32>
    %6 = vector.shape_cast %5 : vector<16x16x32xf32> to vector<256x32xf32>
    %c0_8 = arith.constant 0 : index
    %c32 = arith.constant 32 : index
    %7 = vector.load %arg12[%c0_8, %c32] : memref<256x288xf32, #tpu.memory_space<vmem>>, vector<256x32xf32>
    tpu.vector_store %arg12[%c0_8, %c32], %6 {strides = array<i32>} : memref<256x288xf32, #tpu.memory_space<vmem>>, vector<256x32xf32>,
    %c0_9 = arith.constant 0 : index
    %c0_10 = arith.constant 0 : index
    %c2 = arith.constant 2 : index
    %c0_11 = arith.constant 0 : index
    %8 = vector.load %arg1[%c0_9, %c0_10, %c2, %c0_11] : memref<1x18x18x32xf32, #tpu.memory_space<vmem>>, vector<1x16x16x32xf32>
    %9 = vector.shape_cast %8 : vector<1x16x16x32xf32> to vector<16x16x32xf32>
    %10 = vector.shape_cast %9 : vector<16x16x32xf32> to vector<256x32xf32>
    %c0_12 = arith.constant 0 : index
    %c64 = arith.constant 64 : index
    %11 = vector.load %arg12[%c0_12, %c64] : memref<256x288xf32, #tpu.memory_space<vmem>>, vector<256x32xf32>
    tpu.vector_store %arg12[%c0_12, %c64], %10 {strides = array<i32>} : memref<256x288xf32, #tpu.memory_space<vmem>>, vector<256x32xf32>,
    %c0_13 = arith.constant 0 : index
    %c1_14 = arith.constant 1 : index
    %c0_15 = arith.constant 0 : index
    %c0_16 = arith.constant 0 : index
    %12 = vector.load %arg1[%c0_13, %c1_14, %c0_15, %c0_16] : memref<1x18x18x32xf32, #tpu.memory_space<vmem>>, vector<1x16x16x32xf32>
    %13 = vector.shape_cast %12 : vector<1x16x16x32xf32> to vector<16x16x32xf32>
    %14 = vector.shape_cast %13 : vector<16x16x32xf32> to vector<256x32xf32>
    %c0_17 = arith.constant 0 : index
    %c96 = arith.constant 96 : index
    %15 = vector.load %arg12[%c0_17, %c96] : memref<256x288xf32, #tpu.memory_space<vmem>>, vector<256x32xf32>
    tpu.vector_store %arg12[%c0_17, %c96], %14 {strides = array<i32>} : memref<256x288xf32, #tpu.memory_space<vmem>>, vector<256x32xf32>,
    %c0_18 = arith.constant 0 : index
    %c1_19 = arith.constant 1 : index
    %c1_20 = arith.constant 1 : index
    %c0_21 = arith.constant 0 : index
    %16 = vector.load %arg1[%c0_18, %c1_19, %c1_20, %c0_21] : memref<1x18x18x32xf32, #tpu.memory_space<vmem>>, vector<1x16x16x32xf32>
    %17 = vector.shape_cast %16 : vector<1x16x16x32xf32> to vector<16x16x32xf32>
    %18 = vector.shape_cast %17 : vector<16x16x32xf32> to vector<256x32xf32>
    %c0_22 = arith.constant 0 : index
    %c128 = arith.constant 128 : index
    %19 = vector.load %arg12[%c0_22, %c128] : memref<256x288xf32, #tpu.memory_space<vmem>>, vector<256x32xf32>
    tpu.vector_store %arg12[%c0_22, %c128], %18 {strides = array<i32>} : memref<256x288xf32, #tpu.memory_space<vmem>>, vector<256x32xf32>,
    %c0_23 = arith.constant 0 : index
    %c1_24 = arith.constant 1 : index
    %c2_25 = arith.constant 2 : index
    %c0_26 = arith.constant 0 : index
    %20 = vector.load %arg1[%c0_23, %c1_24, %c2_25, %c0_26] : memref<1x18x18x32xf32, #tpu.memory_space<vmem>>, vector<1x16x16x32xf32>
    %21 = vector.shape_cast %20 : vector<1x16x16x32xf32> to vector<16x16x32xf32>
    %22 = vector.shape_cast %21 : vector<16x16x32xf32> to vector<256x32xf32>
    %c0_27 = arith.constant 0 : index
    %c160 = arith.constant 160 : index
    %23 = vector.load %arg12[%c0_27, %c160] : memref<256x288xf32, #tpu.memory_space<vmem>>, vector<256x32xf32>
    tpu.vector_store %arg12[%c0_27, %c160], %22 {strides = array<i32>} : memref<256x288xf32, #tpu.memory_space<vmem>>, vector<256x32xf32>,
    %c0_28 = arith.constant 0 : index
    %c2_29 = arith.constant 2 : index
    %c0_30 = arith.constant 0 : index
    %c0_31 = arith.constant 0 : index
    %24 = vector.load %arg1[%c0_28, %c2_29, %c0_30, %c0_31] : memref<1x18x18x32xf32, #tpu.memory_space<vmem>>, vector<1x16x16x32xf32>
    %25 = vector.shape_cast %24 : vector<1x16x16x32xf32> to vector<16x16x32xf32>
    %26 = vector.shape_cast %25 : vector<16x16x32xf32> to vector<256x32xf32>
    %c0_32 = arith.constant 0 : index
    %c192 = arith.constant 192 : index
    %27 = vector.load %arg12[%c0_32, %c192] : memref<256x288xf32, #tpu.memory_space<vmem>>, vector<256x32xf32>
    tpu.vector_store %arg12[%c0_32, %c192], %26 {strides = array<i32>} : memref<256x288xf32, #tpu.memory_space<vmem>>, vector<256x32xf32>,
    %c0_33 = arith.constant 0 : index
    %c2_34 = arith.constant 2 : index
    %c1_35 = arith.constant 1 : index
    %c0_36 = arith.constant 0 : index
    %28 = vector.load %arg1[%c0_33, %c2_34, %c1_35, %c0_36] : memref<1x18x18x32xf32, #tpu.memory_space<vmem>>, vector<1x16x16x32xf32>
    %29 = vector.shape_cast %28 : vector<1x16x16x32xf32> to vector<16x16x32xf32>
    %30 = vector.shape_cast %29 : vector<16x16x32xf32> to vector<256x32xf32>
    %c0_37 = arith.constant 0 : index
    %c224 = arith.constant 224 : index
    %31 = vector.load %arg12[%c0_37, %c224] : memref<256x288xf32, #tpu.memory_space<vmem>>, vector<256x32xf32>
    tpu.vector_store %arg12[%c0_37, %c224], %30 {strides = array<i32>} : memref<256x288xf32, #tpu.memory_space<vmem>>, vector<256x32xf32>,
    %c0_38 = arith.constant 0 : index
    %c2_39 = arith.constant 2 : index
    %c2_40 = arith.constant 2 : index
    %c0_41 = arith.constant 0 : index
    %32 = vector.load %arg1[%c0_38, %c2_39, %c2_40, %c0_41] : memref<1x18x18x32xf32, #tpu.memory_space<vmem>>, vector<1x16x16x32xf32>
    %33 = vector.shape_cast %32 : vector<1x16x16x32xf32> to vector<16x16x32xf32>
    %34 = vector.shape_cast %33 : vector<16x16x32xf32> to vector<256x32xf32>
    %c0_42 = arith.constant 0 : index
    %c256 = arith.constant 256 : index
    %35 = vector.load %arg12[%c0_42, %c256] : memref<256x288xf32, #tpu.memory_space<vmem>>, vector<256x32xf32>
    tpu.vector_store %arg12[%c0_42, %c256], %34 {strides = array<i32>} : memref<256x288xf32, #tpu.memory_space<vmem>>, vector<256x32xf32>,
    %c0_43 = arith.constant 0 : index
    %c0_44 = arith.constant 0 : index
    %36 = vector.load %arg12[%c0_43, %c0_44] : memref<256x288xf32, #tpu.memory_space<vmem>>, vector<256x288xf32>
    %37 = arith.truncf %36 : vector<256x288xf32> to vector<256x288xbf16>
    %c0_45 = arith.constant 0 : index
    %c0_46 = arith.constant 0 : index
    %38 = vector.load %arg2[%c0_45, %c0_46] : memref<288x32xbf16, #tpu.memory_space<vmem>>, vector<288x32xbf16>
    %cst = arith.constant dense<0.000000e+00> : vector<256x32xf32>
    %39 = tpu.matmul %37, %38, %cst {dimension_numbers = #tpu.dot_dimension_numbers<[1], [0], [0], [1], [0, 0, 1, 1], [], []>} : vector<256x288xbf16>, vector<288x32xbf16>, vector<256x32xf32> -> vector<256x32xf32>
    %c0_47 = arith.constant 0 : index
    %c0_48 = arith.constant 0 : index
    %40 = vector.load %arg4[%c0_47, %c0_48] : memref<1x32xf32, #tpu.memory_space<vmem>>, vector<1x32xf32>
    %41 = vector.broadcast %40 : vector<1x32xf32> to vector<256x32xf32>
    %42 = arith.mulf %39, %41 : vector<256x32xf32>
    %c0_49 = arith.constant 0 : index
    %c0_50 = arith.constant 0 : index
    %43 = vector.load %arg5[%c0_49, %c0_50] : memref<1x32xf32, #tpu.memory_space<vmem>>, vector<1x32xf32>
    %44 = vector.broadcast %43 : vector<1x32xf32> to vector<256x32xf32>
    %45 = arith.addf %42, %44 : vector<256x32xf32>
    %cst_51 = arith.constant 0.000000e+00 : f32
    %46 = vector.broadcast %cst_51 : f32 to vector<256x32xf32>
    %47 = arith.maximumf %45, %46 : vector<256x32xf32>
    %cst_52 = arith.constant 0.000000e+00 : f32
    %48 = vector.broadcast %cst_52 : f32 to vector<18x18x32xf32>
    %c0_53 = arith.constant 0 : index
    %c0_54 = arith.constant 0 : index
    %c0_55 = arith.constant 0 : index
    %49 = vector.load %arg13[%c0_53, %c0_54, %c0_55] : memref<18x18x32xf32, #tpu.memory_space<vmem>>, vector<18x18x32xf32>
    tpu.vector_store %arg13[%c0_53, %c0_54, %c0_55], %48 {strides = array<i32>} : memref<18x18x32xf32, #tpu.memory_space<vmem>>, vector<18x18x32xf32>,
    %50 = vector.shape_cast %47 : vector<256x32xf32> to vector<16x16x32xf32>
    %c1_56 = arith.constant 1 : index
    %c1_57 = arith.constant 1 : index
    %c0_58 = arith.constant 0 : index
    %51 = vector.load %arg13[%c1_56, %c1_57, %c0_58] : memref<18x18x32xf32, #tpu.memory_space<vmem>>, vector<16x16x32xf32>
    tpu.vector_store %arg13[%c1_56, %c1_57, %c0_58], %50 {strides = array<i32>} : memref<18x18x32xf32, #tpu.memory_space<vmem>>, vector<16x16x32xf32>,
    %c0_59 = arith.constant 0 : index
    %c0_60 = arith.constant 0 : index
    %c0_61 = arith.constant 0 : index
    %52 = vector.load %arg13[%c0_59, %c0_60, %c0_61] : memref<18x18x32xf32, #tpu.memory_space<vmem>>, vector<16x16x32xf32>
    %53 = vector.shape_cast %52 : vector<16x16x32xf32> to vector<256x32xf32>
    %c0_62 = arith.constant 0 : index
    %c0_63 = arith.constant 0 : index
    %54 = vector.load %arg12[%c0_62, %c0_63] : memref<256x288xf32, #tpu.memory_space<vmem>>, vector<256x32xf32>
    tpu.vector_store %arg12[%c0_62, %c0_63], %53 {strides = array<i32>} : memref<256x288xf32, #tpu.memory_space<vmem>>, vector<256x32xf32>,
    %c0_64 = arith.constant 0 : index
    %c1_65 = arith.constant 1 : index
    %c0_66 = arith.constant 0 : index
    %55 = vector.load %arg13[%c0_64, %c1_65, %c0_66] : memref<18x18x32xf32, #tpu.memory_space<vmem>>, vector<16x16x32xf32>
    %56 = vector.shape_cast %55 : vector<16x16x32xf32> to vector<256x32xf32>
    %c0_67 = arith.constant 0 : index
    %c32_68 = arith.constant 32 : index
    %57 = vector.load %arg12[%c0_67, %c32_68] : memref<256x288xf32, #tpu.memory_space<vmem>>, vector<256x32xf32>
    tpu.vector_store %arg12[%c0_67, %c32_68], %56 {strides = array<i32>} : memref<256x288xf32, #tpu.memory_space<vmem>>, vector<256x32xf32>,
    %c0_69 = arith.constant 0 : index
    %c2_70 = arith.constant 2 : index
    %c0_71 = arith.constant 0 : index
    %58 = vector.load %arg13[%c0_69, %c2_70, %c0_71] : memref<18x18x32xf32, #tpu.memory_space<vmem>>, vector<16x16x32xf32>
    %59 = vector.shape_cast %58 : vector<16x16x32xf32> to vector<256x32xf32>
    %c0_72 = arith.constant 0 : index
    %c64_73 = arith.constant 64 : index
    %60 = vector.load %arg12[%c0_72, %c64_73] : memref<256x288xf32, #tpu.memory_space<vmem>>, vector<256x32xf32>
    tpu.vector_store %arg12[%c0_72, %c64_73], %59 {strides = array<i32>} : memref<256x288xf32, #tpu.memory_space<vmem>>, vector<256x32xf32>,
    %c1_74 = arith.constant 1 : index
    %c0_75 = arith.constant 0 : index
    %c0_76 = arith.constant 0 : index
    %61 = vector.load %arg13[%c1_74, %c0_75, %c0_76] : memref<18x18x32xf32, #tpu.memory_space<vmem>>, vector<16x16x32xf32>
    %62 = vector.shape_cast %61 : vector<16x16x32xf32> to vector<256x32xf32>
    %c0_77 = arith.constant 0 : index
    %c96_78 = arith.constant 96 : index
    %63 = vector.load %arg12[%c0_77, %c96_78] : memref<256x288xf32, #tpu.memory_space<vmem>>, vector<256x32xf32>
    tpu.vector_store %arg12[%c0_77, %c96_78], %62 {strides = array<i32>} : memref<256x288xf32, #tpu.memory_space<vmem>>, vector<256x32xf32>,
    %c1_79 = arith.constant 1 : index
    %c1_80 = arith.constant 1 : index
    %c0_81 = arith.constant 0 : index
    %64 = vector.load %arg13[%c1_79, %c1_80, %c0_81] : memref<18x18x32xf32, #tpu.memory_space<vmem>>, vector<16x16x32xf32>
    %65 = vector.shape_cast %64 : vector<16x16x32xf32> to vector<256x32xf32>
    %c0_82 = arith.constant 0 : index
    %c128_83 = arith.constant 128 : index
    %66 = vector.load %arg12[%c0_82, %c128_83] : memref<256x288xf32, #tpu.memory_space<vmem>>, vector<256x32xf32>
    tpu.vector_store %arg12[%c0_82, %c128_83], %65 {strides = array<i32>} : memref<256x288xf32, #tpu.memory_space<vmem>>, vector<256x32xf32>,
    %c1_84 = arith.constant 1 : index
    %c2_85 = arith.constant 2 : index
    %c0_86 = arith.constant 0 : index
    %67 = vector.load %arg13[%c1_84, %c2_85, %c0_86] : memref<18x18x32xf32, #tpu.memory_space<vmem>>, vector<16x16x32xf32>
    %68 = vector.shape_cast %67 : vector<16x16x32xf32> to vector<256x32xf32>
    %c0_87 = arith.constant 0 : index
    %c160_88 = arith.constant 160 : index
    %69 = vector.load %arg12[%c0_87, %c160_88] : memref<256x288xf32, #tpu.memory_space<vmem>>, vector<256x32xf32>
    tpu.vector_store %arg12[%c0_87, %c160_88], %68 {strides = array<i32>} : memref<256x288xf32, #tpu.memory_space<vmem>>, vector<256x32xf32>,
    %c2_89 = arith.constant 2 : index
    %c0_90 = arith.constant 0 : index
    %c0_91 = arith.constant 0 : index
    %70 = vector.load %arg13[%c2_89, %c0_90, %c0_91] : memref<18x18x32xf32, #tpu.memory_space<vmem>>, vector<16x16x32xf32>
    %71 = vector.shape_cast %70 : vector<16x16x32xf32> to vector<256x32xf32>
    %c0_92 = arith.constant 0 : index
    %c192_93 = arith.constant 192 : index
    %72 = vector.load %arg12[%c0_92, %c192_93] : memref<256x288xf32, #tpu.memory_space<vmem>>, vector<256x32xf32>
    tpu.vector_store %arg12[%c0_92, %c192_93], %71 {strides = array<i32>} : memref<256x288xf32, #tpu.memory_space<vmem>>, vector<256x32xf32>,
    %c2_94 = arith.constant 2 : index
    %c1_95 = arith.constant 1 : index
    %c0_96 = arith.constant 0 : index
    %73 = vector.load %arg13[%c2_94, %c1_95, %c0_96] : memref<18x18x32xf32, #tpu.memory_space<vmem>>, vector<16x16x32xf32>
    %74 = vector.shape_cast %73 : vector<16x16x32xf32> to vector<256x32xf32>
    %c0_97 = arith.constant 0 : index
    %c224_98 = arith.constant 224 : index
    %75 = vector.load %arg12[%c0_97, %c224_98] : memref<256x288xf32, #tpu.memory_space<vmem>>, vector<256x32xf32>
    tpu.vector_store %arg12[%c0_97, %c224_98], %74 {strides = array<i32>} : memref<256x288xf32, #tpu.memory_space<vmem>>, vector<256x32xf32>,
    %c2_99 = arith.constant 2 : index
    %c2_100 = arith.constant 2 : index
    %c0_101 = arith.constant 0 : index
    %76 = vector.load %arg13[%c2_99, %c2_100, %c0_101] : memref<18x18x32xf32, #tpu.memory_space<vmem>>, vector<16x16x32xf32>
    %77 = vector.shape_cast %76 : vector<16x16x32xf32> to vector<256x32xf32>
    %c0_102 = arith.constant 0 : index
    %c256_103 = arith.constant 256 : index
    %78 = vector.load %arg12[%c0_102, %c256_103] : memref<256x288xf32, #tpu.memory_space<vmem>>, vector<256x32xf32>
    tpu.vector_store %arg12[%c0_102, %c256_103], %77 {strides = array<i32>} : memref<256x288xf32, #tpu.memory_space<vmem>>, vector<256x32xf32>,
    %c0_104 = arith.constant 0 : index
    %c0_105 = arith.constant 0 : index
    %79 = vector.load %arg12[%c0_104, %c0_105] : memref<256x288xf32, #tpu.memory_space<vmem>>, vector<256x288xf32>
    %80 = arith.truncf %79 : vector<256x288xf32> to vector<256x288xbf16>
    %c0_106 = arith.constant 0 : index
    %c0_107 = arith.constant 0 : index
    %81 = vector.load %arg3[%c0_106, %c0_107] : memref<288x32xbf16, #tpu.memory_space<vmem>>, vector<288x32xbf16>
    %cst_108 = arith.constant dense<0.000000e+00> : vector<256x32xf32>
    %82 = tpu.matmul %80, %81, %cst_108 {dimension_numbers = #tpu.dot_dimension_numbers<[1], [0], [0], [1], [0, 0, 1, 1], [], []>} : vector<256x288xbf16>, vector<288x32xbf16>, vector<256x32xf32> -> vector<256x32xf32>
    %c0_109 = arith.constant 0 : index
    %c0_110 = arith.constant 0 : index
    %83 = vector.load %arg6[%c0_109, %c0_110] : memref<1x32xf32, #tpu.memory_space<vmem>>, vector<1x32xf32>
    %84 = vector.broadcast %83 : vector<1x32xf32> to vector<256x32xf32>
    %85 = arith.mulf %82, %84 : vector<256x32xf32>
    %c0_111 = arith.constant 0 : index
    %c0_112 = arith.constant 0 : index
    %86 = vector.load %arg7[%c0_111, %c0_112] : memref<1x32xf32, #tpu.memory_space<vmem>>, vector<1x32xf32>
    %87 = vector.broadcast %86 : vector<1x32xf32> to vector<256x32xf32>
    %88 = arith.addf %85, %87 : vector<256x32xf32>
    %cst_113 = arith.constant dense<0.000000e+00> : vector<32xf32>
    %89 = vector.multi_reduction <add>, %88, %cst_113 [0] : vector<256x32xf32> to vector<32xf32>
    %90 = vector.shape_cast %89 : vector<32xf32> to vector<1x32xf32>
    %cst_114 = arith.constant 2.560000e+02 : f32
    %91 = vector.broadcast %cst_114 : f32 to vector<1x32xf32>
    %92 = arith.divf %90, %91 : vector<1x32xf32>
    %cst_115 = arith.constant dense<0xFF800000> : vector<32xf32>
    %93 = vector.multi_reduction <maximumf>, %88, %cst_115 [0] : vector<256x32xf32> to vector<32xf32>
    %94 = vector.shape_cast %93 : vector<32xf32> to vector<1x32xf32>
    %95 = tpu.iota {dimensions = array<i32: 0>} : vector<2x32xi32>
    %c0_i32 = arith.constant 0 : i32
    %96 = vector.broadcast %c0_i32 : i32 to vector<2x32xi32>
    %97 = arith.cmpi eq, %95, %96 : vector<2x32xi32>
    %98 = vector.shape_cast %92 : vector<1x32xf32> to vector<1x32xf32>
    %99 = vector.broadcast %98 : vector<1x32xf32> to vector<2x32xf32>
    %100 = vector.shape_cast %94 : vector<1x32xf32> to vector<1x32xf32>
    %101 = vector.broadcast %100 : vector<1x32xf32> to vector<2x32xf32>
    %102 = arith.select %97, %99, %101 : vector<2x32xi1>, vector<2x32xf32>
    %c0_116 = arith.constant 0 : index
    %c0_117 = arith.constant 0 : index
    %103 = vector.load %arg8[%c0_116, %c0_117] : memref<32x2xf32, #tpu.memory_space<vmem>>, vector<32x2xf32>
    %cst_118 = arith.constant dense<0.000000e+00> : vector<2x2xf32>
    %104 = tpu.matmul %102, %103, %cst_118 {dimension_numbers = #tpu.dot_dimension_numbers<[1], [0], [0], [1], [0, 0, 1, 1], [], []>} : vector<2x32xf32>, vector<32x2xf32>, vector<2x2xf32> -> vector<2x2xf32>
    %cst_119 = arith.constant 0.000000e+00 : f32
    %105 = vector.broadcast %cst_119 : f32 to vector<2x2xf32>
    %106 = arith.maximumf %104, %105 : vector<2x2xf32>
    %c0_120 = arith.constant 0 : index
    %c0_121 = arith.constant 0 : index
    %107 = vector.load %arg9[%c0_120, %c0_121] : memref<2x32xf32, #tpu.memory_space<vmem>>, vector<2x32xf32>
    %cst_122 = arith.constant dense<0.000000e+00> : vector<2x32xf32>
    %108 = tpu.matmul %106, %107, %cst_122 {dimension_numbers = #tpu.dot_dimension_numbers<[1], [0], [0], [1], [0, 0, 1, 1], [], []>} : vector<2x2xf32>, vector<2x32xf32>, vector<2x32xf32> -> vector<2x32xf32>
    %cst_123 = arith.constant dense<0.000000e+00> : vector<32xf32>
    %109 = vector.multi_reduction <add>, %108, %cst_123 [0] : vector<2x32xf32> to vector<32xf32>
    %110 = vector.shape_cast %109 : vector<32xf32> to vector<1x32xf32>
    %111 = arith.negf %110 : vector<1x32xf32>
    %112 = math.exp %111 : vector<1x32xf32>
    %cst_124 = arith.constant 1.000000e+00 : f32
    %113 = vector.broadcast %cst_124 : f32 to vector<1x32xf32>
    %114 = arith.addf %113, %112 : vector<1x32xf32>
    %115 = arith.divf %113, %114 : vector<1x32xf32>
    %116 = vector.broadcast %115 : vector<1x32xf32> to vector<256x32xf32>
    %117 = arith.mulf %88, %116 : vector<256x32xf32>
    %118 = vector.shape_cast %117 : vector<256x32xf32> to vector<16x16x32xf32>
    %cst_125 = arith.constant dense<0.000000e+00> : vector<16x16xf32>
    %119 = vector.multi_reduction <add>, %118, %cst_125 [2] : vector<16x16x32xf32> to vector<16x16xf32>
    %cst_126 = arith.constant 3.200000e+01 : f32
    %120 = vector.broadcast %cst_126 : f32 to vector<16x16xf32>
    %121 = arith.divf %119, %120 : vector<16x16xf32>
    %cst_127 = arith.constant dense<0xFF800000> : vector<16x16xf32>
    %122 = vector.multi_reduction <maximumf>, %118, %cst_127 [2] : vector<16x16x32xf32> to vector<16x16xf32>
    %cst_128 = arith.constant 0.000000e+00 : f32
    %123 = vector.broadcast %cst_128 : f32 to vector<2x22x22xf32>
    %c0_129 = arith.constant 0 : index
    %c0_130 = arith.constant 0 : index
    %c0_131 = arith.constant 0 : index
    %124 = vector.load %arg14[%c0_129, %c0_130, %c0_131] : memref<2x22x22xf32, #tpu.memory_space<vmem>>, vector<2x22x22xf32>
    tpu.vector_store %arg14[%c0_129, %c0_130, %c0_131], %123 {strides = array<i32>} : memref<2x22x22xf32, #tpu.memory_space<vmem>>, vector<2x22x22xf32>,
    %c0_132 = arith.constant 0 : index
    %c3 = arith.constant 3 : index
    %c3_133 = arith.constant 3 : index
    %125 = vector.load %arg14[%c0_132, %c3, %c3_133] : memref<2x22x22xf32, #tpu.memory_space<vmem>>, vector<1x16x16xf32>
    %126 = vector.shape_cast %125 : vector<1x16x16xf32> to vector<16x16xf32>
    %127 = vector.shape_cast %121 : vector<16x16xf32> to vector<1x16x16xf32>
    tpu.vector_store %arg14[%c0_132, %c3, %c3_133], %127 {strides = array<i32>} : memref<2x22x22xf32, #tpu.memory_space<vmem>>, vector<1x16x16xf32>,
    %c1_134 = arith.constant 1 : index
    %c3_135 = arith.constant 3 : index
    %c3_136 = arith.constant 3 : index
    %128 = vector.load %arg14[%c1_134, %c3_135, %c3_136] : memref<2x22x22xf32, #tpu.memory_space<vmem>>, vector<1x16x16xf32>
    %129 = vector.shape_cast %128 : vector<1x16x16xf32> to vector<16x16xf32>
    %130 = vector.shape_cast %122 : vector<16x16xf32> to vector<1x16x16xf32>
    tpu.vector_store %arg14[%c1_134, %c3_135, %c3_136], %130 {strides = array<i32>} : memref<2x22x22xf32, #tpu.memory_space<vmem>>, vector<1x16x16xf32>,
    %c0_137 = arith.constant 0 : index
    %c0_138 = arith.constant 0 : index
    %c0_139 = arith.constant 0 : index
    %131 = vector.load %arg14[%c0_137, %c0_138, %c0_139] : memref<2x22x22xf32, #tpu.memory_space<vmem>>, vector<1x16x22xf32>
    %132 = vector.shape_cast %131 : vector<1x16x22xf32> to vector<16x22xf32>
    %c0_140 = arith.constant 0 : index
    %c0_141 = arith.constant 0 : index
    %133 = vector.load %arg15[%c0_140, %c0_141] : memref<16x308xf32, #tpu.memory_space<vmem>>, vector<16x22xf32>
    tpu.vector_store %arg15[%c0_140, %c0_141], %132 {strides = array<i32>} : memref<16x308xf32, #tpu.memory_space<vmem>>, vector<16x22xf32>,
    %c0_142 = arith.constant 0 : index
    %c1_143 = arith.constant 1 : index
    %c0_144 = arith.constant 0 : index
    %134 = vector.load %arg14[%c0_142, %c1_143, %c0_144] : memref<2x22x22xf32, #tpu.memory_space<vmem>>, vector<1x16x22xf32>
    %135 = vector.shape_cast %134 : vector<1x16x22xf32> to vector<16x22xf32>
    %c0_145 = arith.constant 0 : index
    %c22 = arith.constant 22 : index
    %136 = vector.load %arg15[%c0_145, %c22] : memref<16x308xf32, #tpu.memory_space<vmem>>, vector<16x22xf32>
    tpu.vector_store %arg15[%c0_145, %c22], %135 {strides = array<i32>} : memref<16x308xf32, #tpu.memory_space<vmem>>, vector<16x22xf32>,
    %c0_146 = arith.constant 0 : index
    %c2_147 = arith.constant 2 : index
    %c0_148 = arith.constant 0 : index
    %137 = vector.load %arg14[%c0_146, %c2_147, %c0_148] : memref<2x22x22xf32, #tpu.memory_space<vmem>>, vector<1x16x22xf32>
    %138 = vector.shape_cast %137 : vector<1x16x22xf32> to vector<16x22xf32>
    %c0_149 = arith.constant 0 : index
    %c44 = arith.constant 44 : index
    %139 = vector.load %arg15[%c0_149, %c44] : memref<16x308xf32, #tpu.memory_space<vmem>>, vector<16x22xf32>
    tpu.vector_store %arg15[%c0_149, %c44], %138 {strides = array<i32>} : memref<16x308xf32, #tpu.memory_space<vmem>>, vector<16x22xf32>,
    %c0_150 = arith.constant 0 : index
    %c3_151 = arith.constant 3 : index
    %c0_152 = arith.constant 0 : index
    %140 = vector.load %arg14[%c0_150, %c3_151, %c0_152] : memref<2x22x22xf32, #tpu.memory_space<vmem>>, vector<1x16x22xf32>
    %141 = vector.shape_cast %140 : vector<1x16x22xf32> to vector<16x22xf32>
    %c0_153 = arith.constant 0 : index
    %c66 = arith.constant 66 : index
    %142 = vector.load %arg15[%c0_153, %c66] : memref<16x308xf32, #tpu.memory_space<vmem>>, vector<16x22xf32>
    tpu.vector_store %arg15[%c0_153, %c66], %141 {strides = array<i32>} : memref<16x308xf32, #tpu.memory_space<vmem>>, vector<16x22xf32>,
    %c0_154 = arith.constant 0 : index
    %c4 = arith.constant 4 : index
    %c0_155 = arith.constant 0 : index
    %143 = vector.load %arg14[%c0_154, %c4, %c0_155] : memref<2x22x22xf32, #tpu.memory_space<vmem>>, vector<1x16x22xf32>
    %144 = vector.shape_cast %143 : vector<1x16x22xf32> to vector<16x22xf32>
    %c0_156 = arith.constant 0 : index
    %c88 = arith.constant 88 : index
    %145 = vector.load %arg15[%c0_156, %c88] : memref<16x308xf32, #tpu.memory_space<vmem>>, vector<16x22xf32>
    tpu.vector_store %arg15[%c0_156, %c88], %144 {strides = array<i32>} : memref<16x308xf32, #tpu.memory_space<vmem>>, vector<16x22xf32>,
    %c0_157 = arith.constant 0 : index
    %c5 = arith.constant 5 : index
    %c0_158 = arith.constant 0 : index
    %146 = vector.load %arg14[%c0_157, %c5, %c0_158] : memref<2x22x22xf32, #tpu.memory_space<vmem>>, vector<1x16x22xf32>
    %147 = vector.shape_cast %146 : vector<1x16x22xf32> to vector<16x22xf32>
    %c0_159 = arith.constant 0 : index
    %c110 = arith.constant 110 : index
    %148 = vector.load %arg15[%c0_159, %c110] : memref<16x308xf32, #tpu.memory_space<vmem>>, vector<16x22xf32>
    tpu.vector_store %arg15[%c0_159, %c110], %147 {strides = array<i32>} : memref<16x308xf32, #tpu.memory_space<vmem>>, vector<16x22xf32>,
    %c0_160 = arith.constant 0 : index
    %c6 = arith.constant 6 : index
    %c0_161 = arith.constant 0 : index
    %149 = vector.load %arg14[%c0_160, %c6, %c0_161] : memref<2x22x22xf32, #tpu.memory_space<vmem>>, vector<1x16x22xf32>
    %150 = vector.shape_cast %149 : vector<1x16x22xf32> to vector<16x22xf32>
    %c0_162 = arith.constant 0 : index
    %c132 = arith.constant 132 : index
    %151 = vector.load %arg15[%c0_162, %c132] : memref<16x308xf32, #tpu.memory_space<vmem>>, vector<16x22xf32>
    tpu.vector_store %arg15[%c0_162, %c132], %150 {strides = array<i32>} : memref<16x308xf32, #tpu.memory_space<vmem>>, vector<16x22xf32>,
    %c1_163 = arith.constant 1 : index
    %c0_164 = arith.constant 0 : index
    %c0_165 = arith.constant 0 : index
    %152 = vector.load %arg14[%c1_163, %c0_164, %c0_165] : memref<2x22x22xf32, #tpu.memory_space<vmem>>, vector<1x16x22xf32>
    %153 = vector.shape_cast %152 : vector<1x16x22xf32> to vector<16x22xf32>
    %c0_166 = arith.constant 0 : index
    %c154 = arith.constant 154 : index
    %154 = vector.load %arg15[%c0_166, %c154] : memref<16x308xf32, #tpu.memory_space<vmem>>, vector<16x22xf32>
    tpu.vector_store %arg15[%c0_166, %c154], %153 {strides = array<i32>} : memref<16x308xf32, #tpu.memory_space<vmem>>, vector<16x22xf32>,
    %c1_167 = arith.constant 1 : index
    %c1_168 = arith.constant 1 : index
    %c0_169 = arith.constant 0 : index
    %155 = vector.load %arg14[%c1_167, %c1_168, %c0_169] : memref<2x22x22xf32, #tpu.memory_space<vmem>>, vector<1x16x22xf32>
    %156 = vector.shape_cast %155 : vector<1x16x22xf32> to vector<16x22xf32>
    %c0_170 = arith.constant 0 : index
    %c176 = arith.constant 176 : index
    %157 = vector.load %arg15[%c0_170, %c176] : memref<16x308xf32, #tpu.memory_space<vmem>>, vector<16x22xf32>
    tpu.vector_store %arg15[%c0_170, %c176], %156 {strides = array<i32>} : memref<16x308xf32, #tpu.memory_space<vmem>>, vector<16x22xf32>,
    %c1_171 = arith.constant 1 : index
    %c2_172 = arith.constant 2 : index
    %c0_173 = arith.constant 0 : index
    %158 = vector.load %arg14[%c1_171, %c2_172, %c0_173] : memref<2x22x22xf32, #tpu.memory_space<vmem>>, vector<1x16x22xf32>
    %159 = vector.shape_cast %158 : vector<1x16x22xf32> to vector<16x22xf32>
    %c0_174 = arith.constant 0 : index
    %c198 = arith.constant 198 : index
    %160 = vector.load %arg15[%c0_174, %c198] : memref<16x308xf32, #tpu.memory_space<vmem>>, vector<16x22xf32>
    tpu.vector_store %arg15[%c0_174, %c198], %159 {strides = array<i32>} : memref<16x308xf32, #tpu.memory_space<vmem>>, vector<16x22xf32>,
    %c1_175 = arith.constant 1 : index
    %c3_176 = arith.constant 3 : index
    %c0_177 = arith.constant 0 : index
    %161 = vector.load %arg14[%c1_175, %c3_176, %c0_177] : memref<2x22x22xf32, #tpu.memory_space<vmem>>, vector<1x16x22xf32>
    %162 = vector.shape_cast %161 : vector<1x16x22xf32> to vector<16x22xf32>
    %c0_178 = arith.constant 0 : index
    %c220 = arith.constant 220 : index
    %163 = vector.load %arg15[%c0_178, %c220] : memref<16x308xf32, #tpu.memory_space<vmem>>, vector<16x22xf32>
    tpu.vector_store %arg15[%c0_178, %c220], %162 {strides = array<i32>} : memref<16x308xf32, #tpu.memory_space<vmem>>, vector<16x22xf32>,
    %c1_179 = arith.constant 1 : index
    %c4_180 = arith.constant 4 : index
    %c0_181 = arith.constant 0 : index
    %164 = vector.load %arg14[%c1_179, %c4_180, %c0_181] : memref<2x22x22xf32, #tpu.memory_space<vmem>>, vector<1x16x22xf32>
    %165 = vector.shape_cast %164 : vector<1x16x22xf32> to vector<16x22xf32>
    %c0_182 = arith.constant 0 : index
    %c242 = arith.constant 242 : index
    %166 = vector.load %arg15[%c0_182, %c242] : memref<16x308xf32, #tpu.memory_space<vmem>>, vector<16x22xf32>
    tpu.vector_store %arg15[%c0_182, %c242], %165 {strides = array<i32>} : memref<16x308xf32, #tpu.memory_space<vmem>>, vector<16x22xf32>,
    %c1_183 = arith.constant 1 : index
    %c5_184 = arith.constant 5 : index
    %c0_185 = arith.constant 0 : index
    %167 = vector.load %arg14[%c1_183, %c5_184, %c0_185] : memref<2x22x22xf32, #tpu.memory_space<vmem>>, vector<1x16x22xf32>
    %168 = vector.shape_cast %167 : vector<1x16x22xf32> to vector<16x22xf32>
    %c0_186 = arith.constant 0 : index
    %c264 = arith.constant 264 : index
    %169 = vector.load %arg15[%c0_186, %c264] : memref<16x308xf32, #tpu.memory_space<vmem>>, vector<16x22xf32>
    tpu.vector_store %arg15[%c0_186, %c264], %168 {strides = array<i32>} : memref<16x308xf32, #tpu.memory_space<vmem>>, vector<16x22xf32>,
    %c1_187 = arith.constant 1 : index
    %c6_188 = arith.constant 6 : index
    %c0_189 = arith.constant 0 : index
    %170 = vector.load %arg14[%c1_187, %c6_188, %c0_189] : memref<2x22x22xf32, #tpu.memory_space<vmem>>, vector<1x16x22xf32>
    %171 = vector.shape_cast %170 : vector<1x16x22xf32> to vector<16x22xf32>
    %c0_190 = arith.constant 0 : index
    %c286 = arith.constant 286 : index
    %172 = vector.load %arg15[%c0_190, %c286] : memref<16x308xf32, #tpu.memory_space<vmem>>, vector<16x22xf32>
    tpu.vector_store %arg15[%c0_190, %c286], %171 {strides = array<i32>} : memref<16x308xf32, #tpu.memory_space<vmem>>, vector<16x22xf32>,
    %c0_191 = arith.constant 0 : index
    %c0_192 = arith.constant 0 : index
    %173 = vector.load %arg15[%c0_191, %c0_192] : memref<16x308xf32, #tpu.memory_space<vmem>>, vector<16x308xf32>
    %c0_193 = arith.constant 0 : index
    %c0_194 = arith.constant 0 : index
    %174 = vector.load %arg10[%c0_193, %c0_194] : memref<308x16xf32, #tpu.memory_space<vmem>>, vector<308x16xf32>
    %cst_195 = arith.constant dense<0.000000e+00> : vector<16x16xf32>
    %175 = tpu.matmul %173, %174, %cst_195 {dimension_numbers = #tpu.dot_dimension_numbers<[1], [0], [0], [1], [0, 0, 1, 1], [], []>} : vector<16x308xf32>, vector<308x16xf32>, vector<16x16xf32> -> vector<16x16xf32>
    %176 = arith.negf %175 : vector<16x16xf32>
    %177 = math.exp %176 : vector<16x16xf32>
    %cst_196 = arith.constant 1.000000e+00 : f32
    %178 = vector.broadcast %cst_196 : f32 to vector<16x16xf32>
    %179 = arith.addf %178, %177 : vector<16x16xf32>
    %180 = arith.divf %178, %179 : vector<16x16xf32>
    %181 = vector.shape_cast %180 : vector<16x16xf32> to vector<16x16x1xf32>
    %182 = vector.broadcast %181 : vector<16x16x1xf32> to vector<16x16x32xf32>
    %183 = arith.mulf %118, %182 : vector<16x16x32xf32>
    %c0_197 = arith.constant 0 : index
    %c1_198 = arith.constant 1 : index
    %c1_199 = arith.constant 1 : index
    %c0_200 = arith.constant 0 : index
    %184 = vector.load %arg1[%c0_197, %c1_198, %c1_199, %c0_200] : memref<1x18x18x32xf32, #tpu.memory_space<vmem>>, vector<1x16x16x32xf32>
    %185 = vector.shape_cast %184 : vector<1x16x16x32xf32> to vector<16x16x32xf32>
    %186 = arith.addf %183, %185 : vector<16x16x32xf32>
    %cst_201 = arith.constant 0.000000e+00 : f32
    %187 = vector.broadcast %cst_201 : f32 to vector<16x16x32xf32>
    %188 = arith.maximumf %186, %187 : vector<16x16x32xf32>
    %c0_202 = arith.constant 0 : index
    %c0_203 = arith.constant 0 : index
    %c0_204 = arith.constant 0 : index
    %c0_205 = arith.constant 0 : index
    %189 = vector.load %arg11[%c0_202, %c0_203, %c0_204, %c0_205] : memref<1x16x16x32xf32, #tpu.memory_space<vmem>>, vector<1x16x16x32xf32>
    %190 = vector.shape_cast %189 : vector<1x16x16x32xf32> to vector<16x16x32xf32>
    %191 = vector.shape_cast %188 : vector<16x16x32xf32> to vector<1x16x16x32xf32>
    tpu.vector_store %arg11[%c0_202, %c0_203, %c0_204, %c0_205], %191 {strides = array<i32>} : memref<1x16x16x32xf32, #tpu.memory_space<vmem>>, vector<1x16x16x32xf32>,
    return
  }
  func.func @transform_0(%arg0: i32) -> (i32, i32, i32, i32) {
    %c0_i32 = arith.constant 0 : i32
    %c0_i32_0 = arith.constant 0 : i32
    %c0_i32_1 = arith.constant 0 : i32
    %c0_i32_2 = arith.constant 0 : i32
    return %arg0, %c0_i32, %c0_i32_0, %c0_i32_1 : i32, i32, i32, i32
  }
  func.func @transform_1(%arg0: i32) -> (i32, i32) {
    %c0_i32 = arith.constant 0 : i32
    %c0_i32_0 = arith.constant 0 : i32
    %c0_i32_1 = arith.constant 0 : i32
    return %c0_i32, %c0_i32_0 : i32, i32
  }
  func.func @transform_2(%arg0: i32) -> (i32, i32) {
    %c0_i32 = arith.constant 0 : i32
    %c0_i32_0 = arith.constant 0 : i32
    %c0_i32_1 = arith.constant 0 : i32
    return %c0_i32, %c0_i32_0 : i32, i32
  }
  func.func @transform_3(%arg0: i32) -> (i32, i32) {
    %c0_i32 = arith.constant 0 : i32
    %c0_i32_0 = arith.constant 0 : i32
    %c0_i32_1 = arith.constant 0 : i32
    return %c0_i32, %c0_i32_0 : i32, i32
  }
  func.func @transform_4(%arg0: i32) -> (i32, i32) {
    %c0_i32 = arith.constant 0 : i32
    %c0_i32_0 = arith.constant 0 : i32
    %c0_i32_1 = arith.constant 0 : i32
    return %c0_i32, %c0_i32_0 : i32, i32
  }
  func.func @transform_5(%arg0: i32) -> (i32, i32) {
    %c0_i32 = arith.constant 0 : i32
    %c0_i32_0 = arith.constant 0 : i32
    %c0_i32_1 = arith.constant 0 : i32
    return %c0_i32, %c0_i32_0 : i32, i32
  }
  func.func @transform_6(%arg0: i32) -> (i32, i32) {
    %c0_i32 = arith.constant 0 : i32
    %c0_i32_0 = arith.constant 0 : i32
    %c0_i32_1 = arith.constant 0 : i32
    return %c0_i32, %c0_i32_0 : i32, i32
  }
  func.func @transform_7(%arg0: i32) -> (i32, i32) {
    %c0_i32 = arith.constant 0 : i32
    %c0_i32_0 = arith.constant 0 : i32
    %c0_i32_1 = arith.constant 0 : i32
    return %c0_i32, %c0_i32_0 : i32, i32
  }
  func.func @transform_8(%arg0: i32) -> (i32, i32) {
    %c0_i32 = arith.constant 0 : i32
    %c0_i32_0 = arith.constant 0 : i32
    %c0_i32_1 = arith.constant 0 : i32
    return %c0_i32, %c0_i32_0 : i32, i32
  }
  func.func @transform_9(%arg0: i32) -> (i32, i32) {
    %c0_i32 = arith.constant 0 : i32
    %c0_i32_0 = arith.constant 0 : i32
    %c0_i32_1 = arith.constant 0 : i32
    return %c0_i32, %c0_i32_0 : i32, i32
  }
  func.func @transform_10(%arg0: i32) -> (i32, i32, i32, i32) {
    %c0_i32 = arith.constant 0 : i32
    %c0_i32_0 = arith.constant 0 : i32
    %c0_i32_1 = arith.constant 0 : i32
    %c0_i32_2 = arith.constant 0 : i32
    return %arg0, %c0_i32, %c0_i32_0, %c0_i32_1 : i32, i32, i32, i32
  }
}

</mosaic_0001>

<llo_original>
// kernel: tpu_custom_call.1
$region0: #{tpu_custom_call.1}
  #allocation0 [shape = 'u32[]', space=smem, size = 0x4, offset = 0x4, fixed_abs, tag = 'smem constant byte address 0x4 - core index']
  #allocation1 [shape = 'u32[144,128]{1,0:T(1,128)}', space=vmem, size = 0x12000, scoped, tag = 'internal scratch']
  #allocation2 [shape = 'f32[256,288]{1,0:T(8,128)}', space=vmem, size = 0x60000, scoped, tag = 'scratch operand']
  #allocation3 [shape = 'f32[18,18,32]{2,1,0:T(8,128)}', space=vmem, size = 0x36000, scoped, tag = 'scratch operand']
  #allocation4 [shape = 'f32[2,22,22]{2,1,0:T(8,128)}', space=vmem, size = 0x6000, scoped, tag = 'scratch operand']
  #allocation5 [shape = 'f32[16,308]{1,0:T(8,128)}', space=vmem, size = 0x6000, scoped, tag = 'scratch operand']
  %s0 = inlined_call_operand.vmem [shape: f32[2,18,18,32], index: 0, kind: input, shape index: {}]
  %s1 = inlined_call_operand.vmem [shape: bf16[288,32], index: 1, kind: input, shape index: {}]
  %s2 = inlined_call_operand.vmem [shape: bf16[288,32], index: 2, kind: input, shape index: {}]
  %s3 = inlined_call_operand.vmem [shape: f32[1,32], index: 3, kind: input, shape index: {}]
  %s4 = inlined_call_operand.vmem [shape: f32[1,32], index: 4, kind: input, shape index: {}]
  %s5 = inlined_call_operand.vmem [shape: f32[1,32], index: 5, kind: input, shape index: {}]
  %s6 = inlined_call_operand.vmem [shape: f32[1,32], index: 6, kind: input, shape index: {}]
  %s7 = inlined_call_operand.vmem [shape: f32[32,2], index: 7, kind: input, shape index: {}]
  %s8 = inlined_call_operand.vmem [shape: f32[2,32], index: 8, kind: input, shape index: {}]
  %s9 = inlined_call_operand.vmem [shape: f32[308,16], index: 9, kind: input, shape index: {}]
  %s10 = inlined_call_operand.hbm [shape: f32[2,16,16,32], index: 10, kind: output, shape index: {}]
  %s11 = sld [smem:[#allocation0]]
  $region73: #{tpu_custom_call.1} parent=0
    _
  %s13 = ssub.s32 1, %s11
  %s14 = scalar_select 0, %s13, %s11
  $region1: #{tpu_custom_call.1} parent=0
    #allocation6 [shape = 'u8[262144]{0}', space=vmem, size = 0x40000, scoped, tag = 'output window, operand 0']
    #allocation7 [shape = 's32[2]{0}', space=sflag, size = 0x8, scoped, tag = 'scoped memory for tpu_custom_call.1']
    %15 = vsyncpa [#allocation7], 0
    %s16 = scalar_lea.sflag [#allocation7], 1
    %17 = vsyncpa %s16, 0
    loop: start=0, step=1, limit=4
    $region2: #{tpu_custom_call.1} parent=1 // loop_pre_header
      _
    $region3: #{tpu_custom_call.1} parent=1 // loop_header
      %s19 = sphi 0, %s23
      %p20 = scmp.ge.s32.totalorder %s19, 4
      %s29 = sphi 0, %s31
      %s32 = sphi 0, %s29
      %s33 = sphi 0, %s32
      %s49 = sphi 0, %s33
      %s53 = sphi 0, %s53
      %s55 = sphi 0, %s53
      %s56 = sphi 0, %s55
      %s70 = sphi 0, %s56
      %s74 = sphi 0, %s74
      %s76 = sphi 0, %s74
      %s77 = sphi 0, %s76
      %s91 = sphi 0, %s77
      %s95 = sphi 0, %s95
      %s97 = sphi 0, %s95
      %s98 = sphi 0, %s97
      %s112 = sphi 0, %s98
      %s116 = sphi 0, %s116
      %s118 = sphi 0, %s116
      %s119 = sphi 0, %s118
      %s133 = sphi 0, %s119
      %s137 = sphi 0, %s137
      %s139 = sphi 0, %s137
      %s140 = sphi 0, %s139
      %s154 = sphi 0, %s140
      %s158 = sphi 0, %s158
      %s160 = sphi 0, %s158
      %s161 = sphi 0, %s160
      %s175 = sphi 0, %s161
      %s179 = sphi 0, %s179
      %s181 = sphi 0, %s179
      %s182 = sphi 0, %s181
      %s196 = sphi 0, %s182
      %s200 = sphi 0, %s200
      %s202 = sphi 0, %s200
      %s203 = sphi 0, %s202
      %s217 = sphi 0, %s203
      %s221 = sphi 0, %s221
      %s223 = sphi 0, %s221
      %s224 = sphi 0, %s223
      %s238 = sphi 0, %s224
      %s244 = sphi 0, %s246
      %s247 = sphi 0, %s244
      %s248 = sphi 0, %s247
      %s264 = sphi 0, %s248
    $region4: #{tpu_custom_call.1} parent=1 // loop_header_branch
      %22 = sbr.rel (%p20) target = $region8
    $region5: #{tpu_custom_call.1} parent=1 // loop_body
      %s24 = ssub.s32 %s19, 1
      %s25 = ssub.s32 %s19, 2
      %s26 = sadd.s32 %s19, 1
      %s27 = ssub.s32 %s19, %s26
      %p28 = scmp.eq.s32.totalorder %s27, 0
      %s30 = sadd.s32 %s29, 1
      %s31 = scalar_select %p28, %s29, %s30
      %p34 = pneg %p28
      %p35 = scmp.eq.s32.totalorder %s19, 1
      %p36 = por %p34, %p35
      %p37 = scmp.ne.s32.totalorder %s29, %s32
      %p38 = scmp.eq.s32.totalorder %s19, 0
      %p39 = por %p37, %p38
      %p40 = scmp.ne.s32.totalorder %s29, %s32
      %p41 = scmp.eq.s32.totalorder %s24, 1
      %p42 = por %p40, %p41
      %p43 = scmp.ne.s32.totalorder %s32, %s33
      %p44 = scmp.eq.s32.totalorder %s24, 0
      %p45 = por %p43, %p44
      %p46 = scmp.ne.s32.totalorder %s32, %s33
      %p47 = scmp.eq.s32.totalorder %s25, 1
      %p48 = por %p46, %p47
      %p50 = scmp.ne.s32.totalorder %s33, %s49
      %p51 = scmp.eq.s32.totalorder %s25, 0
      %p52 = por %p50, %p51
      %s54 = sadd.s32 %s53, 1
      %p57 = scmp.eq.s32.totalorder %s19, 1
      %p58 = scmp.ne.s32.totalorder %s53, %s55
      %p59 = scmp.eq.s32.totalorder %s19, 0
      %p60 = por %p58, %p59
      %p61 = scmp.ne.s32.totalorder %s53, %s55
      %p62 = scmp.eq.s32.totalorder %s24, 1
      %p63 = por %p61, %p62
      %p64 = scmp.ne.s32.totalorder %s55, %s56
      %p65 = scmp.eq.s32.totalorder %s24, 0
      %p66 = por %p64, %p65
      %p67 = scmp.ne.s32.totalorder %s55, %s56
      %p68 = scmp.eq.s32.totalorder %s25, 1
      %p69 = por %p67, %p68
      %p71 = scmp.ne.s32.totalorder %s56, %s70
      %p72 = scmp.eq.s32.totalorder %s25, 0
      %p73 = por %p71, %p72
      %s75 = sadd.s32 %s74, 1
      %p78 = scmp.eq.s32.totalorder %s19, 1
      %p79 = scmp.ne.s32.totalorder %s74, %s76
      %p80 = scmp.eq.s32.totalorder %s19, 0
      %p81 = por %p79, %p80
      %p82 = scmp.ne.s32.totalorder %s74, %s76
      %p83 = scmp.eq.s32.totalorder %s24, 1
      %p84 = por %p82, %p83
      %p85 = scmp.ne.s32.totalorder %s76, %s77
      %p86 = scmp.eq.s32.totalorder %s24, 0
      %p87 = por %p85, %p86
      %p88 = scmp.ne.s32.totalorder %s76, %s77
      %p89 = scmp.eq.s32.totalorder %s25, 1
      %p90 = por %p88, %p89
      %p92 = scmp.ne.s32.totalorder %s77, %s91
      %p93 = scmp.eq.s32.totalorder %s25, 0
      %p94 = por %p92, %p93
      %s96 = sadd.s32 %s95, 1
      %p99 = scmp.eq.s32.totalorder %s19, 1
      %p100 = scmp.ne.s32.totalorder %s95, %s97
      %p101 = scmp.eq.s32.totalorder %s19, 0
      %p102 = por %p100, %p101
      %p103 = scmp.ne.s32.totalorder %s95, %s97
      %p104 = scmp.eq.s32.totalorder %s24, 1
      %p105 = por %p103, %p104
      %p106 = scmp.ne.s32.totalorder %s97, %s98
      %p107 = scmp.eq.s32.totalorder %s24, 0
      %p108 = por %p106, %p107
      %p109 = scmp.ne.s32.totalorder %s97, %s98
      %p110 = scmp.eq.s32.totalorder %s25, 1
      %p111 = por %p109, %p110
      %p113 = scmp.ne.s32.totalorder %s98, %s112
      %p114 = scmp.eq.s32.totalorder %s25, 0
      %p115 = por %p113, %p114
      %s117 = sadd.s32 %s116, 1
      %p120 = scmp.eq.s32.totalorder %s19, 1
      %p121 = scmp.ne.s32.totalorder %s116, %s118
      %p122 = scmp.eq.s32.totalorder %s19, 0
      %p123 = por %p121, %p122
      %p124 = scmp.ne.s32.totalorder %s116, %s118
      %p125 = scmp.eq.s32.totalorder %s24, 1
      %p126 = por %p124, %p125
      %p127 = scmp.ne.s32.totalorder %s118, %s119
      %p128 = scmp.eq.s32.totalorder %s24, 0
      %p129 = por %p127, %p128
      %p130 = scmp.ne.s32.totalorder %s118, %s119
      %p131 = scmp.eq.s32.totalorder %s25, 1
      %p132 = por %p130, %p131
      %p134 = scmp.ne.s32.totalorder %s119, %s133
      %p135 = scmp.eq.s32.totalorder %s25, 0
      %p136 = por %p134, %p135
      %s138 = sadd.s32 %s137, 1
      %p141 = scmp.eq.s32.totalorder %s19, 1
      %p142 = scmp.ne.s32.totalorder %s137, %s139
      %p143 = scmp.eq.s32.totalorder %s19, 0
      %p144 = por %p142, %p143
      %p145 = scmp.ne.s32.totalorder %s137, %s139
      %p146 = scmp.eq.s32.totalorder %s24, 1
      %p147 = por %p145, %p146
      %p148 = scmp.ne.s32.totalorder %s139, %s140
      %p149 = scmp.eq.s32.totalorder %s24, 0
      %p150 = por %p148, %p149
      %p151 = scmp.ne.s32.totalorder %s139, %s140
      %p152 = scmp.eq.s32.totalorder %s25, 1
      %p153 = por %p151, %p152
      %p155 = scmp.ne.s32.totalorder %s140, %s154
      %p156 = scmp.eq.s32.totalorder %s25, 0
      %p157 = por %p155, %p156
      %s159 = sadd.s32 %s158, 1
      %p162 = scmp.eq.s32.totalorder %s19, 1
      %p163 = scmp.ne.s32.totalorder %s158, %s160
      %p164 = scmp.eq.s32.totalorder %s19, 0
      %p165 = por %p163, %p164
      %p166 = scmp.ne.s32.totalorder %s158, %s160
      %p167 = scmp.eq.s32.totalorder %s24, 1
      %p168 = por %p166, %p167
      %p169 = scmp.ne.s32.totalorder %s160, %s161
      %p170 = scmp.eq.s32.totalorder %s24, 0
      %p171 = por %p169, %p170
      %p172 = scmp.ne.s32.totalorder %s160, %s161
      %p173 = scmp.eq.s32.totalorder %s25, 1
      %p174 = por %p172, %p173
      %p176 = scmp.ne.s32.totalorder %s161, %s175
      %p177 = scmp.eq.s32.totalorder %s25, 0
      %p178 = por %p176, %p177
      %s180 = sadd.s32 %s179, 1
      %p183 = scmp.eq.s32.totalorder %s19, 1
      %p184 = scmp.ne.s32.totalorder %s179, %s181
      %p185 = scmp.eq.s32.totalorder %s19, 0
      %p186 = por %p184, %p185
      %p187 = scmp.ne.s32.totalorder %s179, %s181
      %p188 = scmp.eq.s32.totalorder %s24, 1
      %p189 = por %p187, %p188
      %p190 = scmp.ne.s32.totalorder %s181, %s182
      %p191 = scmp.eq.s32.totalorder %s24, 0
      %p192 = por %p190, %p191
      %p193 = scmp.ne.s32.totalorder %s181, %s182
      %p194 = scmp.eq.s32.totalorder %s25, 1
      %p195 = por %p193, %p194
      %p197 = scmp.ne.s32.totalorder %s182, %s196
      %p198 = scmp.eq.s32.totalorder %s25, 0
      %p199 = por %p197, %p198
      %s201 = sadd.s32 %s200, 1
      %p204 = scmp.eq.s32.totalorder %s19, 1
      %p205 = scmp.ne.s32.totalorder %s200, %s202
      %p206 = scmp.eq.s32.totalorder %s19, 0
      %p207 = por %p205, %p206
      %p208 = scmp.ne.s32.totalorder %s200, %s202
      %p209 = scmp.eq.s32.totalorder %s24, 1
      %p210 = por %p208, %p209
      %p211 = scmp.ne.s32.totalorder %s202, %s203
      %p212 = scmp.eq.s32.totalorder %s24, 0
      %p213 = por %p211, %p212
      %p214 = scmp.ne.s32.totalorder %s202, %s203
      %p215 = scmp.eq.s32.totalorder %s25, 1
      %p216 = por %p214, %p215
      %p218 = scmp.ne.s32.totalorder %s203, %s217
      %p219 = scmp.eq.s32.totalorder %s25, 0
      %p220 = por %p218, %p219
      %s222 = sadd.s32 %s221, 1
      %p225 = scmp.eq.s32.totalorder %s19, 1
      %p226 = scmp.ne.s32.totalorder %s221, %s223
      %p227 = scmp.eq.s32.totalorder %s19, 0
      %p228 = por %p226, %p227
      %p229 = scmp.ne.s32.totalorder %s221, %s223
      %p230 = scmp.eq.s32.totalorder %s24, 1
      %p231 = por %p229, %p230
      %p232 = scmp.ne.s32.totalorder %s223, %s224
      %p233 = scmp.eq.s32.totalorder %s24, 0
      %p234 = por %p232, %p233
      %p235 = scmp.ne.s32.totalorder %s223, %s224
      %p236 = scmp.eq.s32.totalorder %s25, 1
      %p237 = por %p235, %p236
      %p239 = scmp.ne.s32.totalorder %s224, %s238
      %p240 = scmp.eq.s32.totalorder %s25, 0
      %p241 = por %p239, %p240
      %s242 = ssub.s32 %s19, %s26
      %p243 = scmp.eq.s32.totalorder %s242, 0
      %s245 = sadd.s32 %s244, 1
      %s246 = scalar_select %p243, %s244, %s245
      %p249 = pneg %p243
      %p250 = scmp.eq.s32.totalorder %s19, 1
      %p251 = por %p249, %p250
      %p252 = scmp.ne.s32.totalorder %s244, %s247
      %p253 = scmp.eq.s32.totalorder %s19, 0
      %p254 = por %p252, %p253
      %p255 = scmp.ne.s32.totalorder %s244, %s247
      %p256 = scmp.eq.s32.totalorder %s24, 1
      %p257 = por %p255, %p256
      %p258 = scmp.ne.s32.totalorder %s247, %s248
      %p259 = scmp.eq.s32.totalorder %s24, 0
      %p260 = por %p258, %p259
      %p261 = scmp.ne.s32.totalorder %s247, %s248
      %p262 = scmp.eq.s32.totalorder %s25, 1
      %p263 = por %p261, %p262
      %p265 = scmp.ne.s32.totalorder %s248, %s264
      %p266 = scmp.eq.s32.totalorder %s25, 0
      %p267 = por %p265, %p266
      %p268 = scmp.le.s32.totalorder 1, %s19
      %p269 = scmp.lt.s32.totalorder %s19, 3
      %p270 = pnand %p268, %p269
      %p271 = pneg %p270
      // Predicated region
      $region9: #{tpu_custom_call.1} parent=5 // pred_check
        _
      $region10: #{tpu_custom_call.1} parent=5 // pred_check_branch
        %273 = sbr.rel (%p270) target = $region12
      $region11: #{tpu_custom_call.1} parent=5 // pred_region
        %s274 = ssub.s32 %s19, 1
        // Predicated region
        $region13: #{tpu_custom_call.1} parent=11 // pred_check
          %p275 = pneg %p66
        $region14: #{tpu_custom_call.1} parent=11 // pred_check_branch
          %277 = sbr.rel (%p275) target = $region16
        $region15: #{tpu_custom_call.1} parent=11 // pred_region
          _
        $region16: #{tpu_custom_call.1} parent=11 // pred_fallthru
          _
        // Predicated region
        $region17: #{tpu_custom_call.1} parent=11 // pred_check
          %p278 = pneg %p87
        $region18: #{tpu_custom_call.1} parent=11 // pred_check_branch
          %280 = sbr.rel (%p278) target = $region20
        $region19: #{tpu_custom_call.1} parent=11 // pred_region
          _
        $region20: #{tpu_custom_call.1} parent=11 // pred_fallthru
          _
        // Predicated region
        $region21: #{tpu_custom_call.1} parent=11 // pred_check
          %p281 = pneg %p108
        $region22: #{tpu_custom_call.1} parent=11 // pred_check_branch
          %283 = sbr.rel (%p281) target = $region24
        $region23: #{tpu_custom_call.1} parent=11 // pred_region
          _
        $region24: #{tpu_custom_call.1} parent=11 // pred_fallthru
          _
        // Predicated region
        $region25: #{tpu_custom_call.1} parent=11 // pred_check
          %p284 = pneg %p129
        $region26: #{tpu_custom_call.1} parent=11 // pred_check_branch
          %286 = sbr.rel (%p284) target = $region28
        $region27: #{tpu_custom_call.1} parent=11 // pred_region
          _
        $region28: #{tpu_custom_call.1} parent=11 // pred_fallthru
          _
        // Predicated region
        $region29: #{tpu_custom_call.1} parent=11 // pred_check
          %p287 = pneg %p150
        $region30: #{tpu_custom_call.1} parent=11 // pred_check_branch
          %289 = sbr.rel (%p287) target = $region32
        $region31: #{tpu_custom_call.1} parent=11 // pred_region
          _
        $region32: #{tpu_custom_call.1} parent=11 // pred_fallthru
          _
        // Predicated region
        $region33: #{tpu_custom_call.1} parent=11 // pred_check
          %p290 = pneg %p171
        $region34: #{tpu_custom_call.1} parent=11 // pred_check_branch
          %292 = sbr.rel (%p290) target = $region36
        $region35: #{tpu_custom_call.1} parent=11 // pred_region
          _
        $region36: #{tpu_custom_call.1} parent=11 // pred_fallthru
          _
        // Predicated region
        $region37: #{tpu_custom_call.1} parent=11 // pred_check
          %p293 = pneg %p192
        $region38: #{tpu_custom_call.1} parent=11 // pred_check_branch
          %295 = sbr.rel (%p293) target = $region40
        $region39: #{tpu_custom_call.1} parent=11 // pred_region
          _
        $region40: #{tpu_custom_call.1} parent=11 // pred_fallthru
          _
        // Predicated region
        $region41: #{tpu_custom_call.1} parent=11 // pred_check
          %p296 = pneg %p213
        $region42: #{tpu_custom_call.1} parent=11 // pred_check_branch
          %298 = sbr.rel (%p296) target = $region44
        $region43: #{tpu_custom_call.1} parent=11 // pred_region
          _
        $region44: #{tpu_custom_call.1} parent=11 // pred_fallthru
          _
        // Predicated region
        $region45: #{tpu_custom_call.1} parent=11 // pred_check
          %p299 = pneg %p234
        $region46: #{tpu_custom_call.1} parent=11 // pred_check_branch
          %301 = sbr.rel (%p299) target = $region48
        $region47: #{tpu_custom_call.1} parent=11 // pred_region
          _
        $region48: #{tpu_custom_call.1} parent=11 // pred_fallthru
          _
      $region12: #{tpu_custom_call.1} parent=5 // pred_fallthru
        _
      %p302 = scmp.lt.s32.totalorder %s19, 2
      // Predicated region
      $region49: #{tpu_custom_call.1} parent=5 // pred_check
        %p303 = pneg %p302
      $region50: #{tpu_custom_call.1} parent=5 // pred_check_branch
        %305 = sbr.rel (%p303) target = $region52
      $region51: #{tpu_custom_call.1} parent=5 // pred_region
        // Predicated region
        $region53: #{tpu_custom_call.1} parent=51 // pred_check
          %p306 = pneg %p39
        $region54: #{tpu_custom_call.1} parent=51 // pred_check_branch
          %308 = sbr.rel (%p306) target = $region56
        $region55: #{tpu_custom_call.1} parent=51 // pred_region
          %p309 = scmp.lt.s32.totalorder %s19, 1
          %s310 = scalar_select %p309, %s19, 1
          %s311 = smul.addr %s310, 54
          %s312 = smul.addr %s311, 8
          %s313 = scalar_lea.vmem %s0, %s312
        $region56: #{tpu_custom_call.1} parent=51 // pred_fallthru
          _
      $region52: #{tpu_custom_call.1} parent=5 // pred_fallthru
        _
      %p314 = scmp.le.s32.totalorder 1, %s19
      %p315 = scmp.lt.s32.totalorder %s19, 3
      %p316 = pnand %p314, %p315
      %p317 = pneg %p316
      // Predicated region
      $region57: #{tpu_custom_call.1} parent=5 // pred_check
        _
      $region58: #{tpu_custom_call.1} parent=5 // pred_check_branch
        %319 = sbr.rel (%p316) target = $region60
      $region59: #{tpu_custom_call.1} parent=5 // pred_region
        %s320 = ssub.s32 %s19, 1
        %p321 = scmp.lt.s32.totalorder %s24, 1
        %s322 = scalar_select %p321, %s24, 1
        %s323 = smul.addr %s322, 54
        %s324 = smul.addr %s323, 8
        %s325 = scalar_lea.vmem %s0, %s324
        %p326 = pneg %p45
        %p327 = pneg %p42
        %p328 = pneg %p66
        %p329 = pneg %p63
        %p330 = pneg %p87
        %p331 = pneg %p84
        %p332 = pneg %p108
        %p333 = pneg %p105
        %p334 = pneg %p129
        %p335 = pneg %p126
        %p336 = pneg %p150
        %p337 = pneg %p147
        %p338 = pneg %p171
        %p339 = pneg %p168
        %p340 = pneg %p192
        %p341 = pneg %p189
        %p342 = pneg %p213
        %p343 = pneg %p210
        %p344 = pneg %p234
        %p345 = pneg %p231
        %p346 = pneg %p260
        %p347 = pneg %p257
        %s348 = sand.u32 %s247, 1
        %s349 = scalar_lea.sflag [#allocation7], %s348
        %s350 = sand.u32 %s247, 1
        %s351 = smul.addr %s350, 256
        %s352 = scalar_lea.vmem [#allocation6], %s351
        %p353 = scmp.lt.s32.totalorder %s24, 1
        %s354 = scalar_select %p353, %s24, 1
        %s355 = smul.addr %s354, 54
        %s356 = smul.addr %s355, 8
        %s357 = scalar_lea.vmem %s0, %s356
        %v359 = vld [vmem:[%s357] sm:$0xff]
        %v360 = vld [vmem:[%s357 + $0x8] sm:$0xff]
        %v361 = vld [vmem:[%s357 + $0x18] sm:$0xff]
        %v362 = vld [vmem:[%s357 + $0x20] sm:$0xff]
        %v363 = vld [vmem:[%s357 + $0x30] sm:$0xff]
        %v364 = vld [vmem:[%s357 + $0x38] sm:$0xff]
        %v365 = vld [vmem:[%s357 + $0x48] sm:$0xff]
        %v366 = vld [vmem:[%s357 + $0x50] sm:$0xff]
        %v367 = vld [vmem:[%s357 + $0x60] sm:$0xff]
        %v368 = vld [vmem:[%s357 + $0x68] sm:$0xff]
        %v369 = vld [vmem:[%s357 + $0x78] sm:$0xff]
        %v370 = vld [vmem:[%s357 + $0x80] sm:$0xff]
        %v371 = vld [vmem:[%s357 + $0x90] sm:$0xff]
        %v372 = vld [vmem:[%s357 + $0x98] sm:$0xff]
        %v373 = vld [vmem:[%s357 + $0xa8] sm:$0xff]
        %v374 = vld [vmem:[%s357 + $0xb0] sm:$0xff]
        %v375 = vld [vmem:[%s357 + $0xc0] sm:$0xff]
        %v376 = vld [vmem:[%s357 + $0xc8] sm:$0xff]
        %v377 = vld [vmem:[%s357 + $0xd8] sm:$0xff]
        %v378 = vld [vmem:[%s357 + $0xe0] sm:$0xff]
        %v379 = vld [vmem:[%s357 + $0xf0] sm:$0xff]
        %v380 = vld [vmem:[%s357 + $0xf8] sm:$0xff]
        %v381 = vld [vmem:[%s357 + $0x108] sm:$0xff]
        %v382 = vld [vmem:[%s357 + $0x110] sm:$0xff]
        %v383 = vld [vmem:[%s357 + $0x120] sm:$0xff]
        %v384 = vld [vmem:[%s357 + $0x128] sm:$0xff]
        %v385 = vld [vmem:[%s357 + $0x138] sm:$0xff]
        %v386 = vld [vmem:[%s357 + $0x140] sm:$0xff]
        %v387 = vld [vmem:[%s357 + $0x150] sm:$0xff]
        %v388 = vld [vmem:[%s357 + $0x158] sm:$0xff]
        %v389 = vld [vmem:[%s357 + $0x168] sm:$0xff]
        %v390 = vld [vmem:[%s357 + $0x170] sm:$0xff]
        %vm391 = vcmask 261120
        %392 = vst.msk [vmem:[#allocation2] sm:$0xff] %vm391, %v359
        %393 = vst.msk [vmem:[#allocation2 + $0x18] sm:$0xff] %vm391, %v360
        %394 = vst.msk [vmem:[#allocation2 + $0x30] sm:$0xff] %vm391, %v361
        %395 = vst.msk [vmem:[#allocation2 + $0x48] sm:$0xff] %vm391, %v362
        %396 = vst.msk [vmem:[#allocation2 + $0x60] sm:$0xff] %vm391, %v363
        %397 = vst.msk [vmem:[#allocation2 + $0x78] sm:$0xff] %vm391, %v364
        %398 = vst.msk [vmem:[#allocation2 + $0x90] sm:$0xff] %vm391, %v365
        %399 = vst.msk [vmem:[#allocation2 + $0xa8] sm:$0xff] %vm391, %v366
        %400 = vst.msk [vmem:[#allocation2 + $0xc0] sm:$0xff] %vm391, %v367
        %401 = vst.msk [vmem:[#allocation2 + $0xd8] sm:$0xff] %vm391, %v368
        %402 = vst.msk [vmem:[#allocation2 + $0xf0] sm:$0xff] %vm391, %v369
        %403 = vst.msk [vmem:[#allocation2 + $0x108] sm:$0xff] %vm391, %v370
        %404 = vst.msk [vmem:[#allocation2 + $0x120] sm:$0xff] %vm391, %v371
        %405 = vst.msk [vmem:[#allocation2 + $0x138] sm:$0xff] %vm391, %v372
        %406 = vst.msk [vmem:[#allocation2 + $0x150] sm:$0xff] %vm391, %v373
        %407 = vst.msk [vmem:[#allocation2 + $0x168] sm:$0xff] %vm391, %v374
        %408 = vst.msk [vmem:[#allocation2 + $0x180] sm:$0xff] %vm391, %v375
        %409 = vst.msk [vmem:[#allocation2 + $0x198] sm:$0xff] %vm391, %v376
        %410 = vst.msk [vmem:[#allocation2 + $0x1b0] sm:$0xff] %vm391, %v377
        %411 = vst.msk [vmem:[#allocation2 + $0x1c8] sm:$0xff] %vm391, %v378
        %412 = vst.msk [vmem:[#allocation2 + $0x1e0] sm:$0xff] %vm391, %v379
        %413 = vst.msk [vmem:[#allocation2 + $0x1f8] sm:$0xff] %vm391, %v380
        %414 = vst.msk [vmem:[#allocation2 + $0x210] sm:$0xff] %vm391, %v381
        %415 = vst.msk [vmem:[#allocation2 + $0x228] sm:$0xff] %vm391, %v382
        %416 = vst.msk [vmem:[#allocation2 + $0x240] sm:$0xff] %vm391, %v383
        %417 = vst.msk [vmem:[#allocation2 + $0x258] sm:$0xff] %vm391, %v384
        %418 = vst.msk [vmem:[#allocation2 + $0x270] sm:$0xff] %vm391, %v385
        %419 = vst.msk [vmem:[#allocation2 + $0x288] sm:$0xff] %vm391, %v386
        %420 = vst.msk [vmem:[#allocation2 + $0x2a0] sm:$0xff] %vm391, %v387
        %421 = vst.msk [vmem:[#allocation2 + $0x2b8] sm:$0xff] %vm391, %v388
        %422 = vst.msk [vmem:[#allocation2 + $0x2d0] sm:$0xff] %vm391, %v389
        %423 = vst.msk [vmem:[#allocation2 + $0x2e8] sm:$0xff] %vm391, %v390
        %v424 = vld [vmem:[%s357 + $0x1] sm:$0xff]
        %v425 = vld [vmem:[%s357 + $0x9] sm:$0xff]
        %v426 = vld [vmem:[%s357 + $0x19] sm:$0xff]
        %v427 = vld [vmem:[%s357 + $0x21] sm:$0xff]
        %v428 = vld [vmem:[%s357 + $0x31] sm:$0xff]
        %v429 = vld [vmem:[%s357 + $0x39] sm:$0xff]
        %v430 = vld [vmem:[%s357 + $0x49] sm:$0xff]
        %v431 = vld [vmem:[%s357 + $0x51] sm:$0xff]
        %v432 = vld [vmem:[%s357 + $0x61] sm:$0xff]
        %v433 = vld [vmem:[%s357 + $0x69] sm:$0xff]
        %v434 = vld [vmem:[%s357 + $0x79] sm:$0xff]
        %v435 = vld [vmem:[%s357 + $0x81] sm:$0xff]
        %v436 = vld [vmem:[%s357 + $0x91] sm:$0xff]
        %v437 = vld [vmem:[%s357 + $0x99] sm:$0xff]
        %v438 = vld [vmem:[%s357 + $0xa9] sm:$0xff]
        %v439 = vld [vmem:[%s357 + $0xb1] sm:$0xff]
        %v440 = vld [vmem:[%s357 + $0xc1] sm:$0xff]
        %v441 = vld [vmem:[%s357 + $0xc9] sm:$0xff]
        %v442 = vld [vmem:[%s357 + $0xd9] sm:$0xff]
        %v443 = vld [vmem:[%s357 + $0xe1] sm:$0xff]
        %v444 = vld [vmem:[%s357 + $0xf1] sm:$0xff]
        %v445 = vld [vmem:[%s357 + $0xf9] sm:$0xff]
        %v446 = vld [vmem:[%s357 + $0x109] sm:$0xff]
        %v447 = vld [vmem:[%s357 + $0x111] sm:$0xff]
        %v448 = vld [vmem:[%s357 + $0x121] sm:$0xff]
        %v449 = vld [vmem:[%s357 + $0x129] sm:$0xff]
        %v450 = vld [vmem:[%s357 + $0x139] sm:$0xff]
        %v451 = vld [vmem:[%s357 + $0x141] sm:$0xff]
        %v452 = vld [vmem:[%s357 + $0x151] sm:$0xff]
        %v453 = vld [vmem:[%s357 + $0x159] sm:$0xff]
        %v454 = vld [vmem:[%s357 + $0x169] sm:$0xff]
        %v455 = vld [vmem:[%s357 + $0x171] sm:$0xff]
        %488 = vrot.lane.b32.xlu0 %v424, 32
        %v489 = vpop.permute.xlu0 %488
        %490 = vrot.lane.b32.xlu0 %v425, 32
        %v491 = vpop.permute.xlu0 %490
        %492 = vrot.lane.b32.xlu0 %v426, 32
        %v493 = vpop.permute.xlu0 %492
        %494 = vrot.lane.b32.xlu0 %v427, 32
        %v495 = vpop.permute.xlu0 %494
        %496 = vrot.lane.b32.xlu0 %v428, 32
        %v497 = vpop.permute.xlu0 %496
        %498 = vrot.lane.b32.xlu0 %v429, 32
        %v499 = vpop.permute.xlu0 %498
        %500 = vrot.lane.b32.xlu0 %v430, 32
        %v501 = vpop.permute.xlu0 %500
        %502 = vrot.lane.b32.xlu0 %v431, 32
        %v503 = vpop.permute.xlu0 %502
        %504 = vrot.lane.b32.xlu0 %v432, 32
        %v505 = vpop.permute.xlu0 %504
        %506 = vrot.lane.b32.xlu0 %v433, 32
        %v507 = vpop.permute.xlu0 %506
        %508 = vrot.lane.b32.xlu0 %v434, 32
        %v509 = vpop.permute.xlu0 %508
        %510 = vrot.lane.b32.xlu0 %v435, 32
        %v511 = vpop.permute.xlu0 %510
        %512 = vrot.lane.b32.xlu0 %v436, 32
        %v513 = vpop.permute.xlu0 %512
        %514 = vrot.lane.b32.xlu0 %v437, 32
        %v515 = vpop.permute.xlu0 %514
        %516 = vrot.lane.b32.xlu0 %v438, 32
        %v517 = vpop.permute.xlu0 %516
        %518 = vrot.lane.b32.xlu0 %v439, 32
        %v519 = vpop.permute.xlu0 %518
        %520 = vrot.lane.b32.xlu0 %v440, 32
        %v521 = vpop.permute.xlu0 %520
        %522 = vrot.lane.b32.xlu0 %v441, 32
        %v523 = vpop.permute.xlu0 %522
        %524 = vrot.lane.b32.xlu0 %v442, 32
        %v525 = vpop.permute.xlu0 %524
        %526 = vrot.lane.b32.xlu0 %v443, 32
        %v527 = vpop.permute.xlu0 %526
        %528 = vrot.lane.b32.xlu0 %v444, 32
        %v529 = vpop.permute.xlu0 %528
        %530 = vrot.lane.b32.xlu0 %v445, 32
        %v531 = vpop.permute.xlu0 %530
        %532 = vrot.lane.b32.xlu0 %v446, 32
        %v533 = vpop.permute.xlu0 %532
        %534 = vrot.lane.b32.xlu0 %v447, 32
        %v535 = vpop.permute.xlu0 %534
        %536 = vrot.lane.b32.xlu0 %v448, 32
        %v537 = vpop.permute.xlu0 %536
        %538 = vrot.lane.b32.xlu0 %v449, 32
        %v539 = vpop.permute.xlu0 %538
        %540 = vrot.lane.b32.xlu0 %v450, 32
        %v541 = vpop.permute.xlu0 %540
        %542 = vrot.lane.b32.xlu0 %v451, 32
        %v543 = vpop.permute.xlu0 %542
        %544 = vrot.lane.b32.xlu0 %v452, 32
        %v545 = vpop.permute.xlu0 %544
        %546 = vrot.lane.b32.xlu0 %v453, 32
        %v547 = vpop.permute.xlu0 %546
        %548 = vrot.lane.b32.xlu0 %v454, 32
        %v549 = vpop.permute.xlu0 %548
        %550 = vrot.lane.b32.xlu0 %v455, 32
        %v551 = vpop.permute.xlu0 %550
        %vm584 = vcmask 523520
        %585 = vst.msk [vmem:[#allocation2] sm:$0xff] %vm584, %v489
        %586 = vst.msk [vmem:[#allocation2 + $0x18] sm:$0xff] %vm584, %v491
        %587 = vst.msk [vmem:[#allocation2 + $0x30] sm:$0xff] %vm584, %v493
        %588 = vst.msk [vmem:[#allocation2 + $0x48] sm:$0xff] %vm584, %v495
        %589 = vst.msk [vmem:[#allocation2 + $0x60] sm:$0xff] %vm584, %v497
        %590 = vst.msk [vmem:[#allocation2 + $0x78] sm:$0xff] %vm584, %v499
        %591 = vst.msk [vmem:[#allocation2 + $0x90] sm:$0xff] %vm584, %v501
        %592 = vst.msk [vmem:[#allocation2 + $0xa8] sm:$0xff] %vm584, %v503
        %593 = vst.msk [vmem:[#allocation2 + $0xc0] sm:$0xff] %vm584, %v505
        %594 = vst.msk [vmem:[#allocation2 + $0xd8] sm:$0xff] %vm584, %v507
        %595 = vst.msk [vmem:[#allocation2 + $0xf0] sm:$0xff] %vm584, %v509
        %596 = vst.msk [vmem:[#allocation2 + $0x108] sm:$0xff] %vm584, %v511
        %597 = vst.msk [vmem:[#allocation2 + $0x120] sm:$0xff] %vm584, %v513
        %598 = vst.msk [vmem:[#allocation2 + $0x138] sm:$0xff] %vm584, %v515
        %599 = vst.msk [vmem:[#allocation2 + $0x150] sm:$0xff] %vm584, %v517
        %600 = vst.msk [vmem:[#allocation2 + $0x168] sm:$0xff] %vm584, %v519
        %601 = vst.msk [vmem:[#allocation2 + $0x180] sm:$0xff] %vm584, %v521
        %602 = vst.msk [vmem:[#allocation2 + $0x198] sm:$0xff] %vm584, %v523
        %603 = vst.msk [vmem:[#allocation2 + $0x1b0] sm:$0xff] %vm584, %v525
        %604 = vst.msk [vmem:[#allocation2 + $0x1c8] sm:$0xff] %vm584, %v527
        %605 = vst.msk [vmem:[#allocation2 + $0x1e0] sm:$0xff] %vm584, %v529
        %606 = vst.msk [vmem:[#allocation2 + $0x1f8] sm:$0xff] %vm584, %v531
        %607 = vst.msk [vmem:[#allocation2 + $0x210] sm:$0xff] %vm584, %v533
        %608 = vst.msk [vmem:[#allocation2 + $0x228] sm:$0xff] %vm584, %v535
        %609 = vst.msk [vmem:[#allocation2 + $0x240] sm:$0xff] %vm584, %v537
        %610 = vst.msk [vmem:[#allocation2 + $0x258] sm:$0xff] %vm584, %v539
        %611 = vst.msk [vmem:[#allocation2 + $0x270] sm:$0xff] %vm584, %v541
        %612 = vst.msk [vmem:[#allocation2 + $0x288] sm:$0xff] %vm584, %v543
        %613 = vst.msk [vmem:[#allocation2 + $0x2a0] sm:$0xff] %vm584, %v545
        %614 = vst.msk [vmem:[#allocation2 + $0x2b8] sm:$0xff] %vm584, %v547
        %615 = vst.msk [vmem:[#allocation2 + $0x2d0] sm:$0xff] %vm584, %v549
        %616 = vst.msk [vmem:[#allocation2 + $0x2e8] sm:$0xff] %vm584, %v551
        %v617 = vld [vmem:[%s357 + $0x2] sm:$0xff]
        %v618 = vld [vmem:[%s357 + $0xa] sm:$0xff]
        %v619 = vld [vmem:[%s357 + $0x1a] sm:$0xff]
        %v620 = vld [vmem:[%s357 + $0x22] sm:$0xff]
        %v621 = vld [vmem:[%s357 + $0x32] sm:$0xff]
        %v622 = vld [vmem:[%s357 + $0x3a] sm:$0xff]
        %v623 = vld [vmem:[%s357 + $0x4a] sm:$0xff]
        %v624 = vld [vmem:[%s357 + $0x52] sm:$0xff]
        %v625 = vld [vmem:[%s357 + $0x62] sm:$0xff]
        %v626 = vld [vmem:[%s357 + $0x6a] sm:$0xff]
        %v627 = vld [vmem:[%s357 + $0x7a] sm:$0xff]
        %v628 = vld [vmem:[%s357 + $0x82] sm:$0xff]
        %v629 = vld [vmem:[%s357 + $0x92] sm:$0xff]
        %v630 = vld [vmem:[%s357 + $0x9a] sm:$0xff]
        %v631 = vld [vmem:[%s357 + $0xaa] sm:$0xff]
        %v632 = vld [vmem:[%s357 + $0xb2] sm:$0xff]
        %v633 = vld [vmem:[%s357 + $0xc2] sm:$0xff]
        %v634 = vld [vmem:[%s357 + $0xca] sm:$0xff]
        %v635 = vld [vmem:[%s357 + $0xda] sm:$0xff]
        %v636 = vld [vmem:[%s357 + $0xe2] sm:$0xff]
        %v637 = vld [vmem:[%s357 + $0xf2] sm:$0xff]
        %v638 = vld [vmem:[%s357 + $0xfa] sm:$0xff]
        %v639 = vld [vmem:[%s357 + $0x10a] sm:$0xff]
        %v640 = vld [vmem:[%s357 + $0x112] sm:$0xff]
        %v641 = vld [vmem:[%s357 + $0x122] sm:$0xff]
        %v642 = vld [vmem:[%s357 + $0x12a] sm:$0xff]
        %v643 = vld [vmem:[%s357 + $0x13a] sm:$0xff]
        %v644 = vld [vmem:[%s357 + $0x142] sm:$0xff]
        %v645 = vld [vmem:[%s357 + $0x152] sm:$0xff]
        %v646 = vld [vmem:[%s357 + $0x15a] sm:$0xff]
        %v647 = vld [vmem:[%s357 + $0x16a] sm:$0xff]
        %v648 = vld [vmem:[%s357 + $0x172] sm:$0xff]
        %681 = vrot.lane.b32.xlu0 %v617, 64
        %v682 = vpop.permute.xlu0 %681
        %683 = vrot.lane.b32.xlu0 %v618, 64
        %v684 = vpop.permute.xlu0 %683
        %685 = vrot.lane.b32.xlu0 %v619, 64
        %v686 = vpop.permute.xlu0 %685
        %687 = vrot.lane.b32.xlu0 %v620, 64
        %v688 = vpop.permute.xlu0 %687
        %689 = vrot.lane.b32.xlu0 %v621, 64
        %v690 = vpop.permute.xlu0 %689
        %691 = vrot.lane.b32.xlu0 %v622, 64
        %v692 = vpop.permute.xlu0 %691
        %693 = vrot.lane.b32.xlu0 %v623, 64
        %v694 = vpop.permute.xlu0 %693
        %695 = vrot.lane.b32.xlu0 %v624, 64
        %v696 = vpop.permute.xlu0 %695
        %697 = vrot.lane.b32.xlu0 %v625, 64
        %v698 = vpop.permute.xlu0 %697
        %699 = vrot.lane.b32.xlu0 %v626, 64
        %v700 = vpop.permute.xlu0 %699
        %701 = vrot.lane.b32.xlu0 %v627, 64
        %v702 = vpop.permute.xlu0 %701
        %703 = vrot.lane.b32.xlu0 %v628, 64
        %v704 = vpop.permute.xlu0 %703
        %705 = vrot.lane.b32.xlu0 %v629, 64
        %v706 = vpop.permute.xlu0 %705
        %707 = vrot.lane.b32.xlu0 %v630, 64
        %v708 = vpop.permute.xlu0 %707
        %709 = vrot.lane.b32.xlu0 %v631, 64
        %v710 = vpop.permute.xlu0 %709
        %711 = vrot.lane.b32.xlu0 %v632, 64
        %v712 = vpop.permute.xlu0 %711
        %713 = vrot.lane.b32.xlu0 %v633, 64
        %v714 = vpop.permute.xlu0 %713
        %715 = vrot.lane.b32.xlu0 %v634, 64
        %v716 = vpop.permute.xlu0 %715
        %717 = vrot.lane.b32.xlu0 %v635, 64
        %v718 = vpop.permute.xlu0 %717
        %719 = vrot.lane.b32.xlu0 %v636, 64
        %v720 = vpop.permute.xlu0 %719
        %721 = vrot.lane.b32.xlu0 %v637, 64
        %v722 = vpop.permute.xlu0 %721
        %723 = vrot.lane.b32.xlu0 %v638, 64
        %v724 = vpop.permute.xlu0 %723
        %725 = vrot.lane.b32.xlu0 %v639, 64
        %v726 = vpop.permute.xlu0 %725
        %727 = vrot.lane.b32.xlu0 %v640, 64
        %v728 = vpop.permute.xlu0 %727
        %729 = vrot.lane.b32.xlu0 %v641, 64
        %v730 = vpop.permute.xlu0 %729
        %731 = vrot.lane.b32.xlu0 %v642, 64
        %v732 = vpop.permute.xlu0 %731
        %733 = vrot.lane.b32.xlu0 %v643, 64
        %v734 = vpop.permute.xlu0 %733
        %735 = vrot.lane.b32.xlu0 %v644, 64
        %v736 = vpop.permute.xlu0 %735
        %737 = vrot.lane.b32.xlu0 %v645, 64
        %v738 = vpop.permute.xlu0 %737
        %739 = vrot.lane.b32.xlu0 %v646, 64
        %v740 = vpop.permute.xlu0 %739
        %741 = vrot.lane.b32.xlu0 %v647, 64
        %v742 = vpop.permute.xlu0 %741
        %743 = vrot.lane.b32.xlu0 %v648, 64
        %v744 = vpop.permute.xlu0 %743
        %vm777 = vcmask 785920
        %778 = vst.msk [vmem:[#allocation2] sm:$0xff] %vm777, %v682
        %779 = vst.msk [vmem:[#allocation2 + $0x18] sm:$0xff] %vm777, %v684
        %780 = vst.msk [vmem:[#allocation2 + $0x30] sm:$0xff] %vm777, %v686
        %781 = vst.msk [vmem:[#allocation2 + $0x48] sm:$0xff] %vm777, %v688
        %782 = vst.msk [vmem:[#allocation2 + $0x60] sm:$0xff] %vm777, %v690
        %783 = vst.msk [vmem:[#allocation2 + $0x78] sm:$0xff] %vm777, %v692
        %784 = vst.msk [vmem:[#allocation2 + $0x90] sm:$0xff] %vm777, %v694
        %785 = vst.msk [vmem:[#allocation2 + $0xa8] sm:$0xff] %vm777, %v696
        %786 = vst.msk [vmem:[#allocation2 + $0xc0] sm:$0xff] %vm777, %v698
        %787 = vst.msk [vmem:[#allocation2 + $0xd8] sm:$0xff] %vm777, %v700
        %788 = vst.msk [vmem:[#allocation2 + $0xf0] sm:$0xff] %vm777, %v702
        %789 = vst.msk [vmem:[#allocation2 + $0x108] sm:$0xff] %vm777, %v704
        %790 = vst.msk [vmem:[#allocation2 + $0x120] sm:$0xff] %vm777, %v706
        %791 = vst.msk [vmem:[#allocation2 + $0x138] sm:$0xff] %vm777, %v708
        %792 = vst.msk [vmem:[#allocation2 + $0x150] sm:$0xff] %vm777, %v710
        %793 = vst.msk [vmem:[#allocation2 + $0x168] sm:$0xff] %vm777, %v712
        %794 = vst.msk [vmem:[#allocation2 + $0x180] sm:$0xff] %vm777, %v714
        %795 = vst.msk [vmem:[#allocation2 + $0x198] sm:$0xff] %vm777, %v716
        %796 = vst.msk [vmem:[#allocation2 + $0x1b0] sm:$0xff] %vm777, %v718
        %797 = vst.msk [vmem:[#allocation2 + $0x1c8] sm:$0xff] %vm777, %v720
        %798 = vst.msk [vmem:[#allocation2 + $0x1e0] sm:$0xff] %vm777, %v722
        %799 = vst.msk [vmem:[#allocation2 + $0x1f8] sm:$0xff] %vm777, %v724
        %800 = vst.msk [vmem:[#allocation2 + $0x210] sm:$0xff] %vm777, %v726
        %801 = vst.msk [vmem:[#allocation2 + $0x228] sm:$0xff] %vm777, %v728
        %802 = vst.msk [vmem:[#allocation2 + $0x240] sm:$0xff] %vm777, %v730
        %803 = vst.msk [vmem:[#allocation2 + $0x258] sm:$0xff] %vm777, %v732
        %804 = vst.msk [vmem:[#allocation2 + $0x270] sm:$0xff] %vm777, %v734
        %805 = vst.msk [vmem:[#allocation2 + $0x288] sm:$0xff] %vm777, %v736
        %806 = vst.msk [vmem:[#allocation2 + $0x2a0] sm:$0xff] %vm777, %v738
        %807 = vst.msk [vmem:[#allocation2 + $0x2b8] sm:$0xff] %vm777, %v740
        %808 = vst.msk [vmem:[#allocation2 + $0x2d0] sm:$0xff] %vm777, %v742
        %809 = vst.msk [vmem:[#allocation2 + $0x2e8] sm:$0xff] %vm777, %v744
        %s810 = scalar_lea.vmem %s357, 24
        %v811 = vld [vmem:[%s810] sm:$0xff]
        %v812 = vld [vmem:[%s810 + $0x8] sm:$0xff]
        %v813 = vld [vmem:[%s810 + $0x18] sm:$0xff]
        %v814 = vld [vmem:[%s810 + $0x20] sm:$0xff]
        %v815 = vld [vmem:[%s810 + $0x30] sm:$0xff]
        %v816 = vld [vmem:[%s810 + $0x38] sm:$0xff]
        %v817 = vld [vmem:[%s810 + $0x48] sm:$0xff]
        %v818 = vld [vmem:[%s810 + $0x50] sm:$0xff]
        %v819 = vld [vmem:[%s810 + $0x60] sm:$0xff]
        %v820 = vld [vmem:[%s810 + $0x68] sm:$0xff]
        %v821 = vld [vmem:[%s810 + $0x78] sm:$0xff]
        %v822 = vld [vmem:[%s810 + $0x80] sm:$0xff]
        %v823 = vld [vmem:[%s810 + $0x90] sm:$0xff]
        %v824 = vld [vmem:[%s810 + $0x98] sm:$0xff]
        %v825 = vld [vmem:[%s810 + $0xa8] sm:$0xff]
        %v826 = vld [vmem:[%s810 + $0xb0] sm:$0xff]
        %v827 = vld [vmem:[%s810 + $0xc0] sm:$0xff]
        %v828 = vld [vmem:[%s810 + $0xc8] sm:$0xff]
        %v829 = vld [vmem:[%s810 + $0xd8] sm:$0xff]
        %v830 = vld [vmem:[%s810 + $0xe0] sm:$0xff]
        %v831 = vld [vmem:[%s810 + $0xf0] sm:$0xff]
        %v832 = vld [vmem:[%s810 + $0xf8] sm:$0xff]
        %v833 = vld [vmem:[%s810 + $0x108] sm:$0xff]
        %v834 = vld [vmem:[%s810 + $0x110] sm:$0xff]
        %v835 = vld [vmem:[%s810 + $0x120] sm:$0xff]
        %v836 = vld [vmem:[%s810 + $0x128] sm:$0xff]
        %v837 = vld [vmem:[%s810 + $0x138] sm:$0xff]
        %v838 = vld [vmem:[%s810 + $0x140] sm:$0xff]
        %v839 = vld [vmem:[%s810 + $0x150] sm:$0xff]
        %v840 = vld [vmem:[%s810 + $0x158] sm:$0xff]
        %v841 = vld [vmem:[%s810 + $0x168] sm:$0xff]
        %v842 = vld [vmem:[%s810 + $0x170] sm:$0xff]
        %875 = vrot.lane.b32.xlu0 %v811, 96
        %v876 = vpop.permute.xlu0 %875
        %877 = vrot.lane.b32.xlu0 %v812, 96
        %v878 = vpop.permute.xlu0 %877
        %879 = vrot.lane.b32.xlu0 %v813, 96
        %v880 = vpop.permute.xlu0 %879
        %881 = vrot.lane.b32.xlu0 %v814, 96
        %v882 = vpop.permute.xlu0 %881
        %883 = vrot.lane.b32.xlu0 %v815, 96
        %v884 = vpop.permute.xlu0 %883
        %885 = vrot.lane.b32.xlu0 %v816, 96
        %v886 = vpop.permute.xlu0 %885
        %887 = vrot.lane.b32.xlu0 %v817, 96
        %v888 = vpop.permute.xlu0 %887
        %889 = vrot.lane.b32.xlu0 %v818, 96
        %v890 = vpop.permute.xlu0 %889
        %891 = vrot.lane.b32.xlu0 %v819, 96
        %v892 = vpop.permute.xlu0 %891
        %893 = vrot.lane.b32.xlu0 %v820, 96
        %v894 = vpop.permute.xlu0 %893
        %895 = vrot.lane.b32.xlu0 %v821, 96
        %v896 = vpop.permute.xlu0 %895
        %897 = vrot.lane.b32.xlu0 %v822, 96
        %v898 = vpop.permute.xlu0 %897
        %899 = vrot.lane.b32.xlu0 %v823, 96
        %v900 = vpop.permute.xlu0 %899
        %901 = vrot.lane.b32.xlu0 %v824, 96
        %v902 = vpop.permute.xlu0 %901
        %903 = vrot.lane.b32.xlu0 %v825, 96
        %v904 = vpop.permute.xlu0 %903
        %905 = vrot.lane.b32.xlu0 %v826, 96
        %v906 = vpop.permute.xlu0 %905
        %907 = vrot.lane.b32.xlu0 %v827, 96
        %v908 = vpop.permute.xlu0 %907
        %909 = vrot.lane.b32.xlu0 %v828, 96
        %v910 = vpop.permute.xlu0 %909
        %911 = vrot.lane.b32.xlu0 %v829, 96
        %v912 = vpop.permute.xlu0 %911
        %913 = vrot.lane.b32.xlu0 %v830, 96
        %v914 = vpop.permute.xlu0 %913
        %915 = vrot.lane.b32.xlu0 %v831, 96
        %v916 = vpop.permute.xlu0 %915
        %917 = vrot.lane.b32.xlu0 %v832, 96
        %v918 = vpop.permute.xlu0 %917
        %919 = vrot.lane.b32.xlu0 %v833, 96
        %v920 = vpop.permute.xlu0 %919
        %921 = vrot.lane.b32.xlu0 %v834, 96
        %v922 = vpop.permute.xlu0 %921
        %923 = vrot.lane.b32.xlu0 %v835, 96
        %v924 = vpop.permute.xlu0 %923
        %925 = vrot.lane.b32.xlu0 %v836, 96
        %v926 = vpop.permute.xlu0 %925
        %927 = vrot.lane.b32.xlu0 %v837, 96
        %v928 = vpop.permute.xlu0 %927
        %929 = vrot.lane.b32.xlu0 %v838, 96
        %v930 = vpop.permute.xlu0 %929
        %931 = vrot.lane.b32.xlu0 %v839, 96
        %v932 = vpop.permute.xlu0 %931
        %933 = vrot.lane.b32.xlu0 %v840, 96
        %v934 = vpop.permute.xlu0 %933
        %935 = vrot.lane.b32.xlu0 %v841, 96
        %v936 = vpop.permute.xlu0 %935
        %937 = vrot.lane.b32.xlu0 %v842, 96
        %v938 = vpop.permute.xlu0 %937
        %vm971 = vcmask 1048320
        %972 = vst.msk [vmem:[#allocation2] sm:$0xff] %vm971, %v876
        %973 = vst.msk [vmem:[#allocation2 + $0x18] sm:$0xff] %vm971, %v878
        %974 = vst.msk [vmem:[#allocation2 + $0x30] sm:$0xff] %vm971, %v880
        %975 = vst.msk [vmem:[#allocation2 + $0x48] sm:$0xff] %vm971, %v882
        %976 = vst.msk [vmem:[#allocation2 + $0x60] sm:$0xff] %vm971, %v884
        %977 = vst.msk [vmem:[#allocation2 + $0x78] sm:$0xff] %vm971, %v886
        %978 = vst.msk [vmem:[#allocation2 + $0x90] sm:$0xff] %vm971, %v888
        %979 = vst.msk [vmem:[#allocation2 + $0xa8] sm:$0xff] %vm971, %v890
        %980 = vst.msk [vmem:[#allocation2 + $0xc0] sm:$0xff] %vm971, %v892
        %981 = vst.msk [vmem:[#allocation2 + $0xd8] sm:$0xff] %vm971, %v894
        %982 = vst.msk [vmem:[#allocation2 + $0xf0] sm:$0xff] %vm971, %v896
        %983 = vst.msk [vmem:[#allocation2 + $0x108] sm:$0xff] %vm971, %v898
        %984 = vst.msk [vmem:[#allocation2 + $0x120] sm:$0xff] %vm971, %v900
        %985 = vst.msk [vmem:[#allocation2 + $0x138] sm:$0xff] %vm971, %v902
        %986 = vst.msk [vmem:[#allocation2 + $0x150] sm:$0xff] %vm971, %v904
        %987 = vst.msk [vmem:[#allocation2 + $0x168] sm:$0xff] %vm971, %v906
        %988 = vst.msk [vmem:[#allocation2 + $0x180] sm:$0xff] %vm971, %v908
        %989 = vst.msk [vmem:[#allocation2 + $0x198] sm:$0xff] %vm971, %v910
        %990 = vst.msk [vmem:[#allocation2 + $0x1b0] sm:$0xff] %vm971, %v912
        %991 = vst.msk [vmem:[#allocation2 + $0x1c8] sm:$0xff] %vm971, %v914
        %992 = vst.msk [vmem:[#allocation2 + $0x1e0] sm:$0xff] %vm971, %v916
        %993 = vst.msk [vmem:[#allocation2 + $0x1f8] sm:$0xff] %vm971, %v918
        %994 = vst.msk [vmem:[#allocation2 + $0x210] sm:$0xff] %vm971, %v920
        %995 = vst.msk [vmem:[#allocation2 + $0x228] sm:$0xff] %vm971, %v922
        %996 = vst.msk [vmem:[#allocation2 + $0x240] sm:$0xff] %vm971, %v924
        %997 = vst.msk [vmem:[#allocation2 + $0x258] sm:$0xff] %vm971, %v926
        %998 = vst.msk [vmem:[#allocation2 + $0x270] sm:$0xff] %vm971, %v928
        %999 = vst.msk [vmem:[#allocation2 + $0x288] sm:$0xff] %vm971, %v930
        %1000 = vst.msk [vmem:[#allocation2 + $0x2a0] sm:$0xff] %vm971, %v932
        %1001 = vst.msk [vmem:[#allocation2 + $0x2b8] sm:$0xff] %vm971, %v934
        %1002 = vst.msk [vmem:[#allocation2 + $0x2d0] sm:$0xff] %vm971, %v936
        %1003 = vst.msk [vmem:[#allocation2 + $0x2e8] sm:$0xff] %vm971, %v938
        %v1004 = vld [vmem:[%s810 + $0x1] sm:$0xff]
        %v1005 = vld [vmem:[%s810 + $0x9] sm:$0xff]
        %v1006 = vld [vmem:[%s810 + $0x19] sm:$0xff]
        %v1007 = vld [vmem:[%s810 + $0x21] sm:$0xff]
        %v1008 = vld [vmem:[%s810 + $0x31] sm:$0xff]
        %v1009 = vld [vmem:[%s810 + $0x39] sm:$0xff]
        %v1010 = vld [vmem:[%s810 + $0x49] sm:$0xff]
        %v1011 = vld [vmem:[%s810 + $0x51] sm:$0xff]
        %v1012 = vld [vmem:[%s810 + $0x61] sm:$0xff]
        %v1013 = vld [vmem:[%s810 + $0x69] sm:$0xff]
        %v1014 = vld [vmem:[%s810 + $0x79] sm:$0xff]
        %v1015 = vld [vmem:[%s810 + $0x81] sm:$0xff]
        %v1016 = vld [vmem:[%s810 + $0x91] sm:$0xff]
        %v1017 = vld [vmem:[%s810 + $0x99] sm:$0xff]
        %v1018 = vld [vmem:[%s810 + $0xa9] sm:$0xff]
        %v1019 = vld [vmem:[%s810 + $0xb1] sm:$0xff]
        %v1020 = vld [vmem:[%s810 + $0xc1] sm:$0xff]
        %v1021 = vld [vmem:[%s810 + $0xc9] sm:$0xff]
        %v1022 = vld [vmem:[%s810 + $0xd9] sm:$0xff]
        %v1023 = vld [vmem:[%s810 + $0xe1] sm:$0xff]
        %v1024 = vld [vmem:[%s810 + $0xf1] sm:$0xff]
        %v1025 = vld [vmem:[%s810 + $0xf9] sm:$0xff]
        %v1026 = vld [vmem:[%s810 + $0x109] sm:$0xff]
        %v1027 = vld [vmem:[%s810 + $0x111] sm:$0xff]
        %v1028 = vld [vmem:[%s810 + $0x121] sm:$0xff]
        %v1029 = vld [vmem:[%s810 + $0x129] sm:$0xff]
        %v1030 = vld [vmem:[%s810 + $0x139] sm:$0xff]
        %v1031 = vld [vmem:[%s810 + $0x141] sm:$0xff]
        %v1032 = vld [vmem:[%s810 + $0x151] sm:$0xff]
        %v1033 = vld [vmem:[%s810 + $0x159] sm:$0xff]
        %v1034 = vld [vmem:[%s810 + $0x169] sm:$0xff]
        %v1035 = vld [vmem:[%s810 + $0x171] sm:$0xff]
        %1036 = vst.msk [vmem:[#allocation2 + $0x8] sm:$0xff] %vm391, %v1004
        %1037 = vst.msk [vmem:[#allocation2 + $0x20] sm:$0xff] %vm391, %v1005
        %1038 = vst.msk [vmem:[#allocation2 + $0x38] sm:$0xff] %vm391, %v1006
        %1039 = vst.msk [vmem:[#allocation2 + $0x50] sm:$0xff] %vm391, %v1007
        %1040 = vst.msk [vmem:[#allocation2 + $0x68] sm:$0xff] %vm391, %v1008
        %1041 = vst.msk [vmem:[#allocation2 + $0x80] sm:$0xff] %vm391, %v1009
        %1042 = vst.msk [vmem:[#allocation2 + $0x98] sm:$0xff] %vm391, %v1010
        %1043 = vst.msk [vmem:[#allocation2 + $0xb0] sm:$0xff] %vm391, %v1011
        %1044 = vst.msk [vmem:[#allocation2 + $0xc8] sm:$0xff] %vm391, %v1012
        %1045 = vst.msk [vmem:[#allocation2 + $0xe0] sm:$0xff] %vm391, %v1013
        %1046 = vst.msk [vmem:[#allocation2 + $0xf8] sm:$0xff] %vm391, %v1014
        %1047 = vst.msk [vmem:[#allocation2 + $0x110] sm:$0xff] %vm391, %v1015
        %1048 = vst.msk [vmem:[#allocation2 + $0x128] sm:$0xff] %vm391, %v1016
        %1049 = vst.msk [vmem:[#allocation2 + $0x140] sm:$0xff] %vm391, %v1017
        %1050 = vst.msk [vmem:[#allocation2 + $0x158] sm:$0xff] %vm391, %v1018
        %1051 = vst.msk [vmem:[#allocation2 + $0x170] sm:$0xff] %vm391, %v1019
        %1052 = vst.msk [vmem:[#allocation2 + $0x188] sm:$0xff] %vm391, %v1020
        %1053 = vst.msk [vmem:[#allocation2 + $0x1a0] sm:$0xff] %vm391, %v1021
        %1054 = vst.msk [vmem:[#allocation2 + $0x1b8] sm:$0xff] %vm391, %v1022
        %1055 = vst.msk [vmem:[#allocation2 + $0x1d0] sm:$0xff] %vm391, %v1023
        %1056 = vst.msk [vmem:[#allocation2 + $0x1e8] sm:$0xff] %vm391, %v1024
        %1057 = vst.msk [vmem:[#allocation2 + $0x200] sm:$0xff] %vm391, %v1025
        %1058 = vst.msk [vmem:[#allocation2 + $0x218] sm:$0xff] %vm391, %v1026
        %1059 = vst.msk [vmem:[#allocation2 + $0x230] sm:$0xff] %vm391, %v1027
        %1060 = vst.msk [vmem:[#allocation2 + $0x248] sm:$0xff] %vm391, %v1028
        %1061 = vst.msk [vmem:[#allocation2 + $0x260] sm:$0xff] %vm391, %v1029
        %1062 = vst.msk [vmem:[#allocation2 + $0x278] sm:$0xff] %vm391, %v1030
        %1063 = vst.msk [vmem:[#allocation2 + $0x290] sm:$0xff] %vm391, %v1031
        %1064 = vst.msk [vmem:[#allocation2 + $0x2a8] sm:$0xff] %vm391, %v1032
        %1065 = vst.msk [vmem:[#allocation2 + $0x2c0] sm:$0xff] %vm391, %v1033
        %1066 = vst.msk [vmem:[#allocation2 + $0x2d8] sm:$0xff] %vm391, %v1034
        %1067 = vst.msk [vmem:[#allocation2 + $0x2f0] sm:$0xff] %vm391, %v1035
        %v1068 = vld [vmem:[%s810 + $0x2] sm:$0xff]
        %v1069 = vld [vmem:[%s810 + $0xa] sm:$0xff]
        %v1070 = vld [vmem:[%s810 + $0x1a] sm:$0xff]
        %v1071 = vld [vmem:[%s810 + $0x22] sm:$0xff]
        %v1072 = vld [vmem:[%s810 + $0x32] sm:$0xff]
        %v1073 = vld [vmem:[%s810 + $0x3a] sm:$0xff]
        %v1074 = vld [vmem:[%s810 + $0x4a] sm:$0xff]
        %v1075 = vld [vmem:[%s810 + $0x52] sm:$0xff]
        %v1076 = vld [vmem:[%s810 + $0x62] sm:$0xff]
        %v1077 = vld [vmem:[%s810 + $0x6a] sm:$0xff]
        %v1078 = vld [vmem:[%s810 + $0x7a] sm:$0xff]
        %v1079 = vld [vmem:[%s810 + $0x82] sm:$0xff]
        %v1080 = vld [vmem:[%s810 + $0x92] sm:$0xff]
        %v1081 = vld [vmem:[%s810 + $0x9a] sm:$0xff]
        %v1082 = vld [vmem:[%s810 + $0xaa] sm:$0xff]
        %v1083 = vld [vmem:[%s810 + $0xb2] sm:$0xff]
        %v1084 = vld [vmem:[%s810 + $0xc2] sm:$0xff]
        %v1085 = vld [vmem:[%s810 + $0xca] sm:$0xff]
        %v1086 = vld [vmem:[%s810 + $0xda] sm:$0xff]
        %v1087 = vld [vmem:[%s810 + $0xe2] sm:$0xff]
        %v1088 = vld [vmem:[%s810 + $0xf2] sm:$0xff]
        %v1089 = vld [vmem:[%s810 + $0xfa] sm:$0xff]
        %v1090 = vld [vmem:[%s810 + $0x10a] sm:$0xff]
        %v1091 = vld [vmem:[%s810 + $0x112] sm:$0xff]
        %v1092 = vld [vmem:[%s810 + $0x122] sm:$0xff]
        %v1093 = vld [vmem:[%s810 + $0x12a] sm:$0xff]
        %v1094 = vld [vmem:[%s810 + $0x13a] sm:$0xff]
        %v1095 = vld [vmem:[%s810 + $0x142] sm:$0xff]
        %v1096 = vld [vmem:[%s810 + $0x152] sm:$0xff]
        %v1097 = vld [vmem:[%s810 + $0x15a] sm:$0xff]
        %v1098 = vld [vmem:[%s810 + $0x16a] sm:$0xff]
        %v1099 = vld [vmem:[%s810 + $0x172] sm:$0xff]
        %1132 = vrot.lane.b32.xlu0 %v1068, 32
        %v1133 = vpop.permute.xlu0 %1132
        %1134 = vrot.lane.b32.xlu0 %v1069, 32
        %v1135 = vpop.permute.xlu0 %1134
        %1136 = vrot.lane.b32.xlu0 %v1070, 32
        %v1137 = vpop.permute.xlu0 %1136
        %1138 = vrot.lane.b32.xlu0 %v1071, 32
        %v1139 = vpop.permute.xlu0 %1138
        %1140 = vrot.lane.b32.xlu0 %v1072, 32
        %v1141 = vpop.permute.xlu0 %1140
        %1142 = vrot.lane.b32.xlu0 %v1073, 32
        %v1143 = vpop.permute.xlu0 %1142
        %1144 = vrot.lane.b32.xlu0 %v1074, 32
        %v1145 = vpop.permute.xlu0 %1144
        %1146 = vrot.lane.b32.xlu0 %v1075, 32
        %v1147 = vpop.permute.xlu0 %1146
        %1148 = vrot.lane.b32.xlu0 %v1076, 32
        %v1149 = vpop.permute.xlu0 %1148
        %1150 = vrot.lane.b32.xlu0 %v1077, 32
        %v1151 = vpop.permute.xlu0 %1150
        %1152 = vrot.lane.b32.xlu0 %v1078, 32
        %v1153 = vpop.permute.xlu0 %1152
        %1154 = vrot.lane.b32.xlu0 %v1079, 32
        %v1155 = vpop.permute.xlu0 %1154
        %1156 = vrot.lane.b32.xlu0 %v1080, 32
        %v1157 = vpop.permute.xlu0 %1156
        %1158 = vrot.lane.b32.xlu0 %v1081, 32
        %v1159 = vpop.permute.xlu0 %1158
        %1160 = vrot.lane.b32.xlu0 %v1082, 32
        %v1161 = vpop.permute.xlu0 %1160
        %1162 = vrot.lane.b32.xlu0 %v1083, 32
        %v1163 = vpop.permute.xlu0 %1162
        %1164 = vrot.lane.b32.xlu0 %v1084, 32
        %v1165 = vpop.permute.xlu0 %1164
        %1166 = vrot.lane.b32.xlu0 %v1085, 32
        %v1167 = vpop.permute.xlu0 %1166
        %1168 = vrot.lane.b32.xlu0 %v1086, 32
        %v1169 = vpop.permute.xlu0 %1168
        %1170 = vrot.lane.b32.xlu0 %v1087, 32
        %v1171 = vpop.permute.xlu0 %1170
        %1172 = vrot.lane.b32.xlu0 %v1088, 32
        %v1173 = vpop.permute.xlu0 %1172
        %1174 = vrot.lane.b32.xlu0 %v1089, 32
        %v1175 = vpop.permute.xlu0 %1174
        %1176 = vrot.lane.b32.xlu0 %v1090, 32
        %v1177 = vpop.permute.xlu0 %1176
        %1178 = vrot.lane.b32.xlu0 %v1091, 32
        %v1179 = vpop.permute.xlu0 %1178
        %1180 = vrot.lane.b32.xlu0 %v1092, 32
        %v1181 = vpop.permute.xlu0 %1180
        %1182 = vrot.lane.b32.xlu0 %v1093, 32
        %v1183 = vpop.permute.xlu0 %1182
        %1184 = vrot.lane.b32.xlu0 %v1094, 32
        %v1185 = vpop.permute.xlu0 %1184
        %1186 = vrot.lane.b32.xlu0 %v1095, 32
        %v1187 = vpop.permute.xlu0 %1186
        %1188 = vrot.lane.b32.xlu0 %v1096, 32
        %v1189 = vpop.permute.xlu0 %1188
        %1190 = vrot.lane.b32.xlu0 %v1097, 32
        %v1191 = vpop.permute.xlu0 %1190
        %1192 = vrot.lane.b32.xlu0 %v1098, 32
        %v1193 = vpop.permute.xlu0 %1192
        %1194 = vrot.lane.b32.xlu0 %v1099, 32
        %v1195 = vpop.permute.xlu0 %1194
        %1228 = vst.msk [vmem:[#allocation2 + $0x8] sm:$0xff] %vm584, %v1133
        %1229 = vst.msk [vmem:[#allocation2 + $0x20] sm:$0xff] %vm584, %v1135
        %1230 = vst.msk [vmem:[#allocation2 + $0x38] sm:$0xff] %vm584, %v1137
        %1231 = vst.msk [vmem:[#allocation2 + $0x50] sm:$0xff] %vm584, %v1139
        %1232 = vst.msk [vmem:[#allocation2 + $0x68] sm:$0xff] %vm584, %v1141
        %1233 = vst.msk [vmem:[#allocation2 + $0x80] sm:$0xff] %vm584, %v1143
        %1234 = vst.msk [vmem:[#allocation2 + $0x98] sm:$0xff] %vm584, %v1145
        %1235 = vst.msk [vmem:[#allocation2 + $0xb0] sm:$0xff] %vm584, %v1147
        %1236 = vst.msk [vmem:[#allocation2 + $0xc8] sm:$0xff] %vm584, %v1149
        %1237 = vst.msk [vmem:[#allocation2 + $0xe0] sm:$0xff] %vm584, %v1151
        %1238 = vst.msk [vmem:[#allocation2 + $0xf8] sm:$0xff] %vm584, %v1153
        %1239 = vst.msk [vmem:[#allocation2 + $0x110] sm:$0xff] %vm584, %v1155
        %1240 = vst.msk [vmem:[#allocation2 + $0x128] sm:$0xff] %vm584, %v1157
        %1241 = vst.msk [vmem:[#allocation2 + $0x140] sm:$0xff] %vm584, %v1159
        %1242 = vst.msk [vmem:[#allocation2 + $0x158] sm:$0xff] %vm584, %v1161
        %1243 = vst.msk [vmem:[#allocation2 + $0x170] sm:$0xff] %vm584, %v1163
        %1244 = vst.msk [vmem:[#allocation2 + $0x188] sm:$0xff] %vm584, %v1165
        %1245 = vst.msk [vmem:[#allocation2 + $0x1a0] sm:$0xff] %vm584, %v1167
        %1246 = vst.msk [vmem:[#allocation2 + $0x1b8] sm:$0xff] %vm584, %v1169
        %1247 = vst.msk [vmem:[#allocation2 + $0x1d0] sm:$0xff] %vm584, %v1171
        %1248 = vst.msk [vmem:[#allocation2 + $0x1e8] sm:$0xff] %vm584, %v1173
        %1249 = vst.msk [vmem:[#allocation2 + $0x200] sm:$0xff] %vm584, %v1175
        %1250 = vst.msk [vmem:[#allocation2 + $0x218] sm:$0xff] %vm584, %v1177
        %1251 = vst.msk [vmem:[#allocation2 + $0x230] sm:$0xff] %vm584, %v1179
        %1252 = vst.msk [vmem:[#allocation2 + $0x248] sm:$0xff] %vm584, %v1181
        %1253 = vst.msk [vmem:[#allocation2 + $0x260] sm:$0xff] %vm584, %v1183
        %1254 = vst.msk [vmem:[#allocation2 + $0x278] sm:$0xff] %vm584, %v1185
        %1255 = vst.msk [vmem:[#allocation2 + $0x290] sm:$0xff] %vm584, %v1187
        %1256 = vst.msk [vmem:[#allocation2 + $0x2a8] sm:$0xff] %vm584, %v1189
        %1257 = vst.msk [vmem:[#allocation2 + $0x2c0] sm:$0xff] %vm584, %v1191
        %1258 = vst.msk [vmem:[#allocation2 + $0x2d8] sm:$0xff] %vm584, %v1193
        %1259 = vst.msk [vmem:[#allocation2 + $0x2f0] sm:$0xff] %vm584, %v1195
        %s1260 = scalar_lea.vmem %s357, 48
        %v1261 = vld [vmem:[%s1260] sm:$0xff]
        %v1262 = vld [vmem:[%s1260 + $0x8] sm:$0xff]
        %v1263 = vld [vmem:[%s1260 + $0x18] sm:$0xff]
        %v1264 = vld [vmem:[%s1260 + $0x20] sm:$0xff]
        %v1265 = vld [vmem:[%s1260 + $0x30] sm:$0xff]
        %v1266 = vld [vmem:[%s1260 + $0x38] sm:$0xff]
        %v1267 = vld [vmem:[%s1260 + $0x48] sm:$0xff]
        %v1268 = vld [vmem:[%s1260 + $0x50] sm:$0xff]
        %v1269 = vld [vmem:[%s1260 + $0x60] sm:$0xff]
        %v1270 = vld [vmem:[%s1260 + $0x68] sm:$0xff]
        %v1271 = vld [vmem:[%s1260 + $0x78] sm:$0xff]
        %v1272 = vld [vmem:[%s1260 + $0x80] sm:$0xff]
        %v1273 = vld [vmem:[%s1260 + $0x90] sm:$0xff]
        %v1274 = vld [vmem:[%s1260 + $0x98] sm:$0xff]
        %v1275 = vld [vmem:[%s1260 + $0xa8] sm:$0xff]
        %v1276 = vld [vmem:[%s1260 + $0xb0] sm:$0xff]
        %v1277 = vld [vmem:[%s1260 + $0xc0] sm:$0xff]
        %v1278 = vld [vmem:[%s1260 + $0xc8] sm:$0xff]
        %v1279 = vld [vmem:[%s1260 + $0xd8] sm:$0xff]
        %v1280 = vld [vmem:[%s1260 + $0xe0] sm:$0xff]
        %v1281 = vld [vmem:[%s1260 + $0xf0] sm:$0xff]
        %v1282 = vld [vmem:[%s1260 + $0xf8] sm:$0xff]
        %v1283 = vld [vmem:[%s1260 + $0x108] sm:$0xff]
        %v1284 = vld [vmem:[%s1260 + $0x110] sm:$0xff]
        %v1285 = vld [vmem:[%s1260 + $0x120] sm:$0xff]
        %v1286 = vld [vmem:[%s1260 + $0x128] sm:$0xff]
        %v1287 = vld [vmem:[%s1260 + $0x138] sm:$0xff]
        %v1288 = vld [vmem:[%s1260 + $0x140] sm:$0xff]
        %v1289 = vld [vmem:[%s1260 + $0x150] sm:$0xff]
        %v1290 = vld [vmem:[%s1260 + $0x158] sm:$0xff]
        %v1291 = vld [vmem:[%s1260 + $0x168] sm:$0xff]
        %v1292 = vld [vmem:[%s1260 + $0x170] sm:$0xff]
        %1325 = vrot.lane.b32.xlu0 %v1261, 64
        %v1326 = vpop.permute.xlu0 %1325
        %1327 = vrot.lane.b32.xlu0 %v1262, 64
        %v1328 = vpop.permute.xlu0 %1327
        %1329 = vrot.lane.b32.xlu0 %v1263, 64
        %v1330 = vpop.permute.xlu0 %1329
        %1331 = vrot.lane.b32.xlu0 %v1264, 64
        %v1332 = vpop.permute.xlu0 %1331
        %1333 = vrot.lane.b32.xlu0 %v1265, 64
        %v1334 = vpop.permute.xlu0 %1333
        %1335 = vrot.lane.b32.xlu0 %v1266, 64
        %v1336 = vpop.permute.xlu0 %1335
        %1337 = vrot.lane.b32.xlu0 %v1267, 64
        %v1338 = vpop.permute.xlu0 %1337
        %1339 = vrot.lane.b32.xlu0 %v1268, 64
        %v1340 = vpop.permute.xlu0 %1339
        %1341 = vrot.lane.b32.xlu0 %v1269, 64
        %v1342 = vpop.permute.xlu0 %1341
        %1343 = vrot.lane.b32.xlu0 %v1270, 64
        %v1344 = vpop.permute.xlu0 %1343
        %1345 = vrot.lane.b32.xlu0 %v1271, 64
        %v1346 = vpop.permute.xlu0 %1345
        %1347 = vrot.lane.b32.xlu0 %v1272, 64
        %v1348 = vpop.permute.xlu0 %1347
        %1349 = vrot.lane.b32.xlu0 %v1273, 64
        %v1350 = vpop.permute.xlu0 %1349
        %1351 = vrot.lane.b32.xlu0 %v1274, 64
        %v1352 = vpop.permute.xlu0 %1351
        %1353 = vrot.lane.b32.xlu0 %v1275, 64
        %v1354 = vpop.permute.xlu0 %1353
        %1355 = vrot.lane.b32.xlu0 %v1276, 64
        %v1356 = vpop.permute.xlu0 %1355
        %1357 = vrot.lane.b32.xlu0 %v1277, 64
        %v1358 = vpop.permute.xlu0 %1357
        %1359 = vrot.lane.b32.xlu0 %v1278, 64
        %v1360 = vpop.permute.xlu0 %1359
        %1361 = vrot.lane.b32.xlu0 %v1279, 64
        %v1362 = vpop.permute.xlu0 %1361
        %1363 = vrot.lane.b32.xlu0 %v1280, 64
        %v1364 = vpop.permute.xlu0 %1363
        %1365 = vrot.lane.b32.xlu0 %v1281, 64
        %v1366 = vpop.permute.xlu0 %1365
        %1367 = vrot.lane.b32.xlu0 %v1282, 64
        %v1368 = vpop.permute.xlu0 %1367
        %1369 = vrot.lane.b32.xlu0 %v1283, 64
        %v1370 = vpop.permute.xlu0 %1369
        %1371 = vrot.lane.b32.xlu0 %v1284, 64
        %v1372 = vpop.permute.xlu0 %1371
        %1373 = vrot.lane.b32.xlu0 %v1285, 64
        %v1374 = vpop.permute.xlu0 %1373
        %1375 = vrot.lane.b32.xlu0 %v1286, 64
        %v1376 = vpop.permute.xlu0 %1375
        %1377 = vrot.lane.b32.xlu0 %v1287, 64
        %v1378 = vpop.permute.xlu0 %1377
        %1379 = vrot.lane.b32.xlu0 %v1288, 64
        %v1380 = vpop.permute.xlu0 %1379
        %1381 = vrot.lane.b32.xlu0 %v1289, 64
        %v1382 = vpop.permute.xlu0 %1381
        %1383 = vrot.lane.b32.xlu0 %v1290, 64
        %v1384 = vpop.permute.xlu0 %1383
        %1385 = vrot.lane.b32.xlu0 %v1291, 64
        %v1386 = vpop.permute.xlu0 %1385
        %1387 = vrot.lane.b32.xlu0 %v1292, 64
        %v1388 = vpop.permute.xlu0 %1387
        %1421 = vst.msk [vmem:[#allocation2 + $0x8] sm:$0xff] %vm777, %v1326
        %1422 = vst.msk [vmem:[#allocation2 + $0x20] sm:$0xff] %vm777, %v1328
        %1423 = vst.msk [vmem:[#allocation2 + $0x38] sm:$0xff] %vm777, %v1330
        %1424 = vst.msk [vmem:[#allocation2 + $0x50] sm:$0xff] %vm777, %v1332
        %1425 = vst.msk [vmem:[#allocation2 + $0x68] sm:$0xff] %vm777, %v1334
        %1426 = vst.msk [vmem:[#allocation2 + $0x80] sm:$0xff] %vm777, %v1336
        %1427 = vst.msk [vmem:[#allocation2 + $0x98] sm:$0xff] %vm777, %v1338
        %1428 = vst.msk [vmem:[#allocation2 + $0xb0] sm:$0xff] %vm777, %v1340
        %1429 = vst.msk [vmem:[#allocation2 + $0xc8] sm:$0xff] %vm777, %v1342
        %1430 = vst.msk [vmem:[#allocation2 + $0xe0] sm:$0xff] %vm777, %v1344
        %1431 = vst.msk [vmem:[#allocation2 + $0xf8] sm:$0xff] %vm777, %v1346
        %1432 = vst.msk [vmem:[#allocation2 + $0x110] sm:$0xff] %vm777, %v1348
        %1433 = vst.msk [vmem:[#allocation2 + $0x128] sm:$0xff] %vm777, %v1350
        %1434 = vst.msk [vmem:[#allocation2 + $0x140] sm:$0xff] %vm777, %v1352
        %1435 = vst.msk [vmem:[#allocation2 + $0x158] sm:$0xff] %vm777, %v1354
        %1436 = vst.msk [vmem:[#allocation2 + $0x170] sm:$0xff] %vm777, %v1356
        %1437 = vst.msk [vmem:[#allocation2 + $0x188] sm:$0xff] %vm777, %v1358
        %1438 = vst.msk [vmem:[#allocation2 + $0x1a0] sm:$0xff] %vm777, %v1360
        %1439 = vst.msk [vmem:[#allocation2 + $0x1b8] sm:$0xff] %vm777, %v1362
        %1440 = vst.msk [vmem:[#allocation2 + $0x1d0] sm:$0xff] %vm777, %v1364
        %1441 = vst.msk [vmem:[#allocation2 + $0x1e8] sm:$0xff] %vm777, %v1366
        %1442 = vst.msk [vmem:[#allocation2 + $0x200] sm:$0xff] %vm777, %v1368
        %1443 = vst.msk [vmem:[#allocation2 + $0x218] sm:$0xff] %vm777, %v1370
        %1444 = vst.msk [vmem:[#allocation2 + $0x230] sm:$0xff] %vm777, %v1372
        %1445 = vst.msk [vmem:[#allocation2 + $0x248] sm:$0xff] %vm777, %v1374
        %1446 = vst.msk [vmem:[#allocation2 + $0x260] sm:$0xff] %vm777, %v1376
        %1447 = vst.msk [vmem:[#allocation2 + $0x278] sm:$0xff] %vm777, %v1378
        %1448 = vst.msk [vmem:[#allocation2 + $0x290] sm:$0xff] %vm777, %v1380
        %1449 = vst.msk [vmem:[#allocation2 + $0x2a8] sm:$0xff] %vm777, %v1382
        %1450 = vst.msk [vmem:[#allocation2 + $0x2c0] sm:$0xff] %vm777, %v1384
        %1451 = vst.msk [vmem:[#allocation2 + $0x2d8] sm:$0xff] %vm777, %v1386
        %1452 = vst.msk [vmem:[#allocation2 + $0x2f0] sm:$0xff] %vm777, %v1388
        %v1453 = vld [vmem:[%s1260 + $0x1] sm:$0xff]
        %v1454 = vld [vmem:[%s1260 + $0x9] sm:$0xff]
        %v1455 = vld [vmem:[%s1260 + $0x19] sm:$0xff]
        %v1456 = vld [vmem:[%s1260 + $0x21] sm:$0xff]
        %v1457 = vld [vmem:[%s1260 + $0x31] sm:$0xff]
        %v1458 = vld [vmem:[%s1260 + $0x39] sm:$0xff]
        %v1459 = vld [vmem:[%s1260 + $0x49] sm:$0xff]
        %v1460 = vld [vmem:[%s1260 + $0x51] sm:$0xff]
        %v1461 = vld [vmem:[%s1260 + $0x61] sm:$0xff]
        %v1462 = vld [vmem:[%s1260 + $0x69] sm:$0xff]
        %v1463 = vld [vmem:[%s1260 + $0x79] sm:$0xff]
        %v1464 = vld [vmem:[%s1260 + $0x81] sm:$0xff]
        %v1465 = vld [vmem:[%s1260 + $0x91] sm:$0xff]
        %v1466 = vld [vmem:[%s1260 + $0x99] sm:$0xff]
        %v1467 = vld [vmem:[%s1260 + $0xa9] sm:$0xff]
        %v1468 = vld [vmem:[%s1260 + $0xb1] sm:$0xff]
        %v1469 = vld [vmem:[%s1260 + $0xc1] sm:$0xff]
        %v1470 = vld [vmem:[%s1260 + $0xc9] sm:$0xff]
        %v1471 = vld [vmem:[%s1260 + $0xd9] sm:$0xff]
        %v1472 = vld [vmem:[%s1260 + $0xe1] sm:$0xff]
        %v1473 = vld [vmem:[%s1260 + $0xf1] sm:$0xff]
        %v1474 = vld [vmem:[%s1260 + $0xf9] sm:$0xff]
        %v1475 = vld [vmem:[%s1260 + $0x109] sm:$0xff]
        %v1476 = vld [vmem:[%s1260 + $0x111] sm:$0xff]
        %v1477 = vld [vmem:[%s1260 + $0x121] sm:$0xff]
        %v1478 = vld [vmem:[%s1260 + $0x129] sm:$0xff]
        %v1479 = vld [vmem:[%s1260 + $0x139] sm:$0xff]
        %v1480 = vld [vmem:[%s1260 + $0x141] sm:$0xff]
        %v1481 = vld [vmem:[%s1260 + $0x151] sm:$0xff]
        %v1482 = vld [vmem:[%s1260 + $0x159] sm:$0xff]
        %v1483 = vld [vmem:[%s1260 + $0x169] sm:$0xff]
        %v1484 = vld [vmem:[%s1260 + $0x171] sm:$0xff]
        %1517 = vrot.lane.b32.xlu0 %v1453, 96
        %v1518 = vpop.permute.xlu0 %1517
        %1519 = vrot.lane.b32.xlu0 %v1454, 96
        %v1520 = vpop.permute.xlu0 %1519
        %1521 = vrot.lane.b32.xlu0 %v1455, 96
        %v1522 = vpop.permute.xlu0 %1521
        %1523 = vrot.lane.b32.xlu0 %v1456, 96
        %v1524 = vpop.permute.xlu0 %1523
        %1525 = vrot.lane.b32.xlu0 %v1457, 96
        %v1526 = vpop.permute.xlu0 %1525
        %1527 = vrot.lane.b32.xlu0 %v1458, 96
        %v1528 = vpop.permute.xlu0 %1527
        %1529 = vrot.lane.b32.xlu0 %v1459, 96
        %v1530 = vpop.permute.xlu0 %1529
        %1531 = vrot.lane.b32.xlu0 %v1460, 96
        %v1532 = vpop.permute.xlu0 %1531
        %1533 = vrot.lane.b32.xlu0 %v1461, 96
        %v1534 = vpop.permute.xlu0 %1533
        %1535 = vrot.lane.b32.xlu0 %v1462, 96
        %v1536 = vpop.permute.xlu0 %1535
        %1537 = vrot.lane.b32.xlu0 %v1463, 96
        %v1538 = vpop.permute.xlu0 %1537
        %1539 = vrot.lane.b32.xlu0 %v1464, 96
        %v1540 = vpop.permute.xlu0 %1539
        %1541 = vrot.lane.b32.xlu0 %v1465, 96
        %v1542 = vpop.permute.xlu0 %1541
        %1543 = vrot.lane.b32.xlu0 %v1466, 96
        %v1544 = vpop.permute.xlu0 %1543
        %1545 = vrot.lane.b32.xlu0 %v1467, 96
        %v1546 = vpop.permute.xlu0 %1545
        %1547 = vrot.lane.b32.xlu0 %v1468, 96
        %v1548 = vpop.permute.xlu0 %1547
        %1549 = vrot.lane.b32.xlu0 %v1469, 96
        %v1550 = vpop.permute.xlu0 %1549
        %1551 = vrot.lane.b32.xlu0 %v1470, 96
        %v1552 = vpop.permute.xlu0 %1551
        %1553 = vrot.lane.b32.xlu0 %v1471, 96
        %v1554 = vpop.permute.xlu0 %1553
        %1555 = vrot.lane.b32.xlu0 %v1472, 96
        %v1556 = vpop.permute.xlu0 %1555
        %1557 = vrot.lane.b32.xlu0 %v1473, 96
        %v1558 = vpop.permute.xlu0 %1557
        %1559 = vrot.lane.b32.xlu0 %v1474, 96
        %v1560 = vpop.permute.xlu0 %1559
        %1561 = vrot.lane.b32.xlu0 %v1475, 96
        %v1562 = vpop.permute.xlu0 %1561
        %1563 = vrot.lane.b32.xlu0 %v1476, 96
        %v1564 = vpop.permute.xlu0 %1563
        %1565 = vrot.lane.b32.xlu0 %v1477, 96
        %v1566 = vpop.permute.xlu0 %1565
        %1567 = vrot.lane.b32.xlu0 %v1478, 96
        %v1568 = vpop.permute.xlu0 %1567
        %1569 = vrot.lane.b32.xlu0 %v1479, 96
        %v1570 = vpop.permute.xlu0 %1569
        %1571 = vrot.lane.b32.xlu0 %v1480, 96
        %v1572 = vpop.permute.xlu0 %1571
        %1573 = vrot.lane.b32.xlu0 %v1481, 96
        %v1574 = vpop.permute.xlu0 %1573
        %1575 = vrot.lane.b32.xlu0 %v1482, 96
        %v1576 = vpop.permute.xlu0 %1575
        %1577 = vrot.lane.b32.xlu0 %v1483, 96
        %v1578 = vpop.permute.xlu0 %1577
        %1579 = vrot.lane.b32.xlu0 %v1484, 96
        %v1580 = vpop.permute.xlu0 %1579
        %1613 = vst.msk [vmem:[#allocation2 + $0x8] sm:$0xff] %vm971, %v1518
        %1614 = vst.msk [vmem:[#allocation2 + $0x20] sm:$0xff] %vm971, %v1520
        %1615 = vst.msk [vmem:[#allocation2 + $0x38] sm:$0xff] %vm971, %v1522
        %1616 = vst.msk [vmem:[#allocation2 + $0x50] sm:$0xff] %vm971, %v1524
        %1617 = vst.msk [vmem:[#allocation2 + $0x68] sm:$0xff] %vm971, %v1526
        %1618 = vst.msk [vmem:[#allocation2 + $0x80] sm:$0xff] %vm971, %v1528
        %1619 = vst.msk [vmem:[#allocation2 + $0x98] sm:$0xff] %vm971, %v1530
        %1620 = vst.msk [vmem:[#allocation2 + $0xb0] sm:$0xff] %vm971, %v1532
        %1621 = vst.msk [vmem:[#allocation2 + $0xc8] sm:$0xff] %vm971, %v1534
        %1622 = vst.msk [vmem:[#allocation2 + $0xe0] sm:$0xff] %vm971, %v1536
        %1623 = vst.msk [vmem:[#allocation2 + $0xf8] sm:$0xff] %vm971, %v1538
        %1624 = vst.msk [vmem:[#allocation2 + $0x110] sm:$0xff] %vm971, %v1540
        %1625 = vst.msk [vmem:[#allocation2 + $0x128] sm:$0xff] %vm971, %v1542
        %1626 = vst.msk [vmem:[#allocation2 + $0x140] sm:$0xff] %vm971, %v1544
        %1627 = vst.msk [vmem:[#allocation2 + $0x158] sm:$0xff] %vm971, %v1546
        %1628 = vst.msk [vmem:[#allocation2 + $0x170] sm:$0xff] %vm971, %v1548
        %1629 = vst.msk [vmem:[#allocation2 + $0x188] sm:$0xff] %vm971, %v1550
        %1630 = vst.msk [vmem:[#allocation2 + $0x1a0] sm:$0xff] %vm971, %v1552
        %1631 = vst.msk [vmem:[#allocation2 + $0x1b8] sm:$0xff] %vm971, %v1554
        %1632 = vst.msk [vmem:[#allocation2 + $0x1d0] sm:$0xff] %vm971, %v1556
        %1633 = vst.msk [vmem:[#allocation2 + $0x1e8] sm:$0xff] %vm971, %v1558
        %1634 = vst.msk [vmem:[#allocation2 + $0x200] sm:$0xff] %vm971, %v1560
        %1635 = vst.msk [vmem:[#allocation2 + $0x218] sm:$0xff] %vm971, %v1562
        %1636 = vst.msk [vmem:[#allocation2 + $0x230] sm:$0xff] %vm971, %v1564
        %1637 = vst.msk [vmem:[#allocation2 + $0x248] sm:$0xff] %vm971, %v1566
        %1638 = vst.msk [vmem:[#allocation2 + $0x260] sm:$0xff] %vm971, %v1568
        %1639 = vst.msk [vmem:[#allocation2 + $0x278] sm:$0xff] %vm971, %v1570
        %1640 = vst.msk [vmem:[#allocation2 + $0x290] sm:$0xff] %vm971, %v1572
        %1641 = vst.msk [vmem:[#allocation2 + $0x2a8] sm:$0xff] %vm971, %v1574
        %1642 = vst.msk [vmem:[#allocation2 + $0x2c0] sm:$0xff] %vm971, %v1576
        %1643 = vst.msk [vmem:[#allocation2 + $0x2d8] sm:$0xff] %vm971, %v1578
        %1644 = vst.msk [vmem:[#allocation2 + $0x2f0] sm:$0xff] %vm971, %v1580
        %v1645 = vld [vmem:[%s1260 + $0x2] sm:$0xff]
        %v1646 = vld [vmem:[%s1260 + $0xa] sm:$0xff]
        %v1647 = vld [vmem:[%s1260 + $0x1a] sm:$0xff]
        %v1648 = vld [vmem:[%s1260 + $0x22] sm:$0xff]
        %v1649 = vld [vmem:[%s1260 + $0x32] sm:$0xff]
        %v1650 = vld [vmem:[%s1260 + $0x3a] sm:$0xff]
        %v1651 = vld [vmem:[%s1260 + $0x4a] sm:$0xff]
        %v1652 = vld [vmem:[%s1260 + $0x52] sm:$0xff]
        %v1653 = vld [vmem:[%s1260 + $0x62] sm:$0xff]
        %v1654 = vld [vmem:[%s1260 + $0x6a] sm:$0xff]
        %v1655 = vld [vmem:[%s1260 + $0x7a] sm:$0xff]
        %v1656 = vld [vmem:[%s1260 + $0x82] sm:$0xff]
        %v1657 = vld [vmem:[%s1260 + $0x92] sm:$0xff]
        %v1658 = vld [vmem:[%s1260 + $0x9a] sm:$0xff]
        %v1659 = vld [vmem:[%s1260 + $0xaa] sm:$0xff]
        %v1660 = vld [vmem:[%s1260 + $0xb2] sm:$0xff]
        %v1661 = vld [vmem:[%s1260 + $0xc2] sm:$0xff]
        %v1662 = vld [vmem:[%s1260 + $0xca] sm:$0xff]
        %v1663 = vld [vmem:[%s1260 + $0xda] sm:$0xff]
        %v1664 = vld [vmem:[%s1260 + $0xe2] sm:$0xff]
        %v1665 = vld [vmem:[%s1260 + $0xf2] sm:$0xff]
        %v1666 = vld [vmem:[%s1260 + $0xfa] sm:$0xff]
        %v1667 = vld [vmem:[%s1260 + $0x10a] sm:$0xff]
        %v1668 = vld [vmem:[%s1260 + $0x112] sm:$0xff]
        %v1669 = vld [vmem:[%s1260 + $0x122] sm:$0xff]
        %v1670 = vld [vmem:[%s1260 + $0x12a] sm:$0xff]
        %v1671 = vld [vmem:[%s1260 + $0x13a] sm:$0xff]
        %v1672 = vld [vmem:[%s1260 + $0x142] sm:$0xff]
        %v1673 = vld [vmem:[%s1260 + $0x152] sm:$0xff]
        %v1674 = vld [vmem:[%s1260 + $0x15a] sm:$0xff]
        %v1675 = vld [vmem:[%s1260 + $0x16a] sm:$0xff]
        %v1676 = vld [vmem:[%s1260 + $0x172] sm:$0xff]
        %1677 = vst.msk [vmem:[#allocation2 + $0x10] sm:$0xff] %vm391, %v1645
        %1678 = vst.msk [vmem:[#allocation2 + $0x28] sm:$0xff] %vm391, %v1646
        %1679 = vst.msk [vmem:[#allocation2 + $0x40] sm:$0xff] %vm391, %v1647
        %1680 = vst.msk [vmem:[#allocation2 + $0x58] sm:$0xff] %vm391, %v1648
        %1681 = vst.msk [vmem:[#allocation2 + $0x70] sm:$0xff] %vm391, %v1649
        %1682 = vst.msk [vmem:[#allocation2 + $0x88] sm:$0xff] %vm391, %v1650
        %1683 = vst.msk [vmem:[#allocation2 + $0xa0] sm:$0xff] %vm391, %v1651
        %1684 = vst.msk [vmem:[#allocation2 + $0xb8] sm:$0xff] %vm391, %v1652
        %1685 = vst.msk [vmem:[#allocation2 + $0xd0] sm:$0xff] %vm391, %v1653
        %1686 = vst.msk [vmem:[#allocation2 + $0xe8] sm:$0xff] %vm391, %v1654
        %1687 = vst.msk [vmem:[#allocation2 + $0x100] sm:$0xff] %vm391, %v1655
        %1688 = vst.msk [vmem:[#allocation2 + $0x118] sm:$0xff] %vm391, %v1656
        %1689 = vst.msk [vmem:[#allocation2 + $0x130] sm:$0xff] %vm391, %v1657
        %1690 = vst.msk [vmem:[#allocation2 + $0x148] sm:$0xff] %vm391, %v1658
        %1691 = vst.msk [vmem:[#allocation2 + $0x160] sm:$0xff] %vm391, %v1659
        %1692 = vst.msk [vmem:[#allocation2 + $0x178] sm:$0xff] %vm391, %v1660
        %1693 = vst.msk [vmem:[#allocation2 + $0x190] sm:$0xff] %vm391, %v1661
        %1694 = vst.msk [vmem:[#allocation2 + $0x1a8] sm:$0xff] %vm391, %v1662
        %1695 = vst.msk [vmem:[#allocation2 + $0x1c0] sm:$0xff] %vm391, %v1663
        %1696 = vst.msk [vmem:[#allocation2 + $0x1d8] sm:$0xff] %vm391, %v1664
        %1697 = vst.msk [vmem:[#allocation2 + $0x1f0] sm:$0xff] %vm391, %v1665
        %1698 = vst.msk [vmem:[#allocation2 + $0x208] sm:$0xff] %vm391, %v1666
        %1699 = vst.msk [vmem:[#allocation2 + $0x220] sm:$0xff] %vm391, %v1667
        %1700 = vst.msk [vmem:[#allocation2 + $0x238] sm:$0xff] %vm391, %v1668
        %1701 = vst.msk [vmem:[#allocation2 + $0x250] sm:$0xff] %vm391, %v1669
        %1702 = vst.msk [vmem:[#allocation2 + $0x268] sm:$0xff] %vm391, %v1670
        %1703 = vst.msk [vmem:[#allocation2 + $0x280] sm:$0xff] %vm391, %v1671
        %1704 = vst.msk [vmem:[#allocation2 + $0x298] sm:$0xff] %vm391, %v1672
        %1705 = vst.msk [vmem:[#allocation2 + $0x2b0] sm:$0xff] %vm391, %v1673
        %1706 = vst.msk [vmem:[#allocation2 + $0x2c8] sm:$0xff] %vm391, %v1674
        %1707 = vst.msk [vmem:[#allocation2 + $0x2e0] sm:$0xff] %vm391, %v1675
        %1708 = vst.msk [vmem:[#allocation2 + $0x2f8] sm:$0xff] %vm391, %v1676
        %v1709 = vld [vmem:[#allocation2] sm:$0xff]
        %v1710 = vld [vmem:[#allocation2 + $0x8] sm:$0xff]
        %v1711 = vld [vmem:[#allocation2 + $0x10] sm:$0xff]
        %v1712 = vld [vmem:[#allocation2 + $0x18] sm:$0xff]
        %v1713 = vld [vmem:[#allocation2 + $0x20] sm:$0xff]
        %v1714 = vld [vmem:[#allocation2 + $0x28] sm:$0xff]
        %v1715 = vld [vmem:[#allocation2 + $0x30] sm:$0xff]
        %v1716 = vld [vmem:[#allocation2 + $0x38] sm:$0xff]
        %v1717 = vld [vmem:[#allocation2 + $0x40] sm:$0xff]
        %v1718 = vld [vmem:[#allocation2 + $0x48] sm:$0xff]
        %v1719 = vld [vmem:[#allocation2 + $0x50] sm:$0xff]
        %v1720 = vld [vmem:[#allocation2 + $0x58] sm:$0xff]
        %v1721 = vld [vmem:[#allocation2 + $0x60] sm:$0xff]
        %v1722 = vld [vmem:[#allocation2 + $0x68] sm:$0xff]
        %v1723 = vld [vmem:[#allocation2 + $0x70] sm:$0xff]
        %v1724 = vld [vmem:[#allocation2 + $0x78] sm:$0xff]
        %v1725 = vld [vmem:[#allocation2 + $0x80] sm:$0xff]
        %v1726 = vld [vmem:[#allocation2 + $0x88] sm:$0xff]
        %v1727 = vld [vmem:[#allocation2 + $0x90] sm:$0xff]
        %v1728 = vld [vmem:[#allocation2 + $0x98] sm:$0xff]
        %v1729 = vld [vmem:[#allocation2 + $0xa0] sm:$0xff]
        %v1730 = vld [vmem:[#allocation2 + $0xa8] sm:$0xff]
        %v1731 = vld [vmem:[#allocation2 + $0xb0] sm:$0xff]
        %v1732 = vld [vmem:[#allocation2 + $0xb8] sm:$0xff]
        %v1733 = vld [vmem:[#allocation2 + $0xc0] sm:$0xff]
        %v1734 = vld [vmem:[#allocation2 + $0xc8] sm:$0xff]
        %v1735 = vld [vmem:[#allocation2 + $0xd0] sm:$0xff]
        %v1736 = vld [vmem:[#allocation2 + $0xd8] sm:$0xff]
        %v1737 = vld [vmem:[#allocation2 + $0xe0] sm:$0xff]
        %v1738 = vld [vmem:[#allocation2 + $0xe8] sm:$0xff]
        %v1739 = vld [vmem:[#allocation2 + $0xf0] sm:$0xff]
        %v1740 = vld [vmem:[#allocation2 + $0xf8] sm:$0xff]
        %v1741 = vld [vmem:[#allocation2 + $0x100] sm:$0xff]
        %v1742 = vld [vmem:[#allocation2 + $0x108] sm:$0xff]
        %v1743 = vld [vmem:[#allocation2 + $0x110] sm:$0xff]
        %v1744 = vld [vmem:[#allocation2 + $0x118] sm:$0xff]
        %v1745 = vld [vmem:[#allocation2 + $0x120] sm:$0xff]
        %v1746 = vld [vmem:[#allocation2 + $0x128] sm:$0xff]
        %v1747 = vld [vmem:[#allocation2 + $0x130] sm:$0xff]
        %v1748 = vld [vmem:[#allocation2 + $0x138] sm:$0xff]
        %v1749 = vld [vmem:[#allocation2 + $0x140] sm:$0xff]
        %v1750 = vld [vmem:[#allocation2 + $0x148] sm:$0xff]
        %v1751 = vld [vmem:[#allocation2 + $0x150] sm:$0xff]
        %v1752 = vld [vmem:[#allocation2 + $0x158] sm:$0xff]
        %v1753 = vld [vmem:[#allocation2 + $0x160] sm:$0xff]
        %v1754 = vld [vmem:[#allocation2 + $0x168] sm:$0xff]
        %v1755 = vld [vmem:[#allocation2 + $0x170] sm:$0xff]
        %v1756 = vld [vmem:[#allocation2 + $0x178] sm:$0xff]
        %v1757 = vld [vmem:[#allocation2 + $0x180] sm:$0xff]
        %v1758 = vld [vmem:[#allocation2 + $0x188] sm:$0xff]
        %v1759 = vld [vmem:[#allocation2 + $0x190] sm:$0xff]
        %v1760 = vld [vmem:[#allocation2 + $0x198] sm:$0xff]
        %v1761 = vld [vmem:[#allocation2 + $0x1a0] sm:$0xff]
        %v1762 = vld [vmem:[#allocation2 + $0x1a8] sm:$0xff]
        %v1763 = vld [vmem:[#allocation2 + $0x1b0] sm:$0xff]
        %v1764 = vld [vmem:[#allocation2 + $0x1b8] sm:$0xff]
        %v1765 = vld [vmem:[#allocation2 + $0x1c0] sm:$0xff]
        %v1766 = vld [vmem:[#allocation2 + $0x1c8] sm:$0xff]
        %v1767 = vld [vmem:[#allocation2 + $0x1d0] sm:$0xff]
        %v1768 = vld [vmem:[#allocation2 + $0x1d8] sm:$0xff]
        %v1769 = vld [vmem:[#allocation2 + $0x1e0] sm:$0xff]
        %v1770 = vld [vmem:[#allocation2 + $0x1e8] sm:$0xff]
        %v1771 = vld [vmem:[#allocation2 + $0x1f0] sm:$0xff]
        %v1772 = vld [vmem:[#allocation2 + $0x1f8] sm:$0xff]
        %v1773 = vld [vmem:[#allocation2 + $0x200] sm:$0xff]
        %v1774 = vld [vmem:[#allocation2 + $0x208] sm:$0xff]
        %v1775 = vld [vmem:[#allocation2 + $0x210] sm:$0xff]
        %v1776 = vld [vmem:[#allocation2 + $0x218] sm:$0xff]
        %v1777 = vld [vmem:[#allocation2 + $0x220] sm:$0xff]
        %v1778 = vld [vmem:[#allocation2 + $0x228] sm:$0xff]
        %v1779 = vld [vmem:[#allocation2 + $0x230] sm:$0xff]
        %v1780 = vld [vmem:[#allocation2 + $0x238] sm:$0xff]
        %v1781 = vld [vmem:[#allocation2 + $0x240] sm:$0xff]
        %v1782 = vld [vmem:[#allocation2 + $0x248] sm:$0xff]
        %v1783 = vld [vmem:[#allocation2 + $0x250] sm:$0xff]
        %v1784 = vld [vmem:[#allocation2 + $0x258] sm:$0xff]
        %v1785 = vld [vmem:[#allocation2 + $0x260] sm:$0xff]
        %v1786 = vld [vmem:[#allocation2 + $0x268] sm:$0xff]
        %v1787 = vld [vmem:[#allocation2 + $0x270] sm:$0xff]
        %v1788 = vld [vmem:[#allocation2 + $0x278] sm:$0xff]
        %v1789 = vld [vmem:[#allocation2 + $0x280] sm:$0xff]
        %v1790 = vld [vmem:[#allocation2 + $0x288] sm:$0xff]
        %v1791 = vld [vmem:[#allocation2 + $0x290] sm:$0xff]
        %v1792 = vld [vmem:[#allocation2 + $0x298] sm:$0xff]
        %v1793 = vld [vmem:[#allocation2 + $0x2a0] sm:$0xff]
        %v1794 = vld [vmem:[#allocation2 + $0x2a8] sm:$0xff]
        %v1795 = vld [vmem:[#allocation2 + $0x2b0] sm:$0xff]
        %v1796 = vld [vmem:[#allocation2 + $0x2b8] sm:$0xff]
        %v1797 = vld [vmem:[#allocation2 + $0x2c0] sm:$0xff]
        %v1798 = vld [vmem:[#allocation2 + $0x2c8] sm:$0xff]
        %v1799 = vld [vmem:[#allocation2 + $0x2d0] sm:$0xff]
        %v1800 = vld [vmem:[#allocation2 + $0x2d8] sm:$0xff]
        %v1801 = vld [vmem:[#allocation2 + $0x2e0] sm:$0xff]
        %v1802 = vld [vmem:[#allocation2 + $0x2e8] sm:$0xff]
        %v1803 = vld [vmem:[#allocation2 + $0x2f0] sm:$0xff]
        %v1804 = vld [vmem:[#allocation2 + $0x2f8] sm:$0xff]
        %v1805 = vpack.c.bf16 %v1712, %v1709
        %v1806 = vpack.c.bf16 %v1713, %v1710
        %v1807 = vpack.c.bf16 %v1714, %v1711
        %v1808 = vpack.c.bf16 %v1718, %v1715
        %v1809 = vpack.c.bf16 %v1719, %v1716
        %v1810 = vpack.c.bf16 %v1720, %v1717
        %v1811 = vpack.c.bf16 %v1724, %v1721
        %v1812 = vpack.c.bf16 %v1725, %v1722
        %v1813 = vpack.c.bf16 %v1726, %v1723
        %v1814 = vpack.c.bf16 %v1730, %v1727
        %v1815 = vpack.c.bf16 %v1731, %v1728
        %v1816 = vpack.c.bf16 %v1732, %v1729
        %v1817 = vpack.c.bf16 %v1736, %v1733
        %v1818 = vpack.c.bf16 %v1737, %v1734
        %v1819 = vpack.c.bf16 %v1738, %v1735
        %v1820 = vpack.c.bf16 %v1742, %v1739
        %v1821 = vpack.c.bf16 %v1743, %v1740
        %v1822 = vpack.c.bf16 %v1744, %v1741
        %v1823 = vpack.c.bf16 %v1748, %v1745
        %v1824 = vpack.c.bf16 %v1749, %v1746
        %v1825 = vpack.c.bf16 %v1750, %v1747
        %v1826 = vpack.c.bf16 %v1754, %v1751
        %v1827 = vpack.c.bf16 %v1755, %v1752
        %v1828 = vpack.c.bf16 %v1756, %v1753
        %v1829 = vpack.c.bf16 %v1760, %v1757
        %v1830 = vpack.c.bf16 %v1761, %v1758
        %v1831 = vpack.c.bf16 %v1762, %v1759
        %v1832 = vpack.c.bf16 %v1766, %v1763
        %v1833 = vpack.c.bf16 %v1767, %v1764
        %v1834 = vpack.c.bf16 %v1768, %v1765
        %v1835 = vpack.c.bf16 %v1772, %v1769
        %v1836 = vpack.c.bf16 %v1773, %v1770
        %v1837 = vpack.c.bf16 %v1774, %v1771
        %v1838 = vpack.c.bf16 %v1778, %v1775
        %v1839 = vpack.c.bf16 %v1779, %v1776
        %v1840 = vpack.c.bf16 %v1780, %v1777
        %v1841 = vpack.c.bf16 %v1784, %v1781
        %v1842 = vpack.c.bf16 %v1785, %v1782
        %v1843 = vpack.c.bf16 %v1786, %v1783
        %v1844 = vpack.c.bf16 %v1790, %v1787
        %v1845 = vpack.c.bf16 %v1791, %v1788
        %v1846 = vpack.c.bf16 %v1792, %v1789
        %v1847 = vpack.c.bf16 %v1796, %v1793
        %v1848 = vpack.c.bf16 %v1797, %v1794
        %v1849 = vpack.c.bf16 %v1798, %v1795
        %v1850 = vpack.c.bf16 %v1802, %v1799
        %v1851 = vpack.c.bf16 %v1803, %v1800
        %v1852 = vpack.c.bf16 %v1804, %v1801
        %v1853 = vld [vmem:[%s1] sm:$0xf]
        %v1854 = vld [vmem:[%s1 + $0x4] sm:$0xf]
        %v1855 = vld [vmem:[%s1 + $0x8] sm:$0xf]
        %v1856 = vld [vmem:[%s1 + $0xc] sm:$0xf]
        %v1857 = vld [vmem:[%s1 + $0x10] sm:$0xf]
        %v1858 = vld [vmem:[%s1 + $0x14] sm:$0xf]
        %v1859 = vld [vmem:[%s1 + $0x18] sm:$0xf]
        %v1860 = vld [vmem:[%s1 + $0x1c] sm:$0xf]
        %v1861 = vld [vmem:[%s1 + $0x20] sm:$0xf]
        %v1862 = vld [vmem:[%s1 + $0x24] sm:$0xf]
        %v1863 = vld [vmem:[%s1 + $0x28] sm:$0xf]
        %v1864 = vld [vmem:[%s1 + $0x2c] sm:$0xf]
        %v1865 = vld [vmem:[%s1 + $0x30] sm:$0xf]
        %v1866 = vld [vmem:[%s1 + $0x34] sm:$0xf]
        %v1867 = vld [vmem:[%s1 + $0x38] sm:$0xf]
        %v1868 = vld [vmem:[%s1 + $0x3c] sm:$0xf]
        %v1869 = vld [vmem:[%s1 + $0x40] sm:$0xf]
        %v1870 = vld [vmem:[%s1 + $0x44] sm:$0xf]
        %v1871 = vld [vmem:[%s1 + $0x48] sm:$0xf]
        %v1872 = vld [vmem:[%s1 + $0x4c] sm:$0xf]
        %v1873 = vld [vmem:[%s1 + $0x50] sm:$0xf]
        %v1874 = vld [vmem:[%s1 + $0x54] sm:$0xf]
        %v1875 = vld [vmem:[%s1 + $0x58] sm:$0xf]
        %v1876 = vld [vmem:[%s1 + $0x5c] sm:$0xf]
        %v1877 = vld [vmem:[%s1 + $0x60] sm:$0xf]
        %v1878 = vld [vmem:[%s1 + $0x64] sm:$0xf]
        %v1879 = vld [vmem:[%s1 + $0x68] sm:$0xf]
        %v1880 = vld [vmem:[%s1 + $0x6c] sm:$0xf]
        %v1881 = vld [vmem:[%s1 + $0x70] sm:$0xf]
        %v1882 = vld [vmem:[%s1 + $0x74] sm:$0xf]
        %v1883 = vld [vmem:[%s1 + $0x78] sm:$0xf]
        %v1884 = vld [vmem:[%s1 + $0x7c] sm:$0xf]
        %v1885 = vld [vmem:[%s1 + $0x80] sm:$0xf]
        %v1886 = vld [vmem:[%s1 + $0x84] sm:$0xf]
        %v1887 = vld [vmem:[%s1 + $0x88] sm:$0xf]
        %v1888 = vld [vmem:[%s1 + $0x8c] sm:$0xf]
        %v1925 = vunpack.c.l.b16 %v1853
        %v1926 = vunpack.c.l.b16 %v1854
        %v1927 = vunpack.c.l.b16 %v1855
        %v1928 = vunpack.c.l.b16 %v1856
        %v1929 = vunpack.c.l.b16 %v1857
        %v1930 = vunpack.c.l.b16 %v1858
        %v1931 = vunpack.c.l.b16 %v1859
        %v1932 = vunpack.c.l.b16 %v1860
        %v1933 = vunpack.c.l.b16 %v1861
        %v1934 = vunpack.c.l.b16 %v1862
        %v1935 = vunpack.c.l.b16 %v1863
        %v1936 = vunpack.c.l.b16 %v1864
        %v1937 = vunpack.c.l.b16 %v1865
        %v1938 = vunpack.c.l.b16 %v1866
        %v1939 = vunpack.c.l.b16 %v1867
        %v1940 = vunpack.c.l.b16 %v1868
        %v1941 = vunpack.c.l.b16 %v1869
        %v1942 = vunpack.c.l.b16 %v1870
        %v1943 = vunpack.c.l.b16 %v1871
        %v1944 = vunpack.c.l.b16 %v1872
        %v1945 = vunpack.c.l.b16 %v1873
        %v1946 = vunpack.c.l.b16 %v1874
        %v1947 = vunpack.c.l.b16 %v1875
        %v1948 = vunpack.c.l.b16 %v1876
        %v1949 = vunpack.c.l.b16 %v1877
        %v1950 = vunpack.c.l.b16 %v1878
        %v1951 = vunpack.c.l.b16 %v1879
        %v1952 = vunpack.c.l.b16 %v1880
        %v1953 = vunpack.c.l.b16 %v1881
        %v1954 = vunpack.c.l.b16 %v1882
        %v1955 = vunpack.c.l.b16 %v1883
        %v1956 = vunpack.c.l.b16 %v1884
        %v1957 = vunpack.c.l.b16 %v1885
        %v1958 = vunpack.c.l.b16 %v1886
        %v1959 = vunpack.c.l.b16 %v1887
        %v1960 = vunpack.c.l.b16 %v1888
        %v1961 = vpack.c.b16 %v1926, %v1925
        %v1962 = vpack.c.b16 %v1928, %v1927
        %v1963 = vpack.c.b16 %v1930, %v1929
        %v1964 = vpack.c.b16 %v1932, %v1931
        %v1965 = vpack.c.b16 %v1934, %v1933
        %v1966 = vpack.c.b16 %v1936, %v1935
        %v1967 = vpack.c.b16 %v1938, %v1937
        %v1968 = vpack.c.b16 %v1940, %v1939
        %v1969 = vpack.c.b16 %v1942, %v1941
        %v1970 = vpack.c.b16 %v1944, %v1943
        %v1971 = vpack.c.b16 %v1946, %v1945
        %v1972 = vpack.c.b16 %v1948, %v1947
        %v1973 = vpack.c.b16 %v1950, %v1949
        %v1974 = vpack.c.b16 %v1952, %v1951
        %v1975 = vpack.c.b16 %v1954, %v1953
        %v1976 = vpack.c.b16 %v1956, %v1955
        %v1977 = vpack.c.b16 %v1958, %v1957
        %v1978 = vpack.c.b16 %v1960, %v1959
        %v1998 = vsel %vm391, %v1807, 0
        %v2001 = vsel %vm391, %v1810, 0
        %v2004 = vsel %vm391, %v1813, 0
        %v2007 = vsel %vm391, %v1816, 0
        %v2010 = vsel %vm391, %v1819, 0
        %v2013 = vsel %vm391, %v1822, 0
        %v2016 = vsel %vm391, %v1825, 0
        %v2019 = vsel %vm391, %v1828, 0
        %v2022 = vsel %vm391, %v1831, 0
        %v2025 = vsel %vm391, %v1834, 0
        %v2028 = vsel %vm391, %v1837, 0
        %v2031 = vsel %vm391, %v1840, 0
        %v2034 = vsel %vm391, %v1843, 0
        %v2037 = vsel %vm391, %v1846, 0
        %v2040 = vsel %vm391, %v1849, 0
        %v2043 = vsel %vm391, %v1852, 0
        %2045 = vmatprep.subr.bf16.mxu0 0
        %2046 = vmatpush1.bf16.msra.mxu0 %v1968
        %2047 = vmatprep.subr.bf16.mxu0 0
        %2048 = vmatpush1.bf16.msra.mxu0 %v1967
        %2049 = vmatprep.subr.bf16.mxu0 0
        %2050 = vmatpush1.bf16.msra.mxu0 %v1966
        %2051 = vmatprep.subr.bf16.mxu0 0
        %2052 = vmatpush1.bf16.msra.mxu0 %v1965
        %2053 = vmatprep.subr.bf16.mxu0 0
        %2054 = vmatpush1.bf16.msra.mxu0 %v1964
        %2055 = vmatprep.subr.bf16.mxu0 0
        %2056 = vmatpush1.bf16.msra.mxu0 %v1963
        %2057 = vmatprep.subr.bf16.mxu0 0
        %2058 = vmatpush1.bf16.msra.mxu0 %v1962
        %2059 = vmatprep.subr.bf16.mxu0 0
        %2060 = vmatpush1.bf16.msra.mxu0 %v1961
        %2061 = vmatprep.subr.bf16.mxu0 0
        %2062 = vmatpush2.bf16.msra.mxu0 %v1976
        %2063 = vmatprep.subr.bf16.mxu0 0
        %2064 = vmatpush2.bf16.msra.mxu0 %v1975
        %2065 = vmatprep.subr.bf16.mxu0 0
        %2066 = vmatpush2.bf16.msra.mxu0 %v1974
        %2067 = vmatprep.subr.bf16.mxu0 0
        %2068 = vmatpush2.bf16.msra.mxu0 %v1973
        %2069 = vmatprep.subr.bf16.mxu0 0
        %2070 = vmatpush2.bf16.msra.mxu0 %v1972
        %2071 = vmatprep.subr.bf16.mxu0 0
        %2072 = vmatpush2.bf16.msra.mxu0 %v1971
        %2073 = vmatprep.subr.bf16.mxu0 0
        %2074 = vmatpush2.bf16.msra.mxu0 %v1970
        %2075 = vmatprep.subr.bf16.mxu0 0
        %2076 = vmatpush2.bf16.msra.mxu0 %v1969
        %2077 = vmatprep.mubr.bf16.mxu0 %v1806
        %2078 = vmatmul.mubr.bf16.gmra.mxu0 %v1805
        %v2079 = vpop.f32.mrf.mxu0
        %v2080 = vadd.f32 0.0, %v2079
        %v2081 = vpop.f32.mrf.mxu0
        %v2082 = vpop.f32.mrf.mxu0
        %v2083 = vadd.f32 0.0, %v2082
        %v2084 = vpop.f32.mrf.mxu0
        %2085 = vmatprep.mubr.bf16.mxu0 %v1809
        %2086 = vmatmul.mubr.bf16.gmra.mxu0 %v1808
        %v2087 = vpop.f32.mrf.mxu0
        %v2088 = vadd.f32 0.0, %v2087
        %v2089 = vpop.f32.mrf.mxu0
        %v2090 = vpop.f32.mrf.mxu0
        %v2091 = vadd.f32 0.0, %v2090
        %v2092 = vpop.f32.mrf.mxu0
        %2093 = vmatprep.mubr.bf16.mxu0 %v1812
        %2094 = vmatmul.mubr.bf16.gmra.mxu0 %v1811
        %v2095 = vpop.f32.mrf.mxu0
        %v2096 = vadd.f32 0.0, %v2095
        %v2097 = vpop.f32.mrf.mxu0
        %v2098 = vpop.f32.mrf.mxu0
        %v2099 = vadd.f32 0.0, %v2098
        %v2100 = vpop.f32.mrf.mxu0
        %2101 = vmatprep.mubr.bf16.mxu0 %v1815
        %2102 = vmatmul.mubr.bf16.gmra.mxu0 %v1814
        %v2103 = vpop.f32.mrf.mxu0
        %v2104 = vadd.f32 0.0, %v2103
        %v2105 = vpop.f32.mrf.mxu0
        %v2106 = vpop.f32.mrf.mxu0
        %v2107 = vadd.f32 0.0, %v2106
        %v2108 = vpop.f32.mrf.mxu0
        %2109 = vmatprep.mubr.bf16.mxu0 %v1818
        %2110 = vmatmul.mubr.bf16.gmra.mxu0 %v1817
        %v2111 = vpop.f32.mrf.mxu0
        %v2112 = vadd.f32 0.0, %v2111
        %v2113 = vpop.f32.mrf.mxu0
        %v2114 = vpop.f32.mrf.mxu0
        %v2115 = vadd.f32 0.0, %v2114
        %v2116 = vpop.f32.mrf.mxu0
        %2117 = vmatprep.mubr.bf16.mxu0 %v1821
        %2118 = vmatmul.mubr.bf16.gmra.mxu0 %v1820
        %v2119 = vpop.f32.mrf.mxu0
        %v2120 = vadd.f32 0.0, %v2119
        %v2121 = vpop.f32.mrf.mxu0
        %v2122 = vpop.f32.mrf.mxu0
        %v2123 = vadd.f32 0.0, %v2122
        %v2124 = vpop.f32.mrf.mxu0
        %2125 = vmatprep.mubr.bf16.mxu0 %v1824
        %2126 = vmatmul.mubr.bf16.gmra.mxu0 %v1823
        %v2127 = vpop.f32.mrf.mxu0
        %v2128 = vadd.f32 0.0, %v2127
        %v2129 = vpop.f32.mrf.mxu0
        %v2130 = vpop.f32.mrf.mxu0
        %v2131 = vadd.f32 0.0, %v2130
        %v2132 = vpop.f32.mrf.mxu0
        %2133 = vmatprep.mubr.bf16.mxu0 %v1827
        %2134 = vmatmul.mubr.bf16.gmra.mxu0 %v1826
        %v2135 = vpop.f32.mrf.mxu0
        %v2136 = vadd.f32 0.0, %v2135
        %v2137 = vpop.f32.mrf.mxu0
        %v2138 = vpop.f32.mrf.mxu0
        %v2139 = vadd.f32 0.0, %v2138
        %v2140 = vpop.f32.mrf.mxu0
        %2141 = vmatprep.mubr.bf16.mxu0 %v1830
        %2142 = vmatmul.mubr.bf16.gmra.mxu0 %v1829
        %v2143 = vpop.f32.mrf.mxu0
        %v2144 = vadd.f32 0.0, %v2143
        %v2145 = vpop.f32.mrf.mxu0
        %v2146 = vpop.f32.mrf.mxu0
        %v2147 = vadd.f32 0.0, %v2146
        %v2148 = vpop.f32.mrf.mxu0
        %2149 = vmatprep.mubr.bf16.mxu0 %v1833
        %2150 = vmatmul.mubr.bf16.gmra.mxu0 %v1832
        %v2151 = vpop.f32.mrf.mxu0
        %v2152 = vadd.f32 0.0, %v2151
        %v2153 = vpop.f32.mrf.mxu0
        %v2154 = vpop.f32.mrf.mxu0
        %v2155 = vadd.f32 0.0, %v2154
        %v2156 = vpop.f32.mrf.mxu0
        %2157 = vmatprep.mubr.bf16.mxu0 %v1836
        %2158 = vmatmul.mubr.bf16.gmra.mxu0 %v1835
        %v2159 = vpop.f32.mrf.mxu0
        %v2160 = vadd.f32 0.0, %v2159
        %v2161 = vpop.f32.mrf.mxu0
        %v2162 = vpop.f32.mrf.mxu0
        %v2163 = vadd.f32 0.0, %v2162
        %v2164 = vpop.f32.mrf.mxu0
        %2165 = vmatprep.mubr.bf16.mxu0 %v1839
        %2166 = vmatmul.mubr.bf16.gmra.mxu0 %v1838
        %v2167 = vpop.f32.mrf.mxu0
        %v2168 = vadd.f32 0.0, %v2167
        %v2169 = vpop.f32.mrf.mxu0
        %v2170 = vpop.f32.mrf.mxu0
        %v2171 = vadd.f32 0.0, %v2170
        %v2172 = vpop.f32.mrf.mxu0
        %2173 = vmatprep.mubr.bf16.mxu0 %v1842
        %2174 = vmatmul.mubr.bf16.gmra.mxu0 %v1841
        %v2175 = vpop.f32.mrf.mxu0
        %v2176 = vadd.f32 0.0, %v2175
        %v2177 = vpop.f32.mrf.mxu0
        %v2178 = vpop.f32.mrf.mxu0
        %v2179 = vadd.f32 0.0, %v2178
        %v2180 = vpop.f32.mrf.mxu0
        %2181 = vmatprep.mubr.bf16.mxu0 %v1845
        %2182 = vmatmul.mubr.bf16.gmra.mxu0 %v1844
        %v2183 = vpop.f32.mrf.mxu0
        %v2184 = vadd.f32 0.0, %v2183
        %v2185 = vpop.f32.mrf.mxu0
        %v2186 = vpop.f32.mrf.mxu0
        %v2187 = vadd.f32 0.0, %v2186
        %v2188 = vpop.f32.mrf.mxu0
        %2189 = vmatprep.mubr.bf16.mxu0 %v1848
        %2190 = vmatmul.mubr.bf16.gmra.mxu0 %v1847
        %v2191 = vpop.f32.mrf.mxu0
        %v2192 = vadd.f32 0.0, %v2191
        %v2193 = vpop.f32.mrf.mxu0
        %v2194 = vpop.f32.mrf.mxu0
        %v2195 = vadd.f32 0.0, %v2194
        %v2196 = vpop.f32.mrf.mxu0
        %2197 = vmatprep.mubr.bf16.mxu0 %v1851
        %2198 = vmatmul.mubr.bf16.gmra.mxu0 %v1850
        %v2199 = vpop.f32.mrf.mxu0
        %v2200 = vadd.f32 0.0, %v2199
        %v2201 = vpop.f32.mrf.mxu0
        %v2202 = vpop.f32.mrf.mxu0
        %v2203 = vadd.f32 0.0, %v2202
        %v2204 = vpop.f32.mrf.mxu0
        %2205 = vdwg.mxu0
        %2206 = vmatprep.subr.bf16.mxu0 0
        %2207 = vmatpush1.bf16.msra.mxu0 0
        %2208 = vmatprep.subr.bf16.mxu0 0
        %2209 = vmatpush1.bf16.msra.mxu0 0
        %2210 = vmatprep.subr.bf16.mxu0 0
        %2211 = vmatpush1.bf16.msra.mxu0 0
        %2212 = vmatprep.subr.bf16.mxu0 0
        %2213 = vmatpush1.bf16.msra.mxu0 0
        %2214 = vmatprep.subr.bf16.mxu0 0
        %2215 = vmatpush1.bf16.msra.mxu0 0
        %2216 = vmatprep.subr.bf16.mxu0 0
        %2217 = vmatpush1.bf16.msra.mxu0 0
        %2218 = vmatprep.subr.bf16.mxu0 0
        %2219 = vmatpush1.bf16.msra.mxu0 %v1978
        %2220 = vmatprep.subr.bf16.mxu0 0
        %2221 = vmatpush1.bf16.msra.mxu0 %v1977
        %2222 = vmatprep.subr.bf16.mxu0 0
        %2223 = vmatpush2.bf16.msra.mxu0 0
        %2224 = vmatprep.subr.bf16.mxu0 0
        %2225 = vmatpush2.bf16.msra.mxu0 0
        %2226 = vmatprep.subr.bf16.mxu0 0
        %2227 = vmatpush2.bf16.msra.mxu0 0
        %2228 = vmatprep.subr.bf16.mxu0 0
        %2229 = vmatpush2.bf16.msra.mxu0 0
        %2230 = vmatprep.subr.bf16.mxu0 0
        %2231 = vmatpush2.bf16.msra.mxu0 0
        %2232 = vmatprep.subr.bf16.mxu0 0
        %2233 = vmatpush2.bf16.msra.mxu0 0
        %2234 = vmatprep.subr.bf16.mxu0 0
        %2235 = vmatpush2.bf16.msra.mxu0 0
        %2236 = vmatprep.subr.bf16.mxu0 0
        %2237 = vmatpush2.bf16.msra.mxu0 0
        %2238 = vmatprep.mubr.bf16.mxu0 0
        %2239 = vmatmul.mubr.bf16.gmra.mxu0 %v1998
        %v2240 = vpop.f32.mrf.mxu0
        %v2241 = vadd.f32 %v2080, %v2240
        %v2242 = vpop.f32.mrf.mxu0
        %v2243 = vpop.f32.mrf.mxu0
        %v2244 = vadd.f32 %v2083, %v2243
        %v2245 = vpop.f32.mrf.mxu0
        %2246 = vmatprep.mubr.bf16.mxu0 0
        %2247 = vmatmul.mubr.bf16.gmra.mxu0 %v2001
        %v2248 = vpop.f32.mrf.mxu0
        %v2249 = vadd.f32 %v2088, %v2248
        %v2250 = vpop.f32.mrf.mxu0
        %v2251 = vpop.f32.mrf.mxu0
        %v2252 = vadd.f32 %v2091, %v2251
        %v2253 = vpop.f32.mrf.mxu0
        %2254 = vmatprep.mubr.bf16.mxu0 0
        %2255 = vmatmul.mubr.bf16.gmra.mxu0 %v2004
        %v2256 = vpop.f32.mrf.mxu0
        %v2257 = vadd.f32 %v2096, %v2256
        %v2258 = vpop.f32.mrf.mxu0
        %v2259 = vpop.f32.mrf.mxu0
        %v2260 = vadd.f32 %v2099, %v2259
        %v2261 = vpop.f32.mrf.mxu0
        %2262 = vmatprep.mubr.bf16.mxu0 0
        %2263 = vmatmul.mubr.bf16.gmra.mxu0 %v2007
        %v2264 = vpop.f32.mrf.mxu0
        %v2265 = vadd.f32 %v2104, %v2264
        %v2266 = vpop.f32.mrf.mxu0
        %v2267 = vpop.f32.mrf.mxu0
        %v2268 = vadd.f32 %v2107, %v2267
        %v2269 = vpop.f32.mrf.mxu0
        %2270 = vmatprep.mubr.bf16.mxu0 0
        %2271 = vmatmul.mubr.bf16.gmra.mxu0 %v2010
        %v2272 = vpop.f32.mrf.mxu0
        %v2273 = vadd.f32 %v2112, %v2272
        %v2274 = vpop.f32.mrf.mxu0
        %v2275 = vpop.f32.mrf.mxu0
        %v2276 = vadd.f32 %v2115, %v2275
        %v2277 = vpop.f32.mrf.mxu0
        %2278 = vmatprep.mubr.bf16.mxu0 0
        %2279 = vmatmul.mubr.bf16.gmra.mxu0 %v2013
        %v2280 = vpop.f32.mrf.mxu0
        %v2281 = vadd.f32 %v2120, %v2280
        %v2282 = vpop.f32.mrf.mxu0
        %v2283 = vpop.f32.mrf.mxu0
        %v2284 = vadd.f32 %v2123, %v2283
        %v2285 = vpop.f32.mrf.mxu0
        %2286 = vmatprep.mubr.bf16.mxu0 0
        %2287 = vmatmul.mubr.bf16.gmra.mxu0 %v2016
        %v2288 = vpop.f32.mrf.mxu0
        %v2289 = vadd.f32 %v2128, %v2288
        %v2290 = vpop.f32.mrf.mxu0
        %v2291 = vpop.f32.mrf.mxu0
        %v2292 = vadd.f32 %v2131, %v2291
        %v2293 = vpop.f32.mrf.mxu0
        %2294 = vmatprep.mubr.bf16.mxu0 0
        %2295 = vmatmul.mubr.bf16.gmra.mxu0 %v2019
        %v2296 = vpop.f32.mrf.mxu0
        %v2297 = vadd.f32 %v2136, %v2296
        %v2298 = vpop.f32.mrf.mxu0
        %v2299 = vpop.f32.mrf.mxu0
        %v2300 = vadd.f32 %v2139, %v2299
        %v2301 = vpop.f32.mrf.mxu0
        %2302 = vmatprep.mubr.bf16.mxu0 0
        %2303 = vmatmul.mubr.bf16.gmra.mxu0 %v2022
        %v2304 = vpop.f32.mrf.mxu0
        %v2305 = vadd.f32 %v2144, %v2304
        %v2306 = vpop.f32.mrf.mxu0
        %v2307 = vpop.f32.mrf.mxu0
        %v2308 = vadd.f32 %v2147, %v2307
        %v2309 = vpop.f32.mrf.mxu0
        %2310 = vmatprep.mubr.bf16.mxu0 0
        %2311 = vmatmul.mubr.bf16.gmra.mxu0 %v2025
        %v2312 = vpop.f32.mrf.mxu0
        %v2313 = vadd.f32 %v2152, %v2312
        %v2314 = vpop.f32.mrf.mxu0
        %v2315 = vpop.f32.mrf.mxu0
        %v2316 = vadd.f32 %v2155, %v2315
        %v2317 = vpop.f32.mrf.mxu0
        %2318 = vmatprep.mubr.bf16.mxu0 0
        %2319 = vmatmul.mubr.bf16.gmra.mxu0 %v2028
        %v2320 = vpop.f32.mrf.mxu0
        %v2321 = vadd.f32 %v2160, %v2320
        %v2322 = vpop.f32.mrf.mxu0
        %v2323 = vpop.f32.mrf.mxu0
        %v2324 = vadd.f32 %v2163, %v2323
        %v2325 = vpop.f32.mrf.mxu0
        %2326 = vmatprep.mubr.bf16.mxu0 0
        %2327 = vmatmul.mubr.bf16.gmra.mxu0 %v2031
        %v2328 = vpop.f32.mrf.mxu0
        %v2329 = vadd.f32 %v2168, %v2328
        %v2330 = vpop.f32.mrf.mxu0
        %v2331 = vpop.f32.mrf.mxu0
        %v2332 = vadd.f32 %v2171, %v2331
        %v2333 = vpop.f32.mrf.mxu0
        %2334 = vmatprep.mubr.bf16.mxu0 0
        %2335 = vmatmul.mubr.bf16.gmra.mxu0 %v2034
        %v2336 = vpop.f32.mrf.mxu0
        %v2337 = vadd.f32 %v2176, %v2336
        %v2338 = vpop.f32.mrf.mxu0
        %v2339 = vpop.f32.mrf.mxu0
        %v2340 = vadd.f32 %v2179, %v2339
        %v2341 = vpop.f32.mrf.mxu0
        %2342 = vmatprep.mubr.bf16.mxu0 0
        %2343 = vmatmul.mubr.bf16.gmra.mxu0 %v2037
        %v2344 = vpop.f32.mrf.mxu0
        %v2345 = vadd.f32 %v2184, %v2344
        %v2346 = vpop.f32.mrf.mxu0
        %v2347 = vpop.f32.mrf.mxu0
        %v2348 = vadd.f32 %v2187, %v2347
        %v2349 = vpop.f32.mrf.mxu0
        %2350 = vmatprep.mubr.bf16.mxu0 0
        %2351 = vmatmul.mubr.bf16.gmra.mxu0 %v2040
        %v2352 = vpop.f32.mrf.mxu0
        %v2353 = vadd.f32 %v2192, %v2352
        %v2354 = vpop.f32.mrf.mxu0
        %v2355 = vpop.f32.mrf.mxu0
        %v2356 = vadd.f32 %v2195, %v2355
        %v2357 = vpop.f32.mrf.mxu0
        %2358 = vmatprep.mubr.bf16.mxu0 0
        %2359 = vmatmul.mubr.bf16.gmra.mxu0 %v2043
        %v2360 = vpop.f32.mrf.mxu0
        %v2361 = vadd.f32 %v2200, %v2360
        %v2362 = vpop.f32.mrf.mxu0
        %v2363 = vpop.f32.mrf.mxu0
        %v2364 = vadd.f32 %v2203, %v2363
        %v2365 = vpop.f32.mrf.mxu0
        %2366 = vdwg.mxu0
        %v2367 = vld [vmem:[%s3] sm:$0x1]
        %v2369 = vlaneseq
        %v2370 = vshrl.u32 %v2369, 7
        %v2371 = vsub.s32 0, %v2370
        %v2372 = vrot.slane %v2367, %v2371
        %v2374 = vmul.f32 %v2241, %v2372
        %v2375 = vmul.f32 %v2244, %v2372
        %v2376 = vmul.f32 %v2249, %v2372
        %v2377 = vmul.f32 %v2252, %v2372
        %v2378 = vmul.f32 %v2257, %v2372
        %v2379 = vmul.f32 %v2260, %v2372
        %v2380 = vmul.f32 %v2265, %v2372
        %v2381 = vmul.f32 %v2268, %v2372
        %v2382 = vmul.f32 %v2273, %v2372
        %v2383 = vmul.f32 %v2276, %v2372
        %v2384 = vmul.f32 %v2281, %v2372
        %v2385 = vmul.f32 %v2284, %v2372
        %v2386 = vmul.f32 %v2289, %v2372
        %v2387 = vmul.f32 %v2292, %v2372
        %v2388 = vmul.f32 %v2297, %v2372
        %v2389 = vmul.f32 %v2300, %v2372
        %v2390 = vmul.f32 %v2305, %v2372
        %v2391 = vmul.f32 %v2308, %v2372
        %v2392 = vmul.f32 %v2313, %v2372
        %v2393 = vmul.f32 %v2316, %v2372
        %v2394 = vmul.f32 %v2321, %v2372
        %v2395 = vmul.f32 %v2324, %v2372
        %v2396 = vmul.f32 %v2329, %v2372
        %v2397 = vmul.f32 %v2332, %v2372
        %v2398 = vmul.f32 %v2337, %v2372
        %v2399 = vmul.f32 %v2340, %v2372
        %v2400 = vmul.f32 %v2345, %v2372
        %v2401 = vmul.f32 %v2348, %v2372
        %v2402 = vmul.f32 %v2353, %v2372
        %v2403 = vmul.f32 %v2356, %v2372
        %v2404 = vmul.f32 %v2361, %v2372
        %v2405 = vmul.f32 %v2364, %v2372
        %v2406 = vld [vmem:[%s4] sm:$0x1]
        %v2408 = vlaneseq
        %v2409 = vshrl.u32 %v2408, 7
        %v2410 = vsub.s32 0, %v2409
        %v2411 = vrot.slane %v2406, %v2410
        %v2413 = vadd.f32 %v2374, %v2411
        %v2414 = vadd.f32 %v2375, %v2411
        %v2415 = vadd.f32 %v2376, %v2411
        %v2416 = vadd.f32 %v2377, %v2411
        %v2417 = vadd.f32 %v2378, %v2411
        %v2418 = vadd.f32 %v2379, %v2411
        %v2419 = vadd.f32 %v2380, %v2411
        %v2420 = vadd.f32 %v2381, %v2411
        %v2421 = vadd.f32 %v2382, %v2411
        %v2422 = vadd.f32 %v2383, %v2411
        %v2423 = vadd.f32 %v2384, %v2411
        %v2424 = vadd.f32 %v2385, %v2411
        %v2425 = vadd.f32 %v2386, %v2411
        %v2426 = vadd.f32 %v2387, %v2411
        %v2427 = vadd.f32 %v2388, %v2411
        %v2428 = vadd.f32 %v2389, %v2411
        %v2429 = vadd.f32 %v2390, %v2411
        %v2430 = vadd.f32 %v2391, %v2411
        %v2431 = vadd.f32 %v2392, %v2411
        %v2432 = vadd.f32 %v2393, %v2411
        %v2433 = vadd.f32 %v2394, %v2411
        %v2434 = vadd.f32 %v2395, %v2411
        %v2435 = vadd.f32 %v2396, %v2411
        %v2436 = vadd.f32 %v2397, %v2411
        %v2437 = vadd.f32 %v2398, %v2411
        %v2438 = vadd.f32 %v2399, %v2411
        %v2439 = vadd.f32 %v2400, %v2411
        %v2440 = vadd.f32 %v2401, %v2411
        %v2441 = vadd.f32 %v2402, %v2411
        %v2442 = vadd.f32 %v2403, %v2411
        %v2443 = vadd.f32 %v2404, %v2411
        %v2444 = vadd.f32 %v2405, %v2411
        %v2445 = vmax.f32 %v2413, 0.0
        %v2446 = vmax.f32 %v2414, 0.0
        %v2447 = vmax.f32 %v2415, 0.0
        %v2448 = vmax.f32 %v2416, 0.0
        %v2449 = vmax.f32 %v2417, 0.0
        %v2450 = vmax.f32 %v2418, 0.0
        %v2451 = vmax.f32 %v2419, 0.0
        %v2452 = vmax.f32 %v2420, 0.0
        %v2453 = vmax.f32 %v2421, 0.0
        %v2454 = vmax.f32 %v2422, 0.0
        %v2455 = vmax.f32 %v2423, 0.0
        %v2456 = vmax.f32 %v2424, 0.0
        %v2457 = vmax.f32 %v2425, 0.0
        %v2458 = vmax.f32 %v2426, 0.0
        %v2459 = vmax.f32 %v2427, 0.0
        %v2460 = vmax.f32 %v2428, 0.0
        %v2461 = vmax.f32 %v2429, 0.0
        %v2462 = vmax.f32 %v2430, 0.0
        %v2463 = vmax.f32 %v2431, 0.0
        %v2464 = vmax.f32 %v2432, 0.0
        %v2465 = vmax.f32 %v2433, 0.0
        %v2466 = vmax.f32 %v2434, 0.0
        %v2467 = vmax.f32 %v2435, 0.0
        %v2468 = vmax.f32 %v2436, 0.0
        %v2469 = vmax.f32 %v2437, 0.0
        %v2470 = vmax.f32 %v2438, 0.0
        %v2471 = vmax.f32 %v2439, 0.0
        %v2472 = vmax.f32 %v2440, 0.0
        %v2473 = vmax.f32 %v2441, 0.0
        %v2474 = vmax.f32 %v2442, 0.0
        %v2475 = vmax.f32 %v2443, 0.0
        %v2476 = vmax.f32 %v2444, 0.0
        %2477 = vst.msk [vmem:[#allocation3] sm:$0xff] %vm391, 0.0
        %2478 = vst.msk [vmem:[#allocation3 + $0x8] sm:$0xff] %vm391, 0.0
        %vm2479 = vcmask 254976
        %2480 = vst.msk [vmem:[#allocation3 + $0x10] sm:$0x3] %vm2479, 0.0
        %2481 = vst.msk [vmem:[#allocation3 + $0x18] sm:$0xff] %vm391, 0.0
        %2482 = vst.msk [vmem:[#allocation3 + $0x20] sm:$0xff] %vm391, 0.0
        %2483 = vst.msk [vmem:[#allocation3 + $0x28] sm:$0x3] %vm2479, 0.0
        %2484 = vst.msk [vmem:[#allocation3 + $0x30] sm:$0xff] %vm391, 0.0
        %2485 = vst.msk [vmem:[#allocation3 + $0x38] sm:$0xff] %vm391, 0.0
        %2486 = vst.msk [vmem:[#allocation3 + $0x40] sm:$0x3] %vm2479, 0.0
        %2487 = vst.msk [vmem:[#allocation3 + $0x48] sm:$0xff] %vm391, 0.0
        %2488 = vst.msk [vmem:[#allocation3 + $0x50] sm:$0xff] %vm391, 0.0
        %2489 = vst.msk [vmem:[#allocation3 + $0x58] sm:$0x3] %vm2479, 0.0
        %2490 = vst.msk [vmem:[#allocation3 + $0x60] sm:$0xff] %vm391, 0.0
        %2491 = vst.msk [vmem:[#allocation3 + $0x68] sm:$0xff] %vm391, 0.0
        %2492 = vst.msk [vmem:[#allocation3 + $0x70] sm:$0x3] %vm2479, 0.0
        %2493 = vst.msk [vmem:[#allocation3 + $0x78] sm:$0xff] %vm391, 0.0
        %2494 = vst.msk [vmem:[#allocation3 + $0x80] sm:$0xff] %vm391, 0.0
        %2495 = vst.msk [vmem:[#allocation3 + $0x88] sm:$0x3] %vm2479, 0.0
        %2496 = vst.msk [vmem:[#allocation3 + $0x90] sm:$0xff] %vm391, 0.0
        %2497 = vst.msk [vmem:[#allocation3 + $0x98] sm:$0xff] %vm391, 0.0
        %2498 = vst.msk [vmem:[#allocation3 + $0xa0] sm:$0x3] %vm2479, 0.0
        %2499 = vst.msk [vmem:[#allocation3 + $0xa8] sm:$0xff] %vm391, 0.0
        %2500 = vst.msk [vmem:[#allocation3 + $0xb0] sm:$0xff] %vm391, 0.0
        %2501 = vst.msk [vmem:[#allocation3 + $0xb8] sm:$0x3] %vm2479, 0.0
        %2502 = vst.msk [vmem:[#allocation3 + $0xc0] sm:$0xff] %vm391, 0.0
        %2503 = vst.msk [vmem:[#allocation3 + $0xc8] sm:$0xff] %vm391, 0.0
        %2504 = vst.msk [vmem:[#allocation3 + $0xd0] sm:$0x3] %vm2479, 0.0
        %2505 = vst.msk [vmem:[#allocation3 + $0xd8] sm:$0xff] %vm391, 0.0
        %2506 = vst.msk [vmem:[#allocation3 + $0xe0] sm:$0xff] %vm391, 0.0
        %2507 = vst.msk [vmem:[#allocation3 + $0xe8] sm:$0x3] %vm2479, 0.0
        %2508 = vst.msk [vmem:[#allocation3 + $0xf0] sm:$0xff] %vm391, 0.0
        %2509 = vst.msk [vmem:[#allocation3 + $0xf8] sm:$0xff] %vm391, 0.0
        %2510 = vst.msk [vmem:[#allocation3 + $0x100] sm:$0x3] %vm2479, 0.0
        %2511 = vst.msk [vmem:[#allocation3 + $0x108] sm:$0xff] %vm391, 0.0
        %2512 = vst.msk [vmem:[#allocation3 + $0x110] sm:$0xff] %vm391, 0.0
        %2513 = vst.msk [vmem:[#allocation3 + $0x118] sm:$0x3] %vm2479, 0.0
        %2514 = vst.msk [vmem:[#allocation3 + $0x120] sm:$0xff] %vm391, 0.0
        %2515 = vst.msk [vmem:[#allocation3 + $0x128] sm:$0xff] %vm391, 0.0
        %2516 = vst.msk [vmem:[#allocation3 + $0x130] sm:$0x3] %vm2479, 0.0
        %2517 = vst.msk [vmem:[#allocation3 + $0x138] sm:$0xff] %vm391, 0.0
        %2518 = vst.msk [vmem:[#allocation3 + $0x140] sm:$0xff] %vm391, 0.0
        %2519 = vst.msk [vmem:[#allocation3 + $0x148] sm:$0x3] %vm2479, 0.0
        %2520 = vst.msk [vmem:[#allocation3 + $0x150] sm:$0xff] %vm391, 0.0
        %2521 = vst.msk [vmem:[#allocation3 + $0x158] sm:$0xff] %vm391, 0.0
        %2522 = vst.msk [vmem:[#allocation3 + $0x160] sm:$0x3] %vm2479, 0.0
        %2523 = vst.msk [vmem:[#allocation3 + $0x168] sm:$0xff] %vm391, 0.0
        %2524 = vst.msk [vmem:[#allocation3 + $0x170] sm:$0xff] %vm391, 0.0
        %2525 = vst.msk [vmem:[#allocation3 + $0x178] sm:$0x3] %vm2479, 0.0
        %2526 = vst.msk [vmem:[#allocation3 + $0x180] sm:$0xff] %vm391, 0.0
        %2527 = vst.msk [vmem:[#allocation3 + $0x188] sm:$0xff] %vm391, 0.0
        %2528 = vst.msk [vmem:[#allocation3 + $0x190] sm:$0x3] %vm2479, 0.0
        %2529 = vst.msk [vmem:[#allocation3 + $0x198] sm:$0xff] %vm391, 0.0
        %2530 = vst.msk [vmem:[#allocation3 + $0x1a0] sm:$0xff] %vm391, 0.0
        %2531 = vst.msk [vmem:[#allocation3 + $0x1a8] sm:$0x3] %vm2479, 0.0
        %s2532 = scalar_lea.vmem [#allocation3], 24
        %2533 = vst.msk [vmem:[%s2532 + $0x1] sm:$0xff] %vm391, %v2445
        %2534 = vst.msk [vmem:[%s2532 + $0x9] sm:$0xff] %vm391, %v2446
        %2535 = vst.msk [vmem:[%s2532 + $0x19] sm:$0xff] %vm391, %v2447
        %2536 = vst.msk [vmem:[%s2532 + $0x21] sm:$0xff] %vm391, %v2448
        %2537 = vst.msk [vmem:[%s2532 + $0x31] sm:$0xff] %vm391, %v2449
        %2538 = vst.msk [vmem:[%s2532 + $0x39] sm:$0xff] %vm391, %v2450
        %2539 = vst.msk [vmem:[%s2532 + $0x49] sm:$0xff] %vm391, %v2451
        %2540 = vst.msk [vmem:[%s2532 + $0x51] sm:$0xff] %vm391, %v2452
        %2541 = vst.msk [vmem:[%s2532 + $0x61] sm:$0xff] %vm391, %v2453
        %2542 = vst.msk [vmem:[%s2532 + $0x69] sm:$0xff] %vm391, %v2454
        %2543 = vst.msk [vmem:[%s2532 + $0x79] sm:$0xff] %vm391, %v2455
        %2544 = vst.msk [vmem:[%s2532 + $0x81] sm:$0xff] %vm391, %v2456
        %2545 = vst.msk [vmem:[%s2532 + $0x91] sm:$0xff] %vm391, %v2457
        %2546 = vst.msk [vmem:[%s2532 + $0x99] sm:$0xff] %vm391, %v2458
        %2547 = vst.msk [vmem:[%s2532 + $0xa9] sm:$0xff] %vm391, %v2459
        %2548 = vst.msk [vmem:[%s2532 + $0xb1] sm:$0xff] %vm391, %v2460
        %2549 = vst.msk [vmem:[%s2532 + $0xc1] sm:$0xff] %vm391, %v2461
        %2550 = vst.msk [vmem:[%s2532 + $0xc9] sm:$0xff] %vm391, %v2462
        %2551 = vst.msk [vmem:[%s2532 + $0xd9] sm:$0xff] %vm391, %v2463
        %2552 = vst.msk [vmem:[%s2532 + $0xe1] sm:$0xff] %vm391, %v2464
        %2553 = vst.msk [vmem:[%s2532 + $0xf1] sm:$0xff] %vm391, %v2465
        %2554 = vst.msk [vmem:[%s2532 + $0xf9] sm:$0xff] %vm391, %v2466
        %2555 = vst.msk [vmem:[%s2532 + $0x109] sm:$0xff] %vm391, %v2467
        %2556 = vst.msk [vmem:[%s2532 + $0x111] sm:$0xff] %vm391, %v2468
        %2557 = vst.msk [vmem:[%s2532 + $0x121] sm:$0xff] %vm391, %v2469
        %2558 = vst.msk [vmem:[%s2532 + $0x129] sm:$0xff] %vm391, %v2470
        %2559 = vst.msk [vmem:[%s2532 + $0x139] sm:$0xff] %vm391, %v2471
        %2560 = vst.msk [vmem:[%s2532 + $0x141] sm:$0xff] %vm391, %v2472
        %2561 = vst.msk [vmem:[%s2532 + $0x151] sm:$0xff] %vm391, %v2473
        %2562 = vst.msk [vmem:[%s2532 + $0x159] sm:$0xff] %vm391, %v2474
        %2563 = vst.msk [vmem:[%s2532 + $0x169] sm:$0xff] %vm391, %v2475
        %2564 = vst.msk [vmem:[%s2532 + $0x171] sm:$0xff] %vm391, %v2476
        %v2565 = vld [vmem:[#allocation3] sm:$0xff]
        %v2566 = vld [vmem:[#allocation3 + $0x8] sm:$0xff]
        %v2567 = vld [vmem:[#allocation3 + $0x18] sm:$0xff]
        %v2568 = vld [vmem:[#allocation3 + $0x20] sm:$0xff]
        %v2569 = vld [vmem:[#allocation3 + $0x30] sm:$0xff]
        %v2570 = vld [vmem:[#allocation3 + $0x38] sm:$0xff]
        %v2571 = vld [vmem:[#allocation3 + $0x48] sm:$0xff]
        %v2572 = vld [vmem:[#allocation3 + $0x50] sm:$0xff]
        %v2573 = vld [vmem:[#allocation3 + $0x60] sm:$0xff]
        %v2574 = vld [vmem:[#allocation3 + $0x68] sm:$0xff]
        %v2575 = vld [vmem:[#allocation3 + $0x78] sm:$0xff]
        %v2576 = vld [vmem:[#allocation3 + $0x80] sm:$0xff]
        %v2577 = vld [vmem:[#allocation3 + $0x90] sm:$0xff]
        %v2578 = vld [vmem:[#allocation3 + $0x98] sm:$0xff]
        %v2579 = vld [vmem:[#allocation3 + $0xa8] sm:$0xff]
        %v2580 = vld [vmem:[#allocation3 + $0xb0] sm:$0xff]
        %v2581 = vld [vmem:[#allocation3 + $0xc0] sm:$0xff]
        %v2582 = vld [vmem:[#allocation3 + $0xc8] sm:$0xff]
        %v2583 = vld [vmem:[#allocation3 + $0xd8] sm:$0xff]
        %v2584 = vld [vmem:[#allocation3 + $0xe0] sm:$0xff]
        %v2585 = vld [vmem:[#allocation3 + $0xf0] sm:$0xff]
        %v2586 = vld [vmem:[#allocation3 + $0xf8] sm:$0xff]
        %v2587 = vld [vmem:[#allocation3 + $0x108] sm:$0xff]
        %v2588 = vld [vmem:[#allocation3 + $0x110] sm:$0xff]
        %v2589 = vld [vmem:[#allocation3 + $0x120] sm:$0xff]
        %v2590 = vld [vmem:[#allocation3 + $0x128] sm:$0xff]
        %v2591 = vld [vmem:[#allocation3 + $0x138] sm:$0xff]
        %v2592 = vld [vmem:[#allocation3 + $0x140] sm:$0xff]
        %v2593 = vld [vmem:[#allocation3 + $0x150] sm:$0xff]
        %v2594 = vld [vmem:[#allocation3 + $0x158] sm:$0xff]
        %v2595 = vld [vmem:[#allocation3 + $0x168] sm:$0xff]
        %v2596 = vld [vmem:[#allocation3 + $0x170] sm:$0xff]
        %2597 = vst.msk [vmem:[#allocation2] sm:$0xff] %vm391, %v2565
        %2598 = vst.msk [vmem:[#allocation2 + $0x18] sm:$0xff] %vm391, %v2566
        %2599 = vst.msk [vmem:[#allocation2 + $0x30] sm:$0xff] %vm391, %v2567
        %2600 = vst.msk [vmem:[#allocation2 + $0x48] sm:$0xff] %vm391, %v2568
        %2601 = vst.msk [vmem:[#allocation2 + $0x60] sm:$0xff] %vm391, %v2569
        %2602 = vst.msk [vmem:[#allocation2 + $0x78] sm:$0xff] %vm391, %v2570
        %2603 = vst.msk [vmem:[#allocation2 + $0x90] sm:$0xff] %vm391, %v2571
        %2604 = vst.msk [vmem:[#allocation2 + $0xa8] sm:$0xff] %vm391, %v2572
        %2605 = vst.msk [vmem:[#allocation2 + $0xc0] sm:$0xff] %vm391, %v2573
        %2606 = vst.msk [vmem:[#allocation2 + $0xd8] sm:$0xff] %vm391, %v2574
        %2607 = vst.msk [vmem:[#allocation2 + $0xf0] sm:$0xff] %vm391, %v2575
        %2608 = vst.msk [vmem:[#allocation2 + $0x108] sm:$0xff] %vm391, %v2576
        %2609 = vst.msk [vmem:[#allocation2 + $0x120] sm:$0xff] %vm391, %v2577
        %2610 = vst.msk [vmem:[#allocation2 + $0x138] sm:$0xff] %vm391, %v2578
        %2611 = vst.msk [vmem:[#allocation2 + $0x150] sm:$0xff] %vm391, %v2579
        %2612 = vst.msk [vmem:[#allocation2 + $0x168] sm:$0xff] %vm391, %v2580
        %2613 = vst.msk [vmem:[#allocation2 + $0x180] sm:$0xff] %vm391, %v2581
        %2614 = vst.msk [vmem:[#allocation2 + $0x198] sm:$0xff] %vm391, %v2582
        %2615 = vst.msk [vmem:[#allocation2 + $0x1b0] sm:$0xff] %vm391, %v2583
        %2616 = vst.msk [vmem:[#allocation2 + $0x1c8] sm:$0xff] %vm391, %v2584
        %2617 = vst.msk [vmem:[#allocation2 + $0x1e0] sm:$0xff] %vm391, %v2585
        %2618 = vst.msk [vmem:[#allocation2 + $0x1f8] sm:$0xff] %vm391, %v2586
        %2619 = vst.msk [vmem:[#allocation2 + $0x210] sm:$0xff] %vm391, %v2587
        %2620 = vst.msk [vmem:[#allocation2 + $0x228] sm:$0xff] %vm391, %v2588
        %2621 = vst.msk [vmem:[#allocation2 + $0x240] sm:$0xff] %vm391, %v2589
        %2622 = vst.msk [vmem:[#allocation2 + $0x258] sm:$0xff] %vm391, %v2590
        %2623 = vst.msk [vmem:[#allocation2 + $0x270] sm:$0xff] %vm391, %v2591
        %2624 = vst.msk [vmem:[#allocation2 + $0x288] sm:$0xff] %vm391, %v2592
        %2625 = vst.msk [vmem:[#allocation2 + $0x2a0] sm:$0xff] %vm391, %v2593
        %2626 = vst.msk [vmem:[#allocation2 + $0x2b8] sm:$0xff] %vm391, %v2594
        %2627 = vst.msk [vmem:[#allocation2 + $0x2d0] sm:$0xff] %vm391, %v2595
        %2628 = vst.msk [vmem:[#allocation2 + $0x2e8] sm:$0xff] %vm391, %v2596
        %v2629 = vld [vmem:[#allocation3 + $0x1] sm:$0xff]
        %v2630 = vld [vmem:[#allocation3 + $0x9] sm:$0xff]
        %v2631 = vld [vmem:[#allocation3 + $0x19] sm:$0xff]
        %v2632 = vld [vmem:[#allocation3 + $0x21] sm:$0xff]
        %v2633 = vld [vmem:[#allocation3 + $0x31] sm:$0xff]
        %v2634 = vld [vmem:[#allocation3 + $0x39] sm:$0xff]
        %v2635 = vld [vmem:[#allocation3 + $0x49] sm:$0xff]
        %v2636 = vld [vmem:[#allocation3 + $0x51] sm:$0xff]
        %v2637 = vld [vmem:[#allocation3 + $0x61] sm:$0xff]
        %v2638 = vld [vmem:[#allocation3 + $0x69] sm:$0xff]
        %v2639 = vld [vmem:[#allocation3 + $0x79] sm:$0xff]
        %v2640 = vld [vmem:[#allocation3 + $0x81] sm:$0xff]
        %v2641 = vld [vmem:[#allocation3 + $0x91] sm:$0xff]
        %v2642 = vld [vmem:[#allocation3 + $0x99] sm:$0xff]
        %v2643 = vld [vmem:[#allocation3 + $0xa9] sm:$0xff]
        %v2644 = vld [vmem:[#allocation3 + $0xb1] sm:$0xff]
        %v2645 = vld [vmem:[#allocation3 + $0xc1] sm:$0xff]
        %v2646 = vld [vmem:[#allocation3 + $0xc9] sm:$0xff]
        %v2647 = vld [vmem:[#allocation3 + $0xd9] sm:$0xff]
        %v2648 = vld [vmem:[#allocation3 + $0xe1] sm:$0xff]
        %v2649 = vld [vmem:[#allocation3 + $0xf1] sm:$0xff]
        %v2650 = vld [vmem:[#allocation3 + $0xf9] sm:$0xff]
        %v2651 = vld [vmem:[#allocation3 + $0x109] sm:$0xff]
        %v2652 = vld [vmem:[#allocation3 + $0x111] sm:$0xff]
        %v2653 = vld [vmem:[#allocation3 + $0x121] sm:$0xff]
        %v2654 = vld [vmem:[#allocation3 + $0x129] sm:$0xff]
        %v2655 = vld [vmem:[#allocation3 + $0x139] sm:$0xff]
        %v2656 = vld [vmem:[#allocation3 + $0x141] sm:$0xff]
        %v2657 = vld [vmem:[#allocation3 + $0x151] sm:$0xff]
        %v2658 = vld [vmem:[#allocation3 + $0x159] sm:$0xff]
        %v2659 = vld [vmem:[#allocation3 + $0x169] sm:$0xff]
        %v2660 = vld [vmem:[#allocation3 + $0x171] sm:$0xff]
        %2693 = vrot.lane.b32.xlu0 %v2629, 32
        %v2694 = vpop.permute.xlu0 %2693
        %2695 = vrot.lane.b32.xlu0 %v2630, 32
        %v2696 = vpop.permute.xlu0 %2695
        %2697 = vrot.lane.b32.xlu0 %v2631, 32
        %v2698 = vpop.permute.xlu0 %2697
        %2699 = vrot.lane.b32.xlu0 %v2632, 32
        %v2700 = vpop.permute.xlu0 %2699
        %2701 = vrot.lane.b32.xlu0 %v2633, 32
        %v2702 = vpop.permute.xlu0 %2701
        %2703 = vrot.lane.b32.xlu0 %v2634, 32
        %v2704 = vpop.permute.xlu0 %2703
        %2705 = vrot.lane.b32.xlu0 %v2635, 32
        %v2706 = vpop.permute.xlu0 %2705
        %2707 = vrot.lane.b32.xlu0 %v2636, 32
        %v2708 = vpop.permute.xlu0 %2707
        %2709 = vrot.lane.b32.xlu0 %v2637, 32
        %v2710 = vpop.permute.xlu0 %2709
        %2711 = vrot.lane.b32.xlu0 %v2638, 32
        %v2712 = vpop.permute.xlu0 %2711
        %2713 = vrot.lane.b32.xlu0 %v2639, 32
        %v2714 = vpop.permute.xlu0 %2713
        %2715 = vrot.lane.b32.xlu0 %v2640, 32
        %v2716 = vpop.permute.xlu0 %2715
        %2717 = vrot.lane.b32.xlu0 %v2641, 32
        %v2718 = vpop.permute.xlu0 %2717
        %2719 = vrot.lane.b32.xlu0 %v2642, 32
        %v2720 = vpop.permute.xlu0 %2719
        %2721 = vrot.lane.b32.xlu0 %v2643, 32
        %v2722 = vpop.permute.xlu0 %2721
        %2723 = vrot.lane.b32.xlu0 %v2644, 32
        %v2724 = vpop.permute.xlu0 %2723
        %2725 = vrot.lane.b32.xlu0 %v2645, 32
        %v2726 = vpop.permute.xlu0 %2725
        %2727 = vrot.lane.b32.xlu0 %v2646, 32
        %v2728 = vpop.permute.xlu0 %2727
        %2729 = vrot.lane.b32.xlu0 %v2647, 32
        %v2730 = vpop.permute.xlu0 %2729
        %2731 = vrot.lane.b32.xlu0 %v2648, 32
        %v2732 = vpop.permute.xlu0 %2731
        %2733 = vrot.lane.b32.xlu0 %v2649, 32
        %v2734 = vpop.permute.xlu0 %2733
        %2735 = vrot.lane.b32.xlu0 %v2650, 32
        %v2736 = vpop.permute.xlu0 %2735
        %2737 = vrot.lane.b32.xlu0 %v2651, 32
        %v2738 = vpop.permute.xlu0 %2737
        %2739 = vrot.lane.b32.xlu0 %v2652, 32
        %v2740 = vpop.permute.xlu0 %2739
        %2741 = vrot.lane.b32.xlu0 %v2653, 32
        %v2742 = vpop.permute.xlu0 %2741
        %2743 = vrot.lane.b32.xlu0 %v2654, 32
        %v2744 = vpop.permute.xlu0 %2743
        %2745 = vrot.lane.b32.xlu0 %v2655, 32
        %v2746 = vpop.permute.xlu0 %2745
        %2747 = vrot.lane.b32.xlu0 %v2656, 32
        %v2748 = vpop.permute.xlu0 %2747
        %2749 = vrot.lane.b32.xlu0 %v2657, 32
        %v2750 = vpop.permute.xlu0 %2749
        %2751 = vrot.lane.b32.xlu0 %v2658, 32
        %v2752 = vpop.permute.xlu0 %2751
        %2753 = vrot.lane.b32.xlu0 %v2659, 32
        %v2754 = vpop.permute.xlu0 %2753
        %2755 = vrot.lane.b32.xlu0 %v2660, 32
        %v2756 = vpop.permute.xlu0 %2755
        %2789 = vst.msk [vmem:[#allocation2] sm:$0xff] %vm584, %v2694
        %2790 = vst.msk [vmem:[#allocation2 + $0x18] sm:$0xff] %vm584, %v2696
        %2791 = vst.msk [vmem:[#allocation2 + $0x30] sm:$0xff] %vm584, %v2698
        %2792 = vst.msk [vmem:[#allocation2 + $0x48] sm:$0xff] %vm584, %v2700
        %2793 = vst.msk [vmem:[#allocation2 + $0x60] sm:$0xff] %vm584, %v2702
        %2794 = vst.msk [vmem:[#allocation2 + $0x78] sm:$0xff] %vm584, %v2704
        %2795 = vst.msk [vmem:[#allocation2 + $0x90] sm:$0xff] %vm584, %v2706
        %2796 = vst.msk [vmem:[#allocation2 + $0xa8] sm:$0xff] %vm584, %v2708
        %2797 = vst.msk [vmem:[#allocation2 + $0xc0] sm:$0xff] %vm584, %v2710
        %2798 = vst.msk [vmem:[#allocation2 + $0xd8] sm:$0xff] %vm584, %v2712
        %2799 = vst.msk [vmem:[#allocation2 + $0xf0] sm:$0xff] %vm584, %v2714
        %2800 = vst.msk [vmem:[#allocation2 + $0x108] sm:$0xff] %vm584, %v2716
        %2801 = vst.msk [vmem:[#allocation2 + $0x120] sm:$0xff] %vm584, %v2718
        %2802 = vst.msk [vmem:[#allocation2 + $0x138] sm:$0xff] %vm584, %v2720
        %2803 = vst.msk [vmem:[#allocation2 + $0x150] sm:$0xff] %vm584, %v2722
        %2804 = vst.msk [vmem:[#allocation2 + $0x168] sm:$0xff] %vm584, %v2724
        %2805 = vst.msk [vmem:[#allocation2 + $0x180] sm:$0xff] %vm584, %v2726
        %2806 = vst.msk [vmem:[#allocation2 + $0x198] sm:$0xff] %vm584, %v2728
        %2807 = vst.msk [vmem:[#allocation2 + $0x1b0] sm:$0xff] %vm584, %v2730
        %2808 = vst.msk [vmem:[#allocation2 + $0x1c8] sm:$0xff] %vm584, %v2732
        %2809 = vst.msk [vmem:[#allocation2 + $0x1e0] sm:$0xff] %vm584, %v2734
        %2810 = vst.msk [vmem:[#allocation2 + $0x1f8] sm:$0xff] %vm584, %v2736
        %2811 = vst.msk [vmem:[#allocation2 + $0x210] sm:$0xff] %vm584, %v2738
        %2812 = vst.msk [vmem:[#allocation2 + $0x228] sm:$0xff] %vm584, %v2740
        %2813 = vst.msk [vmem:[#allocation2 + $0x240] sm:$0xff] %vm584, %v2742
        %2814 = vst.msk [vmem:[#allocation2 + $0x258] sm:$0xff] %vm584, %v2744
        %2815 = vst.msk [vmem:[#allocation2 + $0x270] sm:$0xff] %vm584, %v2746
        %2816 = vst.msk [vmem:[#allocation2 + $0x288] sm:$0xff] %vm584, %v2748
        %2817 = vst.msk [vmem:[#allocation2 + $0x2a0] sm:$0xff] %vm584, %v2750
        %2818 = vst.msk [vmem:[#allocation2 + $0x2b8] sm:$0xff] %vm584, %v2752
        %2819 = vst.msk [vmem:[#allocation2 + $0x2d0] sm:$0xff] %vm584, %v2754
        %2820 = vst.msk [vmem:[#allocation2 + $0x2e8] sm:$0xff] %vm584, %v2756
        %v2821 = vld [vmem:[#allocation3 + $0x2] sm:$0xff]
        %v2822 = vld [vmem:[#allocation3 + $0xa] sm:$0xff]
        %v2823 = vld [vmem:[#allocation3 + $0x1a] sm:$0xff]
        %v2824 = vld [vmem:[#allocation3 + $0x22] sm:$0xff]
        %v2825 = vld [vmem:[#allocation3 + $0x32] sm:$0xff]
        %v2826 = vld [vmem:[#allocation3 + $0x3a] sm:$0xff]
        %v2827 = vld [vmem:[#allocation3 + $0x4a] sm:$0xff]
        %v2828 = vld [vmem:[#allocation3 + $0x52] sm:$0xff]
        %v2829 = vld [vmem:[#allocation3 + $0x62] sm:$0xff]
        %v2830 = vld [vmem:[#allocation3 + $0x6a] sm:$0xff]
        %v2831 = vld [vmem:[#allocation3 + $0x7a] sm:$0xff]
        %v2832 = vld [vmem:[#allocation3 + $0x82] sm:$0xff]
        %v2833 = vld [vmem:[#allocation3 + $0x92] sm:$0xff]
        %v2834 = vld [vmem:[#allocation3 + $0x9a] sm:$0xff]
        %v2835 = vld [vmem:[#allocation3 + $0xaa] sm:$0xff]
        %v2836 = vld [vmem:[#allocation3 + $0xb2] sm:$0xff]
        %v2837 = vld [vmem:[#allocation3 + $0xc2] sm:$0xff]
        %v2838 = vld [vmem:[#allocation3 + $0xca] sm:$0xff]
        %v2839 = vld [vmem:[#allocation3 + $0xda] sm:$0xff]
        %v2840 = vld [vmem:[#allocation3 + $0xe2] sm:$0xff]
        %v2841 = vld [vmem:[#allocation3 + $0xf2] sm:$0xff]
        %v2842 = vld [vmem:[#allocation3 + $0xfa] sm:$0xff]
        %v2843 = vld [vmem:[#allocation3 + $0x10a] sm:$0xff]
        %v2844 = vld [vmem:[#allocation3 + $0x112] sm:$0xff]
        %v2845 = vld [vmem:[#allocation3 + $0x122] sm:$0xff]
        %v2846 = vld [vmem:[#allocation3 + $0x12a] sm:$0xff]
        %v2847 = vld [vmem:[#allocation3 + $0x13a] sm:$0xff]
        %v2848 = vld [vmem:[#allocation3 + $0x142] sm:$0xff]
        %v2849 = vld [vmem:[#allocation3 + $0x152] sm:$0xff]
        %v2850 = vld [vmem:[#allocation3 + $0x15a] sm:$0xff]
        %v2851 = vld [vmem:[#allocation3 + $0x16a] sm:$0xff]
        %v2852 = vld [vmem:[#allocation3 + $0x172] sm:$0xff]
        %2885 = vrot.lane.b32.xlu0 %v2821, 64
        %v2886 = vpop.permute.xlu0 %2885
        %2887 = vrot.lane.b32.xlu0 %v2822, 64
        %v2888 = vpop.permute.xlu0 %2887
        %2889 = vrot.lane.b32.xlu0 %v2823, 64
        %v2890 = vpop.permute.xlu0 %2889
        %2891 = vrot.lane.b32.xlu0 %v2824, 64
        %v2892 = vpop.permute.xlu0 %2891
        %2893 = vrot.lane.b32.xlu0 %v2825, 64
        %v2894 = vpop.permute.xlu0 %2893
        %2895 = vrot.lane.b32.xlu0 %v2826, 64
        %v2896 = vpop.permute.xlu0 %2895
        %2897 = vrot.lane.b32.xlu0 %v2827, 64
        %v2898 = vpop.permute.xlu0 %2897
        %2899 = vrot.lane.b32.xlu0 %v2828, 64
        %v2900 = vpop.permute.xlu0 %2899
        %2901 = vrot.lane.b32.xlu0 %v2829, 64
        %v2902 = vpop.permute.xlu0 %2901
        %2903 = vrot.lane.b32.xlu0 %v2830, 64
        %v2904 = vpop.permute.xlu0 %2903
        %2905 = vrot.lane.b32.xlu0 %v2831, 64
        %v2906 = vpop.permute.xlu0 %2905
        %2907 = vrot.lane.b32.xlu0 %v2832, 64
        %v2908 = vpop.permute.xlu0 %2907
        %2909 = vrot.lane.b32.xlu0 %v2833, 64
        %v2910 = vpop.permute.xlu0 %2909
        %2911 = vrot.lane.b32.xlu0 %v2834, 64
        %v2912 = vpop.permute.xlu0 %2911
        %2913 = vrot.lane.b32.xlu0 %v2835, 64
        %v2914 = vpop.permute.xlu0 %2913
        %2915 = vrot.lane.b32.xlu0 %v2836, 64
        %v2916 = vpop.permute.xlu0 %2915
        %2917 = vrot.lane.b32.xlu0 %v2837, 64
        %v2918 = vpop.permute.xlu0 %2917
        %2919 = vrot.lane.b32.xlu0 %v2838, 64
        %v2920 = vpop.permute.xlu0 %2919
        %2921 = vrot.lane.b32.xlu0 %v2839, 64
        %v2922 = vpop.permute.xlu0 %2921
        %2923 = vrot.lane.b32.xlu0 %v2840, 64
        %v2924 = vpop.permute.xlu0 %2923
        %2925 = vrot.lane.b32.xlu0 %v2841, 64
        %v2926 = vpop.permute.xlu0 %2925
        %2927 = vrot.lane.b32.xlu0 %v2842, 64
        %v2928 = vpop.permute.xlu0 %2927
        %2929 = vrot.lane.b32.xlu0 %v2843, 64
        %v2930 = vpop.permute.xlu0 %2929
        %2931 = vrot.lane.b32.xlu0 %v2844, 64
        %v2932 = vpop.permute.xlu0 %2931
        %2933 = vrot.lane.b32.xlu0 %v2845, 64
        %v2934 = vpop.permute.xlu0 %2933
        %2935 = vrot.lane.b32.xlu0 %v2846, 64
        %v2936 = vpop.permute.xlu0 %2935
        %2937 = vrot.lane.b32.xlu0 %v2847, 64
        %v2938 = vpop.permute.xlu0 %2937
        %2939 = vrot.lane.b32.xlu0 %v2848, 64
        %v2940 = vpop.permute.xlu0 %2939
        %2941 = vrot.lane.b32.xlu0 %v2849, 64
        %v2942 = vpop.permute.xlu0 %2941
        %2943 = vrot.lane.b32.xlu0 %v2850, 64
        %v2944 = vpop.permute.xlu0 %2943
        %2945 = vrot.lane.b32.xlu0 %v2851, 64
        %v2946 = vpop.permute.xlu0 %2945
        %2947 = vrot.lane.b32.xlu0 %v2852, 64
        %v2948 = vpop.permute.xlu0 %2947
        %2981 = vst.msk [vmem:[#allocation2] sm:$0xff] %vm777, %v2886
        %2982 = vst.msk [vmem:[#allocation2 + $0x18] sm:$0xff] %vm777, %v2888
        %2983 = vst.msk [vmem:[#allocation2 + $0x30] sm:$0xff] %vm777, %v2890
        %2984 = vst.msk [vmem:[#allocation2 + $0x48] sm:$0xff] %vm777, %v2892
        %2985 = vst.msk [vmem:[#allocation2 + $0x60] sm:$0xff] %vm777, %v2894
        %2986 = vst.msk [vmem:[#allocation2 + $0x78] sm:$0xff] %vm777, %v2896
        %2987 = vst.msk [vmem:[#allocation2 + $0x90] sm:$0xff] %vm777, %v2898
        %2988 = vst.msk [vmem:[#allocation2 + $0xa8] sm:$0xff] %vm777, %v2900
        %2989 = vst.msk [vmem:[#allocation2 + $0xc0] sm:$0xff] %vm777, %v2902
        %2990 = vst.msk [vmem:[#allocation2 + $0xd8] sm:$0xff] %vm777, %v2904
        %2991 = vst.msk [vmem:[#allocation2 + $0xf0] sm:$0xff] %vm777, %v2906
        %2992 = vst.msk [vmem:[#allocation2 + $0x108] sm:$0xff] %vm777, %v2908
        %2993 = vst.msk [vmem:[#allocation2 + $0x120] sm:$0xff] %vm777, %v2910
        %2994 = vst.msk [vmem:[#allocation2 + $0x138] sm:$0xff] %vm777, %v2912
        %2995 = vst.msk [vmem:[#allocation2 + $0x150] sm:$0xff] %vm777, %v2914
        %2996 = vst.msk [vmem:[#allocation2 + $0x168] sm:$0xff] %vm777, %v2916
        %2997 = vst.msk [vmem:[#allocation2 + $0x180] sm:$0xff] %vm777, %v2918
        %2998 = vst.msk [vmem:[#allocation2 + $0x198] sm:$0xff] %vm777, %v2920
        %2999 = vst.msk [vmem:[#allocation2 + $0x1b0] sm:$0xff] %vm777, %v2922
        %3000 = vst.msk [vmem:[#allocation2 + $0x1c8] sm:$0xff] %vm777, %v2924
        %3001 = vst.msk [vmem:[#allocation2 + $0x1e0] sm:$0xff] %vm777, %v2926
        %3002 = vst.msk [vmem:[#allocation2 + $0x1f8] sm:$0xff] %vm777, %v2928
        %3003 = vst.msk [vmem:[#allocation2 + $0x210] sm:$0xff] %vm777, %v2930
        %3004 = vst.msk [vmem:[#allocation2 + $0x228] sm:$0xff] %vm777, %v2932
        %3005 = vst.msk [vmem:[#allocation2 + $0x240] sm:$0xff] %vm777, %v2934
        %3006 = vst.msk [vmem:[#allocation2 + $0x258] sm:$0xff] %vm777, %v2936
        %3007 = vst.msk [vmem:[#allocation2 + $0x270] sm:$0xff] %vm777, %v2938
        %3008 = vst.msk [vmem:[#allocation2 + $0x288] sm:$0xff] %vm777, %v2940
        %3009 = vst.msk [vmem:[#allocation2 + $0x2a0] sm:$0xff] %vm777, %v2942
        %3010 = vst.msk [vmem:[#allocation2 + $0x2b8] sm:$0xff] %vm777, %v2944
        %3011 = vst.msk [vmem:[#allocation2 + $0x2d0] sm:$0xff] %vm777, %v2946
        %3012 = vst.msk [vmem:[#allocation2 + $0x2e8] sm:$0xff] %vm777, %v2948
        %v3013 = vld [vmem:[%s2532] sm:$0xff]
        %v3014 = vld [vmem:[%s2532 + $0x8] sm:$0xff]
        %v3015 = vld [vmem:[%s2532 + $0x18] sm:$0xff]
        %v3016 = vld [vmem:[%s2532 + $0x20] sm:$0xff]
        %v3017 = vld [vmem:[%s2532 + $0x30] sm:$0xff]
        %v3018 = vld [vmem:[%s2532 + $0x38] sm:$0xff]
        %v3019 = vld [vmem:[%s2532 + $0x48] sm:$0xff]
        %v3020 = vld [vmem:[%s2532 + $0x50] sm:$0xff]
        %v3021 = vld [vmem:[%s2532 + $0x60] sm:$0xff]
        %v3022 = vld [vmem:[%s2532 + $0x68] sm:$0xff]
        %v3023 = vld [vmem:[%s2532 + $0x78] sm:$0xff]
        %v3024 = vld [vmem:[%s2532 + $0x80] sm:$0xff]
        %v3025 = vld [vmem:[%s2532 + $0x90] sm:$0xff]
        %v3026 = vld [vmem:[%s2532 + $0x98] sm:$0xff]
        %v3027 = vld [vmem:[%s2532 + $0xa8] sm:$0xff]
        %v3028 = vld [vmem:[%s2532 + $0xb0] sm:$0xff]
        %v3029 = vld [vmem:[%s2532 + $0xc0] sm:$0xff]
        %v3030 = vld [vmem:[%s2532 + $0xc8] sm:$0xff]
        %v3031 = vld [vmem:[%s2532 + $0xd8] sm:$0xff]
        %v3032 = vld [vmem:[%s2532 + $0xe0] sm:$0xff]
        %v3033 = vld [vmem:[%s2532 + $0xf0] sm:$0xff]
        %v3034 = vld [vmem:[%s2532 + $0xf8] sm:$0xff]
        %v3035 = vld [vmem:[%s2532 + $0x108] sm:$0xff]
        %v3036 = vld [vmem:[%s2532 + $0x110] sm:$0xff]
        %v3037 = vld [vmem:[%s2532 + $0x120] sm:$0xff]
        %v3038 = vld [vmem:[%s2532 + $0x128] sm:$0xff]
        %v3039 = vld [vmem:[%s2532 + $0x138] sm:$0xff]
        %v3040 = vld [vmem:[%s2532 + $0x140] sm:$0xff]
        %v3041 = vld [vmem:[%s2532 + $0x150] sm:$0xff]
        %v3042 = vld [vmem:[%s2532 + $0x158] sm:$0xff]
        %v3043 = vld [vmem:[%s2532 + $0x168] sm:$0xff]
        %v3044 = vld [vmem:[%s2532 + $0x170] sm:$0xff]
        %3077 = vrot.lane.b32.xlu0 %v3013, 96
        %v3078 = vpop.permute.xlu0 %3077
        %3079 = vrot.lane.b32.xlu0 %v3014, 96
        %v3080 = vpop.permute.xlu0 %3079
        %3081 = vrot.lane.b32.xlu0 %v3015, 96
        %v3082 = vpop.permute.xlu0 %3081
        %3083 = vrot.lane.b32.xlu0 %v3016, 96
        %v3084 = vpop.permute.xlu0 %3083
        %3085 = vrot.lane.b32.xlu0 %v3017, 96
        %v3086 = vpop.permute.xlu0 %3085
        %3087 = vrot.lane.b32.xlu0 %v3018, 96
        %v3088 = vpop.permute.xlu0 %3087
        %3089 = vrot.lane.b32.xlu0 %v3019, 96
        %v3090 = vpop.permute.xlu0 %3089
        %3091 = vrot.lane.b32.xlu0 %v3020, 96
        %v3092 = vpop.permute.xlu0 %3091
        %3093 = vrot.lane.b32.xlu0 %v3021, 96
        %v3094 = vpop.permute.xlu0 %3093
        %3095 = vrot.lane.b32.xlu0 %v3022, 96
        %v3096 = vpop.permute.xlu0 %3095
        %3097 = vrot.lane.b32.xlu0 %v3023, 96
        %v3098 = vpop.permute.xlu0 %3097
        %3099 = vrot.lane.b32.xlu0 %v3024, 96
        %v3100 = vpop.permute.xlu0 %3099
        %3101 = vrot.lane.b32.xlu0 %v3025, 96
        %v3102 = vpop.permute.xlu0 %3101
        %3103 = vrot.lane.b32.xlu0 %v3026, 96
        %v3104 = vpop.permute.xlu0 %3103
        %3105 = vrot.lane.b32.xlu0 %v3027, 96
        %v3106 = vpop.permute.xlu0 %3105
        %3107 = vrot.lane.b32.xlu0 %v3028, 96
        %v3108 = vpop.permute.xlu0 %3107
        %3109 = vrot.lane.b32.xlu0 %v3029, 96
        %v3110 = vpop.permute.xlu0 %3109
        %3111 = vrot.lane.b32.xlu0 %v3030, 96
        %v3112 = vpop.permute.xlu0 %3111
        %3113 = vrot.lane.b32.xlu0 %v3031, 96
        %v3114 = vpop.permute.xlu0 %3113
        %3115 = vrot.lane.b32.xlu0 %v3032, 96
        %v3116 = vpop.permute.xlu0 %3115
        %3117 = vrot.lane.b32.xlu0 %v3033, 96
        %v3118 = vpop.permute.xlu0 %3117
        %3119 = vrot.lane.b32.xlu0 %v3034, 96
        %v3120 = vpop.permute.xlu0 %3119
        %3121 = vrot.lane.b32.xlu0 %v3035, 96
        %v3122 = vpop.permute.xlu0 %3121
        %3123 = vrot.lane.b32.xlu0 %v3036, 96
        %v3124 = vpop.permute.xlu0 %3123
        %3125 = vrot.lane.b32.xlu0 %v3037, 96
        %v3126 = vpop.permute.xlu0 %3125
        %3127 = vrot.lane.b32.xlu0 %v3038, 96
        %v3128 = vpop.permute.xlu0 %3127
        %3129 = vrot.lane.b32.xlu0 %v3039, 96
        %v3130 = vpop.permute.xlu0 %3129
        %3131 = vrot.lane.b32.xlu0 %v3040, 96
        %v3132 = vpop.permute.xlu0 %3131
        %3133 = vrot.lane.b32.xlu0 %v3041, 96
        %v3134 = vpop.permute.xlu0 %3133
        %3135 = vrot.lane.b32.xlu0 %v3042, 96
        %v3136 = vpop.permute.xlu0 %3135
        %3137 = vrot.lane.b32.xlu0 %v3043, 96
        %v3138 = vpop.permute.xlu0 %3137
        %3139 = vrot.lane.b32.xlu0 %v3044, 96
        %v3140 = vpop.permute.xlu0 %3139
        %3173 = vst.msk [vmem:[#allocation2] sm:$0xff] %vm971, %v3078
        %3174 = vst.msk [vmem:[#allocation2 + $0x18] sm:$0xff] %vm971, %v3080
        %3175 = vst.msk [vmem:[#allocation2 + $0x30] sm:$0xff] %vm971, %v3082
        %3176 = vst.msk [vmem:[#allocation2 + $0x48] sm:$0xff] %vm971, %v3084
        %3177 = vst.msk [vmem:[#allocation2 + $0x60] sm:$0xff] %vm971, %v3086
        %3178 = vst.msk [vmem:[#allocation2 + $0x78] sm:$0xff] %vm971, %v3088
        %3179 = vst.msk [vmem:[#allocation2 + $0x90] sm:$0xff] %vm971, %v3090
        %3180 = vst.msk [vmem:[#allocation2 + $0xa8] sm:$0xff] %vm971, %v3092
        %3181 = vst.msk [vmem:[#allocation2 + $0xc0] sm:$0xff] %vm971, %v3094
        %3182 = vst.msk [vmem:[#allocation2 + $0xd8] sm:$0xff] %vm971, %v3096
        %3183 = vst.msk [vmem:[#allocation2 + $0xf0] sm:$0xff] %vm971, %v3098
        %3184 = vst.msk [vmem:[#allocation2 + $0x108] sm:$0xff] %vm971, %v3100
        %3185 = vst.msk [vmem:[#allocation2 + $0x120] sm:$0xff] %vm971, %v3102
        %3186 = vst.msk [vmem:[#allocation2 + $0x138] sm:$0xff] %vm971, %v3104
        %3187 = vst.msk [vmem:[#allocation2 + $0x150] sm:$0xff] %vm971, %v3106
        %3188 = vst.msk [vmem:[#allocation2 + $0x168] sm:$0xff] %vm971, %v3108
        %3189 = vst.msk [vmem:[#allocation2 + $0x180] sm:$0xff] %vm971, %v3110
        %3190 = vst.msk [vmem:[#allocation2 + $0x198] sm:$0xff] %vm971, %v3112
        %3191 = vst.msk [vmem:[#allocation2 + $0x1b0] sm:$0xff] %vm971, %v3114
        %3192 = vst.msk [vmem:[#allocation2 + $0x1c8] sm:$0xff] %vm971, %v3116
        %3193 = vst.msk [vmem:[#allocation2 + $0x1e0] sm:$0xff] %vm971, %v3118
        %3194 = vst.msk [vmem:[#allocation2 + $0x1f8] sm:$0xff] %vm971, %v3120
        %3195 = vst.msk [vmem:[#allocation2 + $0x210] sm:$0xff] %vm971, %v3122
        %3196 = vst.msk [vmem:[#allocation2 + $0x228] sm:$0xff] %vm971, %v3124
        %3197 = vst.msk [vmem:[#allocation2 + $0x240] sm:$0xff] %vm971, %v3126
        %3198 = vst.msk [vmem:[#allocation2 + $0x258] sm:$0xff] %vm971, %v3128
        %3199 = vst.msk [vmem:[#allocation2 + $0x270] sm:$0xff] %vm971, %v3130
        %3200 = vst.msk [vmem:[#allocation2 + $0x288] sm:$0xff] %vm971, %v3132
        %3201 = vst.msk [vmem:[#allocation2 + $0x2a0] sm:$0xff] %vm971, %v3134
        %3202 = vst.msk [vmem:[#allocation2 + $0x2b8] sm:$0xff] %vm971, %v3136
        %3203 = vst.msk [vmem:[#allocation2 + $0x2d0] sm:$0xff] %vm971, %v3138
        %3204 = vst.msk [vmem:[#allocation2 + $0x2e8] sm:$0xff] %vm971, %v3140
        %v3205 = vld [vmem:[%s2532 + $0x1] sm:$0xff]
        %v3206 = vld [vmem:[%s2532 + $0x9] sm:$0xff]
        %v3207 = vld [vmem:[%s2532 + $0x19] sm:$0xff]
        %v3208 = vld [vmem:[%s2532 + $0x21] sm:$0xff]
        %v3209 = vld [vmem:[%s2532 + $0x31] sm:$0xff]
        %v3210 = vld [vmem:[%s2532 + $0x39] sm:$0xff]
        %v3211 = vld [vmem:[%s2532 + $0x49] sm:$0xff]
        %v3212 = vld [vmem:[%s2532 + $0x51] sm:$0xff]
        %v3213 = vld [vmem:[%s2532 + $0x61] sm:$0xff]
        %v3214 = vld [vmem:[%s2532 + $0x69] sm:$0xff]
        %v3215 = vld [vmem:[%s2532 + $0x79] sm:$0xff]
        %v3216 = vld [vmem:[%s2532 + $0x81] sm:$0xff]
        %v3217 = vld [vmem:[%s2532 + $0x91] sm:$0xff]
        %v3218 = vld [vmem:[%s2532 + $0x99] sm:$0xff]
        %v3219 = vld [vmem:[%s2532 + $0xa9] sm:$0xff]
        %v3220 = vld [vmem:[%s2532 + $0xb1] sm:$0xff]
        %v3221 = vld [vmem:[%s2532 + $0xc1] sm:$0xff]
        %v3222 = vld [vmem:[%s2532 + $0xc9] sm:$0xff]
        %v3223 = vld [vmem:[%s2532 + $0xd9] sm:$0xff]
        %v3224 = vld [vmem:[%s2532 + $0xe1] sm:$0xff]
        %v3225 = vld [vmem:[%s2532 + $0xf1] sm:$0xff]
        %v3226 = vld [vmem:[%s2532 + $0xf9] sm:$0xff]
        %v3227 = vld [vmem:[%s2532 + $0x109] sm:$0xff]
        %v3228 = vld [vmem:[%s2532 + $0x111] sm:$0xff]
        %v3229 = vld [vmem:[%s2532 + $0x121] sm:$0xff]
        %v3230 = vld [vmem:[%s2532 + $0x129] sm:$0xff]
        %v3231 = vld [vmem:[%s2532 + $0x139] sm:$0xff]
        %v3232 = vld [vmem:[%s2532 + $0x141] sm:$0xff]
        %v3233 = vld [vmem:[%s2532 + $0x151] sm:$0xff]
        %v3234 = vld [vmem:[%s2532 + $0x159] sm:$0xff]
        %v3235 = vld [vmem:[%s2532 + $0x169] sm:$0xff]
        %v3236 = vld [vmem:[%s2532 + $0x171] sm:$0xff]
        %3237 = vst.msk [vmem:[#allocation2 + $0x8] sm:$0xff] %vm391, %v3205
        %3238 = vst.msk [vmem:[#allocation2 + $0x20] sm:$0xff] %vm391, %v3206
        %3239 = vst.msk [vmem:[#allocation2 + $0x38] sm:$0xff] %vm391, %v3207
        %3240 = vst.msk [vmem:[#allocation2 + $0x50] sm:$0xff] %vm391, %v3208
        %3241 = vst.msk [vmem:[#allocation2 + $0x68] sm:$0xff] %vm391, %v3209
        %3242 = vst.msk [vmem:[#allocation2 + $0x80] sm:$0xff] %vm391, %v3210
        %3243 = vst.msk [vmem:[#allocation2 + $0x98] sm:$0xff] %vm391, %v3211
        %3244 = vst.msk [vmem:[#allocation2 + $0xb0] sm:$0xff] %vm391, %v3212
        %3245 = vst.msk [vmem:[#allocation2 + $0xc8] sm:$0xff] %vm391, %v3213
        %3246 = vst.msk [vmem:[#allocation2 + $0xe0] sm:$0xff] %vm391, %v3214
        %3247 = vst.msk [vmem:[#allocation2 + $0xf8] sm:$0xff] %vm391, %v3215
        %3248 = vst.msk [vmem:[#allocation2 + $0x110] sm:$0xff] %vm391, %v3216
        %3249 = vst.msk [vmem:[#allocation2 + $0x128] sm:$0xff] %vm391, %v3217
        %3250 = vst.msk [vmem:[#allocation2 + $0x140] sm:$0xff] %vm391, %v3218
        %3251 = vst.msk [vmem:[#allocation2 + $0x158] sm:$0xff] %vm391, %v3219
        %3252 = vst.msk [vmem:[#allocation2 + $0x170] sm:$0xff] %vm391, %v3220
        %3253 = vst.msk [vmem:[#allocation2 + $0x188] sm:$0xff] %vm391, %v3221
        %3254 = vst.msk [vmem:[#allocation2 + $0x1a0] sm:$0xff] %vm391, %v3222
        %3255 = vst.msk [vmem:[#allocation2 + $0x1b8] sm:$0xff] %vm391, %v3223
        %3256 = vst.msk [vmem:[#allocation2 + $0x1d0] sm:$0xff] %vm391, %v3224
        %3257 = vst.msk [vmem:[#allocation2 + $0x1e8] sm:$0xff] %vm391, %v3225
        %3258 = vst.msk [vmem:[#allocation2 + $0x200] sm:$0xff] %vm391, %v3226
        %3259 = vst.msk [vmem:[#allocation2 + $0x218] sm:$0xff] %vm391, %v3227
        %3260 = vst.msk [vmem:[#allocation2 + $0x230] sm:$0xff] %vm391, %v3228
        %3261 = vst.msk [vmem:[#allocation2 + $0x248] sm:$0xff] %vm391, %v3229
        %3262 = vst.msk [vmem:[#allocation2 + $0x260] sm:$0xff] %vm391, %v3230
        %3263 = vst.msk [vmem:[#allocation2 + $0x278] sm:$0xff] %vm391, %v3231
        %3264 = vst.msk [vmem:[#allocation2 + $0x290] sm:$0xff] %vm391, %v3232
        %3265 = vst.msk [vmem:[#allocation2 + $0x2a8] sm:$0xff] %vm391, %v3233
        %3266 = vst.msk [vmem:[#allocation2 + $0x2c0] sm:$0xff] %vm391, %v3234
        %3267 = vst.msk [vmem:[#allocation2 + $0x2d8] sm:$0xff] %vm391, %v3235
        %3268 = vst.msk [vmem:[#allocation2 + $0x2f0] sm:$0xff] %vm391, %v3236
        %v3269 = vld [vmem:[%s2532 + $0x2] sm:$0xff]
        %v3270 = vld [vmem:[%s2532 + $0xa] sm:$0xff]
        %v3271 = vld [vmem:[%s2532 + $0x1a] sm:$0xff]
        %v3272 = vld [vmem:[%s2532 + $0x22] sm:$0xff]
        %v3273 = vld [vmem:[%s2532 + $0x32] sm:$0xff]
        %v3274 = vld [vmem:[%s2532 + $0x3a] sm:$0xff]
        %v3275 = vld [vmem:[%s2532 + $0x4a] sm:$0xff]
        %v3276 = vld [vmem:[%s2532 + $0x52] sm:$0xff]
        %v3277 = vld [vmem:[%s2532 + $0x62] sm:$0xff]
        %v3278 = vld [vmem:[%s2532 + $0x6a] sm:$0xff]
        %v3279 = vld [vmem:[%s2532 + $0x7a] sm:$0xff]
        %v3280 = vld [vmem:[%s2532 + $0x82] sm:$0xff]
        %v3281 = vld [vmem:[%s2532 + $0x92] sm:$0xff]
        %v3282 = vld [vmem:[%s2532 + $0x9a] sm:$0xff]
        %v3283 = vld [vmem:[%s2532 + $0xaa] sm:$0xff]
        %v3284 = vld [vmem:[%s2532 + $0xb2] sm:$0xff]
        %v3285 = vld [vmem:[%s2532 + $0xc2] sm:$0xff]
        %v3286 = vld [vmem:[%s2532 + $0xca] sm:$0xff]
        %v3287 = vld [vmem:[%s2532 + $0xda] sm:$0xff]
        %v3288 = vld [vmem:[%s2532 + $0xe2] sm:$0xff]
        %v3289 = vld [vmem:[%s2532 + $0xf2] sm:$0xff]
        %v3290 = vld [vmem:[%s2532 + $0xfa] sm:$0xff]
        %v3291 = vld [vmem:[%s2532 + $0x10a] sm:$0xff]
        %v3292 = vld [vmem:[%s2532 + $0x112] sm:$0xff]
        %v3293 = vld [vmem:[%s2532 + $0x122] sm:$0xff]
        %v3294 = vld [vmem:[%s2532 + $0x12a] sm:$0xff]
        %v3295 = vld [vmem:[%s2532 + $0x13a] sm:$0xff]
        %v3296 = vld [vmem:[%s2532 + $0x142] sm:$0xff]
        %v3297 = vld [vmem:[%s2532 + $0x152] sm:$0xff]
        %v3298 = vld [vmem:[%s2532 + $0x15a] sm:$0xff]
        %v3299 = vld [vmem:[%s2532 + $0x16a] sm:$0xff]
        %v3300 = vld [vmem:[%s2532 + $0x172] sm:$0xff]
        %3333 = vrot.lane.b32.xlu0 %v3269, 32
        %v3334 = vpop.permute.xlu0 %3333
        %3335 = vrot.lane.b32.xlu0 %v3270, 32
        %v3336 = vpop.permute.xlu0 %3335
        %3337 = vrot.lane.b32.xlu0 %v3271, 32
        %v3338 = vpop.permute.xlu0 %3337
        %3339 = vrot.lane.b32.xlu0 %v3272, 32
        %v3340 = vpop.permute.xlu0 %3339
        %3341 = vrot.lane.b32.xlu0 %v3273, 32
        %v3342 = vpop.permute.xlu0 %3341
        %3343 = vrot.lane.b32.xlu0 %v3274, 32
        %v3344 = vpop.permute.xlu0 %3343
        %3345 = vrot.lane.b32.xlu0 %v3275, 32
        %v3346 = vpop.permute.xlu0 %3345
        %3347 = vrot.lane.b32.xlu0 %v3276, 32
        %v3348 = vpop.permute.xlu0 %3347
        %3349 = vrot.lane.b32.xlu0 %v3277, 32
        %v3350 = vpop.permute.xlu0 %3349
        %3351 = vrot.lane.b32.xlu0 %v3278, 32
        %v3352 = vpop.permute.xlu0 %3351
        %3353 = vrot.lane.b32.xlu0 %v3279, 32
        %v3354 = vpop.permute.xlu0 %3353
        %3355 = vrot.lane.b32.xlu0 %v3280, 32
        %v3356 = vpop.permute.xlu0 %3355
        %3357 = vrot.lane.b32.xlu0 %v3281, 32
        %v3358 = vpop.permute.xlu0 %3357
        %3359 = vrot.lane.b32.xlu0 %v3282, 32
        %v3360 = vpop.permute.xlu0 %3359
        %3361 = vrot.lane.b32.xlu0 %v3283, 32
        %v3362 = vpop.permute.xlu0 %3361
        %3363 = vrot.lane.b32.xlu0 %v3284, 32
        %v3364 = vpop.permute.xlu0 %3363
        %3365 = vrot.lane.b32.xlu0 %v3285, 32
        %v3366 = vpop.permute.xlu0 %3365
        %3367 = vrot.lane.b32.xlu0 %v3286, 32
        %v3368 = vpop.permute.xlu0 %3367
        %3369 = vrot.lane.b32.xlu0 %v3287, 32
        %v3370 = vpop.permute.xlu0 %3369
        %3371 = vrot.lane.b32.xlu0 %v3288, 32
        %v3372 = vpop.permute.xlu0 %3371
        %3373 = vrot.lane.b32.xlu0 %v3289, 32
        %v3374 = vpop.permute.xlu0 %3373
        %3375 = vrot.lane.b32.xlu0 %v3290, 32
        %v3376 = vpop.permute.xlu0 %3375
        %3377 = vrot.lane.b32.xlu0 %v3291, 32
        %v3378 = vpop.permute.xlu0 %3377
        %3379 = vrot.lane.b32.xlu0 %v3292, 32
        %v3380 = vpop.permute.xlu0 %3379
        %3381 = vrot.lane.b32.xlu0 %v3293, 32
        %v3382 = vpop.permute.xlu0 %3381
        %3383 = vrot.lane.b32.xlu0 %v3294, 32
        %v3384 = vpop.permute.xlu0 %3383
        %3385 = vrot.lane.b32.xlu0 %v3295, 32
        %v3386 = vpop.permute.xlu0 %3385
        %3387 = vrot.lane.b32.xlu0 %v3296, 32
        %v3388 = vpop.permute.xlu0 %3387
        %3389 = vrot.lane.b32.xlu0 %v3297, 32
        %v3390 = vpop.permute.xlu0 %3389
        %3391 = vrot.lane.b32.xlu0 %v3298, 32
        %v3392 = vpop.permute.xlu0 %3391
        %3393 = vrot.lane.b32.xlu0 %v3299, 32
        %v3394 = vpop.permute.xlu0 %3393
        %3395 = vrot.lane.b32.xlu0 %v3300, 32
        %v3396 = vpop.permute.xlu0 %3395
        %3429 = vst.msk [vmem:[#allocation2 + $0x8] sm:$0xff] %vm584, %v3334
        %3430 = vst.msk [vmem:[#allocation2 + $0x20] sm:$0xff] %vm584, %v3336
        %3431 = vst.msk [vmem:[#allocation2 + $0x38] sm:$0xff] %vm584, %v3338
        %3432 = vst.msk [vmem:[#allocation2 + $0x50] sm:$0xff] %vm584, %v3340
        %3433 = vst.msk [vmem:[#allocation2 + $0x68] sm:$0xff] %vm584, %v3342
        %3434 = vst.msk [vmem:[#allocation2 + $0x80] sm:$0xff] %vm584, %v3344
        %3435 = vst.msk [vmem:[#allocation2 + $0x98] sm:$0xff] %vm584, %v3346
        %3436 = vst.msk [vmem:[#allocation2 + $0xb0] sm:$0xff] %vm584, %v3348
        %3437 = vst.msk [vmem:[#allocation2 + $0xc8] sm:$0xff] %vm584, %v3350
        %3438 = vst.msk [vmem:[#allocation2 + $0xe0] sm:$0xff] %vm584, %v3352
        %3439 = vst.msk [vmem:[#allocation2 + $0xf8] sm:$0xff] %vm584, %v3354
        %3440 = vst.msk [vmem:[#allocation2 + $0x110] sm:$0xff] %vm584, %v3356
        %3441 = vst.msk [vmem:[#allocation2 + $0x128] sm:$0xff] %vm584, %v3358
        %3442 = vst.msk [vmem:[#allocation2 + $0x140] sm:$0xff] %vm584, %v3360
        %3443 = vst.msk [vmem:[#allocation2 + $0x158] sm:$0xff] %vm584, %v3362
        %3444 = vst.msk [vmem:[#allocation2 + $0x170] sm:$0xff] %vm584, %v3364
        %3445 = vst.msk [vmem:[#allocation2 + $0x188] sm:$0xff] %vm584, %v3366
        %3446 = vst.msk [vmem:[#allocation2 + $0x1a0] sm:$0xff] %vm584, %v3368
        %3447 = vst.msk [vmem:[#allocation2 + $0x1b8] sm:$0xff] %vm584, %v3370
        %3448 = vst.msk [vmem:[#allocation2 + $0x1d0] sm:$0xff] %vm584, %v3372
        %3449 = vst.msk [vmem:[#allocation2 + $0x1e8] sm:$0xff] %vm584, %v3374
        %3450 = vst.msk [vmem:[#allocation2 + $0x200] sm:$0xff] %vm584, %v3376
        %3451 = vst.msk [vmem:[#allocation2 + $0x218] sm:$0xff] %vm584, %v3378
        %3452 = vst.msk [vmem:[#allocation2 + $0x230] sm:$0xff] %vm584, %v3380
        %3453 = vst.msk [vmem:[#allocation2 + $0x248] sm:$0xff] %vm584, %v3382
        %3454 = vst.msk [vmem:[#allocation2 + $0x260] sm:$0xff] %vm584, %v3384
        %3455 = vst.msk [vmem:[#allocation2 + $0x278] sm:$0xff] %vm584, %v3386
        %3456 = vst.msk [vmem:[#allocation2 + $0x290] sm:$0xff] %vm584, %v3388
        %3457 = vst.msk [vmem:[#allocation2 + $0x2a8] sm:$0xff] %vm584, %v3390
        %3458 = vst.msk [vmem:[#allocation2 + $0x2c0] sm:$0xff] %vm584, %v3392
        %3459 = vst.msk [vmem:[#allocation2 + $0x2d8] sm:$0xff] %vm584, %v3394
        %3460 = vst.msk [vmem:[#allocation2 + $0x2f0] sm:$0xff] %vm584, %v3396
        %s3461 = scalar_lea.vmem [#allocation3], 48
        %v3462 = vld [vmem:[%s3461] sm:$0xff]
        %v3463 = vld [vmem:[%s3461 + $0x8] sm:$0xff]
        %v3464 = vld [vmem:[%s3461 + $0x18] sm:$0xff]
        %v3465 = vld [vmem:[%s3461 + $0x20] sm:$0xff]
        %v3466 = vld [vmem:[%s3461 + $0x30] sm:$0xff]
        %v3467 = vld [vmem:[%s3461 + $0x38] sm:$0xff]
        %v3468 = vld [vmem:[%s3461 + $0x48] sm:$0xff]
        %v3469 = vld [vmem:[%s3461 + $0x50] sm:$0xff]
        %v3470 = vld [vmem:[%s3461 + $0x60] sm:$0xff]
        %v3471 = vld [vmem:[%s3461 + $0x68] sm:$0xff]
        %v3472 = vld [vmem:[%s3461 + $0x78] sm:$0xff]
        %v3473 = vld [vmem:[%s3461 + $0x80] sm:$0xff]
        %v3474 = vld [vmem:[%s3461 + $0x90] sm:$0xff]
        %v3475 = vld [vmem:[%s3461 + $0x98] sm:$0xff]
        %v3476 = vld [vmem:[%s3461 + $0xa8] sm:$0xff]
        %v3477 = vld [vmem:[%s3461 + $0xb0] sm:$0xff]
        %v3478 = vld [vmem:[%s3461 + $0xc0] sm:$0xff]
        %v3479 = vld [vmem:[%s3461 + $0xc8] sm:$0xff]
        %v3480 = vld [vmem:[%s3461 + $0xd8] sm:$0xff]
        %v3481 = vld [vmem:[%s3461 + $0xe0] sm:$0xff]
        %v3482 = vld [vmem:[%s3461 + $0xf0] sm:$0xff]
        %v3483 = vld [vmem:[%s3461 + $0xf8] sm:$0xff]
        %v3484 = vld [vmem:[%s3461 + $0x108] sm:$0xff]
        %v3485 = vld [vmem:[%s3461 + $0x110] sm:$0xff]
        %v3486 = vld [vmem:[%s3461 + $0x120] sm:$0xff]
        %v3487 = vld [vmem:[%s3461 + $0x128] sm:$0xff]
        %v3488 = vld [vmem:[%s3461 + $0x138] sm:$0xff]
        %v3489 = vld [vmem:[%s3461 + $0x140] sm:$0xff]
        %v3490 = vld [vmem:[%s3461 + $0x150] sm:$0xff]
        %v3491 = vld [vmem:[%s3461 + $0x158] sm:$0xff]
        %v3492 = vld [vmem:[%s3461 + $0x168] sm:$0xff]
        %v3493 = vld [vmem:[%s3461 + $0x170] sm:$0xff]
        %3526 = vrot.lane.b32.xlu0 %v3462, 64
        %v3527 = vpop.permute.xlu0 %3526
        %3528 = vrot.lane.b32.xlu0 %v3463, 64
        %v3529 = vpop.permute.xlu0 %3528
        %3530 = vrot.lane.b32.xlu0 %v3464, 64
        %v3531 = vpop.permute.xlu0 %3530
        %3532 = vrot.lane.b32.xlu0 %v3465, 64
        %v3533 = vpop.permute.xlu0 %3532
        %3534 = vrot.lane.b32.xlu0 %v3466, 64
        %v3535 = vpop.permute.xlu0 %3534
        %3536 = vrot.lane.b32.xlu0 %v3467, 64
        %v3537 = vpop.permute.xlu0 %3536
        %3538 = vrot.lane.b32.xlu0 %v3468, 64
        %v3539 = vpop.permute.xlu0 %3538
        %3540 = vrot.lane.b32.xlu0 %v3469, 64
        %v3541 = vpop.permute.xlu0 %3540
        %3542 = vrot.lane.b32.xlu0 %v3470, 64
        %v3543 = vpop.permute.xlu0 %3542
        %3544 = vrot.lane.b32.xlu0 %v3471, 64
        %v3545 = vpop.permute.xlu0 %3544
        %3546 = vrot.lane.b32.xlu0 %v3472, 64
        %v3547 = vpop.permute.xlu0 %3546
        %3548 = vrot.lane.b32.xlu0 %v3473, 64
        %v3549 = vpop.permute.xlu0 %3548
        %3550 = vrot.lane.b32.xlu0 %v3474, 64
        %v3551 = vpop.permute.xlu0 %3550
        %3552 = vrot.lane.b32.xlu0 %v3475, 64
        %v3553 = vpop.permute.xlu0 %3552
        %3554 = vrot.lane.b32.xlu0 %v3476, 64
        %v3555 = vpop.permute.xlu0 %3554
        %3556 = vrot.lane.b32.xlu0 %v3477, 64
        %v3557 = vpop.permute.xlu0 %3556
        %3558 = vrot.lane.b32.xlu0 %v3478, 64
        %v3559 = vpop.permute.xlu0 %3558
        %3560 = vrot.lane.b32.xlu0 %v3479, 64
        %v3561 = vpop.permute.xlu0 %3560
        %3562 = vrot.lane.b32.xlu0 %v3480, 64
        %v3563 = vpop.permute.xlu0 %3562
        %3564 = vrot.lane.b32.xlu0 %v3481, 64
        %v3565 = vpop.permute.xlu0 %3564
        %3566 = vrot.lane.b32.xlu0 %v3482, 64
        %v3567 = vpop.permute.xlu0 %3566
        %3568 = vrot.lane.b32.xlu0 %v3483, 64
        %v3569 = vpop.permute.xlu0 %3568
        %3570 = vrot.lane.b32.xlu0 %v3484, 64
        %v3571 = vpop.permute.xlu0 %3570
        %3572 = vrot.lane.b32.xlu0 %v3485, 64
        %v3573 = vpop.permute.xlu0 %3572
        %3574 = vrot.lane.b32.xlu0 %v3486, 64
        %v3575 = vpop.permute.xlu0 %3574
        %3576 = vrot.lane.b32.xlu0 %v3487, 64
        %v3577 = vpop.permute.xlu0 %3576
        %3578 = vrot.lane.b32.xlu0 %v3488, 64
        %v3579 = vpop.permute.xlu0 %3578
        %3580 = vrot.lane.b32.xlu0 %v3489, 64
        %v3581 = vpop.permute.xlu0 %3580
        %3582 = vrot.lane.b32.xlu0 %v3490, 64
        %v3583 = vpop.permute.xlu0 %3582
        %3584 = vrot.lane.b32.xlu0 %v3491, 64
        %v3585 = vpop.permute.xlu0 %3584
        %3586 = vrot.lane.b32.xlu0 %v3492, 64
        %v3587 = vpop.permute.xlu0 %3586
        %3588 = vrot.lane.b32.xlu0 %v3493, 64
        %v3589 = vpop.permute.xlu0 %3588
        %3622 = vst.msk [vmem:[#allocation2 + $0x8] sm:$0xff] %vm777, %v3527
        %3623 = vst.msk [vmem:[#allocation2 + $0x20] sm:$0xff] %vm777, %v3529
        %3624 = vst.msk [vmem:[#allocation2 + $0x38] sm:$0xff] %vm777, %v3531
        %3625 = vst.msk [vmem:[#allocation2 + $0x50] sm:$0xff] %vm777, %v3533
        %3626 = vst.msk [vmem:[#allocation2 + $0x68] sm:$0xff] %vm777, %v3535
        %3627 = vst.msk [vmem:[#allocation2 + $0x80] sm:$0xff] %vm777, %v3537
        %3628 = vst.msk [vmem:[#allocation2 + $0x98] sm:$0xff] %vm777, %v3539
        %3629 = vst.msk [vmem:[#allocation2 + $0xb0] sm:$0xff] %vm777, %v3541
        %3630 = vst.msk [vmem:[#allocation2 + $0xc8] sm:$0xff] %vm777, %v3543
        %3631 = vst.msk [vmem:[#allocation2 + $0xe0] sm:$0xff] %vm777, %v3545
        %3632 = vst.msk [vmem:[#allocation2 + $0xf8] sm:$0xff] %vm777, %v3547
        %3633 = vst.msk [vmem:[#allocation2 + $0x110] sm:$0xff] %vm777, %v3549
        %3634 = vst.msk [vmem:[#allocation2 + $0x128] sm:$0xff] %vm777, %v3551
        %3635 = vst.msk [vmem:[#allocation2 + $0x140] sm:$0xff] %vm777, %v3553
        %3636 = vst.msk [vmem:[#allocation2 + $0x158] sm:$0xff] %vm777, %v3555
        %3637 = vst.msk [vmem:[#allocation2 + $0x170] sm:$0xff] %vm777, %v3557
        %3638 = vst.msk [vmem:[#allocation2 + $0x188] sm:$0xff] %vm777, %v3559
        %3639 = vst.msk [vmem:[#allocation2 + $0x1a0] sm:$0xff] %vm777, %v3561
        %3640 = vst.msk [vmem:[#allocation2 + $0x1b8] sm:$0xff] %vm777, %v3563
        %3641 = vst.msk [vmem:[#allocation2 + $0x1d0] sm:$0xff] %vm777, %v3565
        %3642 = vst.msk [vmem:[#allocation2 + $0x1e8] sm:$0xff] %vm777, %v3567
        %3643 = vst.msk [vmem:[#allocation2 + $0x200] sm:$0xff] %vm777, %v3569
        %3644 = vst.msk [vmem:[#allocation2 + $0x218] sm:$0xff] %vm777, %v3571
        %3645 = vst.msk [vmem:[#allocation2 + $0x230] sm:$0xff] %vm777, %v3573
        %3646 = vst.msk [vmem:[#allocation2 + $0x248] sm:$0xff] %vm777, %v3575
        %3647 = vst.msk [vmem:[#allocation2 + $0x260] sm:$0xff] %vm777, %v3577
        %3648 = vst.msk [vmem:[#allocation2 + $0x278] sm:$0xff] %vm777, %v3579
        %3649 = vst.msk [vmem:[#allocation2 + $0x290] sm:$0xff] %vm777, %v3581
        %3650 = vst.msk [vmem:[#allocation2 + $0x2a8] sm:$0xff] %vm777, %v3583
        %3651 = vst.msk [vmem:[#allocation2 + $0x2c0] sm:$0xff] %vm777, %v3585
        %3652 = vst.msk [vmem:[#allocation2 + $0x2d8] sm:$0xff] %vm777, %v3587
        %3653 = vst.msk [vmem:[#allocation2 + $0x2f0] sm:$0xff] %vm777, %v3589
        %v3654 = vld [vmem:[%s3461 + $0x1] sm:$0xff]
        %v3655 = vld [vmem:[%s3461 + $0x9] sm:$0xff]
        %v3656 = vld [vmem:[%s3461 + $0x19] sm:$0xff]
        %v3657 = vld [vmem:[%s3461 + $0x21] sm:$0xff]
        %v3658 = vld [vmem:[%s3461 + $0x31] sm:$0xff]
        %v3659 = vld [vmem:[%s3461 + $0x39] sm:$0xff]
        %v3660 = vld [vmem:[%s3461 + $0x49] sm:$0xff]
        %v3661 = vld [vmem:[%s3461 + $0x51] sm:$0xff]
        %v3662 = vld [vmem:[%s3461 + $0x61] sm:$0xff]
        %v3663 = vld [vmem:[%s3461 + $0x69] sm:$0xff]
        %v3664 = vld [vmem:[%s3461 + $0x79] sm:$0xff]
        %v3665 = vld [vmem:[%s3461 + $0x81] sm:$0xff]
        %v3666 = vld [vmem:[%s3461 + $0x91] sm:$0xff]
        %v3667 = vld [vmem:[%s3461 + $0x99] sm:$0xff]
        %v3668 = vld [vmem:[%s3461 + $0xa9] sm:$0xff]
        %v3669 = vld [vmem:[%s3461 + $0xb1] sm:$0xff]
        %v3670 = vld [vmem:[%s3461 + $0xc1] sm:$0xff]
        %v3671 = vld [vmem:[%s3461 + $0xc9] sm:$0xff]
        %v3672 = vld [vmem:[%s3461 + $0xd9] sm:$0xff]
        %v3673 = vld [vmem:[%s3461 + $0xe1] sm:$0xff]
        %v3674 = vld [vmem:[%s3461 + $0xf1] sm:$0xff]
        %v3675 = vld [vmem:[%s3461 + $0xf9] sm:$0xff]
        %v3676 = vld [vmem:[%s3461 + $0x109] sm:$0xff]
        %v3677 = vld [vmem:[%s3461 + $0x111] sm:$0xff]
        %v3678 = vld [vmem:[%s3461 + $0x121] sm:$0xff]
        %v3679 = vld [vmem:[%s3461 + $0x129] sm:$0xff]
        %v3680 = vld [vmem:[%s3461 + $0x139] sm:$0xff]
        %v3681 = vld [vmem:[%s3461 + $0x141] sm:$0xff]
        %v3682 = vld [vmem:[%s3461 + $0x151] sm:$0xff]
        %v3683 = vld [vmem:[%s3461 + $0x159] sm:$0xff]
        %v3684 = vld [vmem:[%s3461 + $0x169] sm:$0xff]
        %v3685 = vld [vmem:[%s3461 + $0x171] sm:$0xff]
        %3718 = vrot.lane.b32.xlu0 %v3654, 96
        %v3719 = vpop.permute.xlu0 %3718
        %3720 = vrot.lane.b32.xlu0 %v3655, 96
        %v3721 = vpop.permute.xlu0 %3720
        %3722 = vrot.lane.b32.xlu0 %v3656, 96
        %v3723 = vpop.permute.xlu0 %3722
        %3724 = vrot.lane.b32.xlu0 %v3657, 96
        %v3725 = vpop.permute.xlu0 %3724
        %3726 = vrot.lane.b32.xlu0 %v3658, 96
        %v3727 = vpop.permute.xlu0 %3726
        %3728 = vrot.lane.b32.xlu0 %v3659, 96
        %v3729 = vpop.permute.xlu0 %3728
        %3730 = vrot.lane.b32.xlu0 %v3660, 96
        %v3731 = vpop.permute.xlu0 %3730
        %3732 = vrot.lane.b32.xlu0 %v3661, 96
        %v3733 = vpop.permute.xlu0 %3732
        %3734 = vrot.lane.b32.xlu0 %v3662, 96
        %v3735 = vpop.permute.xlu0 %3734
        %3736 = vrot.lane.b32.xlu0 %v3663, 96
        %v3737 = vpop.permute.xlu0 %3736
        %3738 = vrot.lane.b32.xlu0 %v3664, 96
        %v3739 = vpop.permute.xlu0 %3738
        %3740 = vrot.lane.b32.xlu0 %v3665, 96
        %v3741 = vpop.permute.xlu0 %3740
        %3742 = vrot.lane.b32.xlu0 %v3666, 96
        %v3743 = vpop.permute.xlu0 %3742
        %3744 = vrot.lane.b32.xlu0 %v3667, 96
        %v3745 = vpop.permute.xlu0 %3744
        %3746 = vrot.lane.b32.xlu0 %v3668, 96
        %v3747 = vpop.permute.xlu0 %3746
        %3748 = vrot.lane.b32.xlu0 %v3669, 96
        %v3749 = vpop.permute.xlu0 %3748
        %3750 = vrot.lane.b32.xlu0 %v3670, 96
        %v3751 = vpop.permute.xlu0 %3750
        %3752 = vrot.lane.b32.xlu0 %v3671, 96
        %v3753 = vpop.permute.xlu0 %3752
        %3754 = vrot.lane.b32.xlu0 %v3672, 96
        %v3755 = vpop.permute.xlu0 %3754
        %3756 = vrot.lane.b32.xlu0 %v3673, 96
        %v3757 = vpop.permute.xlu0 %3756
        %3758 = vrot.lane.b32.xlu0 %v3674, 96
        %v3759 = vpop.permute.xlu0 %3758
        %3760 = vrot.lane.b32.xlu0 %v3675, 96
        %v3761 = vpop.permute.xlu0 %3760
        %3762 = vrot.lane.b32.xlu0 %v3676, 96
        %v3763 = vpop.permute.xlu0 %3762
        %3764 = vrot.lane.b32.xlu0 %v3677, 96
        %v3765 = vpop.permute.xlu0 %3764
        %3766 = vrot.lane.b32.xlu0 %v3678, 96
        %v3767 = vpop.permute.xlu0 %3766
        %3768 = vrot.lane.b32.xlu0 %v3679, 96
        %v3769 = vpop.permute.xlu0 %3768
        %3770 = vrot.lane.b32.xlu0 %v3680, 96
        %v3771 = vpop.permute.xlu0 %3770
        %3772 = vrot.lane.b32.xlu0 %v3681, 96
        %v3773 = vpop.permute.xlu0 %3772
        %3774 = vrot.lane.b32.xlu0 %v3682, 96
        %v3775 = vpop.permute.xlu0 %3774
        %3776 = vrot.lane.b32.xlu0 %v3683, 96
        %v3777 = vpop.permute.xlu0 %3776
        %3778 = vrot.lane.b32.xlu0 %v3684, 96
        %v3779 = vpop.permute.xlu0 %3778
        %3780 = vrot.lane.b32.xlu0 %v3685, 96
        %v3781 = vpop.permute.xlu0 %3780
        %3814 = vst.msk [vmem:[#allocation2 + $0x8] sm:$0xff] %vm971, %v3719
        %3815 = vst.msk [vmem:[#allocation2 + $0x20] sm:$0xff] %vm971, %v3721
        %3816 = vst.msk [vmem:[#allocation2 + $0x38] sm:$0xff] %vm971, %v3723
        %3817 = vst.msk [vmem:[#allocation2 + $0x50] sm:$0xff] %vm971, %v3725
        %3818 = vst.msk [vmem:[#allocation2 + $0x68] sm:$0xff] %vm971, %v3727
        %3819 = vst.msk [vmem:[#allocation2 + $0x80] sm:$0xff] %vm971, %v3729
        %3820 = vst.msk [vmem:[#allocation2 + $0x98] sm:$0xff] %vm971, %v3731
        %3821 = vst.msk [vmem:[#allocation2 + $0xb0] sm:$0xff] %vm971, %v3733
        %3822 = vst.msk [vmem:[#allocation2 + $0xc8] sm:$0xff] %vm971, %v3735
        %3823 = vst.msk [vmem:[#allocation2 + $0xe0] sm:$0xff] %vm971, %v3737
        %3824 = vst.msk [vmem:[#allocation2 + $0xf8] sm:$0xff] %vm971, %v3739
        %3825 = vst.msk [vmem:[#allocation2 + $0x110] sm:$0xff] %vm971, %v3741
        %3826 = vst.msk [vmem:[#allocation2 + $0x128] sm:$0xff] %vm971, %v3743
        %3827 = vst.msk [vmem:[#allocation2 + $0x140] sm:$0xff] %vm971, %v3745
        %3828 = vst.msk [vmem:[#allocation2 + $0x158] sm:$0xff] %vm971, %v3747
        %3829 = vst.msk [vmem:[#allocation2 + $0x170] sm:$0xff] %vm971, %v3749
        %3830 = vst.msk [vmem:[#allocation2 + $0x188] sm:$0xff] %vm971, %v3751
        %3831 = vst.msk [vmem:[#allocation2 + $0x1a0] sm:$0xff] %vm971, %v3753
        %3832 = vst.msk [vmem:[#allocation2 + $0x1b8] sm:$0xff] %vm971, %v3755
        %3833 = vst.msk [vmem:[#allocation2 + $0x1d0] sm:$0xff] %vm971, %v3757
        %3834 = vst.msk [vmem:[#allocation2 + $0x1e8] sm:$0xff] %vm971, %v3759
        %3835 = vst.msk [vmem:[#allocation2 + $0x200] sm:$0xff] %vm971, %v3761
        %3836 = vst.msk [vmem:[#allocation2 + $0x218] sm:$0xff] %vm971, %v3763
        %3837 = vst.msk [vmem:[#allocation2 + $0x230] sm:$0xff] %vm971, %v3765
        %3838 = vst.msk [vmem:[#allocation2 + $0x248] sm:$0xff] %vm971, %v3767
        %3839 = vst.msk [vmem:[#allocation2 + $0x260] sm:$0xff] %vm971, %v3769
        %3840 = vst.msk [vmem:[#allocation2 + $0x278] sm:$0xff] %vm971, %v3771
        %3841 = vst.msk [vmem:[#allocation2 + $0x290] sm:$0xff] %vm971, %v3773
        %3842 = vst.msk [vmem:[#allocation2 + $0x2a8] sm:$0xff] %vm971, %v3775
        %3843 = vst.msk [vmem:[#allocation2 + $0x2c0] sm:$0xff] %vm971, %v3777
        %3844 = vst.msk [vmem:[#allocation2 + $0x2d8] sm:$0xff] %vm971, %v3779
        %3845 = vst.msk [vmem:[#allocation2 + $0x2f0] sm:$0xff] %vm971, %v3781
        %v3846 = vld [vmem:[%s3461 + $0x2] sm:$0xff]
        %v3847 = vld [vmem:[%s3461 + $0xa] sm:$0xff]
        %v3848 = vld [vmem:[%s3461 + $0x1a] sm:$0xff]
        %v3849 = vld [vmem:[%s3461 + $0x22] sm:$0xff]
        %v3850 = vld [vmem:[%s3461 + $0x32] sm:$0xff]
        %v3851 = vld [vmem:[%s3461 + $0x3a] sm:$0xff]
        %v3852 = vld [vmem:[%s3461 + $0x4a] sm:$0xff]
        %v3853 = vld [vmem:[%s3461 + $0x52] sm:$0xff]
        %v3854 = vld [vmem:[%s3461 + $0x62] sm:$0xff]
        %v3855 = vld [vmem:[%s3461 + $0x6a] sm:$0xff]
        %v3856 = vld [vmem:[%s3461 + $0x7a] sm:$0xff]
        %v3857 = vld [vmem:[%s3461 + $0x82] sm:$0xff]
        %v3858 = vld [vmem:[%s3461 + $0x92] sm:$0xff]
        %v3859 = vld [vmem:[%s3461 + $0x9a] sm:$0xff]
        %v3860 = vld [vmem:[%s3461 + $0xaa] sm:$0xff]
        %v3861 = vld [vmem:[%s3461 + $0xb2] sm:$0xff]
        %v3862 = vld [vmem:[%s3461 + $0xc2] sm:$0xff]
        %v3863 = vld [vmem:[%s3461 + $0xca] sm:$0xff]
        %v3864 = vld [vmem:[%s3461 + $0xda] sm:$0xff]
        %v3865 = vld [vmem:[%s3461 + $0xe2] sm:$0xff]
        %v3866 = vld [vmem:[%s3461 + $0xf2] sm:$0xff]
        %v3867 = vld [vmem:[%s3461 + $0xfa] sm:$0xff]
        %v3868 = vld [vmem:[%s3461 + $0x10a] sm:$0xff]
        %v3869 = vld [vmem:[%s3461 + $0x112] sm:$0xff]
        %v3870 = vld [vmem:[%s3461 + $0x122] sm:$0xff]
        %v3871 = vld [vmem:[%s3461 + $0x12a] sm:$0xff]
        %v3872 = vld [vmem:[%s3461 + $0x13a] sm:$0xff]
        %v3873 = vld [vmem:[%s3461 + $0x142] sm:$0xff]
        %v3874 = vld [vmem:[%s3461 + $0x152] sm:$0xff]
        %v3875 = vld [vmem:[%s3461 + $0x15a] sm:$0xff]
        %v3876 = vld [vmem:[%s3461 + $0x16a] sm:$0xff]
        %v3877 = vld [vmem:[%s3461 + $0x172] sm:$0xff]
        %3878 = vst.msk [vmem:[#allocation2 + $0x10] sm:$0xff] %vm391, %v3846
        %3879 = vst.msk [vmem:[#allocation2 + $0x28] sm:$0xff] %vm391, %v3847
        %3880 = vst.msk [vmem:[#allocation2 + $0x40] sm:$0xff] %vm391, %v3848
        %3881 = vst.msk [vmem:[#allocation2 + $0x58] sm:$0xff] %vm391, %v3849
        %3882 = vst.msk [vmem:[#allocation2 + $0x70] sm:$0xff] %vm391, %v3850
        %3883 = vst.msk [vmem:[#allocation2 + $0x88] sm:$0xff] %vm391, %v3851
        %3884 = vst.msk [vmem:[#allocation2 + $0xa0] sm:$0xff] %vm391, %v3852
        %3885 = vst.msk [vmem:[#allocation2 + $0xb8] sm:$0xff] %vm391, %v3853
        %3886 = vst.msk [vmem:[#allocation2 + $0xd0] sm:$0xff] %vm391, %v3854
        %3887 = vst.msk [vmem:[#allocation2 + $0xe8] sm:$0xff] %vm391, %v3855
        %3888 = vst.msk [vmem:[#allocation2 + $0x100] sm:$0xff] %vm391, %v3856
        %3889 = vst.msk [vmem:[#allocation2 + $0x118] sm:$0xff] %vm391, %v3857
        %3890 = vst.msk [vmem:[#allocation2 + $0x130] sm:$0xff] %vm391, %v3858
        %3891 = vst.msk [vmem:[#allocation2 + $0x148] sm:$0xff] %vm391, %v3859
        %3892 = vst.msk [vmem:[#allocation2 + $0x160] sm:$0xff] %vm391, %v3860
        %3893 = vst.msk [vmem:[#allocation2 + $0x178] sm:$0xff] %vm391, %v3861
        %3894 = vst.msk [vmem:[#allocation2 + $0x190] sm:$0xff] %vm391, %v3862
        %3895 = vst.msk [vmem:[#allocation2 + $0x1a8] sm:$0xff] %vm391, %v3863
        %3896 = vst.msk [vmem:[#allocation2 + $0x1c0] sm:$0xff] %vm391, %v3864
        %3897 = vst.msk [vmem:[#allocation2 + $0x1d8] sm:$0xff] %vm391, %v3865
        %3898 = vst.msk [vmem:[#allocation2 + $0x1f0] sm:$0xff] %vm391, %v3866
        %3899 = vst.msk [vmem:[#allocation2 + $0x208] sm:$0xff] %vm391, %v3867
        %3900 = vst.msk [vmem:[#allocation2 + $0x220] sm:$0xff] %vm391, %v3868
        %3901 = vst.msk [vmem:[#allocation2 + $0x238] sm:$0xff] %vm391, %v3869
        %3902 = vst.msk [vmem:[#allocation2 + $0x250] sm:$0xff] %vm391, %v3870
        %3903 = vst.msk [vmem:[#allocation2 + $0x268] sm:$0xff] %vm391, %v3871
        %3904 = vst.msk [vmem:[#allocation2 + $0x280] sm:$0xff] %vm391, %v3872
        %3905 = vst.msk [vmem:[#allocation2 + $0x298] sm:$0xff] %vm391, %v3873
        %3906 = vst.msk [vmem:[#allocation2 + $0x2b0] sm:$0xff] %vm391, %v3874
        %3907 = vst.msk [vmem:[#allocation2 + $0x2c8] sm:$0xff] %vm391, %v3875
        %3908 = vst.msk [vmem:[#allocation2 + $0x2e0] sm:$0xff] %vm391, %v3876
        %3909 = vst.msk [vmem:[#allocation2 + $0x2f8] sm:$0xff] %vm391, %v3877
        %v3910 = vld [vmem:[#allocation2] sm:$0xff]
        %v3911 = vld [vmem:[#allocation2 + $0x8] sm:$0xff]
        %v3912 = vld [vmem:[#allocation2 + $0x10] sm:$0xff]
        %v3913 = vld [vmem:[#allocation2 + $0x18] sm:$0xff]
        %v3914 = vld [vmem:[#allocation2 + $0x20] sm:$0xff]
        %v3915 = vld [vmem:[#allocation2 + $0x28] sm:$0xff]
        %v3916 = vld [vmem:[#allocation2 + $0x30] sm:$0xff]
        %v3917 = vld [vmem:[#allocation2 + $0x38] sm:$0xff]
        %v3918 = vld [vmem:[#allocation2 + $0x40] sm:$0xff]
        %v3919 = vld [vmem:[#allocation2 + $0x48] sm:$0xff]
        %v3920 = vld [vmem:[#allocation2 + $0x50] sm:$0xff]
        %v3921 = vld [vmem:[#allocation2 + $0x58] sm:$0xff]
        %v3922 = vld [vmem:[#allocation2 + $0x60] sm:$0xff]
        %v3923 = vld [vmem:[#allocation2 + $0x68] sm:$0xff]
        %v3924 = vld [vmem:[#allocation2 + $0x70] sm:$0xff]
        %v3925 = vld [vmem:[#allocation2 + $0x78] sm:$0xff]
        %v3926 = vld [vmem:[#allocation2 + $0x80] sm:$0xff]
        %v3927 = vld [vmem:[#allocation2 + $0x88] sm:$0xff]
        %v3928 = vld [vmem:[#allocation2 + $0x90] sm:$0xff]
        %v3929 = vld [vmem:[#allocation2 + $0x98] sm:$0xff]
        %v3930 = vld [vmem:[#allocation2 + $0xa0] sm:$0xff]
        %v3931 = vld [vmem:[#allocation2 + $0xa8] sm:$0xff]
        %v3932 = vld [vmem:[#allocation2 + $0xb0] sm:$0xff]
        %v3933 = vld [vmem:[#allocation2 + $0xb8] sm:$0xff]
        %v3934 = vld [vmem:[#allocation2 + $0xc0] sm:$0xff]
        %v3935 = vld [vmem:[#allocation2 + $0xc8] sm:$0xff]
        %v3936 = vld [vmem:[#allocation2 + $0xd0] sm:$0xff]
        %v3937 = vld [vmem:[#allocation2 + $0xd8] sm:$0xff]
        %v3938 = vld [vmem:[#allocation2 + $0xe0] sm:$0xff]
        %v3939 = vld [vmem:[#allocation2 + $0xe8] sm:$0xff]
        %v3940 = vld [vmem:[#allocation2 + $0xf0] sm:$0xff]
        %v3941 = vld [vmem:[#allocation2 + $0xf8] sm:$0xff]
        %v3942 = vld [vmem:[#allocation2 + $0x100] sm:$0xff]
        %v3943 = vld [vmem:[#allocation2 + $0x108] sm:$0xff]
        %v3944 = vld [vmem:[#allocation2 + $0x110] sm:$0xff]
        %v3945 = vld [vmem:[#allocation2 + $0x118] sm:$0xff]
        %v3946 = vld [vmem:[#allocation2 + $0x120] sm:$0xff]
        %v3947 = vld [vmem:[#allocation2 + $0x128] sm:$0xff]
        %v3948 = vld [vmem:[#allocation2 + $0x130] sm:$0xff]
        %v3949 = vld [vmem:[#allocation2 + $0x138] sm:$0xff]
        %v3950 = vld [vmem:[#allocation2 + $0x140] sm:$0xff]
        %v3951 = vld [vmem:[#allocation2 + $0x148] sm:$0xff]
        %v3952 = vld [vmem:[#allocation2 + $0x150] sm:$0xff]
        %v3953 = vld [vmem:[#allocation2 + $0x158] sm:$0xff]
        %v3954 = vld [vmem:[#allocation2 + $0x160] sm:$0xff]
        %v3955 = vld [vmem:[#allocation2 + $0x168] sm:$0xff]
        %v3956 = vld [vmem:[#allocation2 + $0x170] sm:$0xff]
        %v3957 = vld [vmem:[#allocation2 + $0x178] sm:$0xff]
        %v3958 = vld [vmem:[#allocation2 + $0x180] sm:$0xff]
        %v3959 = vld [vmem:[#allocation2 + $0x188] sm:$0xff]
        %v3960 = vld [vmem:[#allocation2 + $0x190] sm:$0xff]
        %v3961 = vld [vmem:[#allocation2 + $0x198] sm:$0xff]
        %v3962 = vld [vmem:[#allocation2 + $0x1a0] sm:$0xff]
        %v3963 = vld [vmem:[#allocation2 + $0x1a8] sm:$0xff]
        %v3964 = vld [vmem:[#allocation2 + $0x1b0] sm:$0xff]
        %v3965 = vld [vmem:[#allocation2 + $0x1b8] sm:$0xff]
        %v3966 = vld [vmem:[#allocation2 + $0x1c0] sm:$0xff]
        %v3967 = vld [vmem:[#allocation2 + $0x1c8] sm:$0xff]
        %v3968 = vld [vmem:[#allocation2 + $0x1d0] sm:$0xff]
        %v3969 = vld [vmem:[#allocation2 + $0x1d8] sm:$0xff]
        %v3970 = vld [vmem:[#allocation2 + $0x1e0] sm:$0xff]
        %v3971 = vld [vmem:[#allocation2 + $0x1e8] sm:$0xff]
        %v3972 = vld [vmem:[#allocation2 + $0x1f0] sm:$0xff]
        %v3973 = vld [vmem:[#allocation2 + $0x1f8] sm:$0xff]
        %v3974 = vld [vmem:[#allocation2 + $0x200] sm:$0xff]
        %v3975 = vld [vmem:[#allocation2 + $0x208] sm:$0xff]
        %v3976 = vld [vmem:[#allocation2 + $0x210] sm:$0xff]
        %v3977 = vld [vmem:[#allocation2 + $0x218] sm:$0xff]
        %v3978 = vld [vmem:[#allocation2 + $0x220] sm:$0xff]
        %v3979 = vld [vmem:[#allocation2 + $0x228] sm:$0xff]
        %v3980 = vld [vmem:[#allocation2 + $0x230] sm:$0xff]
        %v3981 = vld [vmem:[#allocation2 + $0x238] sm:$0xff]
        %v3982 = vld [vmem:[#allocation2 + $0x240] sm:$0xff]
        %v3983 = vld [vmem:[#allocation2 + $0x248] sm:$0xff]
        %v3984 = vld [vmem:[#allocation2 + $0x250] sm:$0xff]
        %v3985 = vld [vmem:[#allocation2 + $0x258] sm:$0xff]
        %v3986 = vld [vmem:[#allocation2 + $0x260] sm:$0xff]
        %v3987 = vld [vmem:[#allocation2 + $0x268] sm:$0xff]
        %v3988 = vld [vmem:[#allocation2 + $0x270] sm:$0xff]
        %v3989 = vld [vmem:[#allocation2 + $0x278] sm:$0xff]
        %v3990 = vld [vmem:[#allocation2 + $0x280] sm:$0xff]
        %v3991 = vld [vmem:[#allocation2 + $0x288] sm:$0xff]
        %v3992 = vld [vmem:[#allocation2 + $0x290] sm:$0xff]
        %v3993 = vld [vmem:[#allocation2 + $0x298] sm:$0xff]
        %v3994 = vld [vmem:[#allocation2 + $0x2a0] sm:$0xff]
        %v3995 = vld [vmem:[#allocation2 + $0x2a8] sm:$0xff]
        %v3996 = vld [vmem:[#allocation2 + $0x2b0] sm:$0xff]
        %v3997 = vld [vmem:[#allocation2 + $0x2b8] sm:$0xff]
        %v3998 = vld [vmem:[#allocation2 + $0x2c0] sm:$0xff]
        %v3999 = vld [vmem:[#allocation2 + $0x2c8] sm:$0xff]
        %v4000 = vld [vmem:[#allocation2 + $0x2d0] sm:$0xff]
        %v4001 = vld [vmem:[#allocation2 + $0x2d8] sm:$0xff]
        %v4002 = vld [vmem:[#allocation2 + $0x2e0] sm:$0xff]
        %v4003 = vld [vmem:[#allocation2 + $0x2e8] sm:$0xff]
        %v4004 = vld [vmem:[#allocation2 + $0x2f0] sm:$0xff]
        %v4005 = vld [vmem:[#allocation2 + $0x2f8] sm:$0xff]
        %v4006 = vpack.c.bf16 %v3913, %v3910
        %v4007 = vpack.c.bf16 %v3914, %v3911
        %v4008 = vpack.c.bf16 %v3915, %v3912
        %v4009 = vpack.c.bf16 %v3919, %v3916
        %v4010 = vpack.c.bf16 %v3920, %v3917
        %v4011 = vpack.c.bf16 %v3921, %v3918
        %v4012 = vpack.c.bf16 %v3925, %v3922
        %v4013 = vpack.c.bf16 %v3926, %v3923
        %v4014 = vpack.c.bf16 %v3927, %v3924
        %v4015 = vpack.c.bf16 %v3931, %v3928
        %v4016 = vpack.c.bf16 %v3932, %v3929
        %v4017 = vpack.c.bf16 %v3933, %v3930
        %v4018 = vpack.c.bf16 %v3937, %v3934
        %v4019 = vpack.c.bf16 %v3938, %v3935
        %v4020 = vpack.c.bf16 %v3939, %v3936
        %v4021 = vpack.c.bf16 %v3943, %v3940
        %v4022 = vpack.c.bf16 %v3944, %v3941
        %v4023 = vpack.c.bf16 %v3945, %v3942
        %v4024 = vpack.c.bf16 %v3949, %v3946
        %v4025 = vpack.c.bf16 %v3950, %v3947
        %v4026 = vpack.c.bf16 %v3951, %v3948
        %v4027 = vpack.c.bf16 %v3955, %v3952
        %v4028 = vpack.c.bf16 %v3956, %v3953
        %v4029 = vpack.c.bf16 %v3957, %v3954
        %v4030 = vpack.c.bf16 %v3961, %v3958
        %v4031 = vpack.c.bf16 %v3962, %v3959
        %v4032 = vpack.c.bf16 %v3963, %v3960
        %v4033 = vpack.c.bf16 %v3967, %v3964
        %v4034 = vpack.c.bf16 %v3968, %v3965
        %v4035 = vpack.c.bf16 %v3969, %v3966
        %v4036 = vpack.c.bf16 %v3973, %v3970
        %v4037 = vpack.c.bf16 %v3974, %v3971
        %v4038 = vpack.c.bf16 %v3975, %v3972
        %v4039 = vpack.c.bf16 %v3979, %v3976
        %v4040 = vpack.c.bf16 %v3980, %v3977
        %v4041 = vpack.c.bf16 %v3981, %v3978
        %v4042 = vpack.c.bf16 %v3985, %v3982
        %v4043 = vpack.c.bf16 %v3986, %v3983
        %v4044 = vpack.c.bf16 %v3987, %v3984
        %v4045 = vpack.c.bf16 %v3991, %v3988
        %v4046 = vpack.c.bf16 %v3992, %v3989
        %v4047 = vpack.c.bf16 %v3993, %v3990
        %v4048 = vpack.c.bf16 %v3997, %v3994
        %v4049 = vpack.c.bf16 %v3998, %v3995
        %v4050 = vpack.c.bf16 %v3999, %v3996
        %v4051 = vpack.c.bf16 %v4003, %v4000
        %v4052 = vpack.c.bf16 %v4004, %v4001
        %v4053 = vpack.c.bf16 %v4005, %v4002
        %v4054 = vld [vmem:[%s2] sm:$0xf]
        %v4055 = vld [vmem:[%s2 + $0x4] sm:$0xf]
        %v4056 = vld [vmem:[%s2 + $0x8] sm:$0xf]
        %v4057 = vld [vmem:[%s2 + $0xc] sm:$0xf]
        %v4058 = vld [vmem:[%s2 + $0x10] sm:$0xf]
        %v4059 = vld [vmem:[%s2 + $0x14] sm:$0xf]
        %v4060 = vld [vmem:[%s2 + $0x18] sm:$0xf]
        %v4061 = vld [vmem:[%s2 + $0x1c] sm:$0xf]
        %v4062 = vld [vmem:[%s2 + $0x20] sm:$0xf]
        %v4063 = vld [vmem:[%s2 + $0x24] sm:$0xf]
        %v4064 = vld [vmem:[%s2 + $0x28] sm:$0xf]
        %v4065 = vld [vmem:[%s2 + $0x2c] sm:$0xf]
        %v4066 = vld [vmem:[%s2 + $0x30] sm:$0xf]
        %v4067 = vld [vmem:[%s2 + $0x34] sm:$0xf]
        %v4068 = vld [vmem:[%s2 + $0x38] sm:$0xf]
        %v4069 = vld [vmem:[%s2 + $0x3c] sm:$0xf]
        %v4070 = vld [vmem:[%s2 + $0x40] sm:$0xf]
        %v4071 = vld [vmem:[%s2 + $0x44] sm:$0xf]
        %v4072 = vld [vmem:[%s2 + $0x48] sm:$0xf]
        %v4073 = vld [vmem:[%s2 + $0x4c] sm:$0xf]
        %v4074 = vld [vmem:[%s2 + $0x50] sm:$0xf]
        %v4075 = vld [vmem:[%s2 + $0x54] sm:$0xf]
        %v4076 = vld [vmem:[%s2 + $0x58] sm:$0xf]
        %v4077 = vld [vmem:[%s2 + $0x5c] sm:$0xf]
        %v4078 = vld [vmem:[%s2 + $0x60] sm:$0xf]
        %v4079 = vld [vmem:[%s2 + $0x64] sm:$0xf]
        %v4080 = vld [vmem:[%s2 + $0x68] sm:$0xf]
        %v4081 = vld [vmem:[%s2 + $0x6c] sm:$0xf]
        %v4082 = vld [vmem:[%s2 + $0x70] sm:$0xf]
        %v4083 = vld [vmem:[%s2 + $0x74] sm:$0xf]
        %v4084 = vld [vmem:[%s2 + $0x78] sm:$0xf]
        %v4085 = vld [vmem:[%s2 + $0x7c] sm:$0xf]
        %v4086 = vld [vmem:[%s2 + $0x80] sm:$0xf]
        %v4087 = vld [vmem:[%s2 + $0x84] sm:$0xf]
        %v4088 = vld [vmem:[%s2 + $0x88] sm:$0xf]
        %v4089 = vld [vmem:[%s2 + $0x8c] sm:$0xf]
        %v4126 = vunpack.c.l.b16 %v4054
        %v4127 = vunpack.c.l.b16 %v4055
        %v4128 = vunpack.c.l.b16 %v4056
        %v4129 = vunpack.c.l.b16 %v4057
        %v4130 = vunpack.c.l.b16 %v4058
        %v4131 = vunpack.c.l.b16 %v4059
        %v4132 = vunpack.c.l.b16 %v4060
        %v4133 = vunpack.c.l.b16 %v4061
        %v4134 = vunpack.c.l.b16 %v4062
        %v4135 = vunpack.c.l.b16 %v4063
        %v4136 = vunpack.c.l.b16 %v4064
        %v4137 = vunpack.c.l.b16 %v4065
        %v4138 = vunpack.c.l.b16 %v4066
        %v4139 = vunpack.c.l.b16 %v4067
        %v4140 = vunpack.c.l.b16 %v4068
        %v4141 = vunpack.c.l.b16 %v4069
        %v4142 = vunpack.c.l.b16 %v4070
        %v4143 = vunpack.c.l.b16 %v4071
        %v4144 = vunpack.c.l.b16 %v4072
        %v4145 = vunpack.c.l.b16 %v4073
        %v4146 = vunpack.c.l.b16 %v4074
        %v4147 = vunpack.c.l.b16 %v4075
        %v4148 = vunpack.c.l.b16 %v4076
        %v4149 = vunpack.c.l.b16 %v4077
        %v4150 = vunpack.c.l.b16 %v4078
        %v4151 = vunpack.c.l.b16 %v4079
        %v4152 = vunpack.c.l.b16 %v4080
        %v4153 = vunpack.c.l.b16 %v4081
        %v4154 = vunpack.c.l.b16 %v4082
        %v4155 = vunpack.c.l.b16 %v4083
        %v4156 = vunpack.c.l.b16 %v4084
        %v4157 = vunpack.c.l.b16 %v4085
        %v4158 = vunpack.c.l.b16 %v4086
        %v4159 = vunpack.c.l.b16 %v4087
        %v4160 = vunpack.c.l.b16 %v4088
        %v4161 = vunpack.c.l.b16 %v4089
        %v4162 = vpack.c.b16 %v4127, %v4126
        %v4163 = vpack.c.b16 %v4129, %v4128
        %v4164 = vpack.c.b16 %v4131, %v4130
        %v4165 = vpack.c.b16 %v4133, %v4132
        %v4166 = vpack.c.b16 %v4135, %v4134
        %v4167 = vpack.c.b16 %v4137, %v4136
        %v4168 = vpack.c.b16 %v4139, %v4138
        %v4169 = vpack.c.b16 %v4141, %v4140
        %v4170 = vpack.c.b16 %v4143, %v4142
        %v4171 = vpack.c.b16 %v4145, %v4144
        %v4172 = vpack.c.b16 %v4147, %v4146
        %v4173 = vpack.c.b16 %v4149, %v4148
        %v4174 = vpack.c.b16 %v4151, %v4150
        %v4175 = vpack.c.b16 %v4153, %v4152
        %v4176 = vpack.c.b16 %v4155, %v4154
        %v4177 = vpack.c.b16 %v4157, %v4156
        %v4178 = vpack.c.b16 %v4159, %v4158
        %v4179 = vpack.c.b16 %v4161, %v4160
        %v4199 = vsel %vm391, %v4008, 0
        %v4202 = vsel %vm391, %v4011, 0
        %v4205 = vsel %vm391, %v4014, 0
        %v4208 = vsel %vm391, %v4017, 0
        %v4211 = vsel %vm391, %v4020, 0
        %v4214 = vsel %vm391, %v4023, 0
        %v4217 = vsel %vm391, %v4026, 0
        %v4220 = vsel %vm391, %v4029, 0
        %v4223 = vsel %vm391, %v4032, 0
        %v4226 = vsel %vm391, %v4035, 0
        %v4229 = vsel %vm391, %v4038, 0
        %v4232 = vsel %vm391, %v4041, 0
        %v4235 = vsel %vm391, %v4044, 0
        %v4238 = vsel %vm391, %v4047, 0
        %v4241 = vsel %vm391, %v4050, 0
        %v4244 = vsel %vm391, %v4053, 0
        %4246 = vmatprep.subr.bf16.mxu0 0
        %4247 = vmatpush1.bf16.msra.mxu0 %v4169
        %4248 = vmatprep.subr.bf16.mxu0 0
        %4249 = vmatpush1.bf16.msra.mxu0 %v4168
        %4250 = vmatprep.subr.bf16.mxu0 0
        %4251 = vmatpush1.bf16.msra.mxu0 %v4167
        %4252 = vmatprep.subr.bf16.mxu0 0
        %4253 = vmatpush1.bf16.msra.mxu0 %v4166
        %4254 = vmatprep.subr.bf16.mxu0 0
        %4255 = vmatpush1.bf16.msra.mxu0 %v4165
        %4256 = vmatprep.subr.bf16.mxu0 0
        %4257 = vmatpush1.bf16.msra.mxu0 %v4164
        %4258 = vmatprep.subr.bf16.mxu0 0
        %4259 = vmatpush1.bf16.msra.mxu0 %v4163
        %4260 = vmatprep.subr.bf16.mxu0 0
        %4261 = vmatpush1.bf16.msra.mxu0 %v4162
        %4262 = vmatprep.subr.bf16.mxu0 0
        %4263 = vmatpush2.bf16.msra.mxu0 %v4177
        %4264 = vmatprep.subr.bf16.mxu0 0
        %4265 = vmatpush2.bf16.msra.mxu0 %v4176
        %4266 = vmatprep.subr.bf16.mxu0 0
        %4267 = vmatpush2.bf16.msra.mxu0 %v4175
        %4268 = vmatprep.subr.bf16.mxu0 0
        %4269 = vmatpush2.bf16.msra.mxu0 %v4174
        %4270 = vmatprep.subr.bf16.mxu0 0
        %4271 = vmatpush2.bf16.msra.mxu0 %v4173
        %4272 = vmatprep.subr.bf16.mxu0 0
        %4273 = vmatpush2.bf16.msra.mxu0 %v4172
        %4274 = vmatprep.subr.bf16.mxu0 0
        %4275 = vmatpush2.bf16.msra.mxu0 %v4171
        %4276 = vmatprep.subr.bf16.mxu0 0
        %4277 = vmatpush2.bf16.msra.mxu0 %v4170
        %4278 = vmatprep.mubr.bf16.mxu0 %v4007
        %4279 = vmatmul.mubr.bf16.gmra.mxu0 %v4006
        %v4280 = vpop.f32.mrf.mxu0
        %v4281 = vadd.f32 0.0, %v4280
        %v4282 = vpop.f32.mrf.mxu0
        %v4283 = vpop.f32.mrf.mxu0
        %v4284 = vadd.f32 0.0, %v4283
        %v4285 = vpop.f32.mrf.mxu0
        %4286 = vmatprep.mubr.bf16.mxu0 %v4010
        %4287 = vmatmul.mubr.bf16.gmra.mxu0 %v4009
        %v4288 = vpop.f32.mrf.mxu0
        %v4289 = vadd.f32 0.0, %v4288
        %v4290 = vpop.f32.mrf.mxu0
        %v4291 = vpop.f32.mrf.mxu0
        %v4292 = vadd.f32 0.0, %v4291
        %v4293 = vpop.f32.mrf.mxu0
        %4294 = vmatprep.mubr.bf16.mxu0 %v4013
        %4295 = vmatmul.mubr.bf16.gmra.mxu0 %v4012
        %v4296 = vpop.f32.mrf.mxu0
        %v4297 = vadd.f32 0.0, %v4296
        %v4298 = vpop.f32.mrf.mxu0
        %v4299 = vpop.f32.mrf.mxu0
        %v4300 = vadd.f32 0.0, %v4299
        %v4301 = vpop.f32.mrf.mxu0
        %4302 = vmatprep.mubr.bf16.mxu0 %v4016
        %4303 = vmatmul.mubr.bf16.gmra.mxu0 %v4015
        %v4304 = vpop.f32.mrf.mxu0
        %v4305 = vadd.f32 0.0, %v4304
        %v4306 = vpop.f32.mrf.mxu0
        %v4307 = vpop.f32.mrf.mxu0
        %v4308 = vadd.f32 0.0, %v4307
        %v4309 = vpop.f32.mrf.mxu0
        %4310 = vmatprep.mubr.bf16.mxu0 %v4019
        %4311 = vmatmul.mubr.bf16.gmra.mxu0 %v4018
        %v4312 = vpop.f32.mrf.mxu0
        %v4313 = vadd.f32 0.0, %v4312
        %v4314 = vpop.f32.mrf.mxu0
        %v4315 = vpop.f32.mrf.mxu0
        %v4316 = vadd.f32 0.0, %v4315
        %v4317 = vpop.f32.mrf.mxu0
        %4318 = vmatprep.mubr.bf16.mxu0 %v4022
        %4319 = vmatmul.mubr.bf16.gmra.mxu0 %v4021
        %v4320 = vpop.f32.mrf.mxu0
        %v4321 = vadd.f32 0.0, %v4320
        %v4322 = vpop.f32.mrf.mxu0
        %v4323 = vpop.f32.mrf.mxu0
        %v4324 = vadd.f32 0.0, %v4323
        %v4325 = vpop.f32.mrf.mxu0
        %4326 = vmatprep.mubr.bf16.mxu0 %v4025
        %4327 = vmatmul.mubr.bf16.gmra.mxu0 %v4024
        %v4328 = vpop.f32.mrf.mxu0
        %v4329 = vadd.f32 0.0, %v4328
        %v4330 = vpop.f32.mrf.mxu0
        %v4331 = vpop.f32.mrf.mxu0
        %v4332 = vadd.f32 0.0, %v4331
        %v4333 = vpop.f32.mrf.mxu0
        %4334 = vmatprep.mubr.bf16.mxu0 %v4028
        %4335 = vmatmul.mubr.bf16.gmra.mxu0 %v4027
        %v4336 = vpop.f32.mrf.mxu0
        %v4337 = vadd.f32 0.0, %v4336
        %v4338 = vpop.f32.mrf.mxu0
        %v4339 = vpop.f32.mrf.mxu0
        %v4340 = vadd.f32 0.0, %v4339
        %v4341 = vpop.f32.mrf.mxu0
        %4342 = vmatprep.mubr.bf16.mxu0 %v4031
        %4343 = vmatmul.mubr.bf16.gmra.mxu0 %v4030
        %v4344 = vpop.f32.mrf.mxu0
        %v4345 = vadd.f32 0.0, %v4344
        %v4346 = vpop.f32.mrf.mxu0
        %v4347 = vpop.f32.mrf.mxu0
        %v4348 = vadd.f32 0.0, %v4347
        %v4349 = vpop.f32.mrf.mxu0
        %4350 = vmatprep.mubr.bf16.mxu0 %v4034
        %4351 = vmatmul.mubr.bf16.gmra.mxu0 %v4033
        %v4352 = vpop.f32.mrf.mxu0
        %v4353 = vadd.f32 0.0, %v4352
        %v4354 = vpop.f32.mrf.mxu0
        %v4355 = vpop.f32.mrf.mxu0
        %v4356 = vadd.f32 0.0, %v4355
        %v4357 = vpop.f32.mrf.mxu0
        %4358 = vmatprep.mubr.bf16.mxu0 %v4037
        %4359 = vmatmul.mubr.bf16.gmra.mxu0 %v4036
        %v4360 = vpop.f32.mrf.mxu0
        %v4361 = vadd.f32 0.0, %v4360
        %v4362 = vpop.f32.mrf.mxu0
        %v4363 = vpop.f32.mrf.mxu0
        %v4364 = vadd.f32 0.0, %v4363
        %v4365 = vpop.f32.mrf.mxu0
        %4366 = vmatprep.mubr.bf16.mxu0 %v4040
        %4367 = vmatmul.mubr.bf16.gmra.mxu0 %v4039
        %v4368 = vpop.f32.mrf.mxu0
        %v4369 = vadd.f32 0.0, %v4368
        %v4370 = vpop.f32.mrf.mxu0
        %v4371 = vpop.f32.mrf.mxu0
        %v4372 = vadd.f32 0.0, %v4371
        %v4373 = vpop.f32.mrf.mxu0
        %4374 = vmatprep.mubr.bf16.mxu0 %v4043
        %4375 = vmatmul.mubr.bf16.gmra.mxu0 %v4042
        %v4376 = vpop.f32.mrf.mxu0
        %v4377 = vadd.f32 0.0, %v4376
        %v4378 = vpop.f32.mrf.mxu0
        %v4379 = vpop.f32.mrf.mxu0
        %v4380 = vadd.f32 0.0, %v4379
        %v4381 = vpop.f32.mrf.mxu0
        %4382 = vmatprep.mubr.bf16.mxu0 %v4046
        %4383 = vmatmul.mubr.bf16.gmra.mxu0 %v4045
        %v4384 = vpop.f32.mrf.mxu0
        %v4385 = vadd.f32 0.0, %v4384
        %v4386 = vpop.f32.mrf.mxu0
        %v4387 = vpop.f32.mrf.mxu0
        %v4388 = vadd.f32 0.0, %v4387
        %v4389 = vpop.f32.mrf.mxu0
        %4390 = vmatprep.mubr.bf16.mxu0 %v4049
        %4391 = vmatmul.mubr.bf16.gmra.mxu0 %v4048
        %v4392 = vpop.f32.mrf.mxu0
        %v4393 = vadd.f32 0.0, %v4392
        %v4394 = vpop.f32.mrf.mxu0
        %v4395 = vpop.f32.mrf.mxu0
        %v4396 = vadd.f32 0.0, %v4395
        %v4397 = vpop.f32.mrf.mxu0
        %4398 = vmatprep.mubr.bf16.mxu0 %v4052
        %4399 = vmatmul.mubr.bf16.gmra.mxu0 %v4051
        %v4400 = vpop.f32.mrf.mxu0
        %v4401 = vadd.f32 0.0, %v4400
        %v4402 = vpop.f32.mrf.mxu0
        %v4403 = vpop.f32.mrf.mxu0
        %v4404 = vadd.f32 0.0, %v4403
        %v4405 = vpop.f32.mrf.mxu0
        %4406 = vdwg.mxu0
        %4407 = vmatprep.subr.bf16.mxu0 0
        %4408 = vmatpush1.bf16.msra.mxu0 0
        %4409 = vmatprep.subr.bf16.mxu0 0
        %4410 = vmatpush1.bf16.msra.mxu0 0
        %4411 = vmatprep.subr.bf16.mxu0 0
        %4412 = vmatpush1.bf16.msra.mxu0 0
        %4413 = vmatprep.subr.bf16.mxu0 0
        %4414 = vmatpush1.bf16.msra.mxu0 0
        %4415 = vmatprep.subr.bf16.mxu0 0
        %4416 = vmatpush1.bf16.msra.mxu0 0
        %4417 = vmatprep.subr.bf16.mxu0 0
        %4418 = vmatpush1.bf16.msra.mxu0 0
        %4419 = vmatprep.subr.bf16.mxu0 0
        %4420 = vmatpush1.bf16.msra.mxu0 %v4179
        %4421 = vmatprep.subr.bf16.mxu0 0
        %4422 = vmatpush1.bf16.msra.mxu0 %v4178
        %4423 = vmatprep.subr.bf16.mxu0 0
        %4424 = vmatpush2.bf16.msra.mxu0 0
        %4425 = vmatprep.subr.bf16.mxu0 0
        %4426 = vmatpush2.bf16.msra.mxu0 0
        %4427 = vmatprep.subr.bf16.mxu0 0
        %4428 = vmatpush2.bf16.msra.mxu0 0
        %4429 = vmatprep.subr.bf16.mxu0 0
        %4430 = vmatpush2.bf16.msra.mxu0 0
        %4431 = vmatprep.subr.bf16.mxu0 0
        %4432 = vmatpush2.bf16.msra.mxu0 0
        %4433 = vmatprep.subr.bf16.mxu0 0
        %4434 = vmatpush2.bf16.msra.mxu0 0
        %4435 = vmatprep.subr.bf16.mxu0 0
        %4436 = vmatpush2.bf16.msra.mxu0 0
        %4437 = vmatprep.subr.bf16.mxu0 0
        %4438 = vmatpush2.bf16.msra.mxu0 0
        %4439 = vmatprep.mubr.bf16.mxu0 0
        %4440 = vmatmul.mubr.bf16.gmra.mxu0 %v4199
        %v4441 = vpop.f32.mrf.mxu0
        %v4442 = vadd.f32 %v4281, %v4441
        %v4443 = vpop.f32.mrf.mxu0
        %v4444 = vpop.f32.mrf.mxu0
        %v4445 = vadd.f32 %v4284, %v4444
        %v4446 = vpop.f32.mrf.mxu0
        %4447 = vmatprep.mubr.bf16.mxu0 0
        %4448 = vmatmul.mubr.bf16.gmra.mxu0 %v4202
        %v4449 = vpop.f32.mrf.mxu0
        %v4450 = vadd.f32 %v4289, %v4449
        %v4451 = vpop.f32.mrf.mxu0
        %v4452 = vpop.f32.mrf.mxu0
        %v4453 = vadd.f32 %v4292, %v4452
        %v4454 = vpop.f32.mrf.mxu0
        %4455 = vmatprep.mubr.bf16.mxu0 0
        %4456 = vmatmul.mubr.bf16.gmra.mxu0 %v4205
        %v4457 = vpop.f32.mrf.mxu0
        %v4458 = vadd.f32 %v4297, %v4457
        %v4459 = vpop.f32.mrf.mxu0
        %v4460 = vpop.f32.mrf.mxu0
        %v4461 = vadd.f32 %v4300, %v4460
        %v4462 = vpop.f32.mrf.mxu0
        %4463 = vmatprep.mubr.bf16.mxu0 0
        %4464 = vmatmul.mubr.bf16.gmra.mxu0 %v4208
        %v4465 = vpop.f32.mrf.mxu0
        %v4466 = vadd.f32 %v4305, %v4465
        %v4467 = vpop.f32.mrf.mxu0
        %v4468 = vpop.f32.mrf.mxu0
        %v4469 = vadd.f32 %v4308, %v4468
        %v4470 = vpop.f32.mrf.mxu0
        %4471 = vmatprep.mubr.bf16.mxu0 0
        %4472 = vmatmul.mubr.bf16.gmra.mxu0 %v4211
        %v4473 = vpop.f32.mrf.mxu0
        %v4474 = vadd.f32 %v4313, %v4473
        %v4475 = vpop.f32.mrf.mxu0
        %v4476 = vpop.f32.mrf.mxu0
        %v4477 = vadd.f32 %v4316, %v4476
        %v4478 = vpop.f32.mrf.mxu0
        %4479 = vmatprep.mubr.bf16.mxu0 0
        %4480 = vmatmul.mubr.bf16.gmra.mxu0 %v4214
        %v4481 = vpop.f32.mrf.mxu0
        %v4482 = vadd.f32 %v4321, %v4481
        %v4483 = vpop.f32.mrf.mxu0
        %v4484 = vpop.f32.mrf.mxu0
        %v4485 = vadd.f32 %v4324, %v4484
        %v4486 = vpop.f32.mrf.mxu0
        %4487 = vmatprep.mubr.bf16.mxu0 0
        %4488 = vmatmul.mubr.bf16.gmra.mxu0 %v4217
        %v4489 = vpop.f32.mrf.mxu0
        %v4490 = vadd.f32 %v4329, %v4489
        %v4491 = vpop.f32.mrf.mxu0
        %v4492 = vpop.f32.mrf.mxu0
        %v4493 = vadd.f32 %v4332, %v4492
        %v4494 = vpop.f32.mrf.mxu0
        %4495 = vmatprep.mubr.bf16.mxu0 0
        %4496 = vmatmul.mubr.bf16.gmra.mxu0 %v4220
        %v4497 = vpop.f32.mrf.mxu0
        %v4498 = vadd.f32 %v4337, %v4497
        %v4499 = vpop.f32.mrf.mxu0
        %v4500 = vpop.f32.mrf.mxu0
        %v4501 = vadd.f32 %v4340, %v4500
        %v4502 = vpop.f32.mrf.mxu0
        %4503 = vmatprep.mubr.bf16.mxu0 0
        %4504 = vmatmul.mubr.bf16.gmra.mxu0 %v4223
        %v4505 = vpop.f32.mrf.mxu0
        %v4506 = vadd.f32 %v4345, %v4505
        %v4507 = vpop.f32.mrf.mxu0
        %v4508 = vpop.f32.mrf.mxu0
        %v4509 = vadd.f32 %v4348, %v4508
        %v4510 = vpop.f32.mrf.mxu0
        %4511 = vmatprep.mubr.bf16.mxu0 0
        %4512 = vmatmul.mubr.bf16.gmra.mxu0 %v4226
        %v4513 = vpop.f32.mrf.mxu0
        %v4514 = vadd.f32 %v4353, %v4513
        %v4515 = vpop.f32.mrf.mxu0
        %v4516 = vpop.f32.mrf.mxu0
        %v4517 = vadd.f32 %v4356, %v4516
        %v4518 = vpop.f32.mrf.mxu0
        %4519 = vmatprep.mubr.bf16.mxu0 0
        %4520 = vmatmul.mubr.bf16.gmra.mxu0 %v4229
        %v4521 = vpop.f32.mrf.mxu0
        %v4522 = vadd.f32 %v4361, %v4521
        %v4523 = vpop.f32.mrf.mxu0
        %v4524 = vpop.f32.mrf.mxu0
        %v4525 = vadd.f32 %v4364, %v4524
        %v4526 = vpop.f32.mrf.mxu0
        %4527 = vmatprep.mubr.bf16.mxu0 0
        %4528 = vmatmul.mubr.bf16.gmra.mxu0 %v4232
        %v4529 = vpop.f32.mrf.mxu0
        %v4530 = vadd.f32 %v4369, %v4529
        %v4531 = vpop.f32.mrf.mxu0
        %v4532 = vpop.f32.mrf.mxu0
        %v4533 = vadd.f32 %v4372, %v4532
        %v4534 = vpop.f32.mrf.mxu0
        %4535 = vmatprep.mubr.bf16.mxu0 0
        %4536 = vmatmul.mubr.bf16.gmra.mxu0 %v4235
        %v4537 = vpop.f32.mrf.mxu0
        %v4538 = vadd.f32 %v4377, %v4537
        %v4539 = vpop.f32.mrf.mxu0
        %v4540 = vpop.f32.mrf.mxu0
        %v4541 = vadd.f32 %v4380, %v4540
        %v4542 = vpop.f32.mrf.mxu0
        %4543 = vmatprep.mubr.bf16.mxu0 0
        %4544 = vmatmul.mubr.bf16.gmra.mxu0 %v4238
        %v4545 = vpop.f32.mrf.mxu0
        %v4546 = vadd.f32 %v4385, %v4545
        %v4547 = vpop.f32.mrf.mxu0
        %v4548 = vpop.f32.mrf.mxu0
        %v4549 = vadd.f32 %v4388, %v4548
        %v4550 = vpop.f32.mrf.mxu0
        %4551 = vmatprep.mubr.bf16.mxu0 0
        %4552 = vmatmul.mubr.bf16.gmra.mxu0 %v4241
        %v4553 = vpop.f32.mrf.mxu0
        %v4554 = vadd.f32 %v4393, %v4553
        %v4555 = vpop.f32.mrf.mxu0
        %v4556 = vpop.f32.mrf.mxu0
        %v4557 = vadd.f32 %v4396, %v4556
        %v4558 = vpop.f32.mrf.mxu0
        %4559 = vmatprep.mubr.bf16.mxu0 0
        %4560 = vmatmul.mubr.bf16.gmra.mxu0 %v4244
        %v4561 = vpop.f32.mrf.mxu0
        %v4562 = vadd.f32 %v4401, %v4561
        %v4563 = vpop.f32.mrf.mxu0
        %v4564 = vpop.f32.mrf.mxu0
        %v4565 = vadd.f32 %v4404, %v4564
        %v4566 = vpop.f32.mrf.mxu0
        %4567 = vdwg.mxu0
        %v4568 = vld [vmem:[%s5] sm:$0x1]
        %v4570 = vlaneseq
        %v4571 = vshrl.u32 %v4570, 7
        %v4572 = vsub.s32 0, %v4571
        %v4573 = vrot.slane %v4568, %v4572
        %v4575 = vmul.f32 %v4442, %v4573
        %v4576 = vmul.f32 %v4445, %v4573
        %v4577 = vmul.f32 %v4450, %v4573
        %v4578 = vmul.f32 %v4453, %v4573
        %v4579 = vmul.f32 %v4458, %v4573
        %v4580 = vmul.f32 %v4461, %v4573
        %v4581 = vmul.f32 %v4466, %v4573
        %v4582 = vmul.f32 %v4469, %v4573
        %v4583 = vmul.f32 %v4474, %v4573
        %v4584 = vmul.f32 %v4477, %v4573
        %v4585 = vmul.f32 %v4482, %v4573
        %v4586 = vmul.f32 %v4485, %v4573
        %v4587 = vmul.f32 %v4490, %v4573
        %v4588 = vmul.f32 %v4493, %v4573
        %v4589 = vmul.f32 %v4498, %v4573
        %v4590 = vmul.f32 %v4501, %v4573
        %v4591 = vmul.f32 %v4506, %v4573
        %v4592 = vmul.f32 %v4509, %v4573
        %v4593 = vmul.f32 %v4514, %v4573
        %v4594 = vmul.f32 %v4517, %v4573
        %v4595 = vmul.f32 %v4522, %v4573
        %v4596 = vmul.f32 %v4525, %v4573
        %v4597 = vmul.f32 %v4530, %v4573
        %v4598 = vmul.f32 %v4533, %v4573
        %v4599 = vmul.f32 %v4538, %v4573
        %v4600 = vmul.f32 %v4541, %v4573
        %v4601 = vmul.f32 %v4546, %v4573
        %v4602 = vmul.f32 %v4549, %v4573
        %v4603 = vmul.f32 %v4554, %v4573
        %v4604 = vmul.f32 %v4557, %v4573
        %v4605 = vmul.f32 %v4562, %v4573
        %v4606 = vmul.f32 %v4565, %v4573
        %v4607 = vld [vmem:[%s6] sm:$0x1]
        %v4609 = vlaneseq
        %v4610 = vshrl.u32 %v4609, 7
        %v4611 = vsub.s32 0, %v4610
        %v4612 = vrot.slane %v4607, %v4611
        %v4614 = vadd.f32 %v4575, %v4612
        %v4615 = vadd.f32 %v4576, %v4612
        %v4616 = vadd.f32 %v4577, %v4612
        %v4617 = vadd.f32 %v4578, %v4612
        %v4618 = vadd.f32 %v4579, %v4612
        %v4619 = vadd.f32 %v4580, %v4612
        %v4620 = vadd.f32 %v4581, %v4612
        %v4621 = vadd.f32 %v4582, %v4612
        %v4622 = vadd.f32 %v4583, %v4612
        %v4623 = vadd.f32 %v4584, %v4612
        %v4624 = vadd.f32 %v4585, %v4612
        %v4625 = vadd.f32 %v4586, %v4612
        %v4626 = vadd.f32 %v4587, %v4612
        %v4627 = vadd.f32 %v4588, %v4612
        %v4628 = vadd.f32 %v4589, %v4612
        %v4629 = vadd.f32 %v4590, %v4612
        %v4630 = vadd.f32 %v4591, %v4612
        %v4631 = vadd.f32 %v4592, %v4612
        %v4632 = vadd.f32 %v4593, %v4612
        %v4633 = vadd.f32 %v4594, %v4612
        %v4634 = vadd.f32 %v4595, %v4612
        %v4635 = vadd.f32 %v4596, %v4612
        %v4636 = vadd.f32 %v4597, %v4612
        %v4637 = vadd.f32 %v4598, %v4612
        %v4638 = vadd.f32 %v4599, %v4612
        %v4639 = vadd.f32 %v4600, %v4612
        %v4640 = vadd.f32 %v4601, %v4612
        %v4641 = vadd.f32 %v4602, %v4612
        %v4642 = vadd.f32 %v4603, %v4612
        %v4643 = vadd.f32 %v4604, %v4612
        %v4644 = vadd.f32 %v4605, %v4612
        %v4645 = vadd.f32 %v4606, %v4612
        %v4646 = vsel %vm391, %v4614, 0.0
        %v4647 = vsel %vm391, %v4615, 0.0
        %v4648 = vadd.f32 %v4646, %v4647
        %v4649 = vsel %vm391, %v4616, 0.0
        %v4650 = vadd.f32 %v4648, %v4649
        %v4651 = vsel %vm391, %v4617, 0.0
        %v4652 = vadd.f32 %v4650, %v4651
        %v4653 = vsel %vm391, %v4618, 0.0
        %v4654 = vadd.f32 %v4652, %v4653
        %v4655 = vsel %vm391, %v4619, 0.0
        %v4656 = vadd.f32 %v4654, %v4655
        %v4657 = vsel %vm391, %v4620, 0.0
        %v4658 = vadd.f32 %v4656, %v4657
        %v4659 = vsel %vm391, %v4621, 0.0
        %v4660 = vadd.f32 %v4658, %v4659
        %v4661 = vsel %vm391, %v4622, 0.0
        %v4662 = vadd.f32 %v4660, %v4661
        %v4663 = vsel %vm391, %v4623, 0.0
        %v4664 = vadd.f32 %v4662, %v4663
        %v4665 = vsel %vm391, %v4624, 0.0
        %v4666 = vadd.f32 %v4664, %v4665
        %v4667 = vsel %vm391, %v4625, 0.0
        %v4668 = vadd.f32 %v4666, %v4667
        %v4669 = vsel %vm391, %v4626, 0.0
        %v4670 = vadd.f32 %v4668, %v4669
        %v4671 = vsel %vm391, %v4627, 0.0
        %v4672 = vadd.f32 %v4670, %v4671
        %v4673 = vsel %vm391, %v4628, 0.0
        %v4674 = vadd.f32 %v4672, %v4673
        %v4675 = vsel %vm391, %v4629, 0.0
        %v4676 = vadd.f32 %v4674, %v4675
        %v4677 = vsel %vm391, %v4630, 0.0
        %v4678 = vadd.f32 %v4676, %v4677
        %v4679 = vsel %vm391, %v4631, 0.0
        %v4680 = vadd.f32 %v4678, %v4679
        %v4681 = vsel %vm391, %v4632, 0.0
        %v4682 = vadd.f32 %v4680, %v4681
        %v4683 = vsel %vm391, %v4633, 0.0
        %v4684 = vadd.f32 %v4682, %v4683
        %v4685 = vsel %vm391, %v4634, 0.0
        %v4686 = vadd.f32 %v4684, %v4685
        %v4687 = vsel %vm391, %v4635, 0.0
        %v4688 = vadd.f32 %v4686, %v4687
        %v4689 = vsel %vm391, %v4636, 0.0
        %v4690 = vadd.f32 %v4688, %v4689
        %v4691 = vsel %vm391, %v4637, 0.0
        %v4692 = vadd.f32 %v4690, %v4691
        %v4693 = vsel %vm391, %v4638, 0.0
        %v4694 = vadd.f32 %v4692, %v4693
        %v4695 = vsel %vm391, %v4639, 0.0
        %v4696 = vadd.f32 %v4694, %v4695
        %v4697 = vsel %vm391, %v4640, 0.0
        %v4698 = vadd.f32 %v4696, %v4697
        %v4699 = vsel %vm391, %v4641, 0.0
        %v4700 = vadd.f32 %v4698, %v4699
        %v4701 = vsel %vm391, %v4642, 0.0
        %v4702 = vadd.f32 %v4700, %v4701
        %v4703 = vsel %vm391, %v4643, 0.0
        %v4704 = vadd.f32 %v4702, %v4703
        %v4705 = vsel %vm391, %v4644, 0.0
        %v4706 = vadd.f32 %v4704, %v4705
        %v4707 = vsel %vm391, %v4645, 0.0
        %v4708 = vadd.f32 %v4706, %v4707
        %v4709 = vrot.slane %v4708, 4
        %v4710 = vadd.f32 %v4708, %v4709
        %v4711 = vrot.slane %v4710, 2
        %v4712 = vadd.f32 %v4710, %v4711
        %v4713 = vrot.slane %v4712, 1
        %v4714 = vadd.f32 %v4712, %v4713
        %v4715 = vrcp.pop 256.0
        %v4716 = vmul.f32 %v4714, %v4715
        %v4717 = vsel %vm391, %v4614, -inf
        %v4718 = vsel %vm391, %v4615, -inf
        %v4719 = vsel %vm391, %v4616, -inf
        %v4720 = vsel %vm391, %v4617, -inf
        %v4721 = vsel %vm391, %v4618, -inf
        %v4722 = vmax.f32 %v4717, %v4721
        %v4723 = vsel %vm391, %v4619, -inf
        %v4724 = vmax.f32 %v4718, %v4723
        %v4725 = vsel %vm391, %v4620, -inf
        %v4726 = vmax.f32 %v4719, %v4725
        %v4727 = vsel %vm391, %v4621, -inf
        %v4728 = vmax.f32 %v4720, %v4727
        %v4729 = vsel %vm391, %v4622, -inf
        %v4730 = vmax.f32 %v4722, %v4729
        %v4731 = vsel %vm391, %v4623, -inf
        %v4732 = vmax.f32 %v4724, %v4731
        %v4733 = vsel %vm391, %v4624, -inf
        %v4734 = vmax.f32 %v4726, %v4733
        %v4735 = vsel %vm391, %v4625, -inf
        %v4736 = vmax.f32 %v4728, %v4735
        %v4737 = vsel %vm391, %v4626, -inf
        %v4738 = vmax.f32 %v4730, %v4737
        %v4739 = vsel %vm391, %v4627, -inf
        %v4740 = vmax.f32 %v4732, %v4739
        %v4741 = vsel %vm391, %v4628, -inf
        %v4742 = vmax.f32 %v4734, %v4741
        %v4743 = vsel %vm391, %v4629, -inf
        %v4744 = vmax.f32 %v4736, %v4743
        %v4745 = vsel %vm391, %v4630, -inf
        %v4746 = vmax.f32 %v4738, %v4745
        %v4747 = vsel %vm391, %v4631, -inf
        %v4748 = vmax.f32 %v4740, %v4747
        %v4749 = vsel %vm391, %v4632, -inf
        %v4750 = vmax.f32 %v4742, %v4749
        %v4751 = vsel %vm391, %v4633, -inf
        %v4752 = vmax.f32 %v4744, %v4751
        %v4753 = vsel %vm391, %v4634, -inf
        %v4754 = vmax.f32 %v4746, %v4753
        %v4755 = vsel %vm391, %v4635, -inf
        %v4756 = vmax.f32 %v4748, %v4755
        %v4757 = vsel %vm391, %v4636, -inf
        %v4758 = vmax.f32 %v4750, %v4757
        %v4759 = vsel %vm391, %v4637, -inf
        %v4760 = vmax.f32 %v4752, %v4759
        %v4761 = vsel %vm391, %v4638, -inf
        %v4762 = vmax.f32 %v4754, %v4761
        %v4763 = vsel %vm391, %v4639, -inf
        %v4764 = vmax.f32 %v4756, %v4763
        %v4765 = vsel %vm391, %v4640, -inf
        %v4766 = vmax.f32 %v4758, %v4765
        %v4767 = vsel %vm391, %v4641, -inf
        %v4768 = vmax.f32 %v4760, %v4767
        %v4769 = vsel %vm391, %v4642, -inf
        %v4770 = vmax.f32 %v4762, %v4769
        %v4771 = vsel %vm391, %v4643, -inf
        %v4772 = vmax.f32 %v4764, %v4771
        %v4773 = vsel %vm391, %v4644, -inf
        %v4774 = vmax.f32 %v4766, %v4773
        %v4775 = vsel %vm391, %v4645, -inf
        %v4776 = vmax.f32 %v4768, %v4775
        %v4777 = vmax.f32 %v4770, %v4772
        %v4778 = vmax.f32 %v4774, %v4776
        %v4779 = vmax.f32 %v4777, %v4778
        %v4780 = vrot.slane %v4779, 4
        %v4781 = vmax.f32 %v4779, %v4780
        %v4782 = vrot.slane %v4781, 2
        %v4783 = vmax.f32 %v4781, %v4782
        %v4784 = vrot.slane %v4783, 1
        %v4785 = vmax.f32 %v4783, %v4784
        %v4786 = vlaneseq
        %v4787 = vshrl.u32 %v4786, 7
        %vm4788 = vcmp.eq.s32.totalorder %v4787, 0
        %v4789 = vsel %vm4788, %v4716, %v4785
        %v4790 = vld [vmem:[%s7] sm:$0xff]
        %v4791 = vld [vmem:[%s7 + $0x8] sm:$0xff]
        %v4792 = vld [vmem:[%s7 + $0x10] sm:$0xff]
        %v4793 = vld [vmem:[%s7 + $0x18] sm:$0xff]
        %v4795 = vsel %vm391, %v4789, 0
        %4797 = vmatprep.subr.mxu0 0.0
        %4798 = vmatpush1.msra.mxu0 0.0
        %4799 = vmatprep.subr.mxu0 0.0
        %4800 = vmatpush1.msra.mxu0 0.0
        %4801 = vmatprep.subr.mxu0 0.0
        %4802 = vmatpush1.msra.mxu0 0.0
        %4803 = vmatprep.subr.mxu0 0.0
        %4804 = vmatpush1.msra.mxu0 0.0
        %4805 = vmatprep.subr.mxu0 0.0
        %4806 = vmatpush1.msra.mxu0 0.0
        %4807 = vmatprep.subr.mxu0 0.0
        %4808 = vmatpush1.msra.mxu0 0.0
        %4809 = vmatprep.subr.mxu0 0.0
        %4810 = vmatpush1.msra.mxu0 0.0
        %4811 = vmatprep.subr.mxu0 0.0
        %4812 = vmatpush1.msra.mxu0 0.0
        %4813 = vmatprep.subr.mxu0 0.0
        %4814 = vmatpush1.msra.mxu0 0.0
        %4815 = vmatprep.subr.mxu0 0.0
        %4816 = vmatpush1.msra.mxu0 0.0
        %4817 = vmatprep.subr.mxu0 0.0
        %4818 = vmatpush1.msra.mxu0 0.0
        %4819 = vmatprep.subr.mxu0 0.0
        %4820 = vmatpush1.msra.mxu0 0.0
        %4821 = vmatprep.subr.mxu0 0.0
        %4822 = vmatpush1.msra.mxu0 %v4793
        %4823 = vmatprep.subr.mxu0 0.0
        %4824 = vmatpush1.msra.mxu0 %v4792
        %4825 = vmatprep.subr.mxu0 0.0
        %4826 = vmatpush1.msra.mxu0 %v4791
        %4827 = vmatprep.subr.mxu0 0.0
        %4828 = vmatpush1.msra.mxu0 %v4790
        %4829 = vmatprep.subr.mxu0 0.0
        %4830 = vmatpush2.msra.mxu0 0.0
        %4831 = vmatprep.subr.mxu0 0.0
        %4832 = vmatpush2.msra.mxu0 0.0
        %4833 = vmatprep.subr.mxu0 0.0
        %4834 = vmatpush2.msra.mxu0 0.0
        %4835 = vmatprep.subr.mxu0 0.0
        %4836 = vmatpush2.msra.mxu0 0.0
        %4837 = vmatprep.subr.mxu0 0.0
        %4838 = vmatpush2.msra.mxu0 0.0
        %4839 = vmatprep.subr.mxu0 0.0
        %4840 = vmatpush2.msra.mxu0 0.0
        %4841 = vmatprep.subr.mxu0 0.0
        %4842 = vmatpush2.msra.mxu0 0.0
        %4843 = vmatprep.subr.mxu0 0.0
        %4844 = vmatpush2.msra.mxu0 0.0
        %4845 = vmatprep.subr.mxu0 0.0
        %4846 = vmatpush2.msra.mxu0 0.0
        %4847 = vmatprep.subr.mxu0 0.0
        %4848 = vmatpush2.msra.mxu0 0.0
        %4849 = vmatprep.subr.mxu0 0.0
        %4850 = vmatpush2.msra.mxu0 0.0
        %4851 = vmatprep.subr.mxu0 0.0
        %4852 = vmatpush2.msra.mxu0 0.0
        %4853 = vmatprep.subr.mxu0 0.0
        %4854 = vmatpush2.msra.mxu0 0.0
        %4855 = vmatprep.subr.mxu0 0.0
        %4856 = vmatpush2.msra.mxu0 0.0
        %4857 = vmatprep.subr.mxu0 0.0
        %4858 = vmatpush2.msra.mxu0 0.0
        %4859 = vmatprep.subr.mxu0 0.0
        %4860 = vmatpush2.msra.mxu0 0.0
        %4861 = vmatprep.mubr.f32.mxu0 0.0
        %4862 = vmatmul.mubr.f32.gmra.mxu0 %v4795
        %v4863 = vpop.f32.mrf.mxu0
        %v4864 = vadd.f32 0.0, %v4863
        %v4865 = vpop.f32.mrf.mxu0
        %4866 = vdwg.mxu0
        %v4867 = vmax.f32 %v4864, 0.0
        %v4868 = vld [vmem:[%s8] sm:$0x3]
        %vm4869 = vcmask 15360
        %v4871 = vsel %vm4869, %v4867, 0
        %vm4873 = vcmask 1041408
        %v4875 = vsel %vm4873, %v4868, 0
        %4877 = vmatprep.subr.mxu0 0.0
        %4878 = vmatpush1.msra.mxu0 0.0
        %4879 = vmatprep.subr.mxu0 0.0
        %4880 = vmatpush1.msra.mxu0 0.0
        %4881 = vmatprep.subr.mxu0 0.0
        %4882 = vmatpush1.msra.mxu0 0.0
        %4883 = vmatprep.subr.mxu0 0.0
        %4884 = vmatpush1.msra.mxu0 0.0
        %4885 = vmatprep.subr.mxu0 0.0
        %4886 = vmatpush1.msra.mxu0 0.0
        %4887 = vmatprep.subr.mxu0 0.0
        %4888 = vmatpush1.msra.mxu0 0.0
        %4889 = vmatprep.subr.mxu0 0.0
        %4890 = vmatpush1.msra.mxu0 0.0
        %4891 = vmatprep.subr.mxu0 0.0
        %4892 = vmatpush1.msra.mxu0 0.0
        %4893 = vmatprep.subr.mxu0 0.0
        %4894 = vmatpush1.msra.mxu0 0.0
        %4895 = vmatprep.subr.mxu0 0.0
        %4896 = vmatpush1.msra.mxu0 0.0
        %4897 = vmatprep.subr.mxu0 0.0
        %4898 = vmatpush1.msra.mxu0 0.0
        %4899 = vmatprep.subr.mxu0 0.0
        %4900 = vmatpush1.msra.mxu0 0.0
        %4901 = vmatprep.subr.mxu0 0.0
        %4902 = vmatpush1.msra.mxu0 0.0
        %4903 = vmatprep.subr.mxu0 0.0
        %4904 = vmatpush1.msra.mxu0 0.0
        %4905 = vmatprep.subr.mxu0 0.0
        %4906 = vmatpush1.msra.mxu0 0.0
        %4907 = vmatprep.subr.mxu0 0.0
        %4908 = vmatpush1.msra.mxu0 %v4875
        %4909 = vmatprep.subr.mxu0 0.0
        %4910 = vmatpush2.msra.mxu0 0.0
        %4911 = vmatprep.subr.mxu0 0.0
        %4912 = vmatpush2.msra.mxu0 0.0
        %4913 = vmatprep.subr.mxu0 0.0
        %4914 = vmatpush2.msra.mxu0 0.0
        %4915 = vmatprep.subr.mxu0 0.0
        %4916 = vmatpush2.msra.mxu0 0.0
        %4917 = vmatprep.subr.mxu0 0.0
        %4918 = vmatpush2.msra.mxu0 0.0
        %4919 = vmatprep.subr.mxu0 0.0
        %4920 = vmatpush2.msra.mxu0 0.0
        %4921 = vmatprep.subr.mxu0 0.0
        %4922 = vmatpush2.msra.mxu0 0.0
        %4923 = vmatprep.subr.mxu0 0.0
        %4924 = vmatpush2.msra.mxu0 0.0
        %4925 = vmatprep.subr.mxu0 0.0
        %4926 = vmatpush2.msra.mxu0 0.0
        %4927 = vmatprep.subr.mxu0 0.0
        %4928 = vmatpush2.msra.mxu0 0.0
        %4929 = vmatprep.subr.mxu0 0.0
        %4930 = vmatpush2.msra.mxu0 0.0
        %4931 = vmatprep.subr.mxu0 0.0
        %4932 = vmatpush2.msra.mxu0 0.0
        %4933 = vmatprep.subr.mxu0 0.0
        %4934 = vmatpush2.msra.mxu0 0.0
        %4935 = vmatprep.subr.mxu0 0.0
        %4936 = vmatpush2.msra.mxu0 0.0
        %4937 = vmatprep.subr.mxu0 0.0
        %4938 = vmatpush2.msra.mxu0 0.0
        %4939 = vmatprep.subr.mxu0 0.0
        %4940 = vmatpush2.msra.mxu0 0.0
        %4941 = vmatprep.mubr.f32.mxu0 0.0
        %4942 = vmatmul.mubr.f32.gmra.mxu0 %v4871
        %v4943 = vpop.f32.mrf.mxu0
        %v4944 = vadd.f32 0.0, %v4943
        %v4945 = vpop.f32.mrf.mxu0
        %4946 = vdwg.mxu0
        %v4947 = vsel %vm2479, %v4944, 0.0
        %v4948 = vrot.slane %v4947, 4
        %v4949 = vadd.f32 %v4947, %v4948
        %v4950 = vrot.slane %v4949, 2
        %v4951 = vadd.f32 %v4949, %v4950
        %v4952 = vrot.slane %v4951, 1
        %v4953 = vadd.f32 %v4951, %v4952
        %v4954 = vxor.u32 %v4953, 2147483648
        %v4955 = vmul.f32 %v4954, 1.442695
        %v4956 = vpow.pop %v4955
        %v4957 = vadd.f32 %v4956, 1.0
        %v4958 = vrcp.pop %v4957
        %v4959 = vmul.f32 1.0, %v4958
        %v4960 = vmul.f32 %v4614, %v4959
        %v4961 = vmul.f32 %v4615, %v4959
        %v4962 = vmul.f32 %v4616, %v4959
        %v4963 = vmul.f32 %v4617, %v4959
        %v4964 = vmul.f32 %v4618, %v4959
        %v4965 = vmul.f32 %v4619, %v4959
        %v4966 = vmul.f32 %v4620, %v4959
        %v4967 = vmul.f32 %v4621, %v4959
        %v4968 = vmul.f32 %v4622, %v4959
        %v4969 = vmul.f32 %v4623, %v4959
        %v4970 = vmul.f32 %v4624, %v4959
        %v4971 = vmul.f32 %v4625, %v4959
        %v4972 = vmul.f32 %v4626, %v4959
        %v4973 = vmul.f32 %v4627, %v4959
        %v4974 = vmul.f32 %v4628, %v4959
        %v4975 = vmul.f32 %v4629, %v4959
        %v4976 = vmul.f32 %v4630, %v4959
        %v4977 = vmul.f32 %v4631, %v4959
        %v4978 = vmul.f32 %v4632, %v4959
        %v4979 = vmul.f32 %v4633, %v4959
        %v4980 = vmul.f32 %v4634, %v4959
        %v4981 = vmul.f32 %v4635, %v4959
        %v4982 = vmul.f32 %v4636, %v4959
        %v4983 = vmul.f32 %v4637, %v4959
        %v4984 = vmul.f32 %v4638, %v4959
        %v4985 = vmul.f32 %v4639, %v4959
        %v4986 = vmul.f32 %v4640, %v4959
        %v4987 = vmul.f32 %v4641, %v4959
        %v4988 = vmul.f32 %v4642, %v4959
        %v4989 = vmul.f32 %v4643, %v4959
        %v4990 = vmul.f32 %v4644, %v4959
        %v4991 = vmul.f32 %v4645, %v4959
        %v4992 = vsel %vm391, %v4960, 0.0
        %4993 = vadd.xlane.f32.xlu0 %v4992
        %v4994 = vpop.xlane.xlu0 %4993
        %v4995 = vsel %vm391, %v4961, 0.0
        %4996 = vadd.xlane.f32.xlu0 %v4995
        %v4997 = vpop.xlane.xlu0 %4996
        %v4998 = vsel %vm391, %v4962, 0.0
        %4999 = vadd.xlane.f32.xlu0 %v4998
        %v5000 = vpop.xlane.xlu0 %4999
        %v5001 = vsel %vm391, %v4963, 0.0
        %5002 = vadd.xlane.f32.xlu0 %v5001
        %v5003 = vpop.xlane.xlu0 %5002
        %v5004 = vsel %vm391, %v4964, 0.0
        %5005 = vadd.xlane.f32.xlu0 %v5004
        %v5006 = vpop.xlane.xlu0 %5005
        %v5007 = vsel %vm391, %v4965, 0.0
        %5008 = vadd.xlane.f32.xlu0 %v5007
        %v5009 = vpop.xlane.xlu0 %5008
        %v5010 = vsel %vm391, %v4966, 0.0
        %5011 = vadd.xlane.f32.xlu0 %v5010
        %v5012 = vpop.xlane.xlu0 %5011
        %v5013 = vsel %vm391, %v4967, 0.0
        %5014 = vadd.xlane.f32.xlu0 %v5013
        %v5015 = vpop.xlane.xlu0 %5014
        %v5016 = vsel %vm391, %v4968, 0.0
        %5017 = vadd.xlane.f32.xlu0 %v5016
        %v5018 = vpop.xlane.xlu0 %5017
        %v5019 = vsel %vm391, %v4969, 0.0
        %5020 = vadd.xlane.f32.xlu0 %v5019
        %v5021 = vpop.xlane.xlu0 %5020
        %v5022 = vsel %vm391, %v4970, 0.0
        %5023 = vadd.xlane.f32.xlu0 %v5022
        %v5024 = vpop.xlane.xlu0 %5023
        %v5025 = vsel %vm391, %v4971, 0.0
        %5026 = vadd.xlane.f32.xlu0 %v5025
        %v5027 = vpop.xlane.xlu0 %5026
        %v5028 = vsel %vm391, %v4972, 0.0
        %5029 = vadd.xlane.f32.xlu0 %v5028
        %v5030 = vpop.xlane.xlu0 %5029
        %v5031 = vsel %vm391, %v4973, 0.0
        %5032 = vadd.xlane.f32.xlu0 %v5031
        %v5033 = vpop.xlane.xlu0 %5032
        %v5034 = vsel %vm391, %v4974, 0.0
        %5035 = vadd.xlane.f32.xlu0 %v5034
        %v5036 = vpop.xlane.xlu0 %5035
        %v5037 = vsel %vm391, %v4975, 0.0
        %5038 = vadd.xlane.f32.xlu0 %v5037
        %v5039 = vpop.xlane.xlu0 %5038
        %v5040 = vsel %vm391, %v4976, 0.0
        %5041 = vadd.xlane.f32.xlu0 %v5040
        %v5042 = vpop.xlane.xlu0 %5041
        %v5043 = vsel %vm391, %v4977, 0.0
        %5044 = vadd.xlane.f32.xlu0 %v5043
        %v5045 = vpop.xlane.xlu0 %5044
        %v5046 = vsel %vm391, %v4978, 0.0
        %5047 = vadd.xlane.f32.xlu0 %v5046
        %v5048 = vpop.xlane.xlu0 %5047
        %v5049 = vsel %vm391, %v4979, 0.0
        %5050 = vadd.xlane.f32.xlu0 %v5049
        %v5051 = vpop.xlane.xlu0 %5050
        %v5052 = vsel %vm391, %v4980, 0.0
        %5053 = vadd.xlane.f32.xlu0 %v5052
        %v5054 = vpop.xlane.xlu0 %5053
        %v5055 = vsel %vm391, %v4981, 0.0
        %5056 = vadd.xlane.f32.xlu0 %v5055
        %v5057 = vpop.xlane.xlu0 %5056
        %v5058 = vsel %vm391, %v4982, 0.0
        %5059 = vadd.xlane.f32.xlu0 %v5058
        %v5060 = vpop.xlane.xlu0 %5059
        %v5061 = vsel %vm391, %v4983, 0.0
        %5062 = vadd.xlane.f32.xlu0 %v5061
        %v5063 = vpop.xlane.xlu0 %5062
        %v5064 = vsel %vm391, %v4984, 0.0
        %5065 = vadd.xlane.f32.xlu0 %v5064
        %v5066 = vpop.xlane.xlu0 %5065
        %v5067 = vsel %vm391, %v4985, 0.0
        %5068 = vadd.xlane.f32.xlu0 %v5067
        %v5069 = vpop.xlane.xlu0 %5068
        %v5070 = vsel %vm391, %v4986, 0.0
        %5071 = vadd.xlane.f32.xlu0 %v5070
        %v5072 = vpop.xlane.xlu0 %5071
        %v5073 = vsel %vm391, %v4987, 0.0
        %5074 = vadd.xlane.f32.xlu0 %v5073
        %v5075 = vpop.xlane.xlu0 %5074
        %v5076 = vsel %vm391, %v4988, 0.0
        %5077 = vadd.xlane.f32.xlu0 %v5076
        %v5078 = vpop.xlane.xlu0 %5077
        %v5079 = vsel %vm391, %v4989, 0.0
        %5080 = vadd.xlane.f32.xlu0 %v5079
        %v5081 = vpop.xlane.xlu0 %5080
        %v5082 = vsel %vm391, %v4990, 0.0
        %5083 = vadd.xlane.f32.xlu0 %v5082
        %v5084 = vpop.xlane.xlu0 %5083
        %v5085 = vsel %vm391, %v4991, 0.0
        %5086 = vadd.xlane.f32.xlu0 %v5085
        %v5087 = vpop.xlane.xlu0 %5086
        %v5088 = vrcp.pop 32.0
        %v5089 = vmul.f32 %v4994, %v5088
        %v5090 = vmul.f32 %v4997, %v5088
        %v5091 = vmul.f32 %v5000, %v5088
        %v5092 = vmul.f32 %v5003, %v5088
        %v5093 = vmul.f32 %v5006, %v5088
        %v5094 = vmul.f32 %v5009, %v5088
        %v5095 = vmul.f32 %v5012, %v5088
        %v5096 = vmul.f32 %v5015, %v5088
        %v5097 = vmul.f32 %v5018, %v5088
        %v5098 = vmul.f32 %v5021, %v5088
        %v5099 = vmul.f32 %v5024, %v5088
        %v5100 = vmul.f32 %v5027, %v5088
        %v5101 = vmul.f32 %v5030, %v5088
        %v5102 = vmul.f32 %v5033, %v5088
        %v5103 = vmul.f32 %v5036, %v5088
        %v5104 = vmul.f32 %v5039, %v5088
        %v5105 = vmul.f32 %v5042, %v5088
        %v5106 = vmul.f32 %v5045, %v5088
        %v5107 = vmul.f32 %v5048, %v5088
        %v5108 = vmul.f32 %v5051, %v5088
        %v5109 = vmul.f32 %v5054, %v5088
        %v5110 = vmul.f32 %v5057, %v5088
        %v5111 = vmul.f32 %v5060, %v5088
        %v5112 = vmul.f32 %v5063, %v5088
        %v5113 = vmul.f32 %v5066, %v5088
        %v5114 = vmul.f32 %v5069, %v5088
        %v5115 = vmul.f32 %v5072, %v5088
        %v5116 = vmul.f32 %v5075, %v5088
        %v5117 = vmul.f32 %v5078, %v5088
        %v5118 = vmul.f32 %v5081, %v5088
        %v5119 = vmul.f32 %v5084, %v5088
        %v5120 = vmul.f32 %v5087, %v5088
        %v5121 = vsel %vm391, %v4960, -inf
        %5122 = vmax.xlane.f32.xlu0 %v5121
        %v5123 = vpop.xlane.xlu0 %5122
        %v5124 = vsel %vm391, %v4961, -inf
        %5125 = vmax.xlane.f32.xlu0 %v5124
        %v5126 = vpop.xlane.xlu0 %5125
        %v5127 = vsel %vm391, %v4962, -inf
        %5128 = vmax.xlane.f32.xlu0 %v5127
        %v5129 = vpop.xlane.xlu0 %5128
        %v5130 = vsel %vm391, %v4963, -inf
        %5131 = vmax.xlane.f32.xlu0 %v5130
        %v5132 = vpop.xlane.xlu0 %5131
        %v5133 = vsel %vm391, %v4964, -inf
        %5134 = vmax.xlane.f32.xlu0 %v5133
        %v5135 = vpop.xlane.xlu0 %5134
        %v5136 = vsel %vm391, %v4965, -inf
        %5137 = vmax.xlane.f32.xlu0 %v5136
        %v5138 = vpop.xlane.xlu0 %5137
        %v5139 = vsel %vm391, %v4966, -inf
        %5140 = vmax.xlane.f32.xlu0 %v5139
        %v5141 = vpop.xlane.xlu0 %5140
        %v5142 = vsel %vm391, %v4967, -inf
        %5143 = vmax.xlane.f32.xlu0 %v5142
        %v5144 = vpop.xlane.xlu0 %5143
        %v5145 = vsel %vm391, %v4968, -inf
        %5146 = vmax.xlane.f32.xlu0 %v5145
        %v5147 = vpop.xlane.xlu0 %5146
        %v5148 = vsel %vm391, %v4969, -inf
        %5149 = vmax.xlane.f32.xlu0 %v5148
        %v5150 = vpop.xlane.xlu0 %5149
        %v5151 = vsel %vm391, %v4970, -inf
        %5152 = vmax.xlane.f32.xlu0 %v5151
        %v5153 = vpop.xlane.xlu0 %5152
        %v5154 = vsel %vm391, %v4971, -inf
        %5155 = vmax.xlane.f32.xlu0 %v5154
        %v5156 = vpop.xlane.xlu0 %5155
        %v5157 = vsel %vm391, %v4972, -inf
        %5158 = vmax.xlane.f32.xlu0 %v5157
        %v5159 = vpop.xlane.xlu0 %5158
        %v5160 = vsel %vm391, %v4973, -inf
        %5161 = vmax.xlane.f32.xlu0 %v5160
        %v5162 = vpop.xlane.xlu0 %5161
        %v5163 = vsel %vm391, %v4974, -inf
        %5164 = vmax.xlane.f32.xlu0 %v5163
        %v5165 = vpop.xlane.xlu0 %5164
        %v5166 = vsel %vm391, %v4975, -inf
        %5167 = vmax.xlane.f32.xlu0 %v5166
        %v5168 = vpop.xlane.xlu0 %5167
        %v5169 = vsel %vm391, %v4976, -inf
        %5170 = vmax.xlane.f32.xlu0 %v5169
        %v5171 = vpop.xlane.xlu0 %5170
        %v5172 = vsel %vm391, %v4977, -inf
        %5173 = vmax.xlane.f32.xlu0 %v5172
        %v5174 = vpop.xlane.xlu0 %5173
        %v5175 = vsel %vm391, %v4978, -inf
        %5176 = vmax.xlane.f32.xlu0 %v5175
        %v5177 = vpop.xlane.xlu0 %5176
        %v5178 = vsel %vm391, %v4979, -inf
        %5179 = vmax.xlane.f32.xlu0 %v5178
        %v5180 = vpop.xlane.xlu0 %5179
        %v5181 = vsel %vm391, %v4980, -inf
        %5182 = vmax.xlane.f32.xlu0 %v5181
        %v5183 = vpop.xlane.xlu0 %5182
        %v5184 = vsel %vm391, %v4981, -inf
        %5185 = vmax.xlane.f32.xlu0 %v5184
        %v5186 = vpop.xlane.xlu0 %5185
        %v5187 = vsel %vm391, %v4982, -inf
        %5188 = vmax.xlane.f32.xlu0 %v5187
        %v5189 = vpop.xlane.xlu0 %5188
        %v5190 = vsel %vm391, %v4983, -inf
        %5191 = vmax.xlane.f32.xlu0 %v5190
        %v5192 = vpop.xlane.xlu0 %5191
        %v5193 = vsel %vm391, %v4984, -inf
        %5194 = vmax.xlane.f32.xlu0 %v5193
        %v5195 = vpop.xlane.xlu0 %5194
        %v5196 = vsel %vm391, %v4985, -inf
        %5197 = vmax.xlane.f32.xlu0 %v5196
        %v5198 = vpop.xlane.xlu0 %5197
        %v5199 = vsel %vm391, %v4986, -inf
        %5200 = vmax.xlane.f32.xlu0 %v5199
        %v5201 = vpop.xlane.xlu0 %5200
        %v5202 = vsel %vm391, %v4987, -inf
        %5203 = vmax.xlane.f32.xlu0 %v5202
        %v5204 = vpop.xlane.xlu0 %5203
        %v5205 = vsel %vm391, %v4988, -inf
        %5206 = vmax.xlane.f32.xlu0 %v5205
        %v5207 = vpop.xlane.xlu0 %5206
        %v5208 = vsel %vm391, %v4989, -inf
        %5209 = vmax.xlane.f32.xlu0 %v5208
        %v5210 = vpop.xlane.xlu0 %5209
        %v5211 = vsel %vm391, %v4990, -inf
        %5212 = vmax.xlane.f32.xlu0 %v5211
        %v5213 = vpop.xlane.xlu0 %5212
        %v5214 = vsel %vm391, %v4991, -inf
        %5215 = vmax.xlane.f32.xlu0 %v5214
        %v5216 = vpop.xlane.xlu0 %5215
        %vm5217 = vcmask 179200
        %5218 = vst.msk [vmem:[#allocation4] sm:$0xff] %vm5217, 0.0
        %5219 = vst.msk [vmem:[#allocation4 + $0x8] sm:$0xff] %vm5217, 0.0
        %vm5220 = vcmask 177152
        %5221 = vst.msk [vmem:[#allocation4 + $0x10] sm:$0x3f] %vm5220, 0.0
        %5222 = vst.msk [vmem:[#allocation4 + $0x18] sm:$0xff] %vm5217, 0.0
        %5223 = vst.msk [vmem:[#allocation4 + $0x20] sm:$0xff] %vm5217, 0.0
        %5224 = vst.msk [vmem:[#allocation4 + $0x28] sm:$0x3f] %vm5220, 0.0
        %v5257 = vlaneseq
        %v5258 = vand.u32 %v5257, 127
        %v5259 = vadd.s32 %v5258, 4294967293
        %v5260 = vlaneseq
        %v5261 = vshrl.u32 %v5260, 7
        %v5262 = vsub.s32 %v5259, %v5261
        %v5263 = vrot.slane %v5089, %v5262
        %v5264 = vadd.s32 %v5258, 4294967285
        %v5265 = vlaneseq
        %v5266 = vshrl.u32 %v5265, 7
        %v5267 = vsub.s32 %v5264, %v5266
        %v5268 = vrot.slane %v5090, %v5267
        %vm5269 = vcmask 154712
        %v5270 = vsel %vm5269, %v5268, %v5263
        %v5271 = vlaneseq
        %v5272 = vshrl.u32 %v5271, 7
        %v5273 = vsub.s32 %v5259, %v5272
        %v5274 = vrot.slane %v5091, %v5273
        %v5275 = vlaneseq
        %v5276 = vshrl.u32 %v5275, 7
        %v5277 = vsub.s32 %v5264, %v5276
        %v5278 = vrot.slane %v5092, %v5277
        %v5279 = vsel %vm5269, %v5278, %v5274
        %v5280 = vlaneseq
        %v5281 = vshrl.u32 %v5280, 7
        %v5282 = vsub.s32 %v5259, %v5281
        %v5283 = vrot.slane %v5093, %v5282
        %v5284 = vlaneseq
        %v5285 = vshrl.u32 %v5284, 7
        %v5286 = vsub.s32 %v5264, %v5285
        %v5287 = vrot.slane %v5094, %v5286
        %v5288 = vsel %vm5269, %v5287, %v5283
        %v5289 = vlaneseq
        %v5290 = vshrl.u32 %v5289, 7
        %v5291 = vsub.s32 %v5259, %v5290
        %v5292 = vrot.slane %v5095, %v5291
        %v5293 = vlaneseq
        %v5294 = vshrl.u32 %v5293, 7
        %v5295 = vsub.s32 %v5264, %v5294
        %v5296 = vrot.slane %v5096, %v5295
        %v5297 = vsel %vm5269, %v5296, %v5292
        %v5298 = vlaneseq
        %v5299 = vshrl.u32 %v5298, 7
        %v5300 = vsub.s32 %v5259, %v5299
        %v5301 = vrot.slane %v5097, %v5300
        %v5302 = vlaneseq
        %v5303 = vshrl.u32 %v5302, 7
        %v5304 = vsub.s32 %v5264, %v5303
        %v5305 = vrot.slane %v5098, %v5304
        %v5306 = vsel %vm5269, %v5305, %v5301
        %v5307 = vlaneseq
        %v5308 = vshrl.u32 %v5307, 7
        %v5309 = vsub.s32 %v5259, %v5308
        %v5310 = vrot.slane %v5099, %v5309
        %v5311 = vlaneseq
        %v5312 = vshrl.u32 %v5311, 7
        %v5313 = vsub.s32 %v5264, %v5312
        %v5314 = vrot.slane %v5100, %v5313
        %v5315 = vsel %vm5269, %v5314, %v5310
        %v5316 = vlaneseq
        %v5317 = vshrl.u32 %v5316, 7
        %v5318 = vsub.s32 %v5259, %v5317
        %v5319 = vrot.slane %v5101, %v5318
        %v5320 = vlaneseq
        %v5321 = vshrl.u32 %v5320, 7
        %v5322 = vsub.s32 %v5264, %v5321
        %v5323 = vrot.slane %v5102, %v5322
        %v5324 = vsel %vm5269, %v5323, %v5319
        %v5325 = vlaneseq
        %v5326 = vshrl.u32 %v5325, 7
        %v5327 = vsub.s32 %v5259, %v5326
        %v5328 = vrot.slane %v5103, %v5327
        %v5329 = vlaneseq
        %v5330 = vshrl.u32 %v5329, 7
        %v5331 = vsub.s32 %v5264, %v5330
        %v5332 = vrot.slane %v5104, %v5331
        %v5333 = vsel %vm5269, %v5332, %v5328
        %v5334 = vlaneseq
        %v5335 = vshrl.u32 %v5334, 7
        %v5336 = vsub.s32 %v5259, %v5335
        %v5337 = vrot.slane %v5105, %v5336
        %v5338 = vlaneseq
        %v5339 = vshrl.u32 %v5338, 7
        %v5340 = vsub.s32 %v5264, %v5339
        %v5341 = vrot.slane %v5106, %v5340
        %v5342 = vsel %vm5269, %v5341, %v5337
        %v5343 = vlaneseq
        %v5344 = vshrl.u32 %v5343, 7
        %v5345 = vsub.s32 %v5259, %v5344
        %v5346 = vrot.slane %v5107, %v5345
        %v5347 = vlaneseq
        %v5348 = vshrl.u32 %v5347, 7
        %v5349 = vsub.s32 %v5264, %v5348
        %v5350 = vrot.slane %v5108, %v5349
        %v5351 = vsel %vm5269, %v5350, %v5346
        %v5352 = vlaneseq
        %v5353 = vshrl.u32 %v5352, 7
        %v5354 = vsub.s32 %v5259, %v5353
        %v5355 = vrot.slane %v5109, %v5354
        %v5356 = vlaneseq
        %v5357 = vshrl.u32 %v5356, 7
        %v5358 = vsub.s32 %v5264, %v5357
        %v5359 = vrot.slane %v5110, %v5358
        %v5360 = vsel %vm5269, %v5359, %v5355
        %v5361 = vlaneseq
        %v5362 = vshrl.u32 %v5361, 7
        %v5363 = vsub.s32 %v5259, %v5362
        %v5364 = vrot.slane %v5111, %v5363
        %v5365 = vlaneseq
        %v5366 = vshrl.u32 %v5365, 7
        %v5367 = vsub.s32 %v5264, %v5366
        %v5368 = vrot.slane %v5112, %v5367
        %v5369 = vsel %vm5269, %v5368, %v5364
        %v5370 = vlaneseq
        %v5371 = vshrl.u32 %v5370, 7
        %v5372 = vsub.s32 %v5259, %v5371
        %v5373 = vrot.slane %v5113, %v5372
        %v5374 = vlaneseq
        %v5375 = vshrl.u32 %v5374, 7
        %v5376 = vsub.s32 %v5264, %v5375
        %v5377 = vrot.slane %v5114, %v5376
        %v5378 = vsel %vm5269, %v5377, %v5373
        %v5379 = vlaneseq
        %v5380 = vshrl.u32 %v5379, 7
        %v5381 = vsub.s32 %v5259, %v5380
        %v5382 = vrot.slane %v5115, %v5381
        %v5383 = vlaneseq
        %v5384 = vshrl.u32 %v5383, 7
        %v5385 = vsub.s32 %v5264, %v5384
        %v5386 = vrot.slane %v5116, %v5385
        %v5387 = vsel %vm5269, %v5386, %v5382
        %v5388 = vlaneseq
        %v5389 = vshrl.u32 %v5388, 7
        %v5390 = vsub.s32 %v5259, %v5389
        %v5391 = vrot.slane %v5117, %v5390
        %v5392 = vlaneseq
        %v5393 = vshrl.u32 %v5392, 7
        %v5394 = vsub.s32 %v5264, %v5393
        %v5395 = vrot.slane %v5118, %v5394
        %v5396 = vsel %vm5269, %v5395, %v5391
        %v5397 = vlaneseq
        %v5398 = vshrl.u32 %v5397, 7
        %v5399 = vsub.s32 %v5259, %v5398
        %v5400 = vrot.slane %v5119, %v5399
        %v5401 = vlaneseq
        %v5402 = vshrl.u32 %v5401, 7
        %v5403 = vsub.s32 %v5264, %v5402
        %v5404 = vrot.slane %v5120, %v5403
        %v5405 = vsel %vm5269, %v5404, %v5400
        %vm5406 = vcmask 1041409
        %v5407 = vsel %vm5406, %v5279, %v5270
        %vm5408 = vcmask 1042434
        %v5409 = vsel %vm5408, %v5288, %v5407
        %vm5410 = vcmask 1043459
        %v5411 = vsel %vm5410, %v5297, %v5409
        %vm5412 = vcmask 1044484
        %v5413 = vsel %vm5412, %v5306, %v5411
        %vm5414 = vcmask 1045509
        %v5415 = vsel %vm5414, %v5315, %v5413
        %vm5416 = vcmask 1046534
        %v5417 = vsel %vm5416, %v5324, %v5415
        %vm5418 = vcmask 1047559
        %v5419 = vsel %vm5418, %v5333, %v5417
        %v5420 = vsel %vm5406, %v5351, %v5342
        %v5421 = vsel %vm5408, %v5360, %v5420
        %v5422 = vsel %vm5410, %v5369, %v5421
        %v5423 = vsel %vm5412, %v5378, %v5422
        %v5424 = vsel %vm5414, %v5387, %v5423
        %v5425 = vsel %vm5416, %v5396, %v5424
        %v5426 = vsel %vm5418, %v5405, %v5425
        %vm5429 = vcmask 154648
        %5430 = vst.msk [vmem:[#allocation4 + $0x3] sm:$0xff] %vm5429, %v5419
        %5431 = vst.msk [vmem:[#allocation4 + $0xb] sm:$0xff] %vm5429, %v5426
        %v5464 = vlaneseq
        %v5465 = vshrl.u32 %v5464, 7
        %v5466 = vsub.s32 %v5259, %v5465
        %v5467 = vrot.slane %v5123, %v5466
        %v5468 = vlaneseq
        %v5469 = vshrl.u32 %v5468, 7
        %v5470 = vsub.s32 %v5264, %v5469
        %v5471 = vrot.slane %v5126, %v5470
        %v5472 = vsel %vm5269, %v5471, %v5467
        %v5473 = vlaneseq
        %v5474 = vshrl.u32 %v5473, 7
        %v5475 = vsub.s32 %v5259, %v5474
        %v5476 = vrot.slane %v5129, %v5475
        %v5477 = vlaneseq
        %v5478 = vshrl.u32 %v5477, 7
        %v5479 = vsub.s32 %v5264, %v5478
        %v5480 = vrot.slane %v5132, %v5479
        %v5481 = vsel %vm5269, %v5480, %v5476
        %v5482 = vlaneseq
        %v5483 = vshrl.u32 %v5482, 7
        %v5484 = vsub.s32 %v5259, %v5483
        %v5485 = vrot.slane %v5135, %v5484
        %v5486 = vlaneseq
        %v5487 = vshrl.u32 %v5486, 7
        %v5488 = vsub.s32 %v5264, %v5487
        %v5489 = vrot.slane %v5138, %v5488
        %v5490 = vsel %vm5269, %v5489, %v5485
        %v5491 = vlaneseq
        %v5492 = vshrl.u32 %v5491, 7
        %v5493 = vsub.s32 %v5259, %v5492
        %v5494 = vrot.slane %v5141, %v5493
        %v5495 = vlaneseq
        %v5496 = vshrl.u32 %v5495, 7
        %v5497 = vsub.s32 %v5264, %v5496
        %v5498 = vrot.slane %v5144, %v5497
        %v5499 = vsel %vm5269, %v5498, %v5494
        %v5500 = vlaneseq
        %v5501 = vshrl.u32 %v5500, 7
        %v5502 = vsub.s32 %v5259, %v5501
        %v5503 = vrot.slane %v5147, %v5502
        %v5504 = vlaneseq
        %v5505 = vshrl.u32 %v5504, 7
        %v5506 = vsub.s32 %v5264, %v5505
        %v5507 = vrot.slane %v5150, %v5506
        %v5508 = vsel %vm5269, %v5507, %v5503
        %v5509 = vlaneseq
        %v5510 = vshrl.u32 %v5509, 7
        %v5511 = vsub.s32 %v5259, %v5510
        %v5512 = vrot.slane %v5153, %v5511
        %v5513 = vlaneseq
        %v5514 = vshrl.u32 %v5513, 7
        %v5515 = vsub.s32 %v5264, %v5514
        %v5516 = vrot.slane %v5156, %v5515
        %v5517 = vsel %vm5269, %v5516, %v5512
        %v5518 = vlaneseq
        %v5519 = vshrl.u32 %v5518, 7
        %v5520 = vsub.s32 %v5259, %v5519
        %v5521 = vrot.slane %v5159, %v5520
        %v5522 = vlaneseq
        %v5523 = vshrl.u32 %v5522, 7
        %v5524 = vsub.s32 %v5264, %v5523
        %v5525 = vrot.slane %v5162, %v5524
        %v5526 = vsel %vm5269, %v5525, %v5521
        %v5527 = vlaneseq
        %v5528 = vshrl.u32 %v5527, 7
        %v5529 = vsub.s32 %v5259, %v5528
        %v5530 = vrot.slane %v5165, %v5529
        %v5531 = vlaneseq
        %v5532 = vshrl.u32 %v5531, 7
        %v5533 = vsub.s32 %v5264, %v5532
        %v5534 = vrot.slane %v5168, %v5533
        %v5535 = vsel %vm5269, %v5534, %v5530
        %v5536 = vlaneseq
        %v5537 = vshrl.u32 %v5536, 7
        %v5538 = vsub.s32 %v5259, %v5537
        %v5539 = vrot.slane %v5171, %v5538
        %v5540 = vlaneseq
        %v5541 = vshrl.u32 %v5540, 7
        %v5542 = vsub.s32 %v5264, %v5541
        %v5543 = vrot.slane %v5174, %v5542
        %v5544 = vsel %vm5269, %v5543, %v5539
        %v5545 = vlaneseq
        %v5546 = vshrl.u32 %v5545, 7
        %v5547 = vsub.s32 %v5259, %v5546
        %v5548 = vrot.slane %v5177, %v5547
        %v5549 = vlaneseq
        %v5550 = vshrl.u32 %v5549, 7
        %v5551 = vsub.s32 %v5264, %v5550
        %v5552 = vrot.slane %v5180, %v5551
        %v5553 = vsel %vm5269, %v5552, %v5548
        %v5554 = vlaneseq
        %v5555 = vshrl.u32 %v5554, 7
        %v5556 = vsub.s32 %v5259, %v5555
        %v5557 = vrot.slane %v5183, %v5556
        %v5558 = vlaneseq
        %v5559 = vshrl.u32 %v5558, 7
        %v5560 = vsub.s32 %v5264, %v5559
        %v5561 = vrot.slane %v5186, %v5560
        %v5562 = vsel %vm5269, %v5561, %v5557
        %v5563 = vlaneseq
        %v5564 = vshrl.u32 %v5563, 7
        %v5565 = vsub.s32 %v5259, %v5564
        %v5566 = vrot.slane %v5189, %v5565
        %v5567 = vlaneseq
        %v5568 = vshrl.u32 %v5567, 7
        %v5569 = vsub.s32 %v5264, %v5568
        %v5570 = vrot.slane %v5192, %v5569
        %v5571 = vsel %vm5269, %v5570, %v5566
        %v5572 = vlaneseq
        %v5573 = vshrl.u32 %v5572, 7
        %v5574 = vsub.s32 %v5259, %v5573
        %v5575 = vrot.slane %v5195, %v5574
        %v5576 = vlaneseq
        %v5577 = vshrl.u32 %v5576, 7
        %v5578 = vsub.s32 %v5264, %v5577
        %v5579 = vrot.slane %v5198, %v5578
        %v5580 = vsel %vm5269, %v5579, %v5575
        %v5581 = vlaneseq
        %v5582 = vshrl.u32 %v5581, 7
        %v5583 = vsub.s32 %v5259, %v5582
        %v5584 = vrot.slane %v5201, %v5583
        %v5585 = vlaneseq
        %v5586 = vshrl.u32 %v5585, 7
        %v5587 = vsub.s32 %v5264, %v5586
        %v5588 = vrot.slane %v5204, %v5587
        %v5589 = vsel %vm5269, %v5588, %v5584
        %v5590 = vlaneseq
        %v5591 = vshrl.u32 %v5590, 7
        %v5592 = vsub.s32 %v5259, %v5591
        %v5593 = vrot.slane %v5207, %v5592
        %v5594 = vlaneseq
        %v5595 = vshrl.u32 %v5594, 7
        %v5596 = vsub.s32 %v5264, %v5595
        %v5597 = vrot.slane %v5210, %v5596
        %v5598 = vsel %vm5269, %v5597, %v5593
        %v5599 = vlaneseq
        %v5600 = vshrl.u32 %v5599, 7
        %v5601 = vsub.s32 %v5259, %v5600
        %v5602 = vrot.slane %v5213, %v5601
        %v5603 = vlaneseq
        %v5604 = vshrl.u32 %v5603, 7
        %v5605 = vsub.s32 %v5264, %v5604
        %v5606 = vrot.slane %v5216, %v5605
        %v5607 = vsel %vm5269, %v5606, %v5602
        %v5608 = vsel %vm5406, %v5481, %v5472
        %v5609 = vsel %vm5408, %v5490, %v5608
        %v5610 = vsel %vm5410, %v5499, %v5609
        %v5611 = vsel %vm5412, %v5508, %v5610
        %v5612 = vsel %vm5414, %v5517, %v5611
        %v5613 = vsel %vm5416, %v5526, %v5612
        %v5614 = vsel %vm5418, %v5535, %v5613
        %v5615 = vsel %vm5406, %v5553, %v5544
        %v5616 = vsel %vm5408, %v5562, %v5615
        %v5617 = vsel %vm5410, %v5571, %v5616
        %v5618 = vsel %vm5412, %v5580, %v5617
        %v5619 = vsel %vm5414, %v5589, %v5618
        %v5620 = vsel %vm5416, %v5598, %v5619
        %v5621 = vsel %vm5418, %v5607, %v5620
        %s5624 = scalar_lea.vmem [#allocation4], 24
        %5625 = vst.msk [vmem:[%s5624 + $0x3] sm:$0xff] %vm5429, %v5614
        %5626 = vst.msk [vmem:[%s5624 + $0xb] sm:$0xff] %vm5429, %v5621
        %v5627 = vld [vmem:[#allocation4] sm:$0xff]
        %v5628 = vld [vmem:[#allocation4 + $0x8] sm:$0xff]
        %5629 = vst.msk [vmem:[#allocation5] sm:$0xff] %vm5217, %v5627
        %5630 = vst.msk [vmem:[#allocation5 + $0x18] sm:$0xff] %vm5217, %v5628
        %v5631 = vld [vmem:[#allocation4 + $0x1] sm:$0xff]
        %v5632 = vld [vmem:[#allocation4 + $0x9] sm:$0xff]
        %5635 = vrot.lane.b32.xlu0 %v5631, 22
        %v5636 = vpop.permute.xlu0 %5635
        %5637 = vrot.lane.b32.xlu0 %v5632, 22
        %v5638 = vpop.permute.xlu0 %5637
        %vm5641 = vcmask 359600
        %5642 = vst.msk [vmem:[#allocation5] sm:$0xff] %vm5641, %v5636
        %5643 = vst.msk [vmem:[#allocation5 + $0x18] sm:$0xff] %vm5641, %v5638
        %v5644 = vld [vmem:[#allocation4 + $0x2] sm:$0xff]
        %v5645 = vld [vmem:[#allocation4 + $0xa] sm:$0xff]
        %5648 = vrot.lane.b32.xlu0 %v5644, 44
        %v5649 = vpop.permute.xlu0 %5648
        %5650 = vrot.lane.b32.xlu0 %v5645, 44
        %v5651 = vpop.permute.xlu0 %5650
        %vm5654 = vcmask 540000
        %5655 = vst.msk [vmem:[#allocation5] sm:$0xff] %vm5654, %v5649
        %5656 = vst.msk [vmem:[#allocation5 + $0x18] sm:$0xff] %vm5654, %v5651
        %v5657 = vld [vmem:[#allocation4 + $0x3] sm:$0xff]
        %v5658 = vld [vmem:[#allocation4 + $0xb] sm:$0xff]
        %5661 = vrot.lane.b32.xlu0 %v5657, 66
        %v5662 = vpop.permute.xlu0 %5661
        %5663 = vrot.lane.b32.xlu0 %v5658, 66
        %v5664 = vpop.permute.xlu0 %5663
        %vm5667 = vcmask 720400
        %5668 = vst.msk [vmem:[#allocation5] sm:$0xff] %vm5667, %v5662
        %5669 = vst.msk [vmem:[#allocation5 + $0x18] sm:$0xff] %vm5667, %v5664
        %v5670 = vld [vmem:[#allocation4 + $0x4] sm:$0xff]
        %v5671 = vld [vmem:[#allocation4 + $0xc] sm:$0xff]
        %5674 = vrot.lane.b32.xlu0 %v5670, 88
        %v5675 = vpop.permute.xlu0 %5674
        %5676 = vrot.lane.b32.xlu0 %v5671, 88
        %v5677 = vpop.permute.xlu0 %5676
        %vm5680 = vcmask 900800
        %5681 = vst.msk [vmem:[#allocation5] sm:$0xff] %vm5680, %v5675
        %5682 = vst.msk [vmem:[#allocation5 + $0x18] sm:$0xff] %vm5680, %v5677
        %v5683 = vld [vmem:[#allocation4 + $0x5] sm:$0xff]
        %v5684 = vld [vmem:[#allocation4 + $0xd] sm:$0xff]
        %5687 = vrot.lane.b32.xlu0 %v5683, 110
        %v5688 = vpop.permute.xlu0 %5687
        %5689 = vrot.lane.b32.xlu0 %v5684, 110
        %v5690 = vpop.permute.xlu0 %5689
        %vm5693 = vcmask 1048432
        %5694 = vst.msk [vmem:[#allocation5] sm:$0xff] %vm5693, %v5688
        %vm5695 = vcmask 31744
        %5696 = vst.msk [vmem:[#allocation5 + $0x8] sm:$0xff] %vm5695, %v5688
        %5697 = vst.msk [vmem:[#allocation5 + $0x18] sm:$0xff] %vm5693, %v5690
        %5698 = vst.msk [vmem:[#allocation5 + $0x20] sm:$0xff] %vm5695, %v5690
        %v5699 = vld [vmem:[#allocation4 + $0x6] sm:$0xff]
        %v5700 = vld [vmem:[#allocation4 + $0xe] sm:$0xff]
        %5703 = vrot.lane.b32.xlu0 %v5699, 4
        %v5704 = vpop.permute.xlu0 %5703
        %5705 = vrot.lane.b32.xlu0 %v5700, 4
        %v5706 = vpop.permute.xlu0 %5705
        %vm5709 = vcmask 212000
        %5710 = vst.msk [vmem:[#allocation5 + $0x8] sm:$0xff] %vm5709, %v5704
        %5711 = vst.msk [vmem:[#allocation5 + $0x20] sm:$0xff] %vm5709, %v5706
        %v5712 = vld [vmem:[%s5624] sm:$0xff]
        %v5713 = vld [vmem:[%s5624 + $0x8] sm:$0xff]
        %5716 = vrot.lane.b32.xlu0 %v5712, 26
        %v5717 = vpop.permute.xlu0 %5716
        %5718 = vrot.lane.b32.xlu0 %v5713, 26
        %v5719 = vpop.permute.xlu0 %5718
        %vm5722 = vcmask 392400
        %5723 = vst.msk [vmem:[#allocation5 + $0x8] sm:$0xff] %vm5722, %v5717
        %5724 = vst.msk [vmem:[#allocation5 + $0x20] sm:$0xff] %vm5722, %v5719
        %v5725 = vld [vmem:[%s5624 + $0x1] sm:$0xff]
        %v5726 = vld [vmem:[%s5624 + $0x9] sm:$0xff]
        %5729 = vrot.lane.b32.xlu0 %v5725, 48
        %v5730 = vpop.permute.xlu0 %5729
        %5731 = vrot.lane.b32.xlu0 %v5726, 48
        %v5732 = vpop.permute.xlu0 %5731
        %vm5735 = vcmask 572800
        %5736 = vst.msk [vmem:[#allocation5 + $0x8] sm:$0xff] %vm5735, %v5730
        %5737 = vst.msk [vmem:[#allocation5 + $0x20] sm:$0xff] %vm5735, %v5732
        %v5738 = vld [vmem:[%s5624 + $0x2] sm:$0xff]
        %v5739 = vld [vmem:[%s5624 + $0xa] sm:$0xff]
        %5742 = vrot.lane.b32.xlu0 %v5738, 70
        %v5743 = vpop.permute.xlu0 %5742
        %5744 = vrot.lane.b32.xlu0 %v5739, 70
        %v5745 = vpop.permute.xlu0 %5744
        %vm5748 = vcmask 753200
        %5749 = vst.msk [vmem:[#allocation5 + $0x8] sm:$0xff] %vm5748, %v5743
        %5750 = vst.msk [vmem:[#allocation5 + $0x20] sm:$0xff] %vm5748, %v5745
        %v5751 = vld [vmem:[%s5624 + $0x3] sm:$0xff]
        %v5752 = vld [vmem:[%s5624 + $0xb] sm:$0xff]
        %5755 = vrot.lane.b32.xlu0 %v5751, 92
        %v5756 = vpop.permute.xlu0 %5755
        %5757 = vrot.lane.b32.xlu0 %v5752, 92
        %v5758 = vpop.permute.xlu0 %5757
        %vm5761 = vcmask 933600
        %5762 = vst.msk [vmem:[#allocation5 + $0x8] sm:$0xff] %vm5761, %v5756
        %5763 = vst.msk [vmem:[#allocation5 + $0x20] sm:$0xff] %vm5761, %v5758
        %v5764 = vld [vmem:[%s5624 + $0x4] sm:$0xff]
        %v5765 = vld [vmem:[%s5624 + $0xc] sm:$0xff]
        %5768 = vrot.lane.b32.xlu0 %v5764, 114
        %v5769 = vpop.permute.xlu0 %5768
        %5770 = vrot.lane.b32.xlu0 %v5765, 114
        %v5771 = vpop.permute.xlu0 %5770
        %vm5774 = vcmask 1048464
        %5775 = vst.msk [vmem:[#allocation5 + $0x8] sm:$0xff] %vm5774, %v5769
        %vm5776 = vcmask 64512
        %5777 = vst.msk [vmem:[#allocation5 + $0x10] sm:$0xff] %vm5776, %v5769
        %5778 = vst.msk [vmem:[#allocation5 + $0x20] sm:$0xff] %vm5774, %v5771
        %5779 = vst.msk [vmem:[#allocation5 + $0x28] sm:$0xff] %vm5776, %v5771
        %v5780 = vld [vmem:[%s5624 + $0x5] sm:$0xff]
        %v5781 = vld [vmem:[%s5624 + $0xd] sm:$0xff]
        %5784 = vrot.lane.b32.xlu0 %v5780, 8
        %v5785 = vpop.permute.xlu0 %5784
        %5786 = vrot.lane.b32.xlu0 %v5781, 8
        %v5787 = vpop.permute.xlu0 %5786
        %vm5790 = vcmask 244800
        %5791 = vst.msk [vmem:[#allocation5 + $0x10] sm:$0xff] %vm5790, %v5785
        %5792 = vst.msk [vmem:[#allocation5 + $0x28] sm:$0xff] %vm5790, %v5787
        %v5793 = vld [vmem:[%s5624 + $0x6] sm:$0xff]
        %v5794 = vld [vmem:[%s5624 + $0xe] sm:$0xff]
        %5797 = vrot.lane.b32.xlu0 %v5793, 30
        %v5798 = vpop.permute.xlu0 %5797
        %5799 = vrot.lane.b32.xlu0 %v5794, 30
        %v5800 = vpop.permute.xlu0 %5799
        %vm5803 = vcmask 425200
        %5804 = vst.msk [vmem:[#allocation5 + $0x10] sm:$0xff] %vm5803, %v5798
        %5805 = vst.msk [vmem:[#allocation5 + $0x28] sm:$0xff] %vm5803, %v5800
        %v5806 = vld [vmem:[#allocation5] sm:$0xff]
        %v5807 = vld [vmem:[#allocation5 + $0x8] sm:$0xff]
        %v5808 = vld [vmem:[#allocation5 + $0x10] sm:$0xff]
        %v5809 = vld [vmem:[#allocation5 + $0x18] sm:$0xff]
        %v5810 = vld [vmem:[#allocation5 + $0x20] sm:$0xff]
        %v5811 = vld [vmem:[#allocation5 + $0x28] sm:$0xff]
        %v5812 = vld [vmem:[%s9] sm:$0xff]
        %v5813 = vld [vmem:[%s9 + $0x8] sm:$0xff]
        %v5814 = vld [vmem:[%s9 + $0x10] sm:$0xff]
        %v5815 = vld [vmem:[%s9 + $0x18] sm:$0xff]
        %v5816 = vld [vmem:[%s9 + $0x20] sm:$0xff]
        %v5817 = vld [vmem:[%s9 + $0x28] sm:$0xff]
        %v5818 = vld [vmem:[%s9 + $0x30] sm:$0xff]
        %v5819 = vld [vmem:[%s9 + $0x38] sm:$0xff]
        %v5820 = vld [vmem:[%s9 + $0x40] sm:$0xff]
        %v5821 = vld [vmem:[%s9 + $0x48] sm:$0xff]
        %v5822 = vld [vmem:[%s9 + $0x50] sm:$0xff]
        %v5823 = vld [vmem:[%s9 + $0x58] sm:$0xff]
        %v5824 = vld [vmem:[%s9 + $0x60] sm:$0xff]
        %v5825 = vld [vmem:[%s9 + $0x68] sm:$0xff]
        %v5826 = vld [vmem:[%s9 + $0x70] sm:$0xff]
        %v5827 = vld [vmem:[%s9 + $0x78] sm:$0xff]
        %v5828 = vld [vmem:[%s9 + $0x80] sm:$0xff]
        %v5829 = vld [vmem:[%s9 + $0x88] sm:$0xff]
        %v5830 = vld [vmem:[%s9 + $0x90] sm:$0xff]
        %v5831 = vld [vmem:[%s9 + $0x98] sm:$0xff]
        %v5832 = vld [vmem:[%s9 + $0xa0] sm:$0xff]
        %v5833 = vld [vmem:[%s9 + $0xa8] sm:$0xff]
        %v5834 = vld [vmem:[%s9 + $0xb0] sm:$0xff]
        %v5835 = vld [vmem:[%s9 + $0xb8] sm:$0xff]
        %v5836 = vld [vmem:[%s9 + $0xc0] sm:$0xff]
        %v5837 = vld [vmem:[%s9 + $0xc8] sm:$0xff]
        %v5838 = vld [vmem:[%s9 + $0xd0] sm:$0xff]
        %v5839 = vld [vmem:[%s9 + $0xd8] sm:$0xff]
        %v5840 = vld [vmem:[%s9 + $0xe0] sm:$0xff]
        %v5841 = vld [vmem:[%s9 + $0xe8] sm:$0xff]
        %v5842 = vld [vmem:[%s9 + $0xf0] sm:$0xff]
        %v5843 = vld [vmem:[%s9 + $0xf8] sm:$0xff]
        %v5844 = vld [vmem:[%s9 + $0x100] sm:$0xff]
        %v5845 = vld [vmem:[%s9 + $0x108] sm:$0xff]
        %v5846 = vld [vmem:[%s9 + $0x110] sm:$0xff]
        %v5847 = vld [vmem:[%s9 + $0x118] sm:$0xff]
        %v5848 = vld [vmem:[%s9 + $0x120] sm:$0xff]
        %v5849 = vld [vmem:[%s9 + $0x128] sm:$0xff]
        %v5850 = vld [vmem:[%s9 + $0x130] sm:$0xf]
        %vm5851 = vcmask 424960
        %v5853 = vsel %vm5851, %v5808, 0
        %v5856 = vsel %vm5851, %v5811, 0
        %vm5858 = vcmask 1043456
        %v5860 = vsel %vm5858, %v5850, 0
        %5862 = vmatprep.subr.mxu0 0.0
        %5863 = vmatpush1.msra.mxu0 %v5827
        %5864 = vmatprep.subr.mxu0 0.0
        %5865 = vmatpush1.msra.mxu0 %v5826
        %5866 = vmatprep.subr.mxu0 0.0
        %5867 = vmatpush1.msra.mxu0 %v5825
        %5868 = vmatprep.subr.mxu0 0.0
        %5869 = vmatpush1.msra.mxu0 %v5824
        %5870 = vmatprep.subr.mxu0 0.0
        %5871 = vmatpush1.msra.mxu0 %v5823
        %5872 = vmatprep.subr.mxu0 0.0
        %5873 = vmatpush1.msra.mxu0 %v5822
        %5874 = vmatprep.subr.mxu0 0.0
        %5875 = vmatpush1.msra.mxu0 %v5821
        %5876 = vmatprep.subr.mxu0 0.0
        %5877 = vmatpush1.msra.mxu0 %v5820
        %5878 = vmatprep.subr.mxu0 0.0
        %5879 = vmatpush1.msra.mxu0 %v5819
        %5880 = vmatprep.subr.mxu0 0.0
        %5881 = vmatpush1.msra.mxu0 %v5818
        %5882 = vmatprep.subr.mxu0 0.0
        %5883 = vmatpush1.msra.mxu0 %v5817
        %5884 = vmatprep.subr.mxu0 0.0
        %5885 = vmatpush1.msra.mxu0 %v5816
        %5886 = vmatprep.subr.mxu0 0.0
        %5887 = vmatpush1.msra.mxu0 %v5815
        %5888 = vmatprep.subr.mxu0 0.0
        %5889 = vmatpush1.msra.mxu0 %v5814
        %5890 = vmatprep.subr.mxu0 0.0
        %5891 = vmatpush1.msra.mxu0 %v5813
        %5892 = vmatprep.subr.mxu0 0.0
        %5893 = vmatpush1.msra.mxu0 %v5812
        %5894 = vmatprep.subr.mxu0 0.0
        %5895 = vmatpush2.msra.mxu0 %v5843
        %5896 = vmatprep.subr.mxu0 0.0
        %5897 = vmatpush2.msra.mxu0 %v5842
        %5898 = vmatprep.subr.mxu0 0.0
        %5899 = vmatpush2.msra.mxu0 %v5841
        %5900 = vmatprep.subr.mxu0 0.0
        %5901 = vmatpush2.msra.mxu0 %v5840
        %5902 = vmatprep.subr.mxu0 0.0
        %5903 = vmatpush2.msra.mxu0 %v5839
        %5904 = vmatprep.subr.mxu0 0.0
        %5905 = vmatpush2.msra.mxu0 %v5838
        %5906 = vmatprep.subr.mxu0 0.0
        %5907 = vmatpush2.msra.mxu0 %v5837
        %5908 = vmatprep.subr.mxu0 0.0
        %5909 = vmatpush2.msra.mxu0 %v5836
        %5910 = vmatprep.subr.mxu0 0.0
        %5911 = vmatpush2.msra.mxu0 %v5835
        %5912 = vmatprep.subr.mxu0 0.0
        %5913 = vmatpush2.msra.mxu0 %v5834
        %5914 = vmatprep.subr.mxu0 0.0
        %5915 = vmatpush2.msra.mxu0 %v5833
        %5916 = vmatprep.subr.mxu0 0.0
        %5917 = vmatpush2.msra.mxu0 %v5832
        %5918 = vmatprep.subr.mxu0 0.0
        %5919 = vmatpush2.msra.mxu0 %v5831
        %5920 = vmatprep.subr.mxu0 0.0
        %5921 = vmatpush2.msra.mxu0 %v5830
        %5922 = vmatprep.subr.mxu0 0.0
        %5923 = vmatpush2.msra.mxu0 %v5829
        %5924 = vmatprep.subr.mxu0 0.0
        %5925 = vmatpush2.msra.mxu0 %v5828
        %5926 = vmatprep.mubr.f32.mxu0 %v5807
        %5927 = vmatmul.mubr.f32.gmra.mxu0 %v5806
        %v5928 = vpop.f32.mrf.mxu0
        %v5929 = vadd.f32 0.0, %v5928
        %v5930 = vpop.f32.mrf.mxu0
        %5931 = vmatprep.mubr.f32.mxu0 %v5810
        %5932 = vmatmul.mubr.f32.gmra.mxu0 %v5809
        %v5933 = vpop.f32.mrf.mxu0
        %v5934 = vadd.f32 0.0, %v5933
        %v5935 = vpop.f32.mrf.mxu0
        %5936 = vdwg.mxu0
        %5937 = vmatprep.subr.mxu0 0.0
        %5938 = vmatpush1.msra.mxu0 0.0
        %5939 = vmatprep.subr.mxu0 0.0
        %5940 = vmatpush1.msra.mxu0 0.0
        %5941 = vmatprep.subr.mxu0 0.0
        %5942 = vmatpush1.msra.mxu0 0.0
        %5943 = vmatprep.subr.mxu0 0.0
        %5944 = vmatpush1.msra.mxu0 0.0
        %5945 = vmatprep.subr.mxu0 0.0
        %5946 = vmatpush1.msra.mxu0 0.0
        %5947 = vmatprep.subr.mxu0 0.0
        %5948 = vmatpush1.msra.mxu0 0.0
        %5949 = vmatprep.subr.mxu0 0.0
        %5950 = vmatpush1.msra.mxu0 0.0
        %5951 = vmatprep.subr.mxu0 0.0
        %5952 = vmatpush1.msra.mxu0 0.0
        %5953 = vmatprep.subr.mxu0 0.0
        %5954 = vmatpush1.msra.mxu0 0.0
        %5955 = vmatprep.subr.mxu0 0.0
        %5956 = vmatpush1.msra.mxu0 %v5860
        %5957 = vmatprep.subr.mxu0 0.0
        %5958 = vmatpush1.msra.mxu0 %v5849
        %5959 = vmatprep.subr.mxu0 0.0
        %5960 = vmatpush1.msra.mxu0 %v5848
        %5961 = vmatprep.subr.mxu0 0.0
        %5962 = vmatpush1.msra.mxu0 %v5847
        %5963 = vmatprep.subr.mxu0 0.0
        %5964 = vmatpush1.msra.mxu0 %v5846
        %5965 = vmatprep.subr.mxu0 0.0
        %5966 = vmatpush1.msra.mxu0 %v5845
        %5967 = vmatprep.subr.mxu0 0.0
        %5968 = vmatpush1.msra.mxu0 %v5844
        %5969 = vmatprep.subr.mxu0 0.0
        %5970 = vmatpush2.msra.mxu0 0.0
        %5971 = vmatprep.subr.mxu0 0.0
        %5972 = vmatpush2.msra.mxu0 0.0
        %5973 = vmatprep.subr.mxu0 0.0
        %5974 = vmatpush2.msra.mxu0 0.0
        %5975 = vmatprep.subr.mxu0 0.0
        %5976 = vmatpush2.msra.mxu0 0.0
        %5977 = vmatprep.subr.mxu0 0.0
        %5978 = vmatpush2.msra.mxu0 0.0
        %5979 = vmatprep.subr.mxu0 0.0
        %5980 = vmatpush2.msra.mxu0 0.0
        %5981 = vmatprep.subr.mxu0 0.0
        %5982 = vmatpush2.msra.mxu0 0.0
        %5983 = vmatprep.subr.mxu0 0.0
        %5984 = vmatpush2.msra.mxu0 0.0
        %5985 = vmatprep.subr.mxu0 0.0
        %5986 = vmatpush2.msra.mxu0 0.0
        %5987 = vmatprep.subr.mxu0 0.0
        %5988 = vmatpush2.msra.mxu0 0.0
        %5989 = vmatprep.subr.mxu0 0.0
        %5990 = vmatpush2.msra.mxu0 0.0
        %5991 = vmatprep.subr.mxu0 0.0
        %5992 = vmatpush2.msra.mxu0 0.0
        %5993 = vmatprep.subr.mxu0 0.0
        %5994 = vmatpush2.msra.mxu0 0.0
        %5995 = vmatprep.subr.mxu0 0.0
        %5996 = vmatpush2.msra.mxu0 0.0
        %5997 = vmatprep.subr.mxu0 0.0
        %5998 = vmatpush2.msra.mxu0 0.0
        %5999 = vmatprep.subr.mxu0 0.0
        %6000 = vmatpush2.msra.mxu0 0.0
        %6001 = vmatprep.mubr.f32.mxu0 0.0
        %6002 = vmatmul.mubr.f32.gmra.mxu0 %v5853
        %v6003 = vpop.f32.mrf.mxu0
        %v6004 = vadd.f32 %v5929, %v6003
        %v6005 = vpop.f32.mrf.mxu0
        %6006 = vmatprep.mubr.f32.mxu0 0.0
        %6007 = vmatmul.mubr.f32.gmra.mxu0 %v5856
        %v6008 = vpop.f32.mrf.mxu0
        %v6009 = vadd.f32 %v5934, %v6008
        %v6010 = vpop.f32.mrf.mxu0
        %6011 = vdwg.mxu0
        %v6012 = vxor.u32 %v6004, 2147483648
        %v6013 = vxor.u32 %v6009, 2147483648
        %v6014 = vmul.f32 %v6012, 1.442695
        %v6015 = vpow.pop %v6014
        %v6016 = vmul.f32 %v6013, 1.442695
        %v6017 = vpow.pop %v6016
        %v6018 = vadd.f32 %v6015, 1.0
        %v6019 = vadd.f32 %v6017, 1.0
        %v6020 = vrcp.pop %v6018
        %v6021 = vmul.f32 1.0, %v6020
        %v6022 = vrcp.pop %v6019
        %v6023 = vmul.f32 1.0, %v6022
        %v6024 = vlaneseq
        %v6025 = vshrl.u32 %v6024, 7
        %v6026 = vsub.s32 0, %v6025
        %v6027 = vrot.slane %v6021, %v6026
        %6029 = vbcast.lane.b32.xlu0 %v6027, 256
        %v6030 = vpop.permute.xlu0 %6029
        %s6032 = sor.u32 256, 8
        %6033 = vbcast.lane.b32.xlu0 %v6027, %s6032
        %v6034 = vpop.permute.xlu0 %6033
        %v6035 = vlaneseq
        %v6036 = vshrl.u32 %v6035, 7
        %v6037 = vsub.s32 1, %v6036
        %v6038 = vrot.slane %v6021, %v6037
        %6040 = vbcast.lane.b32.xlu0 %v6038, 256
        %v6041 = vpop.permute.xlu0 %6040
        %s6043 = sor.u32 256, 8
        %6044 = vbcast.lane.b32.xlu0 %v6038, %s6043
        %v6045 = vpop.permute.xlu0 %6044
        %v6046 = vlaneseq
        %v6047 = vshrl.u32 %v6046, 7
        %v6048 = vsub.s32 2, %v6047
        %v6049 = vrot.slane %v6021, %v6048
        %6051 = vbcast.lane.b32.xlu0 %v6049, 256
        %v6052 = vpop.permute.xlu0 %6051
        %s6054 = sor.u32 256, 8
        %6055 = vbcast.lane.b32.xlu0 %v6049, %s6054
        %v6056 = vpop.permute.xlu0 %6055
        %v6057 = vlaneseq
        %v6058 = vshrl.u32 %v6057, 7
        %v6059 = vsub.s32 3, %v6058
        %v6060 = vrot.slane %v6021, %v6059
        %6062 = vbcast.lane.b32.xlu0 %v6060, 256
        %v6063 = vpop.permute.xlu0 %6062
        %s6065 = sor.u32 256, 8
        %6066 = vbcast.lane.b32.xlu0 %v6060, %s6065
        %v6067 = vpop.permute.xlu0 %6066
        %v6068 = vlaneseq
        %v6069 = vshrl.u32 %v6068, 7
        %v6070 = vsub.s32 4, %v6069
        %v6071 = vrot.slane %v6021, %v6070
        %6073 = vbcast.lane.b32.xlu0 %v6071, 256
        %v6074 = vpop.permute.xlu0 %6073
        %s6076 = sor.u32 256, 8
        %6077 = vbcast.lane.b32.xlu0 %v6071, %s6076
        %v6078 = vpop.permute.xlu0 %6077
        %v6079 = vlaneseq
        %v6080 = vshrl.u32 %v6079, 7
        %v6081 = vsub.s32 5, %v6080
        %v6082 = vrot.slane %v6021, %v6081
        %6084 = vbcast.lane.b32.xlu0 %v6082, 256
        %v6085 = vpop.permute.xlu0 %6084
        %s6087 = sor.u32 256, 8
        %6088 = vbcast.lane.b32.xlu0 %v6082, %s6087
        %v6089 = vpop.permute.xlu0 %6088
        %v6090 = vlaneseq
        %v6091 = vshrl.u32 %v6090, 7
        %v6092 = vsub.s32 6, %v6091
        %v6093 = vrot.slane %v6021, %v6092
        %6095 = vbcast.lane.b32.xlu0 %v6093, 256
        %v6096 = vpop.permute.xlu0 %6095
        %s6098 = sor.u32 256, 8
        %6099 = vbcast.lane.b32.xlu0 %v6093, %s6098
        %v6100 = vpop.permute.xlu0 %6099
        %v6101 = vlaneseq
        %v6102 = vshrl.u32 %v6101, 7
        %v6103 = vsub.s32 7, %v6102
        %v6104 = vrot.slane %v6021, %v6103
        %6106 = vbcast.lane.b32.xlu0 %v6104, 256
        %v6107 = vpop.permute.xlu0 %6106
        %s6109 = sor.u32 256, 8
        %6110 = vbcast.lane.b32.xlu0 %v6104, %s6109
        %v6111 = vpop.permute.xlu0 %6110
        %v6112 = vlaneseq
        %v6113 = vshrl.u32 %v6112, 7
        %v6114 = vsub.s32 0, %v6113
        %v6115 = vrot.slane %v6023, %v6114
        %6117 = vbcast.lane.b32.xlu0 %v6115, 256
        %v6118 = vpop.permute.xlu0 %6117
        %s6120 = sor.u32 256, 8
        %6121 = vbcast.lane.b32.xlu0 %v6115, %s6120
        %v6122 = vpop.permute.xlu0 %6121
        %v6123 = vlaneseq
        %v6124 = vshrl.u32 %v6123, 7
        %v6125 = vsub.s32 1, %v6124
        %v6126 = vrot.slane %v6023, %v6125
        %6128 = vbcast.lane.b32.xlu0 %v6126, 256
        %v6129 = vpop.permute.xlu0 %6128
        %s6131 = sor.u32 256, 8
        %6132 = vbcast.lane.b32.xlu0 %v6126, %s6131
        %v6133 = vpop.permute.xlu0 %6132
        %v6134 = vlaneseq
        %v6135 = vshrl.u32 %v6134, 7
        %v6136 = vsub.s32 2, %v6135
        %v6137 = vrot.slane %v6023, %v6136
        %6139 = vbcast.lane.b32.xlu0 %v6137, 256
        %v6140 = vpop.permute.xlu0 %6139
        %s6142 = sor.u32 256, 8
        %6143 = vbcast.lane.b32.xlu0 %v6137, %s6142
        %v6144 = vpop.permute.xlu0 %6143
        %v6145 = vlaneseq
        %v6146 = vshrl.u32 %v6145, 7
        %v6147 = vsub.s32 3, %v6146
        %v6148 = vrot.slane %v6023, %v6147
        %6150 = vbcast.lane.b32.xlu0 %v6148, 256
        %v6151 = vpop.permute.xlu0 %6150
        %s6153 = sor.u32 256, 8
        %6154 = vbcast.lane.b32.xlu0 %v6148, %s6153
        %v6155 = vpop.permute.xlu0 %6154
        %v6156 = vlaneseq
        %v6157 = vshrl.u32 %v6156, 7
        %v6158 = vsub.s32 4, %v6157
        %v6159 = vrot.slane %v6023, %v6158
        %6161 = vbcast.lane.b32.xlu0 %v6159, 256
        %v6162 = vpop.permute.xlu0 %6161
        %s6164 = sor.u32 256, 8
        %6165 = vbcast.lane.b32.xlu0 %v6159, %s6164
        %v6166 = vpop.permute.xlu0 %6165
        %v6167 = vlaneseq
        %v6168 = vshrl.u32 %v6167, 7
        %v6169 = vsub.s32 5, %v6168
        %v6170 = vrot.slane %v6023, %v6169
        %6172 = vbcast.lane.b32.xlu0 %v6170, 256
        %v6173 = vpop.permute.xlu0 %6172
        %s6175 = sor.u32 256, 8
        %6176 = vbcast.lane.b32.xlu0 %v6170, %s6175
        %v6177 = vpop.permute.xlu0 %6176
        %v6178 = vlaneseq
        %v6179 = vshrl.u32 %v6178, 7
        %v6180 = vsub.s32 6, %v6179
        %v6181 = vrot.slane %v6023, %v6180
        %6183 = vbcast.lane.b32.xlu0 %v6181, 256
        %v6184 = vpop.permute.xlu0 %6183
        %s6186 = sor.u32 256, 8
        %6187 = vbcast.lane.b32.xlu0 %v6181, %s6186
        %v6188 = vpop.permute.xlu0 %6187
        %v6189 = vlaneseq
        %v6190 = vshrl.u32 %v6189, 7
        %v6191 = vsub.s32 7, %v6190
        %v6192 = vrot.slane %v6023, %v6191
        %6194 = vbcast.lane.b32.xlu0 %v6192, 256
        %v6195 = vpop.permute.xlu0 %6194
        %s6197 = sor.u32 256, 8
        %6198 = vbcast.lane.b32.xlu0 %v6192, %s6197
        %v6199 = vpop.permute.xlu0 %6198
        %v6200 = vmul.f32 %v4960, %v6030
        %v6201 = vmul.f32 %v4961, %v6034
        %v6202 = vmul.f32 %v4962, %v6041
        %v6203 = vmul.f32 %v4963, %v6045
        %v6204 = vmul.f32 %v4964, %v6052
        %v6205 = vmul.f32 %v4965, %v6056
        %v6206 = vmul.f32 %v4966, %v6063
        %v6207 = vmul.f32 %v4967, %v6067
        %v6208 = vmul.f32 %v4968, %v6074
        %v6209 = vmul.f32 %v4969, %v6078
        %v6210 = vmul.f32 %v4970, %v6085
        %v6211 = vmul.f32 %v4971, %v6089
        %v6212 = vmul.f32 %v4972, %v6096
        %v6213 = vmul.f32 %v4973, %v6100
        %v6214 = vmul.f32 %v4974, %v6107
        %v6215 = vmul.f32 %v4975, %v6111
        %v6216 = vmul.f32 %v4976, %v6118
        %v6217 = vmul.f32 %v4977, %v6122
        %v6218 = vmul.f32 %v4978, %v6129
        %v6219 = vmul.f32 %v4979, %v6133
        %v6220 = vmul.f32 %v4980, %v6140
        %v6221 = vmul.f32 %v4981, %v6144
        %v6222 = vmul.f32 %v4982, %v6151
        %v6223 = vmul.f32 %v4983, %v6155
        %v6224 = vmul.f32 %v4984, %v6162
        %v6225 = vmul.f32 %v4985, %v6166
        %v6226 = vmul.f32 %v4986, %v6173
        %v6227 = vmul.f32 %v4987, %v6177
        %v6228 = vmul.f32 %v4988, %v6184
        %v6229 = vmul.f32 %v4989, %v6188
        %v6230 = vmul.f32 %v4990, %v6195
        %v6231 = vmul.f32 %v4991, %v6199
        %v6232 = vld [vmem:[%s810 + $0x1] sm:$0xff]
        %v6233 = vld [vmem:[%s810 + $0x9] sm:$0xff]
        %v6234 = vld [vmem:[%s810 + $0x19] sm:$0xff]
        %v6235 = vld [vmem:[%s810 + $0x21] sm:$0xff]
        %v6236 = vld [vmem:[%s810 + $0x31] sm:$0xff]
        %v6237 = vld [vmem:[%s810 + $0x39] sm:$0xff]
        %v6238 = vld [vmem:[%s810 + $0x49] sm:$0xff]
        %v6239 = vld [vmem:[%s810 + $0x51] sm:$0xff]
        %v6240 = vld [vmem:[%s810 + $0x61] sm:$0xff]
        %v6241 = vld [vmem:[%s810 + $0x69] sm:$0xff]
        %v6242 = vld [vmem:[%s810 + $0x79] sm:$0xff]
        %v6243 = vld [vmem:[%s810 + $0x81] sm:$0xff]
        %v6244 = vld [vmem:[%s810 + $0x91] sm:$0xff]
        %v6245 = vld [vmem:[%s810 + $0x99] sm:$0xff]
        %v6246 = vld [vmem:[%s810 + $0xa9] sm:$0xff]
        %v6247 = vld [vmem:[%s810 + $0xb1] sm:$0xff]
        %v6248 = vld [vmem:[%s810 + $0xc1] sm:$0xff]
        %v6249 = vld [vmem:[%s810 + $0xc9] sm:$0xff]
        %v6250 = vld [vmem:[%s810 + $0xd9] sm:$0xff]
        %v6251 = vld [vmem:[%s810 + $0xe1] sm:$0xff]
        %v6252 = vld [vmem:[%s810 + $0xf1] sm:$0xff]
        %v6253 = vld [vmem:[%s810 + $0xf9] sm:$0xff]
        %v6254 = vld [vmem:[%s810 + $0x109] sm:$0xff]
        %v6255 = vld [vmem:[%s810 + $0x111] sm:$0xff]
        %v6256 = vld [vmem:[%s810 + $0x121] sm:$0xff]
        %v6257 = vld [vmem:[%s810 + $0x129] sm:$0xff]
        %v6258 = vld [vmem:[%s810 + $0x139] sm:$0xff]
        %v6259 = vld [vmem:[%s810 + $0x141] sm:$0xff]
        %v6260 = vld [vmem:[%s810 + $0x151] sm:$0xff]
        %v6261 = vld [vmem:[%s810 + $0x159] sm:$0xff]
        %v6262 = vld [vmem:[%s810 + $0x169] sm:$0xff]
        %v6263 = vld [vmem:[%s810 + $0x171] sm:$0xff]
        %v6264 = vadd.f32 %v6200, %v6232
        %v6265 = vadd.f32 %v6201, %v6233
        %v6266 = vadd.f32 %v6202, %v6234
        %v6267 = vadd.f32 %v6203, %v6235
        %v6268 = vadd.f32 %v6204, %v6236
        %v6269 = vadd.f32 %v6205, %v6237
        %v6270 = vadd.f32 %v6206, %v6238
        %v6271 = vadd.f32 %v6207, %v6239
        %v6272 = vadd.f32 %v6208, %v6240
        %v6273 = vadd.f32 %v6209, %v6241
        %v6274 = vadd.f32 %v6210, %v6242
        %v6275 = vadd.f32 %v6211, %v6243
        %v6276 = vadd.f32 %v6212, %v6244
        %v6277 = vadd.f32 %v6213, %v6245
        %v6278 = vadd.f32 %v6214, %v6246
        %v6279 = vadd.f32 %v6215, %v6247
        %v6280 = vadd.f32 %v6216, %v6248
        %v6281 = vadd.f32 %v6217, %v6249
        %v6282 = vadd.f32 %v6218, %v6250
        %v6283 = vadd.f32 %v6219, %v6251
        %v6284 = vadd.f32 %v6220, %v6252
        %v6285 = vadd.f32 %v6221, %v6253
        %v6286 = vadd.f32 %v6222, %v6254
        %v6287 = vadd.f32 %v6223, %v6255
        %v6288 = vadd.f32 %v6224, %v6256
        %v6289 = vadd.f32 %v6225, %v6257
        %v6290 = vadd.f32 %v6226, %v6258
        %v6291 = vadd.f32 %v6227, %v6259
        %v6292 = vadd.f32 %v6228, %v6260
        %v6293 = vadd.f32 %v6229, %v6261
        %v6294 = vadd.f32 %v6230, %v6262
        %v6295 = vadd.f32 %v6231, %v6263
        %v6296 = vmax.f32 %v6264, 0.0
        %v6297 = vmax.f32 %v6265, 0.0
        %v6298 = vmax.f32 %v6266, 0.0
        %v6299 = vmax.f32 %v6267, 0.0
        %v6300 = vmax.f32 %v6268, 0.0
        %v6301 = vmax.f32 %v6269, 0.0
        %v6302 = vmax.f32 %v6270, 0.0
        %v6303 = vmax.f32 %v6271, 0.0
        %v6304 = vmax.f32 %v6272, 0.0
        %v6305 = vmax.f32 %v6273, 0.0
        %v6306 = vmax.f32 %v6274, 0.0
        %v6307 = vmax.f32 %v6275, 0.0
        %v6308 = vmax.f32 %v6276, 0.0
        %v6309 = vmax.f32 %v6277, 0.0
        %v6310 = vmax.f32 %v6278, 0.0
        %v6311 = vmax.f32 %v6279, 0.0
        %v6312 = vmax.f32 %v6280, 0.0
        %v6313 = vmax.f32 %v6281, 0.0
        %v6314 = vmax.f32 %v6282, 0.0
        %v6315 = vmax.f32 %v6283, 0.0
        %v6316 = vmax.f32 %v6284, 0.0
        %v6317 = vmax.f32 %v6285, 0.0
        %v6318 = vmax.f32 %v6286, 0.0
        %v6319 = vmax.f32 %v6287, 0.0
        %v6320 = vmax.f32 %v6288, 0.0
        %v6321 = vmax.f32 %v6289, 0.0
        %v6322 = vmax.f32 %v6290, 0.0
        %v6323 = vmax.f32 %v6291, 0.0
        %v6324 = vmax.f32 %v6292, 0.0
        %v6325 = vmax.f32 %v6293, 0.0
        %v6326 = vmax.f32 %v6294, 0.0
        %v6327 = vmax.f32 %v6295, 0.0
        %6328 = vst.msk [vmem:[%s352] sm:$0xff] %vm391, %v6296
        %6329 = vst.msk [vmem:[%s352 + $0x8] sm:$0xff] %vm391, %v6297
        %6330 = vst.msk [vmem:[%s352 + $0x10] sm:$0xff] %vm391, %v6298
        %6331 = vst.msk [vmem:[%s352 + $0x18] sm:$0xff] %vm391, %v6299
        %6332 = vst.msk [vmem:[%s352 + $0x20] sm:$0xff] %vm391, %v6300
        %6333 = vst.msk [vmem:[%s352 + $0x28] sm:$0xff] %vm391, %v6301
        %6334 = vst.msk [vmem:[%s352 + $0x30] sm:$0xff] %vm391, %v6302
        %6335 = vst.msk [vmem:[%s352 + $0x38] sm:$0xff] %vm391, %v6303
        %6336 = vst.msk [vmem:[%s352 + $0x40] sm:$0xff] %vm391, %v6304
        %6337 = vst.msk [vmem:[%s352 + $0x48] sm:$0xff] %vm391, %v6305
        %6338 = vst.msk [vmem:[%s352 + $0x50] sm:$0xff] %vm391, %v6306
        %6339 = vst.msk [vmem:[%s352 + $0x58] sm:$0xff] %vm391, %v6307
        %6340 = vst.msk [vmem:[%s352 + $0x60] sm:$0xff] %vm391, %v6308
        %6341 = vst.msk [vmem:[%s352 + $0x68] sm:$0xff] %vm391, %v6309
        %6342 = vst.msk [vmem:[%s352 + $0x70] sm:$0xff] %vm391, %v6310
        %6343 = vst.msk [vmem:[%s352 + $0x78] sm:$0xff] %vm391, %v6311
        %6344 = vst.msk [vmem:[%s352 + $0x80] sm:$0xff] %vm391, %v6312
        %6345 = vst.msk [vmem:[%s352 + $0x88] sm:$0xff] %vm391, %v6313
        %6346 = vst.msk [vmem:[%s352 + $0x90] sm:$0xff] %vm391, %v6314
        %6347 = vst.msk [vmem:[%s352 + $0x98] sm:$0xff] %vm391, %v6315
        %6348 = vst.msk [vmem:[%s352 + $0xa0] sm:$0xff] %vm391, %v6316
        %6349 = vst.msk [vmem:[%s352 + $0xa8] sm:$0xff] %vm391, %v6317
        %6350 = vst.msk [vmem:[%s352 + $0xb0] sm:$0xff] %vm391, %v6318
        %6351 = vst.msk [vmem:[%s352 + $0xb8] sm:$0xff] %vm391, %v6319
        %6352 = vst.msk [vmem:[%s352 + $0xc0] sm:$0xff] %vm391, %v6320
        %6353 = vst.msk [vmem:[%s352 + $0xc8] sm:$0xff] %vm391, %v6321
        %6354 = vst.msk [vmem:[%s352 + $0xd0] sm:$0xff] %vm391, %v6322
        %6355 = vst.msk [vmem:[%s352 + $0xd8] sm:$0xff] %vm391, %v6323
        %6356 = vst.msk [vmem:[%s352 + $0xe0] sm:$0xff] %vm391, %v6324
        %6357 = vst.msk [vmem:[%s352 + $0xe8] sm:$0xff] %vm391, %v6325
        %6358 = vst.msk [vmem:[%s352 + $0xf0] sm:$0xff] %vm391, %v6326
        %6359 = vst.msk [vmem:[%s352 + $0xf8] sm:$0xff] %vm391, %v6327
        %s6360 = sand.u32 %s247, 1
        %s6361 = scalar_lea.sflag [#allocation7], %s6360
        %s6362 = sand.u32 %s247, 1
        %s6363 = smul.addr %s6362, 256
        %s6364 = scalar_lea.vmem [#allocation6], %s6363
        // Predicated region
        $region61: #{tpu_custom_call.1} parent=59 // pred_check
          %p6365 = pneg %p257
        $region62: #{tpu_custom_call.1} parent=59 // pred_check_branch
          %6367 = sbr.rel (%p6365) target = $region64
        $region63: #{tpu_custom_call.1} parent=59 // pred_region
          %s6369 = ssub.s32 4096, 4096
          %6370 = vsyncadd %s6361, %s6369
          %s6371 = smul.addr %s24, 32
          %s6372 = smul.addr %s6371, 128
          %s6373 = scalar_lea.hbm %s10, %s6372
          %s6374 = sshll.u32 %s6364, 4
          %s6375 = int_to_ptr.vmem [resolvable:$true] %s6374
          %6380 = dma.vmem_to_hbm [thread:$0]  %s6375, 4096, %s6373, %s6361, 128, 128, 8
        $region64: #{tpu_custom_call.1} parent=59 // pred_fallthru
          _
      $region60: #{tpu_custom_call.1} parent=5 // pred_fallthru
        _
      %p6381 = scmp.le.s32.totalorder 2, %s19
      // Predicated region
      $region65: #{tpu_custom_call.1} parent=5 // pred_check
        %p6382 = pneg %p6381
      $region66: #{tpu_custom_call.1} parent=5 // pred_check_branch
        %6384 = sbr.rel (%p6382) target = $region68
      $region67: #{tpu_custom_call.1} parent=5 // pred_region
        %s6385 = ssub.s32 %s19, 2
        // Predicated region
        $region69: #{tpu_custom_call.1} parent=67 // pred_check
          %p6386 = pneg %p263
        $region70: #{tpu_custom_call.1} parent=67 // pred_check_branch
          %6388 = sbr.rel (%p6386) target = $region72
        $region71: #{tpu_custom_call.1} parent=67 // pred_region
          %s6389 = sand.u32 %s248, 1
          %s6390 = scalar_lea.sflag [#allocation7], %s6389
          %s6391 = sand.u32 %s248, 1
          %s6392 = smul.addr %s6391, 256
          %s6393 = scalar_lea.vmem [#allocation6], %s6392
          %6394 = dma.done %s6390, 4096
        $region72: #{tpu_custom_call.1} parent=67 // pred_fallthru
          _
      $region68: #{tpu_custom_call.1} parent=5 // pred_fallthru
        _
    $region6: #{tpu_custom_call.1} parent=1 // loop_footer
      %s23 = sadd.s32 1, %s19
    $region7: #{tpu_custom_call.1} parent=1 // loop_footer_branch
      %18 = sbr.rel target = $region3
    $region8: #{tpu_custom_call.1} parent=1 // loop_exit
      _
    %6395 = vsyncpa [#allocation7], 1
    %s6396 = scalar_lea.sflag [#allocation7], 1
    %6397 = vsyncpa %s6396, 1

</llo_original>
